<compile_context>
chip_gen: v6e
topology: v6e:2x2x1
jax: 0.10.0
libtpu: 0.0.40
codegen_flags: <defaults>
</compile_context>

<pallas_src>
import functools

import jax
import jax.numpy as jnp
import numpy as np
from jax.experimental import pallas as pl
from jax.experimental.pallas import tpu as pltpu

HIDDEN = 64      # Conv-4 channel width
LANE = 128       # TPU lane width


def _round_up(v, m):
    return ((v + m - 1) // m) * m


def _block_dims(spatial):
    """(H, W, Wp) for conv blocks 2..4 (block 1 is handled via wrapper-side im2col)."""
    s = spatial // 2
    dims = []
    for _ in range(3):
        dims.append((s, s, s + 2))      # Wp = W + 2 exactly: no dead padding columns
        s //= 2
    return tuple(dims), s               # s = final spatial side after the last pool


# ------------------------------ fused Pallas kernel ---------------------------------


def _conv_bn_relu_slab(pad_ref, w_ref, s_ref, b_ref, y_ref, *, bs, H, W, Wp, tm):
    """3x3 SAME conv over a batch-stacked padded plane, fused BN(eval) + ReLU.

    pad_ref: (bs*(H+2)*Wp + 8, Cin) f32; image b's padded plane starts at flat row
             b*(H+2)*Wp; borders are zero, interiors hold the activations.
    y_ref:   f32 scratch; output of image b at (h, w) lands at flat row
             b*(H+2)*Wp + h*Wp + w.  Rows straddling image boundaries and the pad
             columns carry junk and are never read by the pooling.

    The 9 taps accumulate in registers per <=tm-row chunk; each output element is
    stored exactly once, with the epilogue already applied.
    """
    P = (H + 2) * Wp
    m_total = (bs - 1) * P + H * Wp
    scale = s_ref[...]
    bias = b_ref[...]
    m0 = 0
    while m0 < m_total:
        m = min(tm, m_total - m0)
        acc = None
        for t in range(9):
            dy, dx = divmod(t, 3)
            off = m0 + dy * Wp + dx
            d = jnp.dot(pad_ref[off:off + m, :].astype(jnp.bfloat16), w_ref[t],
                        preferred_element_type=jnp.float32)
            acc = d if acc is None else acc + d
        y_ref[m0:m0 + m, :] = jnp.maximum(acc * scale + bias, 0.0)
        m0 += m


def _pooled_rows(y_ref, base, Wo, Wp):
    """(Wo, C) f32: 2x2 stride-2 max pool over the two plane rows starting at `base`."""
    if Wo == 1:
        r00 = y_ref[base:base + 1, :]
        r01 = y_ref[base + 1:base + 2, :]
        r10 = y_ref[base + Wp:base + Wp + 1, :]
        r11 = y_ref[base + Wp + 1:base + Wp + 2, :]
    else:
        r00 = y_ref[pl.ds(base, Wo, stride=2), :]
        r01 = y_ref[pl.ds(base + 1, Wo, stride=2), :]
        r10 = y_ref[pl.ds(base + Wp, Wo, stride=2), :]
        r11 = y_ref[pl.ds(base + Wp + 1, Wo, stride=2), :]
    return jnp.maximum(jnp.maximum(r00, r01), jnp.maximum(r10, r11))


def simpleshot_kernel(x1_ref, w1_ref, s1_ref, b1_ref,
                      w2_ref, s2_ref, b2_ref,
                      w3_ref, s3_ref, b3_ref,
                      w4_ref, s4_ref, b4_ref,
                      fcw_ref, fcb_ref,
                      o_ref,
                      pad2_ref, pad3_ref, pad4_ref, y_ref, feats_ref,
                      *, bs, spatial, dims, tm):
    pads = (pad2_ref, pad3_ref, pad4_ref)
    blk_w = (w2_ref, w3_ref, w4_ref)
    blk_s = (s2_ref, s3_ref, s4_ref)
    blk_b = (b2_ref, b3_ref, b4_ref)

    # Zero the padded planes (only the borders actually need it; the interiors are fully
    # overwritten below).  Planes are trimmed to Wp = W+2, so this is a small clear.
    for p in pads:
        p[...] = jnp.zeros_like(p)

    # -- Block 1: prepacked im2col -> one (S*S, 32) @ (32, 64) MXU matmul per image ----
    S = spatial
    H2, _, Wp2 = dims[0]
    P2 = (H2 + 2) * Wp2
    s1 = s1_ref[...]
    b1 = b1_ref[...]
    for b in range(bs):
        a1 = jnp.dot(x1_ref[b], w1_ref[...], preferred_element_type=jnp.float32)
        y_ref[0:S * S, :] = jnp.maximum(a1 * s1 + b1, 0.0)
        for h2 in range(S // 2):                   # 2x2/2 max pool -> pad2 interior
            pooled = _pooled_rows(y_ref, 2 * h2 * S, S // 2, S)
            dst = b * P2 + (h2 + 1) * Wp2 + 1
            pad2_ref[dst:dst + S // 2, :] = pooled

    # -- Blocks 2 & 3: batch-stacked slab conv, pool into the next padded plane --------
    for k in range(2):
        H, W, Wp = dims[k]
        P = (H + 2) * Wp
        Hn, Wn, Wpn = dims[k + 1]
        Pn = (Hn + 2) * Wpn
        _conv_bn_relu_slab(pads[k], blk_w[k], blk_s[k], blk_b[k], y_ref,
                           bs=bs, H=H, W=W, Wp=Wp, tm=tm)
        Wo = W // 2
        for b in range(bs):
            for h2 in range(H // 2):
                pooled = _pooled_rows(y_ref, b * P + 2 * h2 * Wp, Wo, Wp)
                dst = b * Pn + (h2 + 1) * Wpn + 1
                pads[k + 1][dst:dst + Wo, :] = pooled

    # -- Block 4: slab conv, pool straight into per-image feature rows -----------------
    H, W, Wp = dims[2]
    P = (H + 2) * Wp
    _conv_bn_relu_slab(pads[2], blk_w[2], blk_s[2], blk_b[2], y_ref,
                       bs=bs, H=H, W=W, Wp=Wp, tm=tm)
    Wo = W // 2
    for b in range(bs):
        for h2 in range(H // 2):
            pooled = _pooled_rows(y_ref, b * P + 2 * h2 * Wp, Wo, Wp)
            for w2 in range(Wo):
                r = h2 * Wo + w2
                feats_ref[b:b + 1, r * HIDDEN:(r + 1) * HIDDEN] = pooled[w2:w2 + 1, :]

    # -- FC head: one (bs, p4*64) @ (p4*64, ncls_pad) matmul, lane-dense output store --
    o_ref[...] = (jnp.dot(feats_ref[...].astype(jnp.bfloat16), fcw_ref[...],
                          preferred_element_type=jnp.float32) + fcb_ref[...])


# --------------------------------- JAX wrapper ---------------------------------------


def simpleshot_forward(kparams, x_nchw, *, num_classes, images_per_step=8, tm=256):
    """PyTorch-style NCHW batch -> (N, num_classes) logits via one fused pallas_call."""
    x = jnp.transpose(x_nchw, (0, 2, 3, 1)).astype(jnp.float32)   # NHWC at the boundary
    n, spatial, _, cin = x.shape
    assert cin == 3 and spatial % 16 == 0
    dims, final = _block_dims(spatial)
    p4 = final * final
    ncls_pad = kparams["fc_w"].shape[-1]
    assert kparams["fc_w"].shape[0] == p4 * HIDDEN

    bs = max(1, min(images_per_step, n))              # images per grid step
    n_pad = _round_up(n, bs)
    if n_pad != n:
        x = jnp.pad(x, ((0, n_pad - n), (0, 0), (0, 0), (0, 0)))

    # Block-1 im2col as one cheap XLA transform (the image is a few KB): the 3-channel
    # data never enters the kernel.  (n, S, S, 3) -> (n, S*S, 27) -> pad K to 32, bf16.
    k1p = kparams["w1"].shape[0]
    xp = jnp.pad(x, ((0, 0), (1, 1), (1, 1), (0, 0)))
    cols = [xp[:, dy:dy + spatial, dx:dx + spatial, :]
            for dy in range(3) for dx in range(3)]
    x1 = jnp.concatenate(cols, axis=-1).reshape(n_pad, spatial * spatial, 9 * cin)
    x1 = jnp.pad(x1, ((0, 0), (0, 0), (0, k1p - 9 * cin))).astype(jnp.bfloat16)

    const2 = lambda i: (0, 0)
    const3 = lambda i: (0, 0, 0)
    in_specs = [pl.BlockSpec((bs, spatial * spatial, k1p), lambda i: (i, 0, 0)),
                pl.BlockSpec(kparams["w1"].shape, const2),
                pl.BlockSpec(kparams["s1"].shape, const2),
                pl.BlockSpec(kparams["b1"].shape, const2)]
    args = [x1, kparams["w1"], kparams["s1"], kparams["b1"]]
    for blk in kparams["blocks"]:
        in_specs += [pl.BlockSpec(blk["w"].shape, const3),
                     pl.BlockSpec(blk["scale"].shape, const2),
                     pl.BlockSpec(blk["bias"].shape, const2)]
        args += [blk["w"], blk["scale"], blk["bias"]]
    in_specs += [pl.BlockSpec(kparams["fc_w"].shape, const2),
                 pl.BlockSpec(kparams["fc_b"].shape, const2)]
    args += [kparams["fc_w"], kparams["fc_b"]]

    scratch_shapes = [
        pltpu.VMEM((bs * (h + 2) * wp + 8, HIDDEN), jnp.float32) for h, _, wp in dims]
    p2 = (dims[0][0] + 2) * dims[0][2]
    y_rows = max(spatial * spatial, bs * p2)
    scratch_shapes.append(pltpu.VMEM((y_rows, HIDDEN), jnp.float32))      # conv output
    scratch_shapes.append(pltpu.VMEM((bs, p4 * HIDDEN), jnp.float32))     # FC features

    out = pl.pallas_call(
        functools.partial(simpleshot_kernel, bs=bs, spatial=spatial, dims=dims, tm=tm),
        out_shape=jax.ShapeDtypeStruct((n_pad, ncls_pad), jnp.float32),
        grid=(n_pad // bs,),
        in_specs=in_specs,
        out_specs=pl.BlockSpec((bs, ncls_pad), lambda i: (i, 0)),
        scratch_shapes=scratch_shapes,
        compiler_params=pltpu.CompilerParams(
            dimension_semantics=("parallel",)),        # v7x: grid steps split across TCs
    )(*args)
    return out[:n, :num_classes]


# -------------------------- params + pure-JAX reference ------------------------------


def init_params(key, *, input_dim, num_classes, hidden=HIDDEN, eps=1e-5):
    """Random Conv-4 + BN(eval stats) + Linear parameters (all f32)."""
    blocks = []
    cin = 3
    for _ in range(4):
        key, kw, kg, kb, km, kv = jax.random.split(key, 6)
        std = (2.0 / (9 * cin)) ** 0.5
        w_hwio = std * jax.random.normal(kw, (3, 3, cin, hidden), jnp.float32)
        gamma = 1.0 + 0.1 * jax.random.normal(kg, (hidden,), jnp.float32)
        beta = 0.1 * jax.random.normal(kb, (hidden,), jnp.float32)
        rmean = 0.1 * jax.random.normal(km, (hidden,), jnp.float32)
        rvar = 1.0 + 0.1 * jnp.abs(jax.random.normal(kv, (hidden,), jnp.float32))
        scale = gamma / jnp.sqrt(rvar + eps)   # folded eval-mode BatchNorm
        bias = beta - rmean * scale
        blocks.append({"w_hwio": w_hwio, "scale": scale, "bias": bias})
        cin = hidden
    feat_dim = hidden * (input_dim // 16) ** 2     # four 2x2 max-pools
    key, kfw, kfb = jax.random.split(key, 3)
    fc_w = (1.0 / feat_dim) ** 0.5 * jax.random.normal(
        kfw, (feat_dim, num_classes), jnp.float32)
    fc_b = 0.1 * jax.random.normal(kfb, (num_classes,), jnp.float32)
    return {"blocks": blocks, "fc_w": fc_w, "fc_b": fc_b}


def pack_params(params, hidden=HIDDEN):
    """Repack the f32 reference params into the fused kernel's layout / dtypes."""
    blk1 = params["blocks"][0]
    cin = blk1["w_hwio"].shape[2]
    k1p = _round_up(9 * cin, 8)                               # 27 -> 32 contraction dims
    w1 = blk1["w_hwio"].reshape(9 * cin, hidden)              # tap-major, cin innermost
    w1 = jnp.pad(w1, ((0, k1p - 9 * cin), (0, 0))).astype(jnp.bfloat16)
    packed = {
        "w1": w1,
        "s1": blk1["scale"].reshape(1, hidden).astype(jnp.float32),
        "b1": blk1["bias"].reshape(1, hidden).astype(jnp.float32),
        "blocks": [],
    }
    for blk in params["blocks"][1:]:
        packed["blocks"].append({
            "w": blk["w_hwio"].reshape(9, hidden, hidden).astype(jnp.bfloat16),
            "scale": blk["scale"].reshape(1, hidden).astype(jnp.float32),
            "bias": blk["bias"].reshape(1, hidden).astype(jnp.float32),
        })
    fc_w, fc_b = params["fc_w"], params["fc_b"]
    feat_dim, ncls = fc_w.shape
    p4 = feat_dim // hidden                      # final spatial positions (torch C-major)
    ncls_pad = _round_up(max(ncls, LANE), LANE)  # lane-dense FC output
    # torch.flatten order is (c, h, w); the kernel builds features as (h*w, c) chunks,
    # so permute the FC rows once host-side and pad classes to the lane width.
    fcw = fc_w.reshape(hidden, p4, ncls).transpose(1, 0, 2).reshape(p4 * hidden, ncls)
    fcw = jnp.pad(fcw, ((0, 0), (0, ncls_pad - ncls)))
    fcb = jnp.pad(fc_b.reshape(1, ncls), ((0, 0), (0, ncls_pad - ncls)))
    packed["fc_w"] = fcw.astype(jnp.bfloat16)
    packed["fc_b"] = fcb.astype(jnp.float32)
    return packed


def reference_forward(params, x_nchw):
    """Pure-JAX f32 reference of the PyTorch SimpleShot forward (Conv-4)."""
    x = jnp.transpose(x_nchw, (0, 2, 3, 1)).astype(jnp.float32)
    for blk in params["blocks"]:
        y = jax.lax.conv_general_dilated(
            x, blk["w_hwio"], (1, 1), "SAME",
            dimension_numbers=("NHWC", "HWIO", "NHWC"),
            precision=jax.lax.Precision.HIGHEST)
        y = jnp.maximum(y * blk["scale"] + blk["bias"], 0.0)
        x = jax.lax.reduce_window(y, -jnp.inf, jax.lax.max,
                                  (1, 2, 2, 1), (1, 2, 2, 1), "VALID")
    feats = jnp.transpose(x, (0, 3, 1, 2)).reshape(x.shape[0], -1)
    return feats @ params["fc_w"] + params["fc_b"]


# ------------------------------------- main ------------------------------------------


if __name__ == "__main__":
    key = jax.random.PRNGKey(0)
    kx, kp = jax.random.split(key)

    N, CIN, S = 2, 3, 16              # small input consistent with SimpleShot (3ch images)
    NUM_CLASSES = 16
    x = jax.random.normal(kx, (N, CIN, S, S), jnp.float32)    # NCHW like PyTorch
    params = init_params(kp, input_dim=S, num_classes=NUM_CLASSES)
    kparams = pack_params(params)

    fwd = jax.jit(functools.partial(simpleshot_forward, num_classes=NUM_CLASSES))
    logits = jax.block_until_ready(fwd(kparams, x))
    assert logits.shape == (N, NUM_CLASSES)

    ref = reference_forward(params, x)
    # bf16 MXU operands vs. a pure-f32 reference -> slightly relaxed tolerance.
    np.testing.assert_allclose(np.asarray(logits), np.asarray(ref),
                               rtol=3e-2, atol=3e-2)
    print("KERNEL_OK")
</pallas_src>

<mosaic_0001>
module attributes {stable_mosaic.version = 11 : i64} {
  func.func @simpleshot_kernel(%arg0: i32, %arg1: memref<2x256x32xbf16, #tpu.memory_space<vmem>>, %arg2: memref<32x64xbf16, #tpu.memory_space<vmem>>, %arg3: memref<1x64xf32, #tpu.memory_space<vmem>>, %arg4: memref<1x64xf32, #tpu.memory_space<vmem>>, %arg5: memref<9x64x64xbf16, #tpu.memory_space<vmem>>, %arg6: memref<1x64xf32, #tpu.memory_space<vmem>>, %arg7: memref<1x64xf32, #tpu.memory_space<vmem>>, %arg8: memref<9x64x64xbf16, #tpu.memory_space<vmem>>, %arg9: memref<1x64xf32, #tpu.memory_space<vmem>>, %arg10: memref<1x64xf32, #tpu.memory_space<vmem>>, %arg11: memref<9x64x64xbf16, #tpu.memory_space<vmem>>, %arg12: memref<1x64xf32, #tpu.memory_space<vmem>>, %arg13: memref<1x64xf32, #tpu.memory_space<vmem>>, %arg14: memref<64x128xbf16, #tpu.memory_space<vmem>>, %arg15: memref<1x128xf32, #tpu.memory_space<vmem>>, %arg16: memref<2x128xf32, #tpu.memory_space<vmem>>, %arg17: memref<208x64xf32, #tpu.memory_space<vmem>>, %arg18: memref<80x64xf32, #tpu.memory_space<vmem>>, %arg19: memref<40x64xf32, #tpu.memory_space<vmem>>, %arg20: memref<256x64xf32, #tpu.memory_space<vmem>>, %arg21: memref<2x64xf32, #tpu.memory_space<vmem>>) attributes {dimension_semantics = [#tpu.dimension_semantics<parallel>], iteration_bounds = array<i64: 1>, scalar_prefetch = 0 : i64, scratch_operands = 5 : i64, tpu.core_type = #tpu.core_type<tc>, window_params = [{transform_indices = @transform_0, window_bounds = array<i64: 2, 256, 32>}, {pipeline_mode = #tpu.pipeline_mode<synchronous>, transform_indices = @transform_1, window_bounds = array<i64: 32, 64>}, {pipeline_mode = #tpu.pipeline_mode<synchronous>, transform_indices = @transform_2, window_bounds = array<i64: 1, 64>}, {pipeline_mode = #tpu.pipeline_mode<synchronous>, transform_indices = @transform_3, window_bounds = array<i64: 1, 64>}, {pipeline_mode = #tpu.pipeline_mode<synchronous>, transform_indices = @transform_4, window_bounds = array<i64: 9, 64, 64>}, {pipeline_mode = #tpu.pipeline_mode<synchronous>, transform_indices = @transform_5, window_bounds = array<i64: 1, 64>}, {pipeline_mode = #tpu.pipeline_mode<synchronous>, transform_indices = @transform_6, window_bounds = array<i64: 1, 64>}, {pipeline_mode = #tpu.pipeline_mode<synchronous>, transform_indices = @transform_7, window_bounds = array<i64: 9, 64, 64>}, {pipeline_mode = #tpu.pipeline_mode<synchronous>, transform_indices = @transform_8, window_bounds = array<i64: 1, 64>}, {pipeline_mode = #tpu.pipeline_mode<synchronous>, transform_indices = @transform_9, window_bounds = array<i64: 1, 64>}, {pipeline_mode = #tpu.pipeline_mode<synchronous>, transform_indices = @transform_10, window_bounds = array<i64: 9, 64, 64>}, {pipeline_mode = #tpu.pipeline_mode<synchronous>, transform_indices = @transform_11, window_bounds = array<i64: 1, 64>}, {pipeline_mode = #tpu.pipeline_mode<synchronous>, transform_indices = @transform_12, window_bounds = array<i64: 1, 64>}, {pipeline_mode = #tpu.pipeline_mode<synchronous>, transform_indices = @transform_13, window_bounds = array<i64: 64, 128>}, {pipeline_mode = #tpu.pipeline_mode<synchronous>, transform_indices = @transform_14, window_bounds = array<i64: 1, 128>}, {transform_indices = @transform_15, window_bounds = array<i64: 2, 128>}]} {
    %cst = arith.constant 0.000000e+00 : f32
    %0 = vector.broadcast %cst : f32 to vector<208x64xf32>
    %c0 = arith.constant 0 : index
    %c0_0 = arith.constant 0 : index
    %1 = vector.load %arg17[%c0, %c0_0] : memref<208x64xf32, #tpu.memory_space<vmem>>, vector<208x64xf32>
    tpu.vector_store %arg17[%c0, %c0_0], %0 {strides = array<i32>} : memref<208x64xf32, #tpu.memory_space<vmem>>, vector<208x64xf32>,
    %cst_1 = arith.constant 0.000000e+00 : f32
    %2 = vector.broadcast %cst_1 : f32 to vector<80x64xf32>
    %c0_2 = arith.constant 0 : index
    %c0_3 = arith.constant 0 : index
    %3 = vector.load %arg18[%c0_2, %c0_3] : memref<80x64xf32, #tpu.memory_space<vmem>>, vector<80x64xf32>
    tpu.vector_store %arg18[%c0_2, %c0_3], %2 {strides = array<i32>} : memref<80x64xf32, #tpu.memory_space<vmem>>, vector<80x64xf32>,
    %cst_4 = arith.constant 0.000000e+00 : f32
    %4 = vector.broadcast %cst_4 : f32 to vector<40x64xf32>
    %c0_5 = arith.constant 0 : index
    %c0_6 = arith.constant 0 : index
    %5 = vector.load %arg19[%c0_5, %c0_6] : memref<40x64xf32, #tpu.memory_space<vmem>>, vector<40x64xf32>
    tpu.vector_store %arg19[%c0_5, %c0_6], %4 {strides = array<i32>} : memref<40x64xf32, #tpu.memory_space<vmem>>, vector<40x64xf32>,
    %c0_7 = arith.constant 0 : index
    %c0_8 = arith.constant 0 : index
    %6 = vector.load %arg3[%c0_7, %c0_8] : memref<1x64xf32, #tpu.memory_space<vmem>>, vector<1x64xf32>
    %c0_9 = arith.constant 0 : index
    %c0_10 = arith.constant 0 : index
    %7 = vector.load %arg4[%c0_9, %c0_10] : memref<1x64xf32, #tpu.memory_space<vmem>>, vector<1x64xf32>
    %c0_11 = arith.constant 0 : index
    %c0_12 = arith.constant 0 : index
    %c0_13 = arith.constant 0 : index
    %8 = vector.load %arg1[%c0_11, %c0_12, %c0_13] : memref<2x256x32xbf16, #tpu.memory_space<vmem>>, vector<1x256x32xbf16>
    %9 = vector.shape_cast %8 : vector<1x256x32xbf16> to vector<256x32xbf16>
    %c0_14 = arith.constant 0 : index
    %c0_15 = arith.constant 0 : index
    %10 = vector.load %arg2[%c0_14, %c0_15] : memref<32x64xbf16, #tpu.memory_space<vmem>>, vector<32x64xbf16>
    %cst_16 = arith.constant dense<0.000000e+00> : vector<256x64xf32>
    %11 = tpu.matmul %9, %10, %cst_16 {dimension_numbers = #tpu.dot_dimension_numbers<[1], [0], [0], [1], [0, 0, 1, 1], [], []>} : vector<256x32xbf16>, vector<32x64xbf16>, vector<256x64xf32> -> vector<256x64xf32>
    %12 = vector.broadcast %6 : vector<1x64xf32> to vector<256x64xf32>
    %13 = arith.mulf %11, %12 : vector<256x64xf32>
    %14 = vector.broadcast %7 : vector<1x64xf32> to vector<256x64xf32>
    %15 = arith.addf %13, %14 : vector<256x64xf32>
    %cst_17 = arith.constant 0.000000e+00 : f32
    %16 = vector.broadcast %cst_17 : f32 to vector<256x64xf32>
    %17 = arith.maximumf %15, %16 : vector<256x64xf32>
    %c0_18 = arith.constant 0 : index
    %c0_19 = arith.constant 0 : index
    %18 = vector.load %arg20[%c0_18, %c0_19] : memref<256x64xf32, #tpu.memory_space<vmem>>, vector<256x64xf32>
    tpu.vector_store %arg20[%c0_18, %c0_19], %17 {strides = array<i32>} : memref<256x64xf32, #tpu.memory_space<vmem>>, vector<256x64xf32>,
    %c0_20 = arith.constant 0 : index
    %c0_21 = arith.constant 0 : index
    %19 = tpu.strided_load %arg20[%c0_20, %c0_21] {strides = array<i32: 2, 1>} : memref<256x64xf32, #tpu.memory_space<vmem>>, vector<8x64xf32>
    %c1 = arith.constant 1 : index
    %c0_22 = arith.constant 0 : index
    %20 = tpu.strided_load %arg20[%c1, %c0_22] {strides = array<i32: 2, 1>} : memref<256x64xf32, #tpu.memory_space<vmem>>, vector<8x64xf32>
    %c16 = arith.constant 16 : index
    %c0_23 = arith.constant 0 : index
    %21 = tpu.strided_load %arg20[%c16, %c0_23] {strides = array<i32: 2, 1>} : memref<256x64xf32, #tpu.memory_space<vmem>>, vector<8x64xf32>
    %c17 = arith.constant 17 : index
    %c0_24 = arith.constant 0 : index
    %22 = tpu.strided_load %arg20[%c17, %c0_24] {strides = array<i32: 2, 1>} : memref<256x64xf32, #tpu.memory_space<vmem>>, vector<8x64xf32>
    %23 = arith.maximumf %19, %20 : vector<8x64xf32>
    %24 = arith.maximumf %21, %22 : vector<8x64xf32>
    %25 = arith.maximumf %23, %24 : vector<8x64xf32>
    %c11 = arith.constant 11 : index
    %c0_25 = arith.constant 0 : index
    %26 = vector.load %arg17[%c11, %c0_25] : memref<208x64xf32, #tpu.memory_space<vmem>>, vector<8x64xf32>
    tpu.vector_store %arg17[%c11, %c0_25], %25 {strides = array<i32>} : memref<208x64xf32, #tpu.memory_space<vmem>>, vector<8x64xf32>,
    %c32 = arith.constant 32 : index
    %c0_26 = arith.constant 0 : index
    %27 = tpu.strided_load %arg20[%c32, %c0_26] {strides = array<i32: 2, 1>} : memref<256x64xf32, #tpu.memory_space<vmem>>, vector<8x64xf32>
    %c33 = arith.constant 33 : index
    %c0_27 = arith.constant 0 : index
    %28 = tpu.strided_load %arg20[%c33, %c0_27] {strides = array<i32: 2, 1>} : memref<256x64xf32, #tpu.memory_space<vmem>>, vector<8x64xf32>
    %c48 = arith.constant 48 : index
    %c0_28 = arith.constant 0 : index
    %29 = tpu.strided_load %arg20[%c48, %c0_28] {strides = array<i32: 2, 1>} : memref<256x64xf32, #tpu.memory_space<vmem>>, vector<8x64xf32>
    %c49 = arith.constant 49 : index
    %c0_29 = arith.constant 0 : index
    %30 = tpu.strided_load %arg20[%c49, %c0_29] {strides = array<i32: 2, 1>} : memref<256x64xf32, #tpu.memory_space<vmem>>, vector<8x64xf32>
    %31 = arith.maximumf %27, %28 : vector<8x64xf32>
    %32 = arith.maximumf %29, %30 : vector<8x64xf32>
    %33 = arith.maximumf %31, %32 : vector<8x64xf32>
    %c21 = arith.constant 21 : index
    %c0_30 = arith.constant 0 : index
    %34 = vector.load %arg17[%c21, %c0_30] : memref<208x64xf32, #tpu.memory_space<vmem>>, vector<8x64xf32>
    tpu.vector_store %arg17[%c21, %c0_30], %33 {strides = array<i32>} : memref<208x64xf32, #tpu.memory_space<vmem>>, vector<8x64xf32>,
    %c64 = arith.constant 64 : index
    %c0_31 = arith.constant 0 : index
    %35 = tpu.strided_load %arg20[%c64, %c0_31] {strides = array<i32: 2, 1>} : memref<256x64xf32, #tpu.memory_space<vmem>>, vector<8x64xf32>
    %c65 = arith.constant 65 : index
    %c0_32 = arith.constant 0 : index
    %36 = tpu.strided_load %arg20[%c65, %c0_32] {strides = array<i32: 2, 1>} : memref<256x64xf32, #tpu.memory_space<vmem>>, vector<8x64xf32>
    %c80 = arith.constant 80 : index
    %c0_33 = arith.constant 0 : index
    %37 = tpu.strided_load %arg20[%c80, %c0_33] {strides = array<i32: 2, 1>} : memref<256x64xf32, #tpu.memory_space<vmem>>, vector<8x64xf32>
    %c81 = arith.constant 81 : index
    %c0_34 = arith.constant 0 : index
    %38 = tpu.strided_load %arg20[%c81, %c0_34] {strides = array<i32: 2, 1>} : memref<256x64xf32, #tpu.memory_space<vmem>>, vector<8x64xf32>
    %39 = arith.maximumf %35, %36 : vector<8x64xf32>
    %40 = arith.maximumf %37, %38 : vector<8x64xf32>
    %41 = arith.maximumf %39, %40 : vector<8x64xf32>
    %c31 = arith.constant 31 : index
    %c0_35 = arith.constant 0 : index
    %42 = vector.load %arg17[%c31, %c0_35] : memref<208x64xf32, #tpu.memory_space<vmem>>, vector<8x64xf32>
    tpu.vector_store %arg17[%c31, %c0_35], %41 {strides = array<i32>} : memref<208x64xf32, #tpu.memory_space<vmem>>, vector<8x64xf32>,
    %c96 = arith.constant 96 : index
    %c0_36 = arith.constant 0 : index
    %43 = tpu.strided_load %arg20[%c96, %c0_36] {strides = array<i32: 2, 1>} : memref<256x64xf32, #tpu.memory_space<vmem>>, vector<8x64xf32>
    %c97 = arith.constant 97 : index
    %c0_37 = arith.constant 0 : index
    %44 = tpu.strided_load %arg20[%c97, %c0_37] {strides = array<i32: 2, 1>} : memref<256x64xf32, #tpu.memory_space<vmem>>, vector<8x64xf32>
    %c112 = arith.constant 112 : index
    %c0_38 = arith.constant 0 : index
    %45 = tpu.strided_load %arg20[%c112, %c0_38] {strides = array<i32: 2, 1>} : memref<256x64xf32, #tpu.memory_space<vmem>>, vector<8x64xf32>
    %c113 = arith.constant 113 : index
    %c0_39 = arith.constant 0 : index
    %46 = tpu.strided_load %arg20[%c113, %c0_39] {strides = array<i32: 2, 1>} : memref<256x64xf32, #tpu.memory_space<vmem>>, vector<8x64xf32>
    %47 = arith.maximumf %43, %44 : vector<8x64xf32>
    %48 = arith.maximumf %45, %46 : vector<8x64xf32>
    %49 = arith.maximumf %47, %48 : vector<8x64xf32>
    %c41 = arith.constant 41 : index
    %c0_40 = arith.constant 0 : index
    %50 = vector.load %arg17[%c41, %c0_40] : memref<208x64xf32, #tpu.memory_space<vmem>>, vector<8x64xf32>
    tpu.vector_store %arg17[%c41, %c0_40], %49 {strides = array<i32>} : memref<208x64xf32, #tpu.memory_space<vmem>>, vector<8x64xf32>,
    %c128 = arith.constant 128 : index
    %c0_41 = arith.constant 0 : index
    %51 = tpu.strided_load %arg20[%c128, %c0_41] {strides = array<i32: 2, 1>} : memref<256x64xf32, #tpu.memory_space<vmem>>, vector<8x64xf32>
    %c129 = arith.constant 129 : index
    %c0_42 = arith.constant 0 : index
    %52 = tpu.strided_load %arg20[%c129, %c0_42] {strides = array<i32: 2, 1>} : memref<256x64xf32, #tpu.memory_space<vmem>>, vector<8x64xf32>
    %c144 = arith.constant 144 : index
    %c0_43 = arith.constant 0 : index
    %53 = tpu.strided_load %arg20[%c144, %c0_43] {strides = array<i32: 2, 1>} : memref<256x64xf32, #tpu.memory_space<vmem>>, vector<8x64xf32>
    %c145 = arith.constant 145 : index
    %c0_44 = arith.constant 0 : index
    %54 = tpu.strided_load %arg20[%c145, %c0_44] {strides = array<i32: 2, 1>} : memref<256x64xf32, #tpu.memory_space<vmem>>, vector<8x64xf32>
    %55 = arith.maximumf %51, %52 : vector<8x64xf32>
    %56 = arith.maximumf %53, %54 : vector<8x64xf32>
    %57 = arith.maximumf %55, %56 : vector<8x64xf32>
    %c51 = arith.constant 51 : index
    %c0_45 = arith.constant 0 : index
    %58 = vector.load %arg17[%c51, %c0_45] : memref<208x64xf32, #tpu.memory_space<vmem>>, vector<8x64xf32>
    tpu.vector_store %arg17[%c51, %c0_45], %57 {strides = array<i32>} : memref<208x64xf32, #tpu.memory_space<vmem>>, vector<8x64xf32>,
    %c160 = arith.constant 160 : index
    %c0_46 = arith.constant 0 : index
    %59 = tpu.strided_load %arg20[%c160, %c0_46] {strides = array<i32: 2, 1>} : memref<256x64xf32, #tpu.memory_space<vmem>>, vector<8x64xf32>
    %c161 = arith.constant 161 : index
    %c0_47 = arith.constant 0 : index
    %60 = tpu.strided_load %arg20[%c161, %c0_47] {strides = array<i32: 2, 1>} : memref<256x64xf32, #tpu.memory_space<vmem>>, vector<8x64xf32>
    %c176 = arith.constant 176 : index
    %c0_48 = arith.constant 0 : index
    %61 = tpu.strided_load %arg20[%c176, %c0_48] {strides = array<i32: 2, 1>} : memref<256x64xf32, #tpu.memory_space<vmem>>, vector<8x64xf32>
    %c177 = arith.constant 177 : index
    %c0_49 = arith.constant 0 : index
    %62 = tpu.strided_load %arg20[%c177, %c0_49] {strides = array<i32: 2, 1>} : memref<256x64xf32, #tpu.memory_space<vmem>>, vector<8x64xf32>
    %63 = arith.maximumf %59, %60 : vector<8x64xf32>
    %64 = arith.maximumf %61, %62 : vector<8x64xf32>
    %65 = arith.maximumf %63, %64 : vector<8x64xf32>
    %c61 = arith.constant 61 : index
    %c0_50 = arith.constant 0 : index
    %66 = vector.load %arg17[%c61, %c0_50] : memref<208x64xf32, #tpu.memory_space<vmem>>, vector<8x64xf32>
    tpu.vector_store %arg17[%c61, %c0_50], %65 {strides = array<i32>} : memref<208x64xf32, #tpu.memory_space<vmem>>, vector<8x64xf32>,
    %c192 = arith.constant 192 : index
    %c0_51 = arith.constant 0 : index
    %67 = tpu.strided_load %arg20[%c192, %c0_51] {strides = array<i32: 2, 1>} : memref<256x64xf32, #tpu.memory_space<vmem>>, vector<8x64xf32>
    %c193 = arith.constant 193 : index
    %c0_52 = arith.constant 0 : index
    %68 = tpu.strided_load %arg20[%c193, %c0_52] {strides = array<i32: 2, 1>} : memref<256x64xf32, #tpu.memory_space<vmem>>, vector<8x64xf32>
    %c208 = arith.constant 208 : index
    %c0_53 = arith.constant 0 : index
    %69 = tpu.strided_load %arg20[%c208, %c0_53] {strides = array<i32: 2, 1>} : memref<256x64xf32, #tpu.memory_space<vmem>>, vector<8x64xf32>
    %c209 = arith.constant 209 : index
    %c0_54 = arith.constant 0 : index
    %70 = tpu.strided_load %arg20[%c209, %c0_54] {strides = array<i32: 2, 1>} : memref<256x64xf32, #tpu.memory_space<vmem>>, vector<8x64xf32>
    %71 = arith.maximumf %67, %68 : vector<8x64xf32>
    %72 = arith.maximumf %69, %70 : vector<8x64xf32>
    %73 = arith.maximumf %71, %72 : vector<8x64xf32>
    %c71 = arith.constant 71 : index
    %c0_55 = arith.constant 0 : index
    %74 = vector.load %arg17[%c71, %c0_55] : memref<208x64xf32, #tpu.memory_space<vmem>>, vector<8x64xf32>
    tpu.vector_store %arg17[%c71, %c0_55], %73 {strides = array<i32>} : memref<208x64xf32, #tpu.memory_space<vmem>>, vector<8x64xf32>,
    %c224 = arith.constant 224 : index
    %c0_56 = arith.constant 0 : index
    %75 = tpu.strided_load %arg20[%c224, %c0_56] {strides = array<i32: 2, 1>} : memref<256x64xf32, #tpu.memory_space<vmem>>, vector<8x64xf32>
    %c225 = arith.constant 225 : index
    %c0_57 = arith.constant 0 : index
    %76 = tpu.strided_load %arg20[%c225, %c0_57] {strides = array<i32: 2, 1>} : memref<256x64xf32, #tpu.memory_space<vmem>>, vector<8x64xf32>
    %c240 = arith.constant 240 : index
    %c0_58 = arith.constant 0 : index
    %77 = tpu.strided_load %arg20[%c240, %c0_58] {strides = array<i32: 2, 1>} : memref<256x64xf32, #tpu.memory_space<vmem>>, vector<8x64xf32>
    %c241 = arith.constant 241 : index
    %c0_59 = arith.constant 0 : index
    %78 = tpu.strided_load %arg20[%c241, %c0_59] {strides = array<i32: 2, 1>} : memref<256x64xf32, #tpu.memory_space<vmem>>, vector<8x64xf32>
    %79 = arith.maximumf %75, %76 : vector<8x64xf32>
    %80 = arith.maximumf %77, %78 : vector<8x64xf32>
    %81 = arith.maximumf %79, %80 : vector<8x64xf32>
    %c81_60 = arith.constant 81 : index
    %c0_61 = arith.constant 0 : index
    %82 = vector.load %arg17[%c81_60, %c0_61] : memref<208x64xf32, #tpu.memory_space<vmem>>, vector<8x64xf32>
    tpu.vector_store %arg17[%c81_60, %c0_61], %81 {strides = array<i32>} : memref<208x64xf32, #tpu.memory_space<vmem>>, vector<8x64xf32>,
    %c1_62 = arith.constant 1 : index
    %c0_63 = arith.constant 0 : index
    %c0_64 = arith.constant 0 : index
    %83 = vector.load %arg1[%c1_62, %c0_63, %c0_64] : memref<2x256x32xbf16, #tpu.memory_space<vmem>>, vector<1x256x32xbf16>
    %84 = vector.shape_cast %83 : vector<1x256x32xbf16> to vector<256x32xbf16>
    %c0_65 = arith.constant 0 : index
    %c0_66 = arith.constant 0 : index
    %85 = vector.load %arg2[%c0_65, %c0_66] : memref<32x64xbf16, #tpu.memory_space<vmem>>, vector<32x64xbf16>
    %cst_67 = arith.constant dense<0.000000e+00> : vector<256x64xf32>
    %86 = tpu.matmul %84, %85, %cst_67 {dimension_numbers = #tpu.dot_dimension_numbers<[1], [0], [0], [1], [0, 0, 1, 1], [], []>} : vector<256x32xbf16>, vector<32x64xbf16>, vector<256x64xf32> -> vector<256x64xf32>
    %87 = vector.broadcast %6 : vector<1x64xf32> to vector<256x64xf32>
    %88 = arith.mulf %86, %87 : vector<256x64xf32>
    %89 = vector.broadcast %7 : vector<1x64xf32> to vector<256x64xf32>
    %90 = arith.addf %88, %89 : vector<256x64xf32>
    %cst_68 = arith.constant 0.000000e+00 : f32
    %91 = vector.broadcast %cst_68 : f32 to vector<256x64xf32>
    %92 = arith.maximumf %90, %91 : vector<256x64xf32>
    %c0_69 = arith.constant 0 : index
    %c0_70 = arith.constant 0 : index
    %93 = vector.load %arg20[%c0_69, %c0_70] : memref<256x64xf32, #tpu.memory_space<vmem>>, vector<256x64xf32>
    tpu.vector_store %arg20[%c0_69, %c0_70], %92 {strides = array<i32>} : memref<256x64xf32, #tpu.memory_space<vmem>>, vector<256x64xf32>,
    %c0_71 = arith.constant 0 : index
    %c0_72 = arith.constant 0 : index
    %94 = tpu.strided_load %arg20[%c0_71, %c0_72] {strides = array<i32: 2, 1>} : memref<256x64xf32, #tpu.memory_space<vmem>>, vector<8x64xf32>
    %c1_73 = arith.constant 1 : index
    %c0_74 = arith.constant 0 : index
    %95 = tpu.strided_load %arg20[%c1_73, %c0_74] {strides = array<i32: 2, 1>} : memref<256x64xf32, #tpu.memory_space<vmem>>, vector<8x64xf32>
    %c16_75 = arith.constant 16 : index
    %c0_76 = arith.constant 0 : index
    %96 = tpu.strided_load %arg20[%c16_75, %c0_76] {strides = array<i32: 2, 1>} : memref<256x64xf32, #tpu.memory_space<vmem>>, vector<8x64xf32>
    %c17_77 = arith.constant 17 : index
    %c0_78 = arith.constant 0 : index
    %97 = tpu.strided_load %arg20[%c17_77, %c0_78] {strides = array<i32: 2, 1>} : memref<256x64xf32, #tpu.memory_space<vmem>>, vector<8x64xf32>
    %98 = arith.maximumf %94, %95 : vector<8x64xf32>
    %99 = arith.maximumf %96, %97 : vector<8x64xf32>
    %100 = arith.maximumf %98, %99 : vector<8x64xf32>
    %c111 = arith.constant 111 : index
    %c0_79 = arith.constant 0 : index
    %101 = vector.load %arg17[%c111, %c0_79] : memref<208x64xf32, #tpu.memory_space<vmem>>, vector<8x64xf32>
    tpu.vector_store %arg17[%c111, %c0_79], %100 {strides = array<i32>} : memref<208x64xf32, #tpu.memory_space<vmem>>, vector<8x64xf32>,
    %c32_80 = arith.constant 32 : index
    %c0_81 = arith.constant 0 : index
    %102 = tpu.strided_load %arg20[%c32_80, %c0_81] {strides = array<i32: 2, 1>} : memref<256x64xf32, #tpu.memory_space<vmem>>, vector<8x64xf32>
    %c33_82 = arith.constant 33 : index
    %c0_83 = arith.constant 0 : index
    %103 = tpu.strided_load %arg20[%c33_82, %c0_83] {strides = array<i32: 2, 1>} : memref<256x64xf32, #tpu.memory_space<vmem>>, vector<8x64xf32>
    %c48_84 = arith.constant 48 : index
    %c0_85 = arith.constant 0 : index
    %104 = tpu.strided_load %arg20[%c48_84, %c0_85] {strides = array<i32: 2, 1>} : memref<256x64xf32, #tpu.memory_space<vmem>>, vector<8x64xf32>
    %c49_86 = arith.constant 49 : index
    %c0_87 = arith.constant 0 : index
    %105 = tpu.strided_load %arg20[%c49_86, %c0_87] {strides = array<i32: 2, 1>} : memref<256x64xf32, #tpu.memory_space<vmem>>, vector<8x64xf32>
    %106 = arith.maximumf %102, %103 : vector<8x64xf32>
    %107 = arith.maximumf %104, %105 : vector<8x64xf32>
    %108 = arith.maximumf %106, %107 : vector<8x64xf32>
    %c121 = arith.constant 121 : index
    %c0_88 = arith.constant 0 : index
    %109 = vector.load %arg17[%c121, %c0_88] : memref<208x64xf32, #tpu.memory_space<vmem>>, vector<8x64xf32>
    tpu.vector_store %arg17[%c121, %c0_88], %108 {strides = array<i32>} : memref<208x64xf32, #tpu.memory_space<vmem>>, vector<8x64xf32>,
    %c64_89 = arith.constant 64 : index
    %c0_90 = arith.constant 0 : index
    %110 = tpu.strided_load %arg20[%c64_89, %c0_90] {strides = array<i32: 2, 1>} : memref<256x64xf32, #tpu.memory_space<vmem>>, vector<8x64xf32>
    %c65_91 = arith.constant 65 : index
    %c0_92 = arith.constant 0 : index
    %111 = tpu.strided_load %arg20[%c65_91, %c0_92] {strides = array<i32: 2, 1>} : memref<256x64xf32, #tpu.memory_space<vmem>>, vector<8x64xf32>
    %c80_93 = arith.constant 80 : index
    %c0_94 = arith.constant 0 : index
    %112 = tpu.strided_load %arg20[%c80_93, %c0_94] {strides = array<i32: 2, 1>} : memref<256x64xf32, #tpu.memory_space<vmem>>, vector<8x64xf32>
    %c81_95 = arith.constant 81 : index
    %c0_96 = arith.constant 0 : index
    %113 = tpu.strided_load %arg20[%c81_95, %c0_96] {strides = array<i32: 2, 1>} : memref<256x64xf32, #tpu.memory_space<vmem>>, vector<8x64xf32>
    %114 = arith.maximumf %110, %111 : vector<8x64xf32>
    %115 = arith.maximumf %112, %113 : vector<8x64xf32>
    %116 = arith.maximumf %114, %115 : vector<8x64xf32>
    %c131 = arith.constant 131 : index
    %c0_97 = arith.constant 0 : index
    %117 = vector.load %arg17[%c131, %c0_97] : memref<208x64xf32, #tpu.memory_space<vmem>>, vector<8x64xf32>
    tpu.vector_store %arg17[%c131, %c0_97], %116 {strides = array<i32>} : memref<208x64xf32, #tpu.memory_space<vmem>>, vector<8x64xf32>,
    %c96_98 = arith.constant 96 : index
    %c0_99 = arith.constant 0 : index
    %118 = tpu.strided_load %arg20[%c96_98, %c0_99] {strides = array<i32: 2, 1>} : memref<256x64xf32, #tpu.memory_space<vmem>>, vector<8x64xf32>
    %c97_100 = arith.constant 97 : index
    %c0_101 = arith.constant 0 : index
    %119 = tpu.strided_load %arg20[%c97_100, %c0_101] {strides = array<i32: 2, 1>} : memref<256x64xf32, #tpu.memory_space<vmem>>, vector<8x64xf32>
    %c112_102 = arith.constant 112 : index
    %c0_103 = arith.constant 0 : index
    %120 = tpu.strided_load %arg20[%c112_102, %c0_103] {strides = array<i32: 2, 1>} : memref<256x64xf32, #tpu.memory_space<vmem>>, vector<8x64xf32>
    %c113_104 = arith.constant 113 : index
    %c0_105 = arith.constant 0 : index
    %121 = tpu.strided_load %arg20[%c113_104, %c0_105] {strides = array<i32: 2, 1>} : memref<256x64xf32, #tpu.memory_space<vmem>>, vector<8x64xf32>
    %122 = arith.maximumf %118, %119 : vector<8x64xf32>
    %123 = arith.maximumf %120, %121 : vector<8x64xf32>
    %124 = arith.maximumf %122, %123 : vector<8x64xf32>
    %c141 = arith.constant 141 : index
    %c0_106 = arith.constant 0 : index
    %125 = vector.load %arg17[%c141, %c0_106] : memref<208x64xf32, #tpu.memory_space<vmem>>, vector<8x64xf32>
    tpu.vector_store %arg17[%c141, %c0_106], %124 {strides = array<i32>} : memref<208x64xf32, #tpu.memory_space<vmem>>, vector<8x64xf32>,
    %c128_107 = arith.constant 128 : index
    %c0_108 = arith.constant 0 : index
    %126 = tpu.strided_load %arg20[%c128_107, %c0_108] {strides = array<i32: 2, 1>} : memref<256x64xf32, #tpu.memory_space<vmem>>, vector<8x64xf32>
    %c129_109 = arith.constant 129 : index
    %c0_110 = arith.constant 0 : index
    %127 = tpu.strided_load %arg20[%c129_109, %c0_110] {strides = array<i32: 2, 1>} : memref<256x64xf32, #tpu.memory_space<vmem>>, vector<8x64xf32>
    %c144_111 = arith.constant 144 : index
    %c0_112 = arith.constant 0 : index
    %128 = tpu.strided_load %arg20[%c144_111, %c0_112] {strides = array<i32: 2, 1>} : memref<256x64xf32, #tpu.memory_space<vmem>>, vector<8x64xf32>
    %c145_113 = arith.constant 145 : index
    %c0_114 = arith.constant 0 : index
    %129 = tpu.strided_load %arg20[%c145_113, %c0_114] {strides = array<i32: 2, 1>} : memref<256x64xf32, #tpu.memory_space<vmem>>, vector<8x64xf32>
    %130 = arith.maximumf %126, %127 : vector<8x64xf32>
    %131 = arith.maximumf %128, %129 : vector<8x64xf32>
    %132 = arith.maximumf %130, %131 : vector<8x64xf32>
    %c151 = arith.constant 151 : index
    %c0_115 = arith.constant 0 : index
    %133 = vector.load %arg17[%c151, %c0_115] : memref<208x64xf32, #tpu.memory_space<vmem>>, vector<8x64xf32>
    tpu.vector_store %arg17[%c151, %c0_115], %132 {strides = array<i32>} : memref<208x64xf32, #tpu.memory_space<vmem>>, vector<8x64xf32>,
    %c160_116 = arith.constant 160 : index
    %c0_117 = arith.constant 0 : index
    %134 = tpu.strided_load %arg20[%c160_116, %c0_117] {strides = array<i32: 2, 1>} : memref<256x64xf32, #tpu.memory_space<vmem>>, vector<8x64xf32>
    %c161_118 = arith.constant 161 : index
    %c0_119 = arith.constant 0 : index
    %135 = tpu.strided_load %arg20[%c161_118, %c0_119] {strides = array<i32: 2, 1>} : memref<256x64xf32, #tpu.memory_space<vmem>>, vector<8x64xf32>
    %c176_120 = arith.constant 176 : index
    %c0_121 = arith.constant 0 : index
    %136 = tpu.strided_load %arg20[%c176_120, %c0_121] {strides = array<i32: 2, 1>} : memref<256x64xf32, #tpu.memory_space<vmem>>, vector<8x64xf32>
    %c177_122 = arith.constant 177 : index
    %c0_123 = arith.constant 0 : index
    %137 = tpu.strided_load %arg20[%c177_122, %c0_123] {strides = array<i32: 2, 1>} : memref<256x64xf32, #tpu.memory_space<vmem>>, vector<8x64xf32>
    %138 = arith.maximumf %134, %135 : vector<8x64xf32>
    %139 = arith.maximumf %136, %137 : vector<8x64xf32>
    %140 = arith.maximumf %138, %139 : vector<8x64xf32>
    %c161_124 = arith.constant 161 : index
    %c0_125 = arith.constant 0 : index
    %141 = vector.load %arg17[%c161_124, %c0_125] : memref<208x64xf32, #tpu.memory_space<vmem>>, vector<8x64xf32>
    tpu.vector_store %arg17[%c161_124, %c0_125], %140 {strides = array<i32>} : memref<208x64xf32, #tpu.memory_space<vmem>>, vector<8x64xf32>,
    %c192_126 = arith.constant 192 : index
    %c0_127 = arith.constant 0 : index
    %142 = tpu.strided_load %arg20[%c192_126, %c0_127] {strides = array<i32: 2, 1>} : memref<256x64xf32, #tpu.memory_space<vmem>>, vector<8x64xf32>
    %c193_128 = arith.constant 193 : index
    %c0_129 = arith.constant 0 : index
    %143 = tpu.strided_load %arg20[%c193_128, %c0_129] {strides = array<i32: 2, 1>} : memref<256x64xf32, #tpu.memory_space<vmem>>, vector<8x64xf32>
    %c208_130 = arith.constant 208 : index
    %c0_131 = arith.constant 0 : index
    %144 = tpu.strided_load %arg20[%c208_130, %c0_131] {strides = array<i32: 2, 1>} : memref<256x64xf32, #tpu.memory_space<vmem>>, vector<8x64xf32>
    %c209_132 = arith.constant 209 : index
    %c0_133 = arith.constant 0 : index
    %145 = tpu.strided_load %arg20[%c209_132, %c0_133] {strides = array<i32: 2, 1>} : memref<256x64xf32, #tpu.memory_space<vmem>>, vector<8x64xf32>
    %146 = arith.maximumf %142, %143 : vector<8x64xf32>
    %147 = arith.maximumf %144, %145 : vector<8x64xf32>
    %148 = arith.maximumf %146, %147 : vector<8x64xf32>
    %c171 = arith.constant 171 : index
    %c0_134 = arith.constant 0 : index
    %149 = vector.load %arg17[%c171, %c0_134] : memref<208x64xf32, #tpu.memory_space<vmem>>, vector<8x64xf32>
    tpu.vector_store %arg17[%c171, %c0_134], %148 {strides = array<i32>} : memref<208x64xf32, #tpu.memory_space<vmem>>, vector<8x64xf32>,
    %c224_135 = arith.constant 224 : index
    %c0_136 = arith.constant 0 : index
    %150 = tpu.strided_load %arg20[%c224_135, %c0_136] {strides = array<i32: 2, 1>} : memref<256x64xf32, #tpu.memory_space<vmem>>, vector<8x64xf32>
    %c225_137 = arith.constant 225 : index
    %c0_138 = arith.constant 0 : index
    %151 = tpu.strided_load %arg20[%c225_137, %c0_138] {strides = array<i32: 2, 1>} : memref<256x64xf32, #tpu.memory_space<vmem>>, vector<8x64xf32>
    %c240_139 = arith.constant 240 : index
    %c0_140 = arith.constant 0 : index
    %152 = tpu.strided_load %arg20[%c240_139, %c0_140] {strides = array<i32: 2, 1>} : memref<256x64xf32, #tpu.memory_space<vmem>>, vector<8x64xf32>
    %c241_141 = arith.constant 241 : index
    %c0_142 = arith.constant 0 : index
    %153 = tpu.strided_load %arg20[%c241_141, %c0_142] {strides = array<i32: 2, 1>} : memref<256x64xf32, #tpu.memory_space<vmem>>, vector<8x64xf32>
    %154 = arith.maximumf %150, %151 : vector<8x64xf32>
    %155 = arith.maximumf %152, %153 : vector<8x64xf32>
    %156 = arith.maximumf %154, %155 : vector<8x64xf32>
    %c181 = arith.constant 181 : index
    %c0_143 = arith.constant 0 : index
    %157 = vector.load %arg17[%c181, %c0_143] : memref<208x64xf32, #tpu.memory_space<vmem>>, vector<8x64xf32>
    tpu.vector_store %arg17[%c181, %c0_143], %156 {strides = array<i32>} : memref<208x64xf32, #tpu.memory_space<vmem>>, vector<8x64xf32>,
    %c0_144 = arith.constant 0 : index
    %c0_145 = arith.constant 0 : index
    %158 = vector.load %arg6[%c0_144, %c0_145] : memref<1x64xf32, #tpu.memory_space<vmem>>, vector<1x64xf32>
    %c0_146 = arith.constant 0 : index
    %c0_147 = arith.constant 0 : index
    %159 = vector.load %arg7[%c0_146, %c0_147] : memref<1x64xf32, #tpu.memory_space<vmem>>, vector<1x64xf32>
    %c0_148 = arith.constant 0 : index
    %c0_149 = arith.constant 0 : index
    %160 = vector.load %arg17[%c0_148, %c0_149] : memref<208x64xf32, #tpu.memory_space<vmem>>, vector<180x64xf32>
    %161 = arith.truncf %160 : vector<180x64xf32> to vector<180x64xbf16>
    %c0_150 = arith.constant 0 : index
    %c0_151 = arith.constant 0 : index
    %c0_152 = arith.constant 0 : index
    %162 = vector.load %arg5[%c0_150, %c0_151, %c0_152] : memref<9x64x64xbf16, #tpu.memory_space<vmem>>, vector<1x64x64xbf16>
    %163 = vector.shape_cast %162 : vector<1x64x64xbf16> to vector<64x64xbf16>
    %cst_153 = arith.constant dense<0.000000e+00> : vector<180x64xf32>
    %164 = tpu.matmul %161, %163, %cst_153 {dimension_numbers = #tpu.dot_dimension_numbers<[1], [0], [0], [1], [0, 0, 1, 1], [], []>} : vector<180x64xbf16>, vector<64x64xbf16>, vector<180x64xf32> -> vector<180x64xf32>
    %c1_154 = arith.constant 1 : index
    %c0_155 = arith.constant 0 : index
    %165 = vector.load %arg17[%c1_154, %c0_155] : memref<208x64xf32, #tpu.memory_space<vmem>>, vector<180x64xf32>
    %166 = arith.truncf %165 : vector<180x64xf32> to vector<180x64xbf16>
    %c1_156 = arith.constant 1 : index
    %c0_157 = arith.constant 0 : index
    %c0_158 = arith.constant 0 : index
    %167 = vector.load %arg5[%c1_156, %c0_157, %c0_158] : memref<9x64x64xbf16, #tpu.memory_space<vmem>>, vector<1x64x64xbf16>
    %168 = vector.shape_cast %167 : vector<1x64x64xbf16> to vector<64x64xbf16>
    %cst_159 = arith.constant dense<0.000000e+00> : vector<180x64xf32>
    %169 = tpu.matmul %166, %168, %cst_159 {dimension_numbers = #tpu.dot_dimension_numbers<[1], [0], [0], [1], [0, 0, 1, 1], [], []>} : vector<180x64xbf16>, vector<64x64xbf16>, vector<180x64xf32> -> vector<180x64xf32>
    %170 = arith.addf %164, %169 : vector<180x64xf32>
    %c2 = arith.constant 2 : index
    %c0_160 = arith.constant 0 : index
    %171 = vector.load %arg17[%c2, %c0_160] : memref<208x64xf32, #tpu.memory_space<vmem>>, vector<180x64xf32>
    %172 = arith.truncf %171 : vector<180x64xf32> to vector<180x64xbf16>
    %c2_161 = arith.constant 2 : index
    %c0_162 = arith.constant 0 : index
    %c0_163 = arith.constant 0 : index
    %173 = vector.load %arg5[%c2_161, %c0_162, %c0_163] : memref<9x64x64xbf16, #tpu.memory_space<vmem>>, vector<1x64x64xbf16>
    %174 = vector.shape_cast %173 : vector<1x64x64xbf16> to vector<64x64xbf16>
    %cst_164 = arith.constant dense<0.000000e+00> : vector<180x64xf32>
    %175 = tpu.matmul %172, %174, %cst_164 {dimension_numbers = #tpu.dot_dimension_numbers<[1], [0], [0], [1], [0, 0, 1, 1], [], []>} : vector<180x64xbf16>, vector<64x64xbf16>, vector<180x64xf32> -> vector<180x64xf32>
    %176 = arith.addf %170, %175 : vector<180x64xf32>
    %c10 = arith.constant 10 : index
    %c0_165 = arith.constant 0 : index
    %177 = vector.load %arg17[%c10, %c0_165] : memref<208x64xf32, #tpu.memory_space<vmem>>, vector<180x64xf32>
    %178 = arith.truncf %177 : vector<180x64xf32> to vector<180x64xbf16>
    %c3 = arith.constant 3 : index
    %c0_166 = arith.constant 0 : index
    %c0_167 = arith.constant 0 : index
    %179 = vector.load %arg5[%c3, %c0_166, %c0_167] : memref<9x64x64xbf16, #tpu.memory_space<vmem>>, vector<1x64x64xbf16>
    %180 = vector.shape_cast %179 : vector<1x64x64xbf16> to vector<64x64xbf16>
    %cst_168 = arith.constant dense<0.000000e+00> : vector<180x64xf32>
    %181 = tpu.matmul %178, %180, %cst_168 {dimension_numbers = #tpu.dot_dimension_numbers<[1], [0], [0], [1], [0, 0, 1, 1], [], []>} : vector<180x64xbf16>, vector<64x64xbf16>, vector<180x64xf32> -> vector<180x64xf32>
    %182 = arith.addf %176, %181 : vector<180x64xf32>
    %c11_169 = arith.constant 11 : index
    %c0_170 = arith.constant 0 : index
    %183 = vector.load %arg17[%c11_169, %c0_170] : memref<208x64xf32, #tpu.memory_space<vmem>>, vector<180x64xf32>
    %184 = arith.truncf %183 : vector<180x64xf32> to vector<180x64xbf16>
    %c4 = arith.constant 4 : index
    %c0_171 = arith.constant 0 : index
    %c0_172 = arith.constant 0 : index
    %185 = vector.load %arg5[%c4, %c0_171, %c0_172] : memref<9x64x64xbf16, #tpu.memory_space<vmem>>, vector<1x64x64xbf16>
    %186 = vector.shape_cast %185 : vector<1x64x64xbf16> to vector<64x64xbf16>
    %cst_173 = arith.constant dense<0.000000e+00> : vector<180x64xf32>
    %187 = tpu.matmul %184, %186, %cst_173 {dimension_numbers = #tpu.dot_dimension_numbers<[1], [0], [0], [1], [0, 0, 1, 1], [], []>} : vector<180x64xbf16>, vector<64x64xbf16>, vector<180x64xf32> -> vector<180x64xf32>
    %188 = arith.addf %182, %187 : vector<180x64xf32>
    %c12 = arith.constant 12 : index
    %c0_174 = arith.constant 0 : index
    %189 = vector.load %arg17[%c12, %c0_174] : memref<208x64xf32, #tpu.memory_space<vmem>>, vector<180x64xf32>
    %190 = arith.truncf %189 : vector<180x64xf32> to vector<180x64xbf16>
    %c5 = arith.constant 5 : index
    %c0_175 = arith.constant 0 : index
    %c0_176 = arith.constant 0 : index
    %191 = vector.load %arg5[%c5, %c0_175, %c0_176] : memref<9x64x64xbf16, #tpu.memory_space<vmem>>, vector<1x64x64xbf16>
    %192 = vector.shape_cast %191 : vector<1x64x64xbf16> to vector<64x64xbf16>
    %cst_177 = arith.constant dense<0.000000e+00> : vector<180x64xf32>
    %193 = tpu.matmul %190, %192, %cst_177 {dimension_numbers = #tpu.dot_dimension_numbers<[1], [0], [0], [1], [0, 0, 1, 1], [], []>} : vector<180x64xbf16>, vector<64x64xbf16>, vector<180x64xf32> -> vector<180x64xf32>
    %194 = arith.addf %188, %193 : vector<180x64xf32>
    %c20 = arith.constant 20 : index
    %c0_178 = arith.constant 0 : index
    %195 = vector.load %arg17[%c20, %c0_178] : memref<208x64xf32, #tpu.memory_space<vmem>>, vector<180x64xf32>
    %196 = arith.truncf %195 : vector<180x64xf32> to vector<180x64xbf16>
    %c6 = arith.constant 6 : index
    %c0_179 = arith.constant 0 : index
    %c0_180 = arith.constant 0 : index
    %197 = vector.load %arg5[%c6, %c0_179, %c0_180] : memref<9x64x64xbf16, #tpu.memory_space<vmem>>, vector<1x64x64xbf16>
    %198 = vector.shape_cast %197 : vector<1x64x64xbf16> to vector<64x64xbf16>
    %cst_181 = arith.constant dense<0.000000e+00> : vector<180x64xf32>
    %199 = tpu.matmul %196, %198, %cst_181 {dimension_numbers = #tpu.dot_dimension_numbers<[1], [0], [0], [1], [0, 0, 1, 1], [], []>} : vector<180x64xbf16>, vector<64x64xbf16>, vector<180x64xf32> -> vector<180x64xf32>
    %200 = arith.addf %194, %199 : vector<180x64xf32>
    %c21_182 = arith.constant 21 : index
    %c0_183 = arith.constant 0 : index
    %201 = vector.load %arg17[%c21_182, %c0_183] : memref<208x64xf32, #tpu.memory_space<vmem>>, vector<180x64xf32>
    %202 = arith.truncf %201 : vector<180x64xf32> to vector<180x64xbf16>
    %c7 = arith.constant 7 : index
    %c0_184 = arith.constant 0 : index
    %c0_185 = arith.constant 0 : index
    %203 = vector.load %arg5[%c7, %c0_184, %c0_185] : memref<9x64x64xbf16, #tpu.memory_space<vmem>>, vector<1x64x64xbf16>
    %204 = vector.shape_cast %203 : vector<1x64x64xbf16> to vector<64x64xbf16>
    %cst_186 = arith.constant dense<0.000000e+00> : vector<180x64xf32>
    %205 = tpu.matmul %202, %204, %cst_186 {dimension_numbers = #tpu.dot_dimension_numbers<[1], [0], [0], [1], [0, 0, 1, 1], [], []>} : vector<180x64xbf16>, vector<64x64xbf16>, vector<180x64xf32> -> vector<180x64xf32>
    %206 = arith.addf %200, %205 : vector<180x64xf32>
    %c22 = arith.constant 22 : index
    %c0_187 = arith.constant 0 : index
    %207 = vector.load %arg17[%c22, %c0_187] : memref<208x64xf32, #tpu.memory_space<vmem>>, vector<180x64xf32>
    %208 = arith.truncf %207 : vector<180x64xf32> to vector<180x64xbf16>
    %c8 = arith.constant 8 : index
    %c0_188 = arith.constant 0 : index
    %c0_189 = arith.constant 0 : index
    %209 = vector.load %arg5[%c8, %c0_188, %c0_189] : memref<9x64x64xbf16, #tpu.memory_space<vmem>>, vector<1x64x64xbf16>
    %210 = vector.shape_cast %209 : vector<1x64x64xbf16> to vector<64x64xbf16>
    %cst_190 = arith.constant dense<0.000000e+00> : vector<180x64xf32>
    %211 = tpu.matmul %208, %210, %cst_190 {dimension_numbers = #tpu.dot_dimension_numbers<[1], [0], [0], [1], [0, 0, 1, 1], [], []>} : vector<180x64xbf16>, vector<64x64xbf16>, vector<180x64xf32> -> vector<180x64xf32>
    %212 = arith.addf %206, %211 : vector<180x64xf32>
    %213 = vector.broadcast %158 : vector<1x64xf32> to vector<180x64xf32>
    %214 = arith.mulf %212, %213 : vector<180x64xf32>
    %215 = vector.broadcast %159 : vector<1x64xf32> to vector<180x64xf32>
    %216 = arith.addf %214, %215 : vector<180x64xf32>
    %cst_191 = arith.constant 0.000000e+00 : f32
    %217 = vector.broadcast %cst_191 : f32 to vector<180x64xf32>
    %218 = arith.maximumf %216, %217 : vector<180x64xf32>
    %c0_192 = arith.constant 0 : index
    %c0_193 = arith.constant 0 : index
    %219 = vector.load %arg20[%c0_192, %c0_193] : memref<256x64xf32, #tpu.memory_space<vmem>>, vector<180x64xf32>
    tpu.vector_store %arg20[%c0_192, %c0_193], %218 {strides = array<i32>} : memref<256x64xf32, #tpu.memory_space<vmem>>, vector<180x64xf32>,
    %c0_194 = arith.constant 0 : index
    %c0_195 = arith.constant 0 : index
    %220 = tpu.strided_load %arg20[%c0_194, %c0_195] {strides = array<i32: 2, 1>} : memref<256x64xf32, #tpu.memory_space<vmem>>, vector<4x64xf32>
    %c1_196 = arith.constant 1 : index
    %c0_197 = arith.constant 0 : index
    %221 = tpu.strided_load %arg20[%c1_196, %c0_197] {strides = array<i32: 2, 1>} : memref<256x64xf32, #tpu.memory_space<vmem>>, vector<4x64xf32>
    %c10_198 = arith.constant 10 : index
    %c0_199 = arith.constant 0 : index
    %222 = tpu.strided_load %arg20[%c10_198, %c0_199] {strides = array<i32: 2, 1>} : memref<256x64xf32, #tpu.memory_space<vmem>>, vector<4x64xf32>
    %c11_200 = arith.constant 11 : index
    %c0_201 = arith.constant 0 : index
    %223 = tpu.strided_load %arg20[%c11_200, %c0_201] {strides = array<i32: 2, 1>} : memref<256x64xf32, #tpu.memory_space<vmem>>, vector<4x64xf32>
    %224 = arith.maximumf %220, %221 : vector<4x64xf32>
    %225 = arith.maximumf %222, %223 : vector<4x64xf32>
    %226 = arith.maximumf %224, %225 : vector<4x64xf32>
    %c7_202 = arith.constant 7 : index
    %c0_203 = arith.constant 0 : index
    %227 = vector.load %arg18[%c7_202, %c0_203] : memref<80x64xf32, #tpu.memory_space<vmem>>, vector<4x64xf32>
    tpu.vector_store %arg18[%c7_202, %c0_203], %226 {strides = array<i32>} : memref<80x64xf32, #tpu.memory_space<vmem>>, vector<4x64xf32>,
    %c20_204 = arith.constant 20 : index
    %c0_205 = arith.constant 0 : index
    %228 = tpu.strided_load %arg20[%c20_204, %c0_205] {strides = array<i32: 2, 1>} : memref<256x64xf32, #tpu.memory_space<vmem>>, vector<4x64xf32>
    %c21_206 = arith.constant 21 : index
    %c0_207 = arith.constant 0 : index
    %229 = tpu.strided_load %arg20[%c21_206, %c0_207] {strides = array<i32: 2, 1>} : memref<256x64xf32, #tpu.memory_space<vmem>>, vector<4x64xf32>
    %c30 = arith.constant 30 : index
    %c0_208 = arith.constant 0 : index
    %230 = tpu.strided_load %arg20[%c30, %c0_208] {strides = array<i32: 2, 1>} : memref<256x64xf32, #tpu.memory_space<vmem>>, vector<4x64xf32>
    %c31_209 = arith.constant 31 : index
    %c0_210 = arith.constant 0 : index
    %231 = tpu.strided_load %arg20[%c31_209, %c0_210] {strides = array<i32: 2, 1>} : memref<256x64xf32, #tpu.memory_space<vmem>>, vector<4x64xf32>
    %232 = arith.maximumf %228, %229 : vector<4x64xf32>
    %233 = arith.maximumf %230, %231 : vector<4x64xf32>
    %234 = arith.maximumf %232, %233 : vector<4x64xf32>
    %c13 = arith.constant 13 : index
    %c0_211 = arith.constant 0 : index
    %235 = vector.load %arg18[%c13, %c0_211] : memref<80x64xf32, #tpu.memory_space<vmem>>, vector<4x64xf32>
    tpu.vector_store %arg18[%c13, %c0_211], %234 {strides = array<i32>} : memref<80x64xf32, #tpu.memory_space<vmem>>, vector<4x64xf32>,
    %c40 = arith.constant 40 : index
    %c0_212 = arith.constant 0 : index
    %236 = tpu.strided_load %arg20[%c40, %c0_212] {strides = array<i32: 2, 1>} : memref<256x64xf32, #tpu.memory_space<vmem>>, vector<4x64xf32>
    %c41_213 = arith.constant 41 : index
    %c0_214 = arith.constant 0 : index
    %237 = tpu.strided_load %arg20[%c41_213, %c0_214] {strides = array<i32: 2, 1>} : memref<256x64xf32, #tpu.memory_space<vmem>>, vector<4x64xf32>
    %c50 = arith.constant 50 : index
    %c0_215 = arith.constant 0 : index
    %238 = tpu.strided_load %arg20[%c50, %c0_215] {strides = array<i32: 2, 1>} : memref<256x64xf32, #tpu.memory_space<vmem>>, vector<4x64xf32>
    %c51_216 = arith.constant 51 : index
    %c0_217 = arith.constant 0 : index
    %239 = tpu.strided_load %arg20[%c51_216, %c0_217] {strides = array<i32: 2, 1>} : memref<256x64xf32, #tpu.memory_space<vmem>>, vector<4x64xf32>
    %240 = arith.maximumf %236, %237 : vector<4x64xf32>
    %241 = arith.maximumf %238, %239 : vector<4x64xf32>
    %242 = arith.maximumf %240, %241 : vector<4x64xf32>
    %c19 = arith.constant 19 : index
    %c0_218 = arith.constant 0 : index
    %243 = vector.load %arg18[%c19, %c0_218] : memref<80x64xf32, #tpu.memory_space<vmem>>, vector<4x64xf32>
    tpu.vector_store %arg18[%c19, %c0_218], %242 {strides = array<i32>} : memref<80x64xf32, #tpu.memory_space<vmem>>, vector<4x64xf32>,
    %c60 = arith.constant 60 : index
    %c0_219 = arith.constant 0 : index
    %244 = tpu.strided_load %arg20[%c60, %c0_219] {strides = array<i32: 2, 1>} : memref<256x64xf32, #tpu.memory_space<vmem>>, vector<4x64xf32>
    %c61_220 = arith.constant 61 : index
    %c0_221 = arith.constant 0 : index
    %245 = tpu.strided_load %arg20[%c61_220, %c0_221] {strides = array<i32: 2, 1>} : memref<256x64xf32, #tpu.memory_space<vmem>>, vector<4x64xf32>
    %c70 = arith.constant 70 : index
    %c0_222 = arith.constant 0 : index
    %246 = tpu.strided_load %arg20[%c70, %c0_222] {strides = array<i32: 2, 1>} : memref<256x64xf32, #tpu.memory_space<vmem>>, vector<4x64xf32>
    %c71_223 = arith.constant 71 : index
    %c0_224 = arith.constant 0 : index
    %247 = tpu.strided_load %arg20[%c71_223, %c0_224] {strides = array<i32: 2, 1>} : memref<256x64xf32, #tpu.memory_space<vmem>>, vector<4x64xf32>
    %248 = arith.maximumf %244, %245 : vector<4x64xf32>
    %249 = arith.maximumf %246, %247 : vector<4x64xf32>
    %250 = arith.maximumf %248, %249 : vector<4x64xf32>
    %c25 = arith.constant 25 : index
    %c0_225 = arith.constant 0 : index
    %251 = vector.load %arg18[%c25, %c0_225] : memref<80x64xf32, #tpu.memory_space<vmem>>, vector<4x64xf32>
    tpu.vector_store %arg18[%c25, %c0_225], %250 {strides = array<i32>} : memref<80x64xf32, #tpu.memory_space<vmem>>, vector<4x64xf32>,
    %c100 = arith.constant 100 : index
    %c0_226 = arith.constant 0 : index
    %252 = tpu.strided_load %arg20[%c100, %c0_226] {strides = array<i32: 2, 1>} : memref<256x64xf32, #tpu.memory_space<vmem>>, vector<4x64xf32>
    %c101 = arith.constant 101 : index
    %c0_227 = arith.constant 0 : index
    %253 = tpu.strided_load %arg20[%c101, %c0_227] {strides = array<i32: 2, 1>} : memref<256x64xf32, #tpu.memory_space<vmem>>, vector<4x64xf32>
    %c110 = arith.constant 110 : index
    %c0_228 = arith.constant 0 : index
    %254 = tpu.strided_load %arg20[%c110, %c0_228] {strides = array<i32: 2, 1>} : memref<256x64xf32, #tpu.memory_space<vmem>>, vector<4x64xf32>
    %c111_229 = arith.constant 111 : index
    %c0_230 = arith.constant 0 : index
    %255 = tpu.strided_load %arg20[%c111_229, %c0_230] {strides = array<i32: 2, 1>} : memref<256x64xf32, #tpu.memory_space<vmem>>, vector<4x64xf32>
    %256 = arith.maximumf %252, %253 : vector<4x64xf32>
    %257 = arith.maximumf %254, %255 : vector<4x64xf32>
    %258 = arith.maximumf %256, %257 : vector<4x64xf32>
    %c43 = arith.constant 43 : index
    %c0_231 = arith.constant 0 : index
    %259 = vector.load %arg18[%c43, %c0_231] : memref<80x64xf32, #tpu.memory_space<vmem>>, vector<4x64xf32>
    tpu.vector_store %arg18[%c43, %c0_231], %258 {strides = array<i32>} : memref<80x64xf32, #tpu.memory_space<vmem>>, vector<4x64xf32>,
    %c120 = arith.constant 120 : index
    %c0_232 = arith.constant 0 : index
    %260 = tpu.strided_load %arg20[%c120, %c0_232] {strides = array<i32: 2, 1>} : memref<256x64xf32, #tpu.memory_space<vmem>>, vector<4x64xf32>
    %c121_233 = arith.constant 121 : index
    %c0_234 = arith.constant 0 : index
    %261 = tpu.strided_load %arg20[%c121_233, %c0_234] {strides = array<i32: 2, 1>} : memref<256x64xf32, #tpu.memory_space<vmem>>, vector<4x64xf32>
    %c130 = arith.constant 130 : index
    %c0_235 = arith.constant 0 : index
    %262 = tpu.strided_load %arg20[%c130, %c0_235] {strides = array<i32: 2, 1>} : memref<256x64xf32, #tpu.memory_space<vmem>>, vector<4x64xf32>
    %c131_236 = arith.constant 131 : index
    %c0_237 = arith.constant 0 : index
    %263 = tpu.strided_load %arg20[%c131_236, %c0_237] {strides = array<i32: 2, 1>} : memref<256x64xf32, #tpu.memory_space<vmem>>, vector<4x64xf32>
    %264 = arith.maximumf %260, %261 : vector<4x64xf32>
    %265 = arith.maximumf %262, %263 : vector<4x64xf32>
    %266 = arith.maximumf %264, %265 : vector<4x64xf32>
    %c49_238 = arith.constant 49 : index
    %c0_239 = arith.constant 0 : index
    %267 = vector.load %arg18[%c49_238, %c0_239] : memref<80x64xf32, #tpu.memory_space<vmem>>, vector<4x64xf32>
    tpu.vector_store %arg18[%c49_238, %c0_239], %266 {strides = array<i32>} : memref<80x64xf32, #tpu.memory_space<vmem>>, vector<4x64xf32>,
    %c140 = arith.constant 140 : index
    %c0_240 = arith.constant 0 : index
    %268 = tpu.strided_load %arg20[%c140, %c0_240] {strides = array<i32: 2, 1>} : memref<256x64xf32, #tpu.memory_space<vmem>>, vector<4x64xf32>
    %c141_241 = arith.constant 141 : index
    %c0_242 = arith.constant 0 : index
    %269 = tpu.strided_load %arg20[%c141_241, %c0_242] {strides = array<i32: 2, 1>} : memref<256x64xf32, #tpu.memory_space<vmem>>, vector<4x64xf32>
    %c150 = arith.constant 150 : index
    %c0_243 = arith.constant 0 : index
    %270 = tpu.strided_load %arg20[%c150, %c0_243] {strides = array<i32: 2, 1>} : memref<256x64xf32, #tpu.memory_space<vmem>>, vector<4x64xf32>
    %c151_244 = arith.constant 151 : index
    %c0_245 = arith.constant 0 : index
    %271 = tpu.strided_load %arg20[%c151_244, %c0_245] {strides = array<i32: 2, 1>} : memref<256x64xf32, #tpu.memory_space<vmem>>, vector<4x64xf32>
    %272 = arith.maximumf %268, %269 : vector<4x64xf32>
    %273 = arith.maximumf %270, %271 : vector<4x64xf32>
    %274 = arith.maximumf %272, %273 : vector<4x64xf32>
    %c55 = arith.constant 55 : index
    %c0_246 = arith.constant 0 : index
    %275 = vector.load %arg18[%c55, %c0_246] : memref<80x64xf32, #tpu.memory_space<vmem>>, vector<4x64xf32>
    tpu.vector_store %arg18[%c55, %c0_246], %274 {strides = array<i32>} : memref<80x64xf32, #tpu.memory_space<vmem>>, vector<4x64xf32>,
    %c160_247 = arith.constant 160 : index
    %c0_248 = arith.constant 0 : index
    %276 = tpu.strided_load %arg20[%c160_247, %c0_248] {strides = array<i32: 2, 1>} : memref<256x64xf32, #tpu.memory_space<vmem>>, vector<4x64xf32>
    %c161_249 = arith.constant 161 : index
    %c0_250 = arith.constant 0 : index
    %277 = tpu.strided_load %arg20[%c161_249, %c0_250] {strides = array<i32: 2, 1>} : memref<256x64xf32, #tpu.memory_space<vmem>>, vector<4x64xf32>
    %c170 = arith.constant 170 : index
    %c0_251 = arith.constant 0 : index
    %278 = tpu.strided_load %arg20[%c170, %c0_251] {strides = array<i32: 2, 1>} : memref<256x64xf32, #tpu.memory_space<vmem>>, vector<4x64xf32>
    %c171_252 = arith.constant 171 : index
    %c0_253 = arith.constant 0 : index
    %279 = tpu.strided_load %arg20[%c171_252, %c0_253] {strides = array<i32: 2, 1>} : memref<256x64xf32, #tpu.memory_space<vmem>>, vector<4x64xf32>
    %280 = arith.maximumf %276, %277 : vector<4x64xf32>
    %281 = arith.maximumf %278, %279 : vector<4x64xf32>
    %282 = arith.maximumf %280, %281 : vector<4x64xf32>
    %c61_254 = arith.constant 61 : index
    %c0_255 = arith.constant 0 : index
    %283 = vector.load %arg18[%c61_254, %c0_255] : memref<80x64xf32, #tpu.memory_space<vmem>>, vector<4x64xf32>
    tpu.vector_store %arg18[%c61_254, %c0_255], %282 {strides = array<i32>} : memref<80x64xf32, #tpu.memory_space<vmem>>, vector<4x64xf32>,
    %c0_256 = arith.constant 0 : index
    %c0_257 = arith.constant 0 : index
    %284 = vector.load %arg9[%c0_256, %c0_257] : memref<1x64xf32, #tpu.memory_space<vmem>>, vector<1x64xf32>
    %c0_258 = arith.constant 0 : index
    %c0_259 = arith.constant 0 : index
    %285 = vector.load %arg10[%c0_258, %c0_259] : memref<1x64xf32, #tpu.memory_space<vmem>>, vector<1x64xf32>
    %c0_260 = arith.constant 0 : index
    %c0_261 = arith.constant 0 : index
    %286 = vector.load %arg18[%c0_260, %c0_261] : memref<80x64xf32, #tpu.memory_space<vmem>>, vector<60x64xf32>
    %287 = arith.truncf %286 : vector<60x64xf32> to vector<60x64xbf16>
    %c0_262 = arith.constant 0 : index
    %c0_263 = arith.constant 0 : index
    %c0_264 = arith.constant 0 : index
    %288 = vector.load %arg8[%c0_262, %c0_263, %c0_264] : memref<9x64x64xbf16, #tpu.memory_space<vmem>>, vector<1x64x64xbf16>
    %289 = vector.shape_cast %288 : vector<1x64x64xbf16> to vector<64x64xbf16>
    %cst_265 = arith.constant dense<0.000000e+00> : vector<60x64xf32>
    %290 = tpu.matmul %287, %289, %cst_265 {dimension_numbers = #tpu.dot_dimension_numbers<[1], [0], [0], [1], [0, 0, 1, 1], [], []>} : vector<60x64xbf16>, vector<64x64xbf16>, vector<60x64xf32> -> vector<60x64xf32>
    %c1_266 = arith.constant 1 : index
    %c0_267 = arith.constant 0 : index
    %291 = vector.load %arg18[%c1_266, %c0_267] : memref<80x64xf32, #tpu.memory_space<vmem>>, vector<60x64xf32>
    %292 = arith.truncf %291 : vector<60x64xf32> to vector<60x64xbf16>
    %c1_268 = arith.constant 1 : index
    %c0_269 = arith.constant 0 : index
    %c0_270 = arith.constant 0 : index
    %293 = vector.load %arg8[%c1_268, %c0_269, %c0_270] : memref<9x64x64xbf16, #tpu.memory_space<vmem>>, vector<1x64x64xbf16>
    %294 = vector.shape_cast %293 : vector<1x64x64xbf16> to vector<64x64xbf16>
    %cst_271 = arith.constant dense<0.000000e+00> : vector<60x64xf32>
    %295 = tpu.matmul %292, %294, %cst_271 {dimension_numbers = #tpu.dot_dimension_numbers<[1], [0], [0], [1], [0, 0, 1, 1], [], []>} : vector<60x64xbf16>, vector<64x64xbf16>, vector<60x64xf32> -> vector<60x64xf32>
    %296 = arith.addf %290, %295 : vector<60x64xf32>
    %c2_272 = arith.constant 2 : index
    %c0_273 = arith.constant 0 : index
    %297 = vector.load %arg18[%c2_272, %c0_273] : memref<80x64xf32, #tpu.memory_space<vmem>>, vector<60x64xf32>
    %298 = arith.truncf %297 : vector<60x64xf32> to vector<60x64xbf16>
    %c2_274 = arith.constant 2 : index
    %c0_275 = arith.constant 0 : index
    %c0_276 = arith.constant 0 : index
    %299 = vector.load %arg8[%c2_274, %c0_275, %c0_276] : memref<9x64x64xbf16, #tpu.memory_space<vmem>>, vector<1x64x64xbf16>
    %300 = vector.shape_cast %299 : vector<1x64x64xbf16> to vector<64x64xbf16>
    %cst_277 = arith.constant dense<0.000000e+00> : vector<60x64xf32>
    %301 = tpu.matmul %298, %300, %cst_277 {dimension_numbers = #tpu.dot_dimension_numbers<[1], [0], [0], [1], [0, 0, 1, 1], [], []>} : vector<60x64xbf16>, vector<64x64xbf16>, vector<60x64xf32> -> vector<60x64xf32>
    %302 = arith.addf %296, %301 : vector<60x64xf32>
    %c6_278 = arith.constant 6 : index
    %c0_279 = arith.constant 0 : index
    %303 = vector.load %arg18[%c6_278, %c0_279] : memref<80x64xf32, #tpu.memory_space<vmem>>, vector<60x64xf32>
    %304 = arith.truncf %303 : vector<60x64xf32> to vector<60x64xbf16>
    %c3_280 = arith.constant 3 : index
    %c0_281 = arith.constant 0 : index
    %c0_282 = arith.constant 0 : index
    %305 = vector.load %arg8[%c3_280, %c0_281, %c0_282] : memref<9x64x64xbf16, #tpu.memory_space<vmem>>, vector<1x64x64xbf16>
    %306 = vector.shape_cast %305 : vector<1x64x64xbf16> to vector<64x64xbf16>
    %cst_283 = arith.constant dense<0.000000e+00> : vector<60x64xf32>
    %307 = tpu.matmul %304, %306, %cst_283 {dimension_numbers = #tpu.dot_dimension_numbers<[1], [0], [0], [1], [0, 0, 1, 1], [], []>} : vector<60x64xbf16>, vector<64x64xbf16>, vector<60x64xf32> -> vector<60x64xf32>
    %308 = arith.addf %302, %307 : vector<60x64xf32>
    %c7_284 = arith.constant 7 : index
    %c0_285 = arith.constant 0 : index
    %309 = vector.load %arg18[%c7_284, %c0_285] : memref<80x64xf32, #tpu.memory_space<vmem>>, vector<60x64xf32>
    %310 = arith.truncf %309 : vector<60x64xf32> to vector<60x64xbf16>
    %c4_286 = arith.constant 4 : index
    %c0_287 = arith.constant 0 : index
    %c0_288 = arith.constant 0 : index
    %311 = vector.load %arg8[%c4_286, %c0_287, %c0_288] : memref<9x64x64xbf16, #tpu.memory_space<vmem>>, vector<1x64x64xbf16>
    %312 = vector.shape_cast %311 : vector<1x64x64xbf16> to vector<64x64xbf16>
    %cst_289 = arith.constant dense<0.000000e+00> : vector<60x64xf32>
    %313 = tpu.matmul %310, %312, %cst_289 {dimension_numbers = #tpu.dot_dimension_numbers<[1], [0], [0], [1], [0, 0, 1, 1], [], []>} : vector<60x64xbf16>, vector<64x64xbf16>, vector<60x64xf32> -> vector<60x64xf32>
    %314 = arith.addf %308, %313 : vector<60x64xf32>
    %c8_290 = arith.constant 8 : index
    %c0_291 = arith.constant 0 : index
    %315 = vector.load %arg18[%c8_290, %c0_291] : memref<80x64xf32, #tpu.memory_space<vmem>>, vector<60x64xf32>
    %316 = arith.truncf %315 : vector<60x64xf32> to vector<60x64xbf16>
    %c5_292 = arith.constant 5 : index
    %c0_293 = arith.constant 0 : index
    %c0_294 = arith.constant 0 : index
    %317 = vector.load %arg8[%c5_292, %c0_293, %c0_294] : memref<9x64x64xbf16, #tpu.memory_space<vmem>>, vector<1x64x64xbf16>
    %318 = vector.shape_cast %317 : vector<1x64x64xbf16> to vector<64x64xbf16>
    %cst_295 = arith.constant dense<0.000000e+00> : vector<60x64xf32>
    %319 = tpu.matmul %316, %318, %cst_295 {dimension_numbers = #tpu.dot_dimension_numbers<[1], [0], [0], [1], [0, 0, 1, 1], [], []>} : vector<60x64xbf16>, vector<64x64xbf16>, vector<60x64xf32> -> vector<60x64xf32>
    %320 = arith.addf %314, %319 : vector<60x64xf32>
    %c12_296 = arith.constant 12 : index
    %c0_297 = arith.constant 0 : index
    %321 = vector.load %arg18[%c12_296, %c0_297] : memref<80x64xf32, #tpu.memory_space<vmem>>, vector<60x64xf32>
    %322 = arith.truncf %321 : vector<60x64xf32> to vector<60x64xbf16>
    %c6_298 = arith.constant 6 : index
    %c0_299 = arith.constant 0 : index
    %c0_300 = arith.constant 0 : index
    %323 = vector.load %arg8[%c6_298, %c0_299, %c0_300] : memref<9x64x64xbf16, #tpu.memory_space<vmem>>, vector<1x64x64xbf16>
    %324 = vector.shape_cast %323 : vector<1x64x64xbf16> to vector<64x64xbf16>
    %cst_301 = arith.constant dense<0.000000e+00> : vector<60x64xf32>
    %325 = tpu.matmul %322, %324, %cst_301 {dimension_numbers = #tpu.dot_dimension_numbers<[1], [0], [0], [1], [0, 0, 1, 1], [], []>} : vector<60x64xbf16>, vector<64x64xbf16>, vector<60x64xf32> -> vector<60x64xf32>
    %326 = arith.addf %320, %325 : vector<60x64xf32>
    %c13_302 = arith.constant 13 : index
    %c0_303 = arith.constant 0 : index
    %327 = vector.load %arg18[%c13_302, %c0_303] : memref<80x64xf32, #tpu.memory_space<vmem>>, vector<60x64xf32>
    %328 = arith.truncf %327 : vector<60x64xf32> to vector<60x64xbf16>
    %c7_304 = arith.constant 7 : index
    %c0_305 = arith.constant 0 : index
    %c0_306 = arith.constant 0 : index
    %329 = vector.load %arg8[%c7_304, %c0_305, %c0_306] : memref<9x64x64xbf16, #tpu.memory_space<vmem>>, vector<1x64x64xbf16>
    %330 = vector.shape_cast %329 : vector<1x64x64xbf16> to vector<64x64xbf16>
    %cst_307 = arith.constant dense<0.000000e+00> : vector<60x64xf32>
    %331 = tpu.matmul %328, %330, %cst_307 {dimension_numbers = #tpu.dot_dimension_numbers<[1], [0], [0], [1], [0, 0, 1, 1], [], []>} : vector<60x64xbf16>, vector<64x64xbf16>, vector<60x64xf32> -> vector<60x64xf32>
    %332 = arith.addf %326, %331 : vector<60x64xf32>
    %c14 = arith.constant 14 : index
    %c0_308 = arith.constant 0 : index
    %333 = vector.load %arg18[%c14, %c0_308] : memref<80x64xf32, #tpu.memory_space<vmem>>, vector<60x64xf32>
    %334 = arith.truncf %333 : vector<60x64xf32> to vector<60x64xbf16>
    %c8_309 = arith.constant 8 : index
    %c0_310 = arith.constant 0 : index
    %c0_311 = arith.constant 0 : index
    %335 = vector.load %arg8[%c8_309, %c0_310, %c0_311] : memref<9x64x64xbf16, #tpu.memory_space<vmem>>, vector<1x64x64xbf16>
    %336 = vector.shape_cast %335 : vector<1x64x64xbf16> to vector<64x64xbf16>
    %cst_312 = arith.constant dense<0.000000e+00> : vector<60x64xf32>
    %337 = tpu.matmul %334, %336, %cst_312 {dimension_numbers = #tpu.dot_dimension_numbers<[1], [0], [0], [1], [0, 0, 1, 1], [], []>} : vector<60x64xbf16>, vector<64x64xbf16>, vector<60x64xf32> -> vector<60x64xf32>
    %338 = arith.addf %332, %337 : vector<60x64xf32>
    %339 = vector.broadcast %284 : vector<1x64xf32> to vector<60x64xf32>
    %340 = arith.mulf %338, %339 : vector<60x64xf32>
    %341 = vector.broadcast %285 : vector<1x64xf32> to vector<60x64xf32>
    %342 = arith.addf %340, %341 : vector<60x64xf32>
    %cst_313 = arith.constant 0.000000e+00 : f32
    %343 = vector.broadcast %cst_313 : f32 to vector<60x64xf32>
    %344 = arith.maximumf %342, %343 : vector<60x64xf32>
    %c0_314 = arith.constant 0 : index
    %c0_315 = arith.constant 0 : index
    %345 = vector.load %arg20[%c0_314, %c0_315] : memref<256x64xf32, #tpu.memory_space<vmem>>, vector<60x64xf32>
    tpu.vector_store %arg20[%c0_314, %c0_315], %344 {strides = array<i32>} : memref<256x64xf32, #tpu.memory_space<vmem>>, vector<60x64xf32>,
    %c0_316 = arith.constant 0 : index
    %c0_317 = arith.constant 0 : index
    %346 = tpu.strided_load %arg20[%c0_316, %c0_317] {strides = array<i32: 2, 1>} : memref<256x64xf32, #tpu.memory_space<vmem>>, vector<2x64xf32>
    %c1_318 = arith.constant 1 : index
    %c0_319 = arith.constant 0 : index
    %347 = tpu.strided_load %arg20[%c1_318, %c0_319] {strides = array<i32: 2, 1>} : memref<256x64xf32, #tpu.memory_space<vmem>>, vector<2x64xf32>
    %c6_320 = arith.constant 6 : index
    %c0_321 = arith.constant 0 : index
    %348 = tpu.strided_load %arg20[%c6_320, %c0_321] {strides = array<i32: 2, 1>} : memref<256x64xf32, #tpu.memory_space<vmem>>, vector<2x64xf32>
    %c7_322 = arith.constant 7 : index
    %c0_323 = arith.constant 0 : index
    %349 = tpu.strided_load %arg20[%c7_322, %c0_323] {strides = array<i32: 2, 1>} : memref<256x64xf32, #tpu.memory_space<vmem>>, vector<2x64xf32>
    %350 = arith.maximumf %346, %347 : vector<2x64xf32>
    %351 = arith.maximumf %348, %349 : vector<2x64xf32>
    %352 = arith.maximumf %350, %351 : vector<2x64xf32>
    %c5_324 = arith.constant 5 : index
    %c0_325 = arith.constant 0 : index
    %353 = vector.load %arg19[%c5_324, %c0_325] : memref<40x64xf32, #tpu.memory_space<vmem>>, vector<2x64xf32>
    tpu.vector_store %arg19[%c5_324, %c0_325], %352 {strides = array<i32>} : memref<40x64xf32, #tpu.memory_space<vmem>>, vector<2x64xf32>,
    %c12_326 = arith.constant 12 : index
    %c0_327 = arith.constant 0 : index
    %354 = tpu.strided_load %arg20[%c12_326, %c0_327] {strides = array<i32: 2, 1>} : memref<256x64xf32, #tpu.memory_space<vmem>>, vector<2x64xf32>
    %c13_328 = arith.constant 13 : index
    %c0_329 = arith.constant 0 : index
    %355 = tpu.strided_load %arg20[%c13_328, %c0_329] {strides = array<i32: 2, 1>} : memref<256x64xf32, #tpu.memory_space<vmem>>, vector<2x64xf32>
    %c18 = arith.constant 18 : index
    %c0_330 = arith.constant 0 : index
    %356 = tpu.strided_load %arg20[%c18, %c0_330] {strides = array<i32: 2, 1>} : memref<256x64xf32, #tpu.memory_space<vmem>>, vector<2x64xf32>
    %c19_331 = arith.constant 19 : index
    %c0_332 = arith.constant 0 : index
    %357 = tpu.strided_load %arg20[%c19_331, %c0_332] {strides = array<i32: 2, 1>} : memref<256x64xf32, #tpu.memory_space<vmem>>, vector<2x64xf32>
    %358 = arith.maximumf %354, %355 : vector<2x64xf32>
    %359 = arith.maximumf %356, %357 : vector<2x64xf32>
    %360 = arith.maximumf %358, %359 : vector<2x64xf32>
    %c9 = arith.constant 9 : index
    %c0_333 = arith.constant 0 : index
    %361 = vector.load %arg19[%c9, %c0_333] : memref<40x64xf32, #tpu.memory_space<vmem>>, vector<2x64xf32>
    tpu.vector_store %arg19[%c9, %c0_333], %360 {strides = array<i32>} : memref<40x64xf32, #tpu.memory_space<vmem>>, vector<2x64xf32>,
    %c36 = arith.constant 36 : index
    %c0_334 = arith.constant 0 : index
    %362 = tpu.strided_load %arg20[%c36, %c0_334] {strides = array<i32: 2, 1>} : memref<256x64xf32, #tpu.memory_space<vmem>>, vector<2x64xf32>
    %c37 = arith.constant 37 : index
    %c0_335 = arith.constant 0 : index
    %363 = tpu.strided_load %arg20[%c37, %c0_335] {strides = array<i32: 2, 1>} : memref<256x64xf32, #tpu.memory_space<vmem>>, vector<2x64xf32>
    %c42 = arith.constant 42 : index
    %c0_336 = arith.constant 0 : index
    %364 = tpu.strided_load %arg20[%c42, %c0_336] {strides = array<i32: 2, 1>} : memref<256x64xf32, #tpu.memory_space<vmem>>, vector<2x64xf32>
    %c43_337 = arith.constant 43 : index
    %c0_338 = arith.constant 0 : index
    %365 = tpu.strided_load %arg20[%c43_337, %c0_338] {strides = array<i32: 2, 1>} : memref<256x64xf32, #tpu.memory_space<vmem>>, vector<2x64xf32>
    %366 = arith.maximumf %362, %363 : vector<2x64xf32>
    %367 = arith.maximumf %364, %365 : vector<2x64xf32>
    %368 = arith.maximumf %366, %367 : vector<2x64xf32>
    %c21_339 = arith.constant 21 : index
    %c0_340 = arith.constant 0 : index
    %369 = vector.load %arg19[%c21_339, %c0_340] : memref<40x64xf32, #tpu.memory_space<vmem>>, vector<2x64xf32>
    tpu.vector_store %arg19[%c21_339, %c0_340], %368 {strides = array<i32>} : memref<40x64xf32, #tpu.memory_space<vmem>>, vector<2x64xf32>,
    %c48_341 = arith.constant 48 : index
    %c0_342 = arith.constant 0 : index
    %370 = tpu.strided_load %arg20[%c48_341, %c0_342] {strides = array<i32: 2, 1>} : memref<256x64xf32, #tpu.memory_space<vmem>>, vector<2x64xf32>
    %c49_343 = arith.constant 49 : index
    %c0_344 = arith.constant 0 : index
    %371 = tpu.strided_load %arg20[%c49_343, %c0_344] {strides = array<i32: 2, 1>} : memref<256x64xf32, #tpu.memory_space<vmem>>, vector<2x64xf32>
    %c54 = arith.constant 54 : index
    %c0_345 = arith.constant 0 : index
    %372 = tpu.strided_load %arg20[%c54, %c0_345] {strides = array<i32: 2, 1>} : memref<256x64xf32, #tpu.memory_space<vmem>>, vector<2x64xf32>
    %c55_346 = arith.constant 55 : index
    %c0_347 = arith.constant 0 : index
    %373 = tpu.strided_load %arg20[%c55_346, %c0_347] {strides = array<i32: 2, 1>} : memref<256x64xf32, #tpu.memory_space<vmem>>, vector<2x64xf32>
    %374 = arith.maximumf %370, %371 : vector<2x64xf32>
    %375 = arith.maximumf %372, %373 : vector<2x64xf32>
    %376 = arith.maximumf %374, %375 : vector<2x64xf32>
    %c25_348 = arith.constant 25 : index
    %c0_349 = arith.constant 0 : index
    %377 = vector.load %arg19[%c25_348, %c0_349] : memref<40x64xf32, #tpu.memory_space<vmem>>, vector<2x64xf32>
    tpu.vector_store %arg19[%c25_348, %c0_349], %376 {strides = array<i32>} : memref<40x64xf32, #tpu.memory_space<vmem>>, vector<2x64xf32>,
    %c0_350 = arith.constant 0 : index
    %c0_351 = arith.constant 0 : index
    %378 = vector.load %arg12[%c0_350, %c0_351] : memref<1x64xf32, #tpu.memory_space<vmem>>, vector<1x64xf32>
    %c0_352 = arith.constant 0 : index
    %c0_353 = arith.constant 0 : index
    %379 = vector.load %arg13[%c0_352, %c0_353] : memref<1x64xf32, #tpu.memory_space<vmem>>, vector<1x64xf32>
    %c0_354 = arith.constant 0 : index
    %c0_355 = arith.constant 0 : index
    %380 = vector.load %arg19[%c0_354, %c0_355] : memref<40x64xf32, #tpu.memory_space<vmem>>, vector<24x64xf32>
    %381 = arith.truncf %380 : vector<24x64xf32> to vector<24x64xbf16>
    %c0_356 = arith.constant 0 : index
    %c0_357 = arith.constant 0 : index
    %c0_358 = arith.constant 0 : index
    %382 = vector.load %arg11[%c0_356, %c0_357, %c0_358] : memref<9x64x64xbf16, #tpu.memory_space<vmem>>, vector<1x64x64xbf16>
    %383 = vector.shape_cast %382 : vector<1x64x64xbf16> to vector<64x64xbf16>
    %cst_359 = arith.constant dense<0.000000e+00> : vector<24x64xf32>
    %384 = tpu.matmul %381, %383, %cst_359 {dimension_numbers = #tpu.dot_dimension_numbers<[1], [0], [0], [1], [0, 0, 1, 1], [], []>} : vector<24x64xbf16>, vector<64x64xbf16>, vector<24x64xf32> -> vector<24x64xf32>
    %c1_360 = arith.constant 1 : index
    %c0_361 = arith.constant 0 : index
    %385 = vector.load %arg19[%c1_360, %c0_361] : memref<40x64xf32, #tpu.memory_space<vmem>>, vector<24x64xf32>
    %386 = arith.truncf %385 : vector<24x64xf32> to vector<24x64xbf16>
    %c1_362 = arith.constant 1 : index
    %c0_363 = arith.constant 0 : index
    %c0_364 = arith.constant 0 : index
    %387 = vector.load %arg11[%c1_362, %c0_363, %c0_364] : memref<9x64x64xbf16, #tpu.memory_space<vmem>>, vector<1x64x64xbf16>
    %388 = vector.shape_cast %387 : vector<1x64x64xbf16> to vector<64x64xbf16>
    %cst_365 = arith.constant dense<0.000000e+00> : vector<24x64xf32>
    %389 = tpu.matmul %386, %388, %cst_365 {dimension_numbers = #tpu.dot_dimension_numbers<[1], [0], [0], [1], [0, 0, 1, 1], [], []>} : vector<24x64xbf16>, vector<64x64xbf16>, vector<24x64xf32> -> vector<24x64xf32>
    %390 = arith.addf %384, %389 : vector<24x64xf32>
    %c2_366 = arith.constant 2 : index
    %c0_367 = arith.constant 0 : index
    %391 = vector.load %arg19[%c2_366, %c0_367] : memref<40x64xf32, #tpu.memory_space<vmem>>, vector<24x64xf32>
    %392 = arith.truncf %391 : vector<24x64xf32> to vector<24x64xbf16>
    %c2_368 = arith.constant 2 : index
    %c0_369 = arith.constant 0 : index
    %c0_370 = arith.constant 0 : index
    %393 = vector.load %arg11[%c2_368, %c0_369, %c0_370] : memref<9x64x64xbf16, #tpu.memory_space<vmem>>, vector<1x64x64xbf16>
    %394 = vector.shape_cast %393 : vector<1x64x64xbf16> to vector<64x64xbf16>
    %cst_371 = arith.constant dense<0.000000e+00> : vector<24x64xf32>
    %395 = tpu.matmul %392, %394, %cst_371 {dimension_numbers = #tpu.dot_dimension_numbers<[1], [0], [0], [1], [0, 0, 1, 1], [], []>} : vector<24x64xbf16>, vector<64x64xbf16>, vector<24x64xf32> -> vector<24x64xf32>
    %396 = arith.addf %390, %395 : vector<24x64xf32>
    %c4_372 = arith.constant 4 : index
    %c0_373 = arith.constant 0 : index
    %397 = vector.load %arg19[%c4_372, %c0_373] : memref<40x64xf32, #tpu.memory_space<vmem>>, vector<24x64xf32>
    %398 = arith.truncf %397 : vector<24x64xf32> to vector<24x64xbf16>
    %c3_374 = arith.constant 3 : index
    %c0_375 = arith.constant 0 : index
    %c0_376 = arith.constant 0 : index
    %399 = vector.load %arg11[%c3_374, %c0_375, %c0_376] : memref<9x64x64xbf16, #tpu.memory_space<vmem>>, vector<1x64x64xbf16>
    %400 = vector.shape_cast %399 : vector<1x64x64xbf16> to vector<64x64xbf16>
    %cst_377 = arith.constant dense<0.000000e+00> : vector<24x64xf32>
    %401 = tpu.matmul %398, %400, %cst_377 {dimension_numbers = #tpu.dot_dimension_numbers<[1], [0], [0], [1], [0, 0, 1, 1], [], []>} : vector<24x64xbf16>, vector<64x64xbf16>, vector<24x64xf32> -> vector<24x64xf32>
    %402 = arith.addf %396, %401 : vector<24x64xf32>
    %c5_378 = arith.constant 5 : index
    %c0_379 = arith.constant 0 : index
    %403 = vector.load %arg19[%c5_378, %c0_379] : memref<40x64xf32, #tpu.memory_space<vmem>>, vector<24x64xf32>
    %404 = arith.truncf %403 : vector<24x64xf32> to vector<24x64xbf16>
    %c4_380 = arith.constant 4 : index
    %c0_381 = arith.constant 0 : index
    %c0_382 = arith.constant 0 : index
    %405 = vector.load %arg11[%c4_380, %c0_381, %c0_382] : memref<9x64x64xbf16, #tpu.memory_space<vmem>>, vector<1x64x64xbf16>
    %406 = vector.shape_cast %405 : vector<1x64x64xbf16> to vector<64x64xbf16>
    %cst_383 = arith.constant dense<0.000000e+00> : vector<24x64xf32>
    %407 = tpu.matmul %404, %406, %cst_383 {dimension_numbers = #tpu.dot_dimension_numbers<[1], [0], [0], [1], [0, 0, 1, 1], [], []>} : vector<24x64xbf16>, vector<64x64xbf16>, vector<24x64xf32> -> vector<24x64xf32>
    %408 = arith.addf %402, %407 : vector<24x64xf32>
    %c6_384 = arith.constant 6 : index
    %c0_385 = arith.constant 0 : index
    %409 = vector.load %arg19[%c6_384, %c0_385] : memref<40x64xf32, #tpu.memory_space<vmem>>, vector<24x64xf32>
    %410 = arith.truncf %409 : vector<24x64xf32> to vector<24x64xbf16>
    %c5_386 = arith.constant 5 : index
    %c0_387 = arith.constant 0 : index
    %c0_388 = arith.constant 0 : index
    %411 = vector.load %arg11[%c5_386, %c0_387, %c0_388] : memref<9x64x64xbf16, #tpu.memory_space<vmem>>, vector<1x64x64xbf16>
    %412 = vector.shape_cast %411 : vector<1x64x64xbf16> to vector<64x64xbf16>
    %cst_389 = arith.constant dense<0.000000e+00> : vector<24x64xf32>
    %413 = tpu.matmul %410, %412, %cst_389 {dimension_numbers = #tpu.dot_dimension_numbers<[1], [0], [0], [1], [0, 0, 1, 1], [], []>} : vector<24x64xbf16>, vector<64x64xbf16>, vector<24x64xf32> -> vector<24x64xf32>
    %414 = arith.addf %408, %413 : vector<24x64xf32>
    %c8_390 = arith.constant 8 : index
    %c0_391 = arith.constant 0 : index
    %415 = vector.load %arg19[%c8_390, %c0_391] : memref<40x64xf32, #tpu.memory_space<vmem>>, vector<24x64xf32>
    %416 = arith.truncf %415 : vector<24x64xf32> to vector<24x64xbf16>
    %c6_392 = arith.constant 6 : index
    %c0_393 = arith.constant 0 : index
    %c0_394 = arith.constant 0 : index
    %417 = vector.load %arg11[%c6_392, %c0_393, %c0_394] : memref<9x64x64xbf16, #tpu.memory_space<vmem>>, vector<1x64x64xbf16>
    %418 = vector.shape_cast %417 : vector<1x64x64xbf16> to vector<64x64xbf16>
    %cst_395 = arith.constant dense<0.000000e+00> : vector<24x64xf32>
    %419 = tpu.matmul %416, %418, %cst_395 {dimension_numbers = #tpu.dot_dimension_numbers<[1], [0], [0], [1], [0, 0, 1, 1], [], []>} : vector<24x64xbf16>, vector<64x64xbf16>, vector<24x64xf32> -> vector<24x64xf32>
    %420 = arith.addf %414, %419 : vector<24x64xf32>
    %c9_396 = arith.constant 9 : index
    %c0_397 = arith.constant 0 : index
    %421 = vector.load %arg19[%c9_396, %c0_397] : memref<40x64xf32, #tpu.memory_space<vmem>>, vector<24x64xf32>
    %422 = arith.truncf %421 : vector<24x64xf32> to vector<24x64xbf16>
    %c7_398 = arith.constant 7 : index
    %c0_399 = arith.constant 0 : index
    %c0_400 = arith.constant 0 : index
    %423 = vector.load %arg11[%c7_398, %c0_399, %c0_400] : memref<9x64x64xbf16, #tpu.memory_space<vmem>>, vector<1x64x64xbf16>
    %424 = vector.shape_cast %423 : vector<1x64x64xbf16> to vector<64x64xbf16>
    %cst_401 = arith.constant dense<0.000000e+00> : vector<24x64xf32>
    %425 = tpu.matmul %422, %424, %cst_401 {dimension_numbers = #tpu.dot_dimension_numbers<[1], [0], [0], [1], [0, 0, 1, 1], [], []>} : vector<24x64xbf16>, vector<64x64xbf16>, vector<24x64xf32> -> vector<24x64xf32>
    %426 = arith.addf %420, %425 : vector<24x64xf32>
    %c10_402 = arith.constant 10 : index
    %c0_403 = arith.constant 0 : index
    %427 = vector.load %arg19[%c10_402, %c0_403] : memref<40x64xf32, #tpu.memory_space<vmem>>, vector<24x64xf32>
    %428 = arith.truncf %427 : vector<24x64xf32> to vector<24x64xbf16>
    %c8_404 = arith.constant 8 : index
    %c0_405 = arith.constant 0 : index
    %c0_406 = arith.constant 0 : index
    %429 = vector.load %arg11[%c8_404, %c0_405, %c0_406] : memref<9x64x64xbf16, #tpu.memory_space<vmem>>, vector<1x64x64xbf16>
    %430 = vector.shape_cast %429 : vector<1x64x64xbf16> to vector<64x64xbf16>
    %cst_407 = arith.constant dense<0.000000e+00> : vector<24x64xf32>
    %431 = tpu.matmul %428, %430, %cst_407 {dimension_numbers = #tpu.dot_dimension_numbers<[1], [0], [0], [1], [0, 0, 1, 1], [], []>} : vector<24x64xbf16>, vector<64x64xbf16>, vector<24x64xf32> -> vector<24x64xf32>
    %432 = arith.addf %426, %431 : vector<24x64xf32>
    %433 = vector.broadcast %378 : vector<1x64xf32> to vector<24x64xf32>
    %434 = arith.mulf %432, %433 : vector<24x64xf32>
    %435 = vector.broadcast %379 : vector<1x64xf32> to vector<24x64xf32>
    %436 = arith.addf %434, %435 : vector<24x64xf32>
    %cst_408 = arith.constant 0.000000e+00 : f32
    %437 = vector.broadcast %cst_408 : f32 to vector<24x64xf32>
    %438 = arith.maximumf %436, %437 : vector<24x64xf32>
    %c0_409 = arith.constant 0 : index
    %c0_410 = arith.constant 0 : index
    %439 = vector.load %arg20[%c0_409, %c0_410] : memref<256x64xf32, #tpu.memory_space<vmem>>, vector<24x64xf32>
    tpu.vector_store %arg20[%c0_409, %c0_410], %438 {strides = array<i32>} : memref<256x64xf32, #tpu.memory_space<vmem>>, vector<24x64xf32>,
    %c0_411 = arith.constant 0 : index
    %c0_412 = arith.constant 0 : index
    %440 = vector.load %arg20[%c0_411, %c0_412] : memref<256x64xf32, #tpu.memory_space<vmem>>, vector<1x64xf32>
    %c1_413 = arith.constant 1 : index
    %c0_414 = arith.constant 0 : index
    %441 = vector.load %arg20[%c1_413, %c0_414] : memref<256x64xf32, #tpu.memory_space<vmem>>, vector<1x64xf32>
    %c4_415 = arith.constant 4 : index
    %c0_416 = arith.constant 0 : index
    %442 = vector.load %arg20[%c4_415, %c0_416] : memref<256x64xf32, #tpu.memory_space<vmem>>, vector<1x64xf32>
    %c5_417 = arith.constant 5 : index
    %c0_418 = arith.constant 0 : index
    %443 = vector.load %arg20[%c5_417, %c0_418] : memref<256x64xf32, #tpu.memory_space<vmem>>, vector<1x64xf32>
    %444 = arith.maximumf %440, %441 : vector<1x64xf32>
    %445 = arith.maximumf %442, %443 : vector<1x64xf32>
    %446 = arith.maximumf %444, %445 : vector<1x64xf32>
    %c0_419 = arith.constant 0 : index
    %c0_420 = arith.constant 0 : index
    %447 = vector.load %arg21[%c0_419, %c0_420] : memref<2x64xf32, #tpu.memory_space<vmem>>, vector<1x64xf32>
    tpu.vector_store %arg21[%c0_419, %c0_420], %446 {strides = array<i32>} : memref<2x64xf32, #tpu.memory_space<vmem>>, vector<1x64xf32>,
    %c16_421 = arith.constant 16 : index
    %c0_422 = arith.constant 0 : index
    %448 = vector.load %arg20[%c16_421, %c0_422] : memref<256x64xf32, #tpu.memory_space<vmem>>, vector<1x64xf32>
    %c17_423 = arith.constant 17 : index
    %c0_424 = arith.constant 0 : index
    %449 = vector.load %arg20[%c17_423, %c0_424] : memref<256x64xf32, #tpu.memory_space<vmem>>, vector<1x64xf32>
    %c20_425 = arith.constant 20 : index
    %c0_426 = arith.constant 0 : index
    %450 = vector.load %arg20[%c20_425, %c0_426] : memref<256x64xf32, #tpu.memory_space<vmem>>, vector<1x64xf32>
    %c21_427 = arith.constant 21 : index
    %c0_428 = arith.constant 0 : index
    %451 = vector.load %arg20[%c21_427, %c0_428] : memref<256x64xf32, #tpu.memory_space<vmem>>, vector<1x64xf32>
    %452 = arith.maximumf %448, %449 : vector<1x64xf32>
    %453 = arith.maximumf %450, %451 : vector<1x64xf32>
    %454 = arith.maximumf %452, %453 : vector<1x64xf32>
    %c1_429 = arith.constant 1 : index
    %c0_430 = arith.constant 0 : index
    %455 = vector.load %arg21[%c1_429, %c0_430] : memref<2x64xf32, #tpu.memory_space<vmem>>, vector<1x64xf32>
    tpu.vector_store %arg21[%c1_429, %c0_430], %454 {strides = array<i32>} : memref<2x64xf32, #tpu.memory_space<vmem>>, vector<1x64xf32>,
    %c0_431 = arith.constant 0 : index
    %c0_432 = arith.constant 0 : index
    %456 = vector.load %arg21[%c0_431, %c0_432] : memref<2x64xf32, #tpu.memory_space<vmem>>, vector<2x64xf32>
    %457 = arith.truncf %456 : vector<2x64xf32> to vector<2x64xbf16>
    %c0_433 = arith.constant 0 : index
    %c0_434 = arith.constant 0 : index
    %458 = vector.load %arg14[%c0_433, %c0_434] : memref<64x128xbf16, #tpu.memory_space<vmem>>, vector<64x128xbf16>
    %cst_435 = arith.constant dense<0.000000e+00> : vector<2x128xf32>
    %459 = tpu.matmul %457, %458, %cst_435 {dimension_numbers = #tpu.dot_dimension_numbers<[1], [0], [0], [1], [0, 0, 1, 1], [], []>} : vector<2x64xbf16>, vector<64x128xbf16>, vector<2x128xf32> -> vector<2x128xf32>
    %c0_436 = arith.constant 0 : index
    %c0_437 = arith.constant 0 : index
    %460 = vector.load %arg15[%c0_436, %c0_437] : memref<1x128xf32, #tpu.memory_space<vmem>>, vector<1x128xf32>
    %461 = vector.broadcast %460 : vector<1x128xf32> to vector<2x128xf32>
    %462 = arith.addf %459, %461 : vector<2x128xf32>
    %c0_438 = arith.constant 0 : index
    %c0_439 = arith.constant 0 : index
    %463 = vector.load %arg16[%c0_438, %c0_439] : memref<2x128xf32, #tpu.memory_space<vmem>>, vector<2x128xf32>
    tpu.vector_store %arg16[%c0_438, %c0_439], %462 {strides = array<i32>} : memref<2x128xf32, #tpu.memory_space<vmem>>, vector<2x128xf32>,
    return
  }
  func.func @transform_0(%arg0: i32) -> (i32, i32, i32) {
    %c0_i32 = arith.constant 0 : i32
    %c0_i32_0 = arith.constant 0 : i32
    %c0_i32_1 = arith.constant 0 : i32
    return %arg0, %c0_i32, %c0_i32_0 : i32, i32, i32
  }
  func.func @transform_1(%arg0: i32) -> (i32, i32) {
    %c0_i32 = arith.constant 0 : i32
    %c0_i32_0 = arith.constant 0 : i32
    %c0_i32_1 = arith.constant 0 : i32
    return %c0_i32, %c0_i32_0 : i32, i32
  }
  func.func @transform_2(%arg0: i32) -> (i32, i32) {
    %c0_i32 = arith.constant 0 : i32
    %c0_i32_0 = arith.constant 0 : i32
    %c0_i32_1 = arith.constant 0 : i32
    return %c0_i32, %c0_i32_0 : i32, i32
  }
  func.func @transform_3(%arg0: i32) -> (i32, i32) {
    %c0_i32 = arith.constant 0 : i32
    %c0_i32_0 = arith.constant 0 : i32
    %c0_i32_1 = arith.constant 0 : i32
    return %c0_i32, %c0_i32_0 : i32, i32
  }
  func.func @transform_4(%arg0: i32) -> (i32, i32, i32) {
    %c0_i32 = arith.constant 0 : i32
    %c0_i32_0 = arith.constant 0 : i32
    %c0_i32_1 = arith.constant 0 : i32
    %c0_i32_2 = arith.constant 0 : i32
    return %c0_i32, %c0_i32_0, %c0_i32_1 : i32, i32, i32
  }
  func.func @transform_5(%arg0: i32) -> (i32, i32) {
    %c0_i32 = arith.constant 0 : i32
    %c0_i32_0 = arith.constant 0 : i32
    %c0_i32_1 = arith.constant 0 : i32
    return %c0_i32, %c0_i32_0 : i32, i32
  }
  func.func @transform_6(%arg0: i32) -> (i32, i32) {
    %c0_i32 = arith.constant 0 : i32
    %c0_i32_0 = arith.constant 0 : i32
    %c0_i32_1 = arith.constant 0 : i32
    return %c0_i32, %c0_i32_0 : i32, i32
  }
  func.func @transform_7(%arg0: i32) -> (i32, i32, i32) {
    %c0_i32 = arith.constant 0 : i32
    %c0_i32_0 = arith.constant 0 : i32
    %c0_i32_1 = arith.constant 0 : i32
    %c0_i32_2 = arith.constant 0 : i32
    return %c0_i32, %c0_i32_0, %c0_i32_1 : i32, i32, i32
  }
  func.func @transform_8(%arg0: i32) -> (i32, i32) {
    %c0_i32 = arith.constant 0 : i32
    %c0_i32_0 = arith.constant 0 : i32
    %c0_i32_1 = arith.constant 0 : i32
    return %c0_i32, %c0_i32_0 : i32, i32
  }
  func.func @transform_9(%arg0: i32) -> (i32, i32) {
    %c0_i32 = arith.constant 0 : i32
    %c0_i32_0 = arith.constant 0 : i32
    %c0_i32_1 = arith.constant 0 : i32
    return %c0_i32, %c0_i32_0 : i32, i32
  }
  func.func @transform_10(%arg0: i32) -> (i32, i32, i32) {
    %c0_i32 = arith.constant 0 : i32
    %c0_i32_0 = arith.constant 0 : i32
    %c0_i32_1 = arith.constant 0 : i32
    %c0_i32_2 = arith.constant 0 : i32
    return %c0_i32, %c0_i32_0, %c0_i32_1 : i32, i32, i32
  }
  func.func @transform_11(%arg0: i32) -> (i32, i32) {
    %c0_i32 = arith.constant 0 : i32
    %c0_i32_0 = arith.constant 0 : i32
    %c0_i32_1 = arith.constant 0 : i32
    return %c0_i32, %c0_i32_0 : i32, i32
  }
  func.func @transform_12(%arg0: i32) -> (i32, i32) {
    %c0_i32 = arith.constant 0 : i32
    %c0_i32_0 = arith.constant 0 : i32
    %c0_i32_1 = arith.constant 0 : i32
    return %c0_i32, %c0_i32_0 : i32, i32
  }
  func.func @transform_13(%arg0: i32) -> (i32, i32) {
    %c0_i32 = arith.constant 0 : i32
    %c0_i32_0 = arith.constant 0 : i32
    %c0_i32_1 = arith.constant 0 : i32
    return %c0_i32, %c0_i32_0 : i32, i32
  }
  func.func @transform_14(%arg0: i32) -> (i32, i32) {
    %c0_i32 = arith.constant 0 : i32
    %c0_i32_0 = arith.constant 0 : i32
    %c0_i32_1 = arith.constant 0 : i32
    return %c0_i32, %c0_i32_0 : i32, i32
  }
  func.func @transform_15(%arg0: i32) -> (i32, i32) {
    %c0_i32 = arith.constant 0 : i32
    %c0_i32_0 = arith.constant 0 : i32
    return %arg0, %c0_i32 : i32, i32
  }
}

</mosaic_0001>

<llo_original>
// kernel: simpleshot_forward.1
$region0: #{simpleshot_forward.1}
  #allocation0 [shape = 'u32[]', space=smem, size = 0x4, offset = 0x4, fixed_abs, tag = 'smem constant byte address 0x4 - core index']
  #allocation1 [shape = 'u32[144,128]{1,0:T(1,128)}', space=vmem, size = 0x12000, scoped, tag = 'internal scratch']
  #allocation2 [shape = 'f32[208,64]{1,0:T(8,128)}', space=vmem, size = 0x1a000, scoped, tag = 'scratch operand']
  #allocation3 [shape = 'f32[80,64]{1,0:T(8,128)}', space=vmem, size = 0xa000, scoped, tag = 'scratch operand']
  #allocation4 [shape = 'f32[40,64]{1,0:T(8,128)}', space=vmem, size = 0x5000, scoped, tag = 'scratch operand']
  #allocation5 [shape = 'f32[256,64]{1,0:T(8,128)}', space=vmem, size = 0x20000, scoped, tag = 'scratch operand']
  #allocation6 [shape = 'f32[2,64]{1,0:T(2,128)}', space=vmem, size = 0x400, scoped, tag = 'scratch operand']
  %s0 = inlined_call_operand.vmem [shape: bf16[2,256,32], index: 0, kind: input, shape index: {}]
  %s1 = inlined_call_operand.vmem [shape: bf16[32,64], index: 1, kind: input, shape index: {}]
  %s2 = inlined_call_operand.vmem [shape: f32[1,64], index: 2, kind: input, shape index: {}]
  %s3 = inlined_call_operand.vmem [shape: f32[1,64], index: 3, kind: input, shape index: {}]
  %s4 = inlined_call_operand.vmem [shape: bf16[9,64,64], index: 4, kind: input, shape index: {}]
  %s5 = inlined_call_operand.vmem [shape: f32[1,64], index: 5, kind: input, shape index: {}]
  %s6 = inlined_call_operand.vmem [shape: f32[1,64], index: 6, kind: input, shape index: {}]
  %s7 = inlined_call_operand.vmem [shape: bf16[9,64,64], index: 7, kind: input, shape index: {}]
  %s8 = inlined_call_operand.vmem [shape: f32[1,64], index: 8, kind: input, shape index: {}]
  %s9 = inlined_call_operand.vmem [shape: f32[1,64], index: 9, kind: input, shape index: {}]
  %s10 = inlined_call_operand.vmem [shape: bf16[9,64,64], index: 10, kind: input, shape index: {}]
  %s11 = inlined_call_operand.vmem [shape: f32[1,64], index: 11, kind: input, shape index: {}]
  %s12 = inlined_call_operand.vmem [shape: f32[1,64], index: 12, kind: input, shape index: {}]
  %s13 = inlined_call_operand.vmem [shape: bf16[64,128], index: 13, kind: input, shape index: {}]
  %s14 = inlined_call_operand.vmem [shape: f32[1,128], index: 14, kind: input, shape index: {}]
  %s15 = inlined_call_operand.hbm [shape: f32[2,128], index: 15, kind: output, shape index: {}]
  %s16 = sld [smem:[#allocation0]]
  $region70: #{simpleshot_forward.1} parent=0
    _
  %s18 = ssub.s32 1, %s16
  %s19 = scalar_select 0, %s18, %s16
  $region1: #{simpleshot_forward.1} parent=0
    #allocation7 [shape = 'u8[1024]{0}', space=vmem, size = 0x400, scoped, tag = 'output window, operand 0, single buffered']
    #allocation8 [shape = 's32[1]{0}', space=sflag, size = 0x4, scoped, tag = 'scoped memory for simpleshot_forward.1']
    %20 = vsyncpa [#allocation8], 0
    // Predicated region
    $region2: #{simpleshot_forward.1} parent=1 // pred_check
      _
    $region3: #{simpleshot_forward.1} parent=1 // pred_check_branch
      %22 = sbr.rel (0) target = $region5
    $region4: #{simpleshot_forward.1} parent=1 // pred_region
      _
    $region5: #{simpleshot_forward.1} parent=1 // pred_fallthru
      _
    // Predicated region
    $region6: #{simpleshot_forward.1} parent=1 // pred_check
      _
    $region7: #{simpleshot_forward.1} parent=1 // pred_check_branch
      %24 = sbr.rel (0) target = $region9
    $region8: #{simpleshot_forward.1} parent=1 // pred_region
      _
    $region9: #{simpleshot_forward.1} parent=1 // pred_fallthru
      _
    // Predicated region
    $region10: #{simpleshot_forward.1} parent=1 // pred_check
      _
    $region11: #{simpleshot_forward.1} parent=1 // pred_check_branch
      %26 = sbr.rel (0) target = $region13
    $region12: #{simpleshot_forward.1} parent=1 // pred_region
      _
    $region13: #{simpleshot_forward.1} parent=1 // pred_fallthru
      _
    // Predicated region
    $region14: #{simpleshot_forward.1} parent=1 // pred_check
      _
    $region15: #{simpleshot_forward.1} parent=1 // pred_check_branch
      %28 = sbr.rel (0) target = $region17
    $region16: #{simpleshot_forward.1} parent=1 // pred_region
      _
    $region17: #{simpleshot_forward.1} parent=1 // pred_fallthru
      _
    // Predicated region
    $region18: #{simpleshot_forward.1} parent=1 // pred_check
      _
    $region19: #{simpleshot_forward.1} parent=1 // pred_check_branch
      %30 = sbr.rel (0) target = $region21
    $region20: #{simpleshot_forward.1} parent=1 // pred_region
      _
    $region21: #{simpleshot_forward.1} parent=1 // pred_fallthru
      _
    // Predicated region
    $region22: #{simpleshot_forward.1} parent=1 // pred_check
      _
    $region23: #{simpleshot_forward.1} parent=1 // pred_check_branch
      %32 = sbr.rel (0) target = $region25
    $region24: #{simpleshot_forward.1} parent=1 // pred_region
      _
    $region25: #{simpleshot_forward.1} parent=1 // pred_fallthru
      _
    // Predicated region
    $region26: #{simpleshot_forward.1} parent=1 // pred_check
      _
    $region27: #{simpleshot_forward.1} parent=1 // pred_check_branch
      %34 = sbr.rel (0) target = $region29
    $region28: #{simpleshot_forward.1} parent=1 // pred_region
      _
    $region29: #{simpleshot_forward.1} parent=1 // pred_fallthru
      _
    // Predicated region
    $region30: #{simpleshot_forward.1} parent=1 // pred_check
      _
    $region31: #{simpleshot_forward.1} parent=1 // pred_check_branch
      %36 = sbr.rel (0) target = $region33
    $region32: #{simpleshot_forward.1} parent=1 // pred_region
      _
    $region33: #{simpleshot_forward.1} parent=1 // pred_fallthru
      _
    // Predicated region
    $region34: #{simpleshot_forward.1} parent=1 // pred_check
      _
    $region35: #{simpleshot_forward.1} parent=1 // pred_check_branch
      %38 = sbr.rel (0) target = $region37
    $region36: #{simpleshot_forward.1} parent=1 // pred_region
      _
    $region37: #{simpleshot_forward.1} parent=1 // pred_fallthru
      _
    // Predicated region
    $region38: #{simpleshot_forward.1} parent=1 // pred_check
      _
    $region39: #{simpleshot_forward.1} parent=1 // pred_check_branch
      %40 = sbr.rel (0) target = $region41
    $region40: #{simpleshot_forward.1} parent=1 // pred_region
      _
    $region41: #{simpleshot_forward.1} parent=1 // pred_fallthru
      _
    // Predicated region
    $region42: #{simpleshot_forward.1} parent=1 // pred_check
      _
    $region43: #{simpleshot_forward.1} parent=1 // pred_check_branch
      %42 = sbr.rel (0) target = $region45
    $region44: #{simpleshot_forward.1} parent=1 // pred_region
      _
    $region45: #{simpleshot_forward.1} parent=1 // pred_fallthru
      _
    // Predicated region
    $region46: #{simpleshot_forward.1} parent=1 // pred_check
      _
    $region47: #{simpleshot_forward.1} parent=1 // pred_check_branch
      %44 = sbr.rel (0) target = $region49
    $region48: #{simpleshot_forward.1} parent=1 // pred_region
      _
    $region49: #{simpleshot_forward.1} parent=1 // pred_fallthru
      _
    // Predicated region
    $region50: #{simpleshot_forward.1} parent=1 // pred_check
      _
    $region51: #{simpleshot_forward.1} parent=1 // pred_check_branch
      %46 = sbr.rel (0) target = $region53
    $region52: #{simpleshot_forward.1} parent=1 // pred_region
      _
    $region53: #{simpleshot_forward.1} parent=1 // pred_fallthru
      _
    // Predicated region
    $region54: #{simpleshot_forward.1} parent=1 // pred_check
      _
    $region55: #{simpleshot_forward.1} parent=1 // pred_check_branch
      %48 = sbr.rel (0) target = $region57
    $region56: #{simpleshot_forward.1} parent=1 // pred_region
      _
    $region57: #{simpleshot_forward.1} parent=1 // pred_fallthru
      _
    // Predicated region
    $region58: #{simpleshot_forward.1} parent=1 // pred_check
      _
    $region59: #{simpleshot_forward.1} parent=1 // pred_check_branch
      %50 = sbr.rel (0) target = $region61
    $region60: #{simpleshot_forward.1} parent=1 // pred_region
      _
    $region61: #{simpleshot_forward.1} parent=1 // pred_fallthru
      _
    %vm52 = vcmask 523264
    %53 = vst.msk [vmem:[#allocation2] sm:$0xff] %vm52, 0.0
    %54 = vst.msk [vmem:[#allocation2 + $0x8] sm:$0xff] %vm52, 0.0
    %55 = vst.msk [vmem:[#allocation2 + $0x10] sm:$0xff] %vm52, 0.0
    %56 = vst.msk [vmem:[#allocation2 + $0x18] sm:$0xff] %vm52, 0.0
    %57 = vst.msk [vmem:[#allocation2 + $0x20] sm:$0xff] %vm52, 0.0
    %58 = vst.msk [vmem:[#allocation2 + $0x28] sm:$0xff] %vm52, 0.0
    %59 = vst.msk [vmem:[#allocation2 + $0x30] sm:$0xff] %vm52, 0.0
    %60 = vst.msk [vmem:[#allocation2 + $0x38] sm:$0xff] %vm52, 0.0
    %61 = vst.msk [vmem:[#allocation2 + $0x40] sm:$0xff] %vm52, 0.0
    %62 = vst.msk [vmem:[#allocation2 + $0x48] sm:$0xff] %vm52, 0.0
    %63 = vst.msk [vmem:[#allocation2 + $0x50] sm:$0xff] %vm52, 0.0
    %64 = vst.msk [vmem:[#allocation2 + $0x58] sm:$0xff] %vm52, 0.0
    %65 = vst.msk [vmem:[#allocation2 + $0x60] sm:$0xff] %vm52, 0.0
    %66 = vst.msk [vmem:[#allocation2 + $0x68] sm:$0xff] %vm52, 0.0
    %67 = vst.msk [vmem:[#allocation2 + $0x70] sm:$0xff] %vm52, 0.0
    %68 = vst.msk [vmem:[#allocation2 + $0x78] sm:$0xff] %vm52, 0.0
    %69 = vst.msk [vmem:[#allocation2 + $0x80] sm:$0xff] %vm52, 0.0
    %70 = vst.msk [vmem:[#allocation2 + $0x88] sm:$0xff] %vm52, 0.0
    %71 = vst.msk [vmem:[#allocation2 + $0x90] sm:$0xff] %vm52, 0.0
    %72 = vst.msk [vmem:[#allocation2 + $0x98] sm:$0xff] %vm52, 0.0
    %73 = vst.msk [vmem:[#allocation2 + $0xa0] sm:$0xff] %vm52, 0.0
    %74 = vst.msk [vmem:[#allocation2 + $0xa8] sm:$0xff] %vm52, 0.0
    %75 = vst.msk [vmem:[#allocation2 + $0xb0] sm:$0xff] %vm52, 0.0
    %76 = vst.msk [vmem:[#allocation2 + $0xb8] sm:$0xff] %vm52, 0.0
    %77 = vst.msk [vmem:[#allocation2 + $0xc0] sm:$0xff] %vm52, 0.0
    %78 = vst.msk [vmem:[#allocation2 + $0xc8] sm:$0xff] %vm52, 0.0
    %79 = vst.msk [vmem:[#allocation3] sm:$0xff] %vm52, 0.0
    %80 = vst.msk [vmem:[#allocation3 + $0x8] sm:$0xff] %vm52, 0.0
    %81 = vst.msk [vmem:[#allocation3 + $0x10] sm:$0xff] %vm52, 0.0
    %82 = vst.msk [vmem:[#allocation3 + $0x18] sm:$0xff] %vm52, 0.0
    %83 = vst.msk [vmem:[#allocation3 + $0x20] sm:$0xff] %vm52, 0.0
    %84 = vst.msk [vmem:[#allocation3 + $0x28] sm:$0xff] %vm52, 0.0
    %85 = vst.msk [vmem:[#allocation3 + $0x30] sm:$0xff] %vm52, 0.0
    %86 = vst.msk [vmem:[#allocation3 + $0x38] sm:$0xff] %vm52, 0.0
    %87 = vst.msk [vmem:[#allocation3 + $0x40] sm:$0xff] %vm52, 0.0
    %88 = vst.msk [vmem:[#allocation3 + $0x48] sm:$0xff] %vm52, 0.0
    %89 = vst.msk [vmem:[#allocation4] sm:$0xff] %vm52, 0.0
    %90 = vst.msk [vmem:[#allocation4 + $0x8] sm:$0xff] %vm52, 0.0
    %91 = vst.msk [vmem:[#allocation4 + $0x10] sm:$0xff] %vm52, 0.0
    %92 = vst.msk [vmem:[#allocation4 + $0x18] sm:$0xff] %vm52, 0.0
    %93 = vst.msk [vmem:[#allocation4 + $0x20] sm:$0xff] %vm52, 0.0
    %v94 = vld [vmem:[%s2] sm:$0x1]
    %v95 = vld [vmem:[%s3] sm:$0x1]
    %v96 = vld [vmem:[%s0] sm:$0xf]
    %v97 = vld [vmem:[%s0 + $0x4] sm:$0xf]
    %v98 = vld [vmem:[%s0 + $0x8] sm:$0xf]
    %v99 = vld [vmem:[%s0 + $0xc] sm:$0xf]
    %v100 = vld [vmem:[%s0 + $0x10] sm:$0xf]
    %v101 = vld [vmem:[%s0 + $0x14] sm:$0xf]
    %v102 = vld [vmem:[%s0 + $0x18] sm:$0xf]
    %v103 = vld [vmem:[%s0 + $0x1c] sm:$0xf]
    %v104 = vld [vmem:[%s0 + $0x20] sm:$0xf]
    %v105 = vld [vmem:[%s0 + $0x24] sm:$0xf]
    %v106 = vld [vmem:[%s0 + $0x28] sm:$0xf]
    %v107 = vld [vmem:[%s0 + $0x2c] sm:$0xf]
    %v108 = vld [vmem:[%s0 + $0x30] sm:$0xf]
    %v109 = vld [vmem:[%s0 + $0x34] sm:$0xf]
    %v110 = vld [vmem:[%s0 + $0x38] sm:$0xf]
    %v111 = vld [vmem:[%s0 + $0x3c] sm:$0xf]
    %v112 = vld [vmem:[%s0 + $0x40] sm:$0xf]
    %v113 = vld [vmem:[%s0 + $0x44] sm:$0xf]
    %v114 = vld [vmem:[%s0 + $0x48] sm:$0xf]
    %v115 = vld [vmem:[%s0 + $0x4c] sm:$0xf]
    %v116 = vld [vmem:[%s0 + $0x50] sm:$0xf]
    %v117 = vld [vmem:[%s0 + $0x54] sm:$0xf]
    %v118 = vld [vmem:[%s0 + $0x58] sm:$0xf]
    %v119 = vld [vmem:[%s0 + $0x5c] sm:$0xf]
    %v120 = vld [vmem:[%s0 + $0x60] sm:$0xf]
    %v121 = vld [vmem:[%s0 + $0x64] sm:$0xf]
    %v122 = vld [vmem:[%s0 + $0x68] sm:$0xf]
    %v123 = vld [vmem:[%s0 + $0x6c] sm:$0xf]
    %v124 = vld [vmem:[%s0 + $0x70] sm:$0xf]
    %v125 = vld [vmem:[%s0 + $0x74] sm:$0xf]
    %v126 = vld [vmem:[%s0 + $0x78] sm:$0xf]
    %v127 = vld [vmem:[%s0 + $0x7c] sm:$0xf]
    %v128 = vld [vmem:[%s1] sm:$0xf]
    %v129 = vld [vmem:[%s1 + $0x4] sm:$0xf]
    %v130 = vld [vmem:[%s1 + $0x8] sm:$0xf]
    %v131 = vld [vmem:[%s1 + $0xc] sm:$0xf]
    %v164 = vunpack.c.l.b16 %v96
    %v165 = vunpack.c.l.b16 %v97
    %v166 = vunpack.c.l.b16 %v98
    %v167 = vunpack.c.l.b16 %v99
    %v168 = vunpack.c.l.b16 %v100
    %v169 = vunpack.c.l.b16 %v101
    %v170 = vunpack.c.l.b16 %v102
    %v171 = vunpack.c.l.b16 %v103
    %v172 = vunpack.c.l.b16 %v104
    %v173 = vunpack.c.l.b16 %v105
    %v174 = vunpack.c.l.b16 %v106
    %v175 = vunpack.c.l.b16 %v107
    %v176 = vunpack.c.l.b16 %v108
    %v177 = vunpack.c.l.b16 %v109
    %v178 = vunpack.c.l.b16 %v110
    %v179 = vunpack.c.l.b16 %v111
    %v180 = vunpack.c.l.b16 %v112
    %v181 = vunpack.c.l.b16 %v113
    %v182 = vunpack.c.l.b16 %v114
    %v183 = vunpack.c.l.b16 %v115
    %v184 = vunpack.c.l.b16 %v116
    %v185 = vunpack.c.l.b16 %v117
    %v186 = vunpack.c.l.b16 %v118
    %v187 = vunpack.c.l.b16 %v119
    %v188 = vunpack.c.l.b16 %v120
    %v189 = vunpack.c.l.b16 %v121
    %v190 = vunpack.c.l.b16 %v122
    %v191 = vunpack.c.l.b16 %v123
    %v192 = vunpack.c.l.b16 %v124
    %v193 = vunpack.c.l.b16 %v125
    %v194 = vunpack.c.l.b16 %v126
    %v195 = vunpack.c.l.b16 %v127
    %v196 = vpack.c.b16 %v165, %v164
    %v197 = vpack.c.b16 %v167, %v166
    %v198 = vpack.c.b16 %v169, %v168
    %v199 = vpack.c.b16 %v171, %v170
    %v200 = vpack.c.b16 %v173, %v172
    %v201 = vpack.c.b16 %v175, %v174
    %v202 = vpack.c.b16 %v177, %v176
    %v203 = vpack.c.b16 %v179, %v178
    %v204 = vpack.c.b16 %v181, %v180
    %v205 = vpack.c.b16 %v183, %v182
    %v206 = vpack.c.b16 %v185, %v184
    %v207 = vpack.c.b16 %v187, %v186
    %v208 = vpack.c.b16 %v189, %v188
    %v209 = vpack.c.b16 %v191, %v190
    %v210 = vpack.c.b16 %v193, %v192
    %v211 = vpack.c.b16 %v195, %v194
    %v216 = vunpack.c.l.b16 %v128
    %v217 = vunpack.c.l.b16 %v129
    %v218 = vunpack.c.l.b16 %v130
    %v219 = vunpack.c.l.b16 %v131
    %v220 = vpack.c.b16 %v217, %v216
    %v221 = vpack.c.b16 %v219, %v218
    %vm224 = vcmask 261120
    %v226 = vsel %vm224, %v196, 0
    %v229 = vsel %vm224, %v197, 0
    %v232 = vsel %vm224, %v198, 0
    %v235 = vsel %vm224, %v199, 0
    %v238 = vsel %vm224, %v200, 0
    %v241 = vsel %vm224, %v201, 0
    %v244 = vsel %vm224, %v202, 0
    %v247 = vsel %vm224, %v203, 0
    %v250 = vsel %vm224, %v204, 0
    %v253 = vsel %vm224, %v205, 0
    %v256 = vsel %vm224, %v206, 0
    %v259 = vsel %vm224, %v207, 0
    %v262 = vsel %vm224, %v208, 0
    %v265 = vsel %vm224, %v209, 0
    %v268 = vsel %vm224, %v210, 0
    %v271 = vsel %vm224, %v211, 0
    %273 = vmatprep.subr.bf16.mxu0 0
    %274 = vmatpush1.bf16.msra.mxu0 0
    %275 = vmatprep.subr.bf16.mxu0 0
    %276 = vmatpush1.bf16.msra.mxu0 0
    %277 = vmatprep.subr.bf16.mxu0 0
    %278 = vmatpush1.bf16.msra.mxu0 0
    %279 = vmatprep.subr.bf16.mxu0 0
    %280 = vmatpush1.bf16.msra.mxu0 0
    %281 = vmatprep.subr.bf16.mxu0 0
    %282 = vmatpush1.bf16.msra.mxu0 0
    %283 = vmatprep.subr.bf16.mxu0 0
    %284 = vmatpush1.bf16.msra.mxu0 0
    %285 = vmatprep.subr.bf16.mxu0 0
    %286 = vmatpush1.bf16.msra.mxu0 %v221
    %287 = vmatprep.subr.bf16.mxu0 0
    %288 = vmatpush1.bf16.msra.mxu0 %v220
    %289 = vmatprep.subr.bf16.mxu0 0
    %290 = vmatpush2.bf16.msra.mxu0 0
    %291 = vmatprep.subr.bf16.mxu0 0
    %292 = vmatpush2.bf16.msra.mxu0 0
    %293 = vmatprep.subr.bf16.mxu0 0
    %294 = vmatpush2.bf16.msra.mxu0 0
    %295 = vmatprep.subr.bf16.mxu0 0
    %296 = vmatpush2.bf16.msra.mxu0 0
    %297 = vmatprep.subr.bf16.mxu0 0
    %298 = vmatpush2.bf16.msra.mxu0 0
    %299 = vmatprep.subr.bf16.mxu0 0
    %300 = vmatpush2.bf16.msra.mxu0 0
    %301 = vmatprep.subr.bf16.mxu0 0
    %302 = vmatpush2.bf16.msra.mxu0 0
    %303 = vmatprep.subr.bf16.mxu0 0
    %304 = vmatpush2.bf16.msra.mxu0 0
    %305 = vmatprep.mubr.bf16.mxu0 0
    %306 = vmatmul.mubr.bf16.gmra.mxu0 %v226
    %v307 = vpop.f32.mrf.mxu0
    %v308 = vadd.f32 0.0, %v307
    %v309 = vpop.f32.mrf.mxu0
    %v310 = vpop.f32.mrf.mxu0
    %v311 = vadd.f32 0.0, %v310
    %v312 = vpop.f32.mrf.mxu0
    %313 = vmatprep.mubr.bf16.mxu0 0
    %314 = vmatmul.mubr.bf16.gmra.mxu0 %v229
    %v315 = vpop.f32.mrf.mxu0
    %v316 = vadd.f32 0.0, %v315
    %v317 = vpop.f32.mrf.mxu0
    %v318 = vpop.f32.mrf.mxu0
    %v319 = vadd.f32 0.0, %v318
    %v320 = vpop.f32.mrf.mxu0
    %321 = vmatprep.mubr.bf16.mxu0 0
    %322 = vmatmul.mubr.bf16.gmra.mxu0 %v232
    %v323 = vpop.f32.mrf.mxu0
    %v324 = vadd.f32 0.0, %v323
    %v325 = vpop.f32.mrf.mxu0
    %v326 = vpop.f32.mrf.mxu0
    %v327 = vadd.f32 0.0, %v326
    %v328 = vpop.f32.mrf.mxu0
    %329 = vmatprep.mubr.bf16.mxu0 0
    %330 = vmatmul.mubr.bf16.gmra.mxu0 %v235
    %v331 = vpop.f32.mrf.mxu0
    %v332 = vadd.f32 0.0, %v331
    %v333 = vpop.f32.mrf.mxu0
    %v334 = vpop.f32.mrf.mxu0
    %v335 = vadd.f32 0.0, %v334
    %v336 = vpop.f32.mrf.mxu0
    %337 = vmatprep.mubr.bf16.mxu0 0
    %338 = vmatmul.mubr.bf16.gmra.mxu0 %v238
    %v339 = vpop.f32.mrf.mxu0
    %v340 = vadd.f32 0.0, %v339
    %v341 = vpop.f32.mrf.mxu0
    %v342 = vpop.f32.mrf.mxu0
    %v343 = vadd.f32 0.0, %v342
    %v344 = vpop.f32.mrf.mxu0
    %345 = vmatprep.mubr.bf16.mxu0 0
    %346 = vmatmul.mubr.bf16.gmra.mxu0 %v241
    %v347 = vpop.f32.mrf.mxu0
    %v348 = vadd.f32 0.0, %v347
    %v349 = vpop.f32.mrf.mxu0
    %v350 = vpop.f32.mrf.mxu0
    %v351 = vadd.f32 0.0, %v350
    %v352 = vpop.f32.mrf.mxu0
    %353 = vmatprep.mubr.bf16.mxu0 0
    %354 = vmatmul.mubr.bf16.gmra.mxu0 %v244
    %v355 = vpop.f32.mrf.mxu0
    %v356 = vadd.f32 0.0, %v355
    %v357 = vpop.f32.mrf.mxu0
    %v358 = vpop.f32.mrf.mxu0
    %v359 = vadd.f32 0.0, %v358
    %v360 = vpop.f32.mrf.mxu0
    %361 = vmatprep.mubr.bf16.mxu0 0
    %362 = vmatmul.mubr.bf16.gmra.mxu0 %v247
    %v363 = vpop.f32.mrf.mxu0
    %v364 = vadd.f32 0.0, %v363
    %v365 = vpop.f32.mrf.mxu0
    %v366 = vpop.f32.mrf.mxu0
    %v367 = vadd.f32 0.0, %v366
    %v368 = vpop.f32.mrf.mxu0
    %369 = vmatprep.mubr.bf16.mxu0 0
    %370 = vmatmul.mubr.bf16.gmra.mxu0 %v250
    %v371 = vpop.f32.mrf.mxu0
    %v372 = vadd.f32 0.0, %v371
    %v373 = vpop.f32.mrf.mxu0
    %v374 = vpop.f32.mrf.mxu0
    %v375 = vadd.f32 0.0, %v374
    %v376 = vpop.f32.mrf.mxu0
    %377 = vmatprep.mubr.bf16.mxu0 0
    %378 = vmatmul.mubr.bf16.gmra.mxu0 %v253
    %v379 = vpop.f32.mrf.mxu0
    %v380 = vadd.f32 0.0, %v379
    %v381 = vpop.f32.mrf.mxu0
    %v382 = vpop.f32.mrf.mxu0
    %v383 = vadd.f32 0.0, %v382
    %v384 = vpop.f32.mrf.mxu0
    %385 = vmatprep.mubr.bf16.mxu0 0
    %386 = vmatmul.mubr.bf16.gmra.mxu0 %v256
    %v387 = vpop.f32.mrf.mxu0
    %v388 = vadd.f32 0.0, %v387
    %v389 = vpop.f32.mrf.mxu0
    %v390 = vpop.f32.mrf.mxu0
    %v391 = vadd.f32 0.0, %v390
    %v392 = vpop.f32.mrf.mxu0
    %393 = vmatprep.mubr.bf16.mxu0 0
    %394 = vmatmul.mubr.bf16.gmra.mxu0 %v259
    %v395 = vpop.f32.mrf.mxu0
    %v396 = vadd.f32 0.0, %v395
    %v397 = vpop.f32.mrf.mxu0
    %v398 = vpop.f32.mrf.mxu0
    %v399 = vadd.f32 0.0, %v398
    %v400 = vpop.f32.mrf.mxu0
    %401 = vmatprep.mubr.bf16.mxu0 0
    %402 = vmatmul.mubr.bf16.gmra.mxu0 %v262
    %v403 = vpop.f32.mrf.mxu0
    %v404 = vadd.f32 0.0, %v403
    %v405 = vpop.f32.mrf.mxu0
    %v406 = vpop.f32.mrf.mxu0
    %v407 = vadd.f32 0.0, %v406
    %v408 = vpop.f32.mrf.mxu0
    %409 = vmatprep.mubr.bf16.mxu0 0
    %410 = vmatmul.mubr.bf16.gmra.mxu0 %v265
    %v411 = vpop.f32.mrf.mxu0
    %v412 = vadd.f32 0.0, %v411
    %v413 = vpop.f32.mrf.mxu0
    %v414 = vpop.f32.mrf.mxu0
    %v415 = vadd.f32 0.0, %v414
    %v416 = vpop.f32.mrf.mxu0
    %417 = vmatprep.mubr.bf16.mxu0 0
    %418 = vmatmul.mubr.bf16.gmra.mxu0 %v268
    %v419 = vpop.f32.mrf.mxu0
    %v420 = vadd.f32 0.0, %v419
    %v421 = vpop.f32.mrf.mxu0
    %v422 = vpop.f32.mrf.mxu0
    %v423 = vadd.f32 0.0, %v422
    %v424 = vpop.f32.mrf.mxu0
    %425 = vmatprep.mubr.bf16.mxu0 0
    %426 = vmatmul.mubr.bf16.gmra.mxu0 %v271
    %v427 = vpop.f32.mrf.mxu0
    %v428 = vadd.f32 0.0, %v427
    %v429 = vpop.f32.mrf.mxu0
    %v430 = vpop.f32.mrf.mxu0
    %v431 = vadd.f32 0.0, %v430
    %v432 = vpop.f32.mrf.mxu0
    %433 = vdwg.mxu0
    %v435 = vlaneseq
    %v436 = vshrl.u32 %v435, 7
    %v437 = vsub.s32 0, %v436
    %v438 = vrot.slane %v94, %v437
    %v440 = vmul.f32 %v308, %v438
    %v441 = vmul.f32 %v311, %v438
    %v442 = vmul.f32 %v316, %v438
    %v443 = vmul.f32 %v319, %v438
    %v444 = vmul.f32 %v324, %v438
    %v445 = vmul.f32 %v327, %v438
    %v446 = vmul.f32 %v332, %v438
    %v447 = vmul.f32 %v335, %v438
    %v448 = vmul.f32 %v340, %v438
    %v449 = vmul.f32 %v343, %v438
    %v450 = vmul.f32 %v348, %v438
    %v451 = vmul.f32 %v351, %v438
    %v452 = vmul.f32 %v356, %v438
    %v453 = vmul.f32 %v359, %v438
    %v454 = vmul.f32 %v364, %v438
    %v455 = vmul.f32 %v367, %v438
    %v456 = vmul.f32 %v372, %v438
    %v457 = vmul.f32 %v375, %v438
    %v458 = vmul.f32 %v380, %v438
    %v459 = vmul.f32 %v383, %v438
    %v460 = vmul.f32 %v388, %v438
    %v461 = vmul.f32 %v391, %v438
    %v462 = vmul.f32 %v396, %v438
    %v463 = vmul.f32 %v399, %v438
    %v464 = vmul.f32 %v404, %v438
    %v465 = vmul.f32 %v407, %v438
    %v466 = vmul.f32 %v412, %v438
    %v467 = vmul.f32 %v415, %v438
    %v468 = vmul.f32 %v420, %v438
    %v469 = vmul.f32 %v423, %v438
    %v470 = vmul.f32 %v428, %v438
    %v471 = vmul.f32 %v431, %v438
    %v473 = vlaneseq
    %v474 = vshrl.u32 %v473, 7
    %v475 = vsub.s32 0, %v474
    %v476 = vrot.slane %v95, %v475
    %v478 = vadd.f32 %v440, %v476
    %v479 = vadd.f32 %v441, %v476
    %v480 = vadd.f32 %v442, %v476
    %v481 = vadd.f32 %v443, %v476
    %v482 = vadd.f32 %v444, %v476
    %v483 = vadd.f32 %v445, %v476
    %v484 = vadd.f32 %v446, %v476
    %v485 = vadd.f32 %v447, %v476
    %v486 = vadd.f32 %v448, %v476
    %v487 = vadd.f32 %v449, %v476
    %v488 = vadd.f32 %v450, %v476
    %v489 = vadd.f32 %v451, %v476
    %v490 = vadd.f32 %v452, %v476
    %v491 = vadd.f32 %v453, %v476
    %v492 = vadd.f32 %v454, %v476
    %v493 = vadd.f32 %v455, %v476
    %v494 = vadd.f32 %v456, %v476
    %v495 = vadd.f32 %v457, %v476
    %v496 = vadd.f32 %v458, %v476
    %v497 = vadd.f32 %v459, %v476
    %v498 = vadd.f32 %v460, %v476
    %v499 = vadd.f32 %v461, %v476
    %v500 = vadd.f32 %v462, %v476
    %v501 = vadd.f32 %v463, %v476
    %v502 = vadd.f32 %v464, %v476
    %v503 = vadd.f32 %v465, %v476
    %v504 = vadd.f32 %v466, %v476
    %v505 = vadd.f32 %v467, %v476
    %v506 = vadd.f32 %v468, %v476
    %v507 = vadd.f32 %v469, %v476
    %v508 = vadd.f32 %v470, %v476
    %v509 = vadd.f32 %v471, %v476
    %v510 = vmax.f32 %v478, 0.0
    %v511 = vmax.f32 %v479, 0.0
    %v512 = vmax.f32 %v480, 0.0
    %v513 = vmax.f32 %v481, 0.0
    %v514 = vmax.f32 %v482, 0.0
    %v515 = vmax.f32 %v483, 0.0
    %v516 = vmax.f32 %v484, 0.0
    %v517 = vmax.f32 %v485, 0.0
    %v518 = vmax.f32 %v486, 0.0
    %v519 = vmax.f32 %v487, 0.0
    %v520 = vmax.f32 %v488, 0.0
    %v521 = vmax.f32 %v489, 0.0
    %v522 = vmax.f32 %v490, 0.0
    %v523 = vmax.f32 %v491, 0.0
    %v524 = vmax.f32 %v492, 0.0
    %v525 = vmax.f32 %v493, 0.0
    %v526 = vmax.f32 %v494, 0.0
    %v527 = vmax.f32 %v495, 0.0
    %v528 = vmax.f32 %v496, 0.0
    %v529 = vmax.f32 %v497, 0.0
    %v530 = vmax.f32 %v498, 0.0
    %v531 = vmax.f32 %v499, 0.0
    %v532 = vmax.f32 %v500, 0.0
    %v533 = vmax.f32 %v501, 0.0
    %v534 = vmax.f32 %v502, 0.0
    %v535 = vmax.f32 %v503, 0.0
    %v536 = vmax.f32 %v504, 0.0
    %v537 = vmax.f32 %v505, 0.0
    %v538 = vmax.f32 %v506, 0.0
    %v539 = vmax.f32 %v507, 0.0
    %v540 = vmax.f32 %v508, 0.0
    %v541 = vmax.f32 %v509, 0.0
    %542 = vst.msk [vmem:[#allocation5] sm:$0xff] %vm52, %v510
    %543 = vst.msk [vmem:[#allocation5 + $0x8] sm:$0xff] %vm52, %v511
    %544 = vst.msk [vmem:[#allocation5 + $0x10] sm:$0xff] %vm52, %v512
    %545 = vst.msk [vmem:[#allocation5 + $0x18] sm:$0xff] %vm52, %v513
    %546 = vst.msk [vmem:[#allocation5 + $0x20] sm:$0xff] %vm52, %v514
    %547 = vst.msk [vmem:[#allocation5 + $0x28] sm:$0xff] %vm52, %v515
    %548 = vst.msk [vmem:[#allocation5 + $0x30] sm:$0xff] %vm52, %v516
    %549 = vst.msk [vmem:[#allocation5 + $0x38] sm:$0xff] %vm52, %v517
    %550 = vst.msk [vmem:[#allocation5 + $0x40] sm:$0xff] %vm52, %v518
    %551 = vst.msk [vmem:[#allocation5 + $0x48] sm:$0xff] %vm52, %v519
    %552 = vst.msk [vmem:[#allocation5 + $0x50] sm:$0xff] %vm52, %v520
    %553 = vst.msk [vmem:[#allocation5 + $0x58] sm:$0xff] %vm52, %v521
    %554 = vst.msk [vmem:[#allocation5 + $0x60] sm:$0xff] %vm52, %v522
    %555 = vst.msk [vmem:[#allocation5 + $0x68] sm:$0xff] %vm52, %v523
    %556 = vst.msk [vmem:[#allocation5 + $0x70] sm:$0xff] %vm52, %v524
    %557 = vst.msk [vmem:[#allocation5 + $0x78] sm:$0xff] %vm52, %v525
    %558 = vst.msk [vmem:[#allocation5 + $0x80] sm:$0xff] %vm52, %v526
    %559 = vst.msk [vmem:[#allocation5 + $0x88] sm:$0xff] %vm52, %v527
    %560 = vst.msk [vmem:[#allocation5 + $0x90] sm:$0xff] %vm52, %v528
    %561 = vst.msk [vmem:[#allocation5 + $0x98] sm:$0xff] %vm52, %v529
    %562 = vst.msk [vmem:[#allocation5 + $0xa0] sm:$0xff] %vm52, %v530
    %563 = vst.msk [vmem:[#allocation5 + $0xa8] sm:$0xff] %vm52, %v531
    %564 = vst.msk [vmem:[#allocation5 + $0xb0] sm:$0xff] %vm52, %v532
    %565 = vst.msk [vmem:[#allocation5 + $0xb8] sm:$0xff] %vm52, %v533
    %566 = vst.msk [vmem:[#allocation5 + $0xc0] sm:$0xff] %vm52, %v534
    %567 = vst.msk [vmem:[#allocation5 + $0xc8] sm:$0xff] %vm52, %v535
    %568 = vst.msk [vmem:[#allocation5 + $0xd0] sm:$0xff] %vm52, %v536
    %569 = vst.msk [vmem:[#allocation5 + $0xd8] sm:$0xff] %vm52, %v537
    %570 = vst.msk [vmem:[#allocation5 + $0xe0] sm:$0xff] %vm52, %v538
    %571 = vst.msk [vmem:[#allocation5 + $0xe8] sm:$0xff] %vm52, %v539
    %572 = vst.msk [vmem:[#allocation5 + $0xf0] sm:$0xff] %vm52, %v540
    %573 = vst.msk [vmem:[#allocation5 + $0xf8] sm:$0xff] %vm52, %v541
    %v574 = vld [vmem:[#allocation5] ss:$2 sm:$0xff]
    %s575 = scalar_lea.vmem [#allocation5], 1
    %v576 = vld [vmem:[%s575] ss:$2 sm:$0xff]
    %s577 = scalar_lea.vmem [#allocation5], 16
    %v578 = vld [vmem:[%s577] ss:$2 sm:$0xff]
    %s579 = scalar_lea.vmem [#allocation5], 17
    %v580 = vld [vmem:[%s579] ss:$2 sm:$0xff]
    %v581 = vmax.f32 %v574, %v576
    %v582 = vmax.f32 %v578, %v580
    %v583 = vmax.f32 %v581, %v582
    %584 = vst.msk [vmem:[#allocation2 + $0xb] sm:$0xff] %vm52, %v583
    %s585 = scalar_lea.vmem [#allocation5], 32
    %v586 = vld [vmem:[%s585] ss:$2 sm:$0xff]
    %s587 = scalar_lea.vmem [#allocation5], 33
    %v588 = vld [vmem:[%s587] ss:$2 sm:$0xff]
    %s589 = scalar_lea.vmem [#allocation5], 48
    %v590 = vld [vmem:[%s589] ss:$2 sm:$0xff]
    %s591 = scalar_lea.vmem [#allocation5], 49
    %v592 = vld [vmem:[%s591] ss:$2 sm:$0xff]
    %v593 = vmax.f32 %v586, %v588
    %v594 = vmax.f32 %v590, %v592
    %v595 = vmax.f32 %v593, %v594
    %596 = vst.msk [vmem:[#allocation2 + $0x15] sm:$0xff] %vm52, %v595
    %s597 = scalar_lea.vmem [#allocation5], 64
    %v598 = vld [vmem:[%s597] ss:$2 sm:$0xff]
    %s599 = scalar_lea.vmem [#allocation5], 65
    %v600 = vld [vmem:[%s599] ss:$2 sm:$0xff]
    %s601 = scalar_lea.vmem [#allocation5], 80
    %v602 = vld [vmem:[%s601] ss:$2 sm:$0xff]
    %s603 = scalar_lea.vmem [#allocation5], 81
    %v604 = vld [vmem:[%s603] ss:$2 sm:$0xff]
    %v605 = vmax.f32 %v598, %v600
    %v606 = vmax.f32 %v602, %v604
    %v607 = vmax.f32 %v605, %v606
    %608 = vst.msk [vmem:[#allocation2 + $0x1f] sm:$0xff] %vm52, %v607
    %s609 = scalar_lea.vmem [#allocation5], 96
    %v610 = vld [vmem:[%s609] ss:$2 sm:$0xff]
    %s611 = scalar_lea.vmem [#allocation5], 97
    %v612 = vld [vmem:[%s611] ss:$2 sm:$0xff]
    %s613 = scalar_lea.vmem [#allocation5], 112
    %v614 = vld [vmem:[%s613] ss:$2 sm:$0xff]
    %s615 = scalar_lea.vmem [#allocation5], 113
    %v616 = vld [vmem:[%s615] ss:$2 sm:$0xff]
    %v617 = vmax.f32 %v610, %v612
    %v618 = vmax.f32 %v614, %v616
    %v619 = vmax.f32 %v617, %v618
    %620 = vst.msk [vmem:[#allocation2 + $0x29] sm:$0xff] %vm52, %v619
    %s621 = scalar_lea.vmem [#allocation5], 128
    %v622 = vld [vmem:[%s621] ss:$2 sm:$0xff]
    %s623 = scalar_lea.vmem [#allocation5], 129
    %v624 = vld [vmem:[%s623] ss:$2 sm:$0xff]
    %s625 = scalar_lea.vmem [#allocation5], 144
    %v626 = vld [vmem:[%s625] ss:$2 sm:$0xff]
    %s627 = scalar_lea.vmem [#allocation5], 145
    %v628 = vld [vmem:[%s627] ss:$2 sm:$0xff]
    %v629 = vmax.f32 %v622, %v624
    %v630 = vmax.f32 %v626, %v628
    %v631 = vmax.f32 %v629, %v630
    %632 = vst.msk [vmem:[#allocation2 + $0x33] sm:$0xff] %vm52, %v631
    %s633 = scalar_lea.vmem [#allocation5], 160
    %v634 = vld [vmem:[%s633] ss:$2 sm:$0xff]
    %s635 = scalar_lea.vmem [#allocation5], 161
    %v636 = vld [vmem:[%s635] ss:$2 sm:$0xff]
    %s637 = scalar_lea.vmem [#allocation5], 176
    %v638 = vld [vmem:[%s637] ss:$2 sm:$0xff]
    %s639 = scalar_lea.vmem [#allocation5], 177
    %v640 = vld [vmem:[%s639] ss:$2 sm:$0xff]
    %v641 = vmax.f32 %v634, %v636
    %v642 = vmax.f32 %v638, %v640
    %v643 = vmax.f32 %v641, %v642
    %644 = vst.msk [vmem:[#allocation2 + $0x3d] sm:$0xff] %vm52, %v643
    %s645 = scalar_lea.vmem [#allocation5], 192
    %v646 = vld [vmem:[%s645] ss:$2 sm:$0xff]
    %s647 = scalar_lea.vmem [#allocation5], 193
    %v648 = vld [vmem:[%s647] ss:$2 sm:$0xff]
    %s649 = scalar_lea.vmem [#allocation5], 208
    %v650 = vld [vmem:[%s649] ss:$2 sm:$0xff]
    %s651 = scalar_lea.vmem [#allocation5], 209
    %v652 = vld [vmem:[%s651] ss:$2 sm:$0xff]
    %v653 = vmax.f32 %v646, %v648
    %v654 = vmax.f32 %v650, %v652
    %v655 = vmax.f32 %v653, %v654
    %656 = vst.msk [vmem:[#allocation2 + $0x47] sm:$0xff] %vm52, %v655
    %s657 = scalar_lea.vmem [#allocation5], 224
    %v658 = vld [vmem:[%s657] ss:$2 sm:$0xff]
    %s659 = scalar_lea.vmem [#allocation5], 225
    %v660 = vld [vmem:[%s659] ss:$2 sm:$0xff]
    %s661 = scalar_lea.vmem [#allocation5], 240
    %v662 = vld [vmem:[%s661] ss:$2 sm:$0xff]
    %s663 = scalar_lea.vmem [#allocation5], 241
    %v664 = vld [vmem:[%s663] ss:$2 sm:$0xff]
    %v665 = vmax.f32 %v658, %v660
    %v666 = vmax.f32 %v662, %v664
    %v667 = vmax.f32 %v665, %v666
    %668 = vst.msk [vmem:[#allocation2 + $0x51] sm:$0xff] %vm52, %v667
    %s669 = scalar_lea.vmem %s0, 128
    %v670 = vld [vmem:[%s669] sm:$0xf]
    %v671 = vld [vmem:[%s669 + $0x4] sm:$0xf]
    %v672 = vld [vmem:[%s669 + $0x8] sm:$0xf]
    %v673 = vld [vmem:[%s669 + $0xc] sm:$0xf]
    %v674 = vld [vmem:[%s669 + $0x10] sm:$0xf]
    %v675 = vld [vmem:[%s669 + $0x14] sm:$0xf]
    %v676 = vld [vmem:[%s669 + $0x18] sm:$0xf]
    %v677 = vld [vmem:[%s669 + $0x1c] sm:$0xf]
    %v678 = vld [vmem:[%s669 + $0x20] sm:$0xf]
    %v679 = vld [vmem:[%s669 + $0x24] sm:$0xf]
    %v680 = vld [vmem:[%s669 + $0x28] sm:$0xf]
    %v681 = vld [vmem:[%s669 + $0x2c] sm:$0xf]
    %v682 = vld [vmem:[%s669 + $0x30] sm:$0xf]
    %v683 = vld [vmem:[%s669 + $0x34] sm:$0xf]
    %v684 = vld [vmem:[%s669 + $0x38] sm:$0xf]
    %v685 = vld [vmem:[%s669 + $0x3c] sm:$0xf]
    %v686 = vld [vmem:[%s669 + $0x40] sm:$0xf]
    %v687 = vld [vmem:[%s669 + $0x44] sm:$0xf]
    %v688 = vld [vmem:[%s669 + $0x48] sm:$0xf]
    %v689 = vld [vmem:[%s669 + $0x4c] sm:$0xf]
    %v690 = vld [vmem:[%s669 + $0x50] sm:$0xf]
    %v691 = vld [vmem:[%s669 + $0x54] sm:$0xf]
    %v692 = vld [vmem:[%s669 + $0x58] sm:$0xf]
    %v693 = vld [vmem:[%s669 + $0x5c] sm:$0xf]
    %v694 = vld [vmem:[%s669 + $0x60] sm:$0xf]
    %v695 = vld [vmem:[%s669 + $0x64] sm:$0xf]
    %v696 = vld [vmem:[%s669 + $0x68] sm:$0xf]
    %v697 = vld [vmem:[%s669 + $0x6c] sm:$0xf]
    %v698 = vld [vmem:[%s669 + $0x70] sm:$0xf]
    %v699 = vld [vmem:[%s669 + $0x74] sm:$0xf]
    %v700 = vld [vmem:[%s669 + $0x78] sm:$0xf]
    %v701 = vld [vmem:[%s669 + $0x7c] sm:$0xf]
    %v702 = vld [vmem:[%s1] sm:$0xf]
    %v703 = vld [vmem:[%s1 + $0x4] sm:$0xf]
    %v704 = vld [vmem:[%s1 + $0x8] sm:$0xf]
    %v705 = vld [vmem:[%s1 + $0xc] sm:$0xf]
    %v738 = vunpack.c.l.b16 %v670
    %v739 = vunpack.c.l.b16 %v671
    %v740 = vunpack.c.l.b16 %v672
    %v741 = vunpack.c.l.b16 %v673
    %v742 = vunpack.c.l.b16 %v674
    %v743 = vunpack.c.l.b16 %v675
    %v744 = vunpack.c.l.b16 %v676
    %v745 = vunpack.c.l.b16 %v677
    %v746 = vunpack.c.l.b16 %v678
    %v747 = vunpack.c.l.b16 %v679
    %v748 = vunpack.c.l.b16 %v680
    %v749 = vunpack.c.l.b16 %v681
    %v750 = vunpack.c.l.b16 %v682
    %v751 = vunpack.c.l.b16 %v683
    %v752 = vunpack.c.l.b16 %v684
    %v753 = vunpack.c.l.b16 %v685
    %v754 = vunpack.c.l.b16 %v686
    %v755 = vunpack.c.l.b16 %v687
    %v756 = vunpack.c.l.b16 %v688
    %v757 = vunpack.c.l.b16 %v689
    %v758 = vunpack.c.l.b16 %v690
    %v759 = vunpack.c.l.b16 %v691
    %v760 = vunpack.c.l.b16 %v692
    %v761 = vunpack.c.l.b16 %v693
    %v762 = vunpack.c.l.b16 %v694
    %v763 = vunpack.c.l.b16 %v695
    %v764 = vunpack.c.l.b16 %v696
    %v765 = vunpack.c.l.b16 %v697
    %v766 = vunpack.c.l.b16 %v698
    %v767 = vunpack.c.l.b16 %v699
    %v768 = vunpack.c.l.b16 %v700
    %v769 = vunpack.c.l.b16 %v701
    %v770 = vpack.c.b16 %v739, %v738
    %v771 = vpack.c.b16 %v741, %v740
    %v772 = vpack.c.b16 %v743, %v742
    %v773 = vpack.c.b16 %v745, %v744
    %v774 = vpack.c.b16 %v747, %v746
    %v775 = vpack.c.b16 %v749, %v748
    %v776 = vpack.c.b16 %v751, %v750
    %v777 = vpack.c.b16 %v753, %v752
    %v778 = vpack.c.b16 %v755, %v754
    %v779 = vpack.c.b16 %v757, %v756
    %v780 = vpack.c.b16 %v759, %v758
    %v781 = vpack.c.b16 %v761, %v760
    %v782 = vpack.c.b16 %v763, %v762
    %v783 = vpack.c.b16 %v765, %v764
    %v784 = vpack.c.b16 %v767, %v766
    %v785 = vpack.c.b16 %v769, %v768
    %v790 = vunpack.c.l.b16 %v702
    %v791 = vunpack.c.l.b16 %v703
    %v792 = vunpack.c.l.b16 %v704
    %v793 = vunpack.c.l.b16 %v705
    %v794 = vpack.c.b16 %v791, %v790
    %v795 = vpack.c.b16 %v793, %v792
    %v799 = vsel %vm224, %v770, 0
    %v802 = vsel %vm224, %v771, 0
    %v805 = vsel %vm224, %v772, 0
    %v808 = vsel %vm224, %v773, 0
    %v811 = vsel %vm224, %v774, 0
    %v814 = vsel %vm224, %v775, 0
    %v817 = vsel %vm224, %v776, 0
    %v820 = vsel %vm224, %v777, 0
    %v823 = vsel %vm224, %v778, 0
    %v826 = vsel %vm224, %v779, 0
    %v829 = vsel %vm224, %v780, 0
    %v832 = vsel %vm224, %v781, 0
    %v835 = vsel %vm224, %v782, 0
    %v838 = vsel %vm224, %v783, 0
    %v841 = vsel %vm224, %v784, 0
    %v844 = vsel %vm224, %v785, 0
    %846 = vmatprep.subr.bf16.mxu0 0
    %847 = vmatpush1.bf16.msra.mxu0 0
    %848 = vmatprep.subr.bf16.mxu0 0
    %849 = vmatpush1.bf16.msra.mxu0 0
    %850 = vmatprep.subr.bf16.mxu0 0
    %851 = vmatpush1.bf16.msra.mxu0 0
    %852 = vmatprep.subr.bf16.mxu0 0
    %853 = vmatpush1.bf16.msra.mxu0 0
    %854 = vmatprep.subr.bf16.mxu0 0
    %855 = vmatpush1.bf16.msra.mxu0 0
    %856 = vmatprep.subr.bf16.mxu0 0
    %857 = vmatpush1.bf16.msra.mxu0 0
    %858 = vmatprep.subr.bf16.mxu0 0
    %859 = vmatpush1.bf16.msra.mxu0 %v795
    %860 = vmatprep.subr.bf16.mxu0 0
    %861 = vmatpush1.bf16.msra.mxu0 %v794
    %862 = vmatprep.subr.bf16.mxu0 0
    %863 = vmatpush2.bf16.msra.mxu0 0
    %864 = vmatprep.subr.bf16.mxu0 0
    %865 = vmatpush2.bf16.msra.mxu0 0
    %866 = vmatprep.subr.bf16.mxu0 0
    %867 = vmatpush2.bf16.msra.mxu0 0
    %868 = vmatprep.subr.bf16.mxu0 0
    %869 = vmatpush2.bf16.msra.mxu0 0
    %870 = vmatprep.subr.bf16.mxu0 0
    %871 = vmatpush2.bf16.msra.mxu0 0
    %872 = vmatprep.subr.bf16.mxu0 0
    %873 = vmatpush2.bf16.msra.mxu0 0
    %874 = vmatprep.subr.bf16.mxu0 0
    %875 = vmatpush2.bf16.msra.mxu0 0
    %876 = vmatprep.subr.bf16.mxu0 0
    %877 = vmatpush2.bf16.msra.mxu0 0
    %878 = vmatprep.mubr.bf16.mxu0 0
    %879 = vmatmul.mubr.bf16.gmra.mxu0 %v799
    %v880 = vpop.f32.mrf.mxu0
    %v881 = vadd.f32 0.0, %v880
    %v882 = vpop.f32.mrf.mxu0
    %v883 = vpop.f32.mrf.mxu0
    %v884 = vadd.f32 0.0, %v883
    %v885 = vpop.f32.mrf.mxu0
    %886 = vmatprep.mubr.bf16.mxu0 0
    %887 = vmatmul.mubr.bf16.gmra.mxu0 %v802
    %v888 = vpop.f32.mrf.mxu0
    %v889 = vadd.f32 0.0, %v888
    %v890 = vpop.f32.mrf.mxu0
    %v891 = vpop.f32.mrf.mxu0
    %v892 = vadd.f32 0.0, %v891
    %v893 = vpop.f32.mrf.mxu0
    %894 = vmatprep.mubr.bf16.mxu0 0
    %895 = vmatmul.mubr.bf16.gmra.mxu0 %v805
    %v896 = vpop.f32.mrf.mxu0
    %v897 = vadd.f32 0.0, %v896
    %v898 = vpop.f32.mrf.mxu0
    %v899 = vpop.f32.mrf.mxu0
    %v900 = vadd.f32 0.0, %v899
    %v901 = vpop.f32.mrf.mxu0
    %902 = vmatprep.mubr.bf16.mxu0 0
    %903 = vmatmul.mubr.bf16.gmra.mxu0 %v808
    %v904 = vpop.f32.mrf.mxu0
    %v905 = vadd.f32 0.0, %v904
    %v906 = vpop.f32.mrf.mxu0
    %v907 = vpop.f32.mrf.mxu0
    %v908 = vadd.f32 0.0, %v907
    %v909 = vpop.f32.mrf.mxu0
    %910 = vmatprep.mubr.bf16.mxu0 0
    %911 = vmatmul.mubr.bf16.gmra.mxu0 %v811
    %v912 = vpop.f32.mrf.mxu0
    %v913 = vadd.f32 0.0, %v912
    %v914 = vpop.f32.mrf.mxu0
    %v915 = vpop.f32.mrf.mxu0
    %v916 = vadd.f32 0.0, %v915
    %v917 = vpop.f32.mrf.mxu0
    %918 = vmatprep.mubr.bf16.mxu0 0
    %919 = vmatmul.mubr.bf16.gmra.mxu0 %v814
    %v920 = vpop.f32.mrf.mxu0
    %v921 = vadd.f32 0.0, %v920
    %v922 = vpop.f32.mrf.mxu0
    %v923 = vpop.f32.mrf.mxu0
    %v924 = vadd.f32 0.0, %v923
    %v925 = vpop.f32.mrf.mxu0
    %926 = vmatprep.mubr.bf16.mxu0 0
    %927 = vmatmul.mubr.bf16.gmra.mxu0 %v817
    %v928 = vpop.f32.mrf.mxu0
    %v929 = vadd.f32 0.0, %v928
    %v930 = vpop.f32.mrf.mxu0
    %v931 = vpop.f32.mrf.mxu0
    %v932 = vadd.f32 0.0, %v931
    %v933 = vpop.f32.mrf.mxu0
    %934 = vmatprep.mubr.bf16.mxu0 0
    %935 = vmatmul.mubr.bf16.gmra.mxu0 %v820
    %v936 = vpop.f32.mrf.mxu0
    %v937 = vadd.f32 0.0, %v936
    %v938 = vpop.f32.mrf.mxu0
    %v939 = vpop.f32.mrf.mxu0
    %v940 = vadd.f32 0.0, %v939
    %v941 = vpop.f32.mrf.mxu0
    %942 = vmatprep.mubr.bf16.mxu0 0
    %943 = vmatmul.mubr.bf16.gmra.mxu0 %v823
    %v944 = vpop.f32.mrf.mxu0
    %v945 = vadd.f32 0.0, %v944
    %v946 = vpop.f32.mrf.mxu0
    %v947 = vpop.f32.mrf.mxu0
    %v948 = vadd.f32 0.0, %v947
    %v949 = vpop.f32.mrf.mxu0
    %950 = vmatprep.mubr.bf16.mxu0 0
    %951 = vmatmul.mubr.bf16.gmra.mxu0 %v826
    %v952 = vpop.f32.mrf.mxu0
    %v953 = vadd.f32 0.0, %v952
    %v954 = vpop.f32.mrf.mxu0
    %v955 = vpop.f32.mrf.mxu0
    %v956 = vadd.f32 0.0, %v955
    %v957 = vpop.f32.mrf.mxu0
    %958 = vmatprep.mubr.bf16.mxu0 0
    %959 = vmatmul.mubr.bf16.gmra.mxu0 %v829
    %v960 = vpop.f32.mrf.mxu0
    %v961 = vadd.f32 0.0, %v960
    %v962 = vpop.f32.mrf.mxu0
    %v963 = vpop.f32.mrf.mxu0
    %v964 = vadd.f32 0.0, %v963
    %v965 = vpop.f32.mrf.mxu0
    %966 = vmatprep.mubr.bf16.mxu0 0
    %967 = vmatmul.mubr.bf16.gmra.mxu0 %v832
    %v968 = vpop.f32.mrf.mxu0
    %v969 = vadd.f32 0.0, %v968
    %v970 = vpop.f32.mrf.mxu0
    %v971 = vpop.f32.mrf.mxu0
    %v972 = vadd.f32 0.0, %v971
    %v973 = vpop.f32.mrf.mxu0
    %974 = vmatprep.mubr.bf16.mxu0 0
    %975 = vmatmul.mubr.bf16.gmra.mxu0 %v835
    %v976 = vpop.f32.mrf.mxu0
    %v977 = vadd.f32 0.0, %v976
    %v978 = vpop.f32.mrf.mxu0
    %v979 = vpop.f32.mrf.mxu0
    %v980 = vadd.f32 0.0, %v979
    %v981 = vpop.f32.mrf.mxu0
    %982 = vmatprep.mubr.bf16.mxu0 0
    %983 = vmatmul.mubr.bf16.gmra.mxu0 %v838
    %v984 = vpop.f32.mrf.mxu0
    %v985 = vadd.f32 0.0, %v984
    %v986 = vpop.f32.mrf.mxu0
    %v987 = vpop.f32.mrf.mxu0
    %v988 = vadd.f32 0.0, %v987
    %v989 = vpop.f32.mrf.mxu0
    %990 = vmatprep.mubr.bf16.mxu0 0
    %991 = vmatmul.mubr.bf16.gmra.mxu0 %v841
    %v992 = vpop.f32.mrf.mxu0
    %v993 = vadd.f32 0.0, %v992
    %v994 = vpop.f32.mrf.mxu0
    %v995 = vpop.f32.mrf.mxu0
    %v996 = vadd.f32 0.0, %v995
    %v997 = vpop.f32.mrf.mxu0
    %998 = vmatprep.mubr.bf16.mxu0 0
    %999 = vmatmul.mubr.bf16.gmra.mxu0 %v844
    %v1000 = vpop.f32.mrf.mxu0
    %v1001 = vadd.f32 0.0, %v1000
    %v1002 = vpop.f32.mrf.mxu0
    %v1003 = vpop.f32.mrf.mxu0
    %v1004 = vadd.f32 0.0, %v1003
    %v1005 = vpop.f32.mrf.mxu0
    %1006 = vdwg.mxu0
    %v1007 = vmul.f32 %v881, %v438
    %v1008 = vmul.f32 %v884, %v438
    %v1009 = vmul.f32 %v889, %v438
    %v1010 = vmul.f32 %v892, %v438
    %v1011 = vmul.f32 %v897, %v438
    %v1012 = vmul.f32 %v900, %v438
    %v1013 = vmul.f32 %v905, %v438
    %v1014 = vmul.f32 %v908, %v438
    %v1015 = vmul.f32 %v913, %v438
    %v1016 = vmul.f32 %v916, %v438
    %v1017 = vmul.f32 %v921, %v438
    %v1018 = vmul.f32 %v924, %v438
    %v1019 = vmul.f32 %v929, %v438
    %v1020 = vmul.f32 %v932, %v438
    %v1021 = vmul.f32 %v937, %v438
    %v1022 = vmul.f32 %v940, %v438
    %v1023 = vmul.f32 %v945, %v438
    %v1024 = vmul.f32 %v948, %v438
    %v1025 = vmul.f32 %v953, %v438
    %v1026 = vmul.f32 %v956, %v438
    %v1027 = vmul.f32 %v961, %v438
    %v1028 = vmul.f32 %v964, %v438
    %v1029 = vmul.f32 %v969, %v438
    %v1030 = vmul.f32 %v972, %v438
    %v1031 = vmul.f32 %v977, %v438
    %v1032 = vmul.f32 %v980, %v438
    %v1033 = vmul.f32 %v985, %v438
    %v1034 = vmul.f32 %v988, %v438
    %v1035 = vmul.f32 %v993, %v438
    %v1036 = vmul.f32 %v996, %v438
    %v1037 = vmul.f32 %v1001, %v438
    %v1038 = vmul.f32 %v1004, %v438
    %v1039 = vadd.f32 %v1007, %v476
    %v1040 = vadd.f32 %v1008, %v476
    %v1041 = vadd.f32 %v1009, %v476
    %v1042 = vadd.f32 %v1010, %v476
    %v1043 = vadd.f32 %v1011, %v476
    %v1044 = vadd.f32 %v1012, %v476
    %v1045 = vadd.f32 %v1013, %v476
    %v1046 = vadd.f32 %v1014, %v476
    %v1047 = vadd.f32 %v1015, %v476
    %v1048 = vadd.f32 %v1016, %v476
    %v1049 = vadd.f32 %v1017, %v476
    %v1050 = vadd.f32 %v1018, %v476
    %v1051 = vadd.f32 %v1019, %v476
    %v1052 = vadd.f32 %v1020, %v476
    %v1053 = vadd.f32 %v1021, %v476
    %v1054 = vadd.f32 %v1022, %v476
    %v1055 = vadd.f32 %v1023, %v476
    %v1056 = vadd.f32 %v1024, %v476
    %v1057 = vadd.f32 %v1025, %v476
    %v1058 = vadd.f32 %v1026, %v476
    %v1059 = vadd.f32 %v1027, %v476
    %v1060 = vadd.f32 %v1028, %v476
    %v1061 = vadd.f32 %v1029, %v476
    %v1062 = vadd.f32 %v1030, %v476
    %v1063 = vadd.f32 %v1031, %v476
    %v1064 = vadd.f32 %v1032, %v476
    %v1065 = vadd.f32 %v1033, %v476
    %v1066 = vadd.f32 %v1034, %v476
    %v1067 = vadd.f32 %v1035, %v476
    %v1068 = vadd.f32 %v1036, %v476
    %v1069 = vadd.f32 %v1037, %v476
    %v1070 = vadd.f32 %v1038, %v476
    %v1071 = vmax.f32 %v1039, 0.0
    %v1072 = vmax.f32 %v1040, 0.0
    %v1073 = vmax.f32 %v1041, 0.0
    %v1074 = vmax.f32 %v1042, 0.0
    %v1075 = vmax.f32 %v1043, 0.0
    %v1076 = vmax.f32 %v1044, 0.0
    %v1077 = vmax.f32 %v1045, 0.0
    %v1078 = vmax.f32 %v1046, 0.0
    %v1079 = vmax.f32 %v1047, 0.0
    %v1080 = vmax.f32 %v1048, 0.0
    %v1081 = vmax.f32 %v1049, 0.0
    %v1082 = vmax.f32 %v1050, 0.0
    %v1083 = vmax.f32 %v1051, 0.0
    %v1084 = vmax.f32 %v1052, 0.0
    %v1085 = vmax.f32 %v1053, 0.0
    %v1086 = vmax.f32 %v1054, 0.0
    %v1087 = vmax.f32 %v1055, 0.0
    %v1088 = vmax.f32 %v1056, 0.0
    %v1089 = vmax.f32 %v1057, 0.0
    %v1090 = vmax.f32 %v1058, 0.0
    %v1091 = vmax.f32 %v1059, 0.0
    %v1092 = vmax.f32 %v1060, 0.0
    %v1093 = vmax.f32 %v1061, 0.0
    %v1094 = vmax.f32 %v1062, 0.0
    %v1095 = vmax.f32 %v1063, 0.0
    %v1096 = vmax.f32 %v1064, 0.0
    %v1097 = vmax.f32 %v1065, 0.0
    %v1098 = vmax.f32 %v1066, 0.0
    %v1099 = vmax.f32 %v1067, 0.0
    %v1100 = vmax.f32 %v1068, 0.0
    %v1101 = vmax.f32 %v1069, 0.0
    %v1102 = vmax.f32 %v1070, 0.0
    %1103 = vst.msk [vmem:[#allocation5] sm:$0xff] %vm52, %v1071
    %1104 = vst.msk [vmem:[#allocation5 + $0x8] sm:$0xff] %vm52, %v1072
    %1105 = vst.msk [vmem:[#allocation5 + $0x10] sm:$0xff] %vm52, %v1073
    %1106 = vst.msk [vmem:[#allocation5 + $0x18] sm:$0xff] %vm52, %v1074
    %1107 = vst.msk [vmem:[#allocation5 + $0x20] sm:$0xff] %vm52, %v1075
    %1108 = vst.msk [vmem:[#allocation5 + $0x28] sm:$0xff] %vm52, %v1076
    %1109 = vst.msk [vmem:[#allocation5 + $0x30] sm:$0xff] %vm52, %v1077
    %1110 = vst.msk [vmem:[#allocation5 + $0x38] sm:$0xff] %vm52, %v1078
    %1111 = vst.msk [vmem:[#allocation5 + $0x40] sm:$0xff] %vm52, %v1079
    %1112 = vst.msk [vmem:[#allocation5 + $0x48] sm:$0xff] %vm52, %v1080
    %1113 = vst.msk [vmem:[#allocation5 + $0x50] sm:$0xff] %vm52, %v1081
    %1114 = vst.msk [vmem:[#allocation5 + $0x58] sm:$0xff] %vm52, %v1082
    %1115 = vst.msk [vmem:[#allocation5 + $0x60] sm:$0xff] %vm52, %v1083
    %1116 = vst.msk [vmem:[#allocation5 + $0x68] sm:$0xff] %vm52, %v1084
    %1117 = vst.msk [vmem:[#allocation5 + $0x70] sm:$0xff] %vm52, %v1085
    %1118 = vst.msk [vmem:[#allocation5 + $0x78] sm:$0xff] %vm52, %v1086
    %1119 = vst.msk [vmem:[#allocation5 + $0x80] sm:$0xff] %vm52, %v1087
    %1120 = vst.msk [vmem:[#allocation5 + $0x88] sm:$0xff] %vm52, %v1088
    %1121 = vst.msk [vmem:[#allocation5 + $0x90] sm:$0xff] %vm52, %v1089
    %1122 = vst.msk [vmem:[#allocation5 + $0x98] sm:$0xff] %vm52, %v1090
    %1123 = vst.msk [vmem:[#allocation5 + $0xa0] sm:$0xff] %vm52, %v1091
    %1124 = vst.msk [vmem:[#allocation5 + $0xa8] sm:$0xff] %vm52, %v1092
    %1125 = vst.msk [vmem:[#allocation5 + $0xb0] sm:$0xff] %vm52, %v1093
    %1126 = vst.msk [vmem:[#allocation5 + $0xb8] sm:$0xff] %vm52, %v1094
    %1127 = vst.msk [vmem:[#allocation5 + $0xc0] sm:$0xff] %vm52, %v1095
    %1128 = vst.msk [vmem:[#allocation5 + $0xc8] sm:$0xff] %vm52, %v1096
    %1129 = vst.msk [vmem:[#allocation5 + $0xd0] sm:$0xff] %vm52, %v1097
    %1130 = vst.msk [vmem:[#allocation5 + $0xd8] sm:$0xff] %vm52, %v1098
    %1131 = vst.msk [vmem:[#allocation5 + $0xe0] sm:$0xff] %vm52, %v1099
    %1132 = vst.msk [vmem:[#allocation5 + $0xe8] sm:$0xff] %vm52, %v1100
    %1133 = vst.msk [vmem:[#allocation5 + $0xf0] sm:$0xff] %vm52, %v1101
    %1134 = vst.msk [vmem:[#allocation5 + $0xf8] sm:$0xff] %vm52, %v1102
    %v1135 = vld [vmem:[#allocation5] ss:$2 sm:$0xff]
    %v1136 = vld [vmem:[%s575] ss:$2 sm:$0xff]
    %v1137 = vld [vmem:[%s577] ss:$2 sm:$0xff]
    %v1138 = vld [vmem:[%s579] ss:$2 sm:$0xff]
    %v1139 = vmax.f32 %v1135, %v1136
    %v1140 = vmax.f32 %v1137, %v1138
    %v1141 = vmax.f32 %v1139, %v1140
    %1142 = vst.msk [vmem:[#allocation2 + $0x6f] sm:$0xff] %vm52, %v1141
    %v1143 = vld [vmem:[%s585] ss:$2 sm:$0xff]
    %v1144 = vld [vmem:[%s587] ss:$2 sm:$0xff]
    %v1145 = vld [vmem:[%s589] ss:$2 sm:$0xff]
    %v1146 = vld [vmem:[%s591] ss:$2 sm:$0xff]
    %v1147 = vmax.f32 %v1143, %v1144
    %v1148 = vmax.f32 %v1145, %v1146
    %v1149 = vmax.f32 %v1147, %v1148
    %1150 = vst.msk [vmem:[#allocation2 + $0x79] sm:$0xff] %vm52, %v1149
    %v1151 = vld [vmem:[%s597] ss:$2 sm:$0xff]
    %v1152 = vld [vmem:[%s599] ss:$2 sm:$0xff]
    %v1153 = vld [vmem:[%s601] ss:$2 sm:$0xff]
    %v1154 = vld [vmem:[%s603] ss:$2 sm:$0xff]
    %v1155 = vmax.f32 %v1151, %v1152
    %v1156 = vmax.f32 %v1153, %v1154
    %v1157 = vmax.f32 %v1155, %v1156
    %1158 = vst.msk [vmem:[#allocation2 + $0x83] sm:$0xff] %vm52, %v1157
    %v1159 = vld [vmem:[%s609] ss:$2 sm:$0xff]
    %v1160 = vld [vmem:[%s611] ss:$2 sm:$0xff]
    %v1161 = vld [vmem:[%s613] ss:$2 sm:$0xff]
    %v1162 = vld [vmem:[%s615] ss:$2 sm:$0xff]
    %v1163 = vmax.f32 %v1159, %v1160
    %v1164 = vmax.f32 %v1161, %v1162
    %v1165 = vmax.f32 %v1163, %v1164
    %1166 = vst.msk [vmem:[#allocation2 + $0x8d] sm:$0xff] %vm52, %v1165
    %v1167 = vld [vmem:[%s621] ss:$2 sm:$0xff]
    %v1168 = vld [vmem:[%s623] ss:$2 sm:$0xff]
    %v1169 = vld [vmem:[%s625] ss:$2 sm:$0xff]
    %v1170 = vld [vmem:[%s627] ss:$2 sm:$0xff]
    %v1171 = vmax.f32 %v1167, %v1168
    %v1172 = vmax.f32 %v1169, %v1170
    %v1173 = vmax.f32 %v1171, %v1172
    %1174 = vst.msk [vmem:[#allocation2 + $0x97] sm:$0xff] %vm52, %v1173
    %v1175 = vld [vmem:[%s633] ss:$2 sm:$0xff]
    %v1176 = vld [vmem:[%s635] ss:$2 sm:$0xff]
    %v1177 = vld [vmem:[%s637] ss:$2 sm:$0xff]
    %v1178 = vld [vmem:[%s639] ss:$2 sm:$0xff]
    %v1179 = vmax.f32 %v1175, %v1176
    %v1180 = vmax.f32 %v1177, %v1178
    %v1181 = vmax.f32 %v1179, %v1180
    %1182 = vst.msk [vmem:[#allocation2 + $0xa1] sm:$0xff] %vm52, %v1181
    %v1183 = vld [vmem:[%s645] ss:$2 sm:$0xff]
    %v1184 = vld [vmem:[%s647] ss:$2 sm:$0xff]
    %v1185 = vld [vmem:[%s649] ss:$2 sm:$0xff]
    %v1186 = vld [vmem:[%s651] ss:$2 sm:$0xff]
    %v1187 = vmax.f32 %v1183, %v1184
    %v1188 = vmax.f32 %v1185, %v1186
    %v1189 = vmax.f32 %v1187, %v1188
    %1190 = vst.msk [vmem:[#allocation2 + $0xab] sm:$0xff] %vm52, %v1189
    %v1191 = vld [vmem:[%s657] ss:$2 sm:$0xff]
    %v1192 = vld [vmem:[%s659] ss:$2 sm:$0xff]
    %v1193 = vld [vmem:[%s661] ss:$2 sm:$0xff]
    %v1194 = vld [vmem:[%s663] ss:$2 sm:$0xff]
    %v1195 = vmax.f32 %v1191, %v1192
    %v1196 = vmax.f32 %v1193, %v1194
    %v1197 = vmax.f32 %v1195, %v1196
    %1198 = vst.msk [vmem:[#allocation2 + $0xb5] sm:$0xff] %vm52, %v1197
    %v1199 = vld [vmem:[%s5] sm:$0x1]
    %v1200 = vld [vmem:[%s6] sm:$0x1]
    %v1201 = vld [vmem:[#allocation2] sm:$0xff]
    %v1202 = vld [vmem:[#allocation2 + $0x8] sm:$0xff]
    %v1203 = vld [vmem:[#allocation2 + $0x10] sm:$0xff]
    %v1204 = vld [vmem:[#allocation2 + $0x18] sm:$0xff]
    %v1205 = vld [vmem:[#allocation2 + $0x20] sm:$0xff]
    %v1206 = vld [vmem:[#allocation2 + $0x28] sm:$0xff]
    %v1207 = vld [vmem:[#allocation2 + $0x30] sm:$0xff]
    %v1208 = vld [vmem:[#allocation2 + $0x38] sm:$0xff]
    %v1209 = vld [vmem:[#allocation2 + $0x40] sm:$0xff]
    %v1210 = vld [vmem:[#allocation2 + $0x48] sm:$0xff]
    %v1211 = vld [vmem:[#allocation2 + $0x50] sm:$0xff]
    %v1212 = vld [vmem:[#allocation2 + $0x58] sm:$0xff]
    %v1213 = vld [vmem:[#allocation2 + $0x60] sm:$0xff]
    %v1214 = vld [vmem:[#allocation2 + $0x68] sm:$0xff]
    %v1215 = vld [vmem:[#allocation2 + $0x70] sm:$0xff]
    %v1216 = vld [vmem:[#allocation2 + $0x78] sm:$0xff]
    %v1217 = vld [vmem:[#allocation2 + $0x80] sm:$0xff]
    %v1218 = vld [vmem:[#allocation2 + $0x88] sm:$0xff]
    %v1219 = vld [vmem:[#allocation2 + $0x90] sm:$0xff]
    %v1220 = vld [vmem:[#allocation2 + $0x98] sm:$0xff]
    %v1221 = vld [vmem:[#allocation2 + $0xa0] sm:$0xff]
    %v1222 = vld [vmem:[#allocation2 + $0xa8] sm:$0xff]
    %v1223 = vld [vmem:[#allocation2 + $0xb0] sm:$0xf]
    %v1224 = vpack.c.bf16 %v1202, %v1201
    %v1225 = vpack.c.bf16 %v1204, %v1203
    %v1226 = vpack.c.bf16 %v1206, %v1205
    %v1227 = vpack.c.bf16 %v1208, %v1207
    %v1228 = vpack.c.bf16 %v1210, %v1209
    %v1229 = vpack.c.bf16 %v1212, %v1211
    %v1230 = vpack.c.bf16 %v1214, %v1213
    %v1231 = vpack.c.bf16 %v1216, %v1215
    %v1232 = vpack.c.bf16 %v1218, %v1217
    %v1233 = vpack.c.bf16 %v1220, %v1219
    %v1234 = vpack.c.bf16 %v1222, %v1221
    %v1235 = vpack.c.bf16 %v1223, %v1223
    %v1236 = vld [vmem:[%s4] sm:$0xf]
    %v1237 = vld [vmem:[%s4 + $0x4] sm:$0xf]
    %v1238 = vld [vmem:[%s4 + $0x8] sm:$0xf]
    %v1239 = vld [vmem:[%s4 + $0xc] sm:$0xf]
    %v1240 = vld [vmem:[%s4 + $0x10] sm:$0xf]
    %v1241 = vld [vmem:[%s4 + $0x14] sm:$0xf]
    %v1242 = vld [vmem:[%s4 + $0x18] sm:$0xf]
    %v1243 = vld [vmem:[%s4 + $0x1c] sm:$0xf]
    %v1244 = vld [vmem:[#allocation2 + $0x1] sm:$0xff]
    %v1245 = vld [vmem:[#allocation2 + $0x9] sm:$0xff]
    %v1246 = vld [vmem:[#allocation2 + $0x11] sm:$0xff]
    %v1247 = vld [vmem:[#allocation2 + $0x19] sm:$0xff]
    %v1248 = vld [vmem:[#allocation2 + $0x21] sm:$0xff]
    %v1249 = vld [vmem:[#allocation2 + $0x29] sm:$0xff]
    %v1250 = vld [vmem:[#allocation2 + $0x31] sm:$0xff]
    %v1251 = vld [vmem:[#allocation2 + $0x39] sm:$0xff]
    %v1252 = vld [vmem:[#allocation2 + $0x41] sm:$0xff]
    %v1253 = vld [vmem:[#allocation2 + $0x49] sm:$0xff]
    %v1254 = vld [vmem:[#allocation2 + $0x51] sm:$0xff]
    %v1255 = vld [vmem:[#allocation2 + $0x59] sm:$0xff]
    %v1256 = vld [vmem:[#allocation2 + $0x61] sm:$0xff]
    %v1257 = vld [vmem:[#allocation2 + $0x69] sm:$0xff]
    %v1258 = vld [vmem:[#allocation2 + $0x71] sm:$0xff]
    %v1259 = vld [vmem:[#allocation2 + $0x79] sm:$0xff]
    %v1260 = vld [vmem:[#allocation2 + $0x81] sm:$0xff]
    %v1261 = vld [vmem:[#allocation2 + $0x89] sm:$0xff]
    %v1262 = vld [vmem:[#allocation2 + $0x91] sm:$0xff]
    %v1263 = vld [vmem:[#allocation2 + $0x99] sm:$0xff]
    %v1264 = vld [vmem:[#allocation2 + $0xa1] sm:$0xff]
    %v1265 = vld [vmem:[#allocation2 + $0xa9] sm:$0xff]
    %v1266 = vld [vmem:[#allocation2 + $0xb1] sm:$0xf]
    %v1267 = vpack.c.bf16 %v1245, %v1244
    %v1268 = vpack.c.bf16 %v1247, %v1246
    %v1269 = vpack.c.bf16 %v1249, %v1248
    %v1270 = vpack.c.bf16 %v1251, %v1250
    %v1271 = vpack.c.bf16 %v1253, %v1252
    %v1272 = vpack.c.bf16 %v1255, %v1254
    %v1273 = vpack.c.bf16 %v1257, %v1256
    %v1274 = vpack.c.bf16 %v1259, %v1258
    %v1275 = vpack.c.bf16 %v1261, %v1260
    %v1276 = vpack.c.bf16 %v1263, %v1262
    %v1277 = vpack.c.bf16 %v1265, %v1264
    %v1278 = vpack.c.bf16 %v1266, %v1266
    %s1279 = scalar_lea.vmem %s4, 32
    %v1280 = vld [vmem:[%s1279] sm:$0xf]
    %v1281 = vld [vmem:[%s1279 + $0x4] sm:$0xf]
    %v1282 = vld [vmem:[%s1279 + $0x8] sm:$0xf]
    %v1283 = vld [vmem:[%s1279 + $0xc] sm:$0xf]
    %v1284 = vld [vmem:[%s1279 + $0x10] sm:$0xf]
    %v1285 = vld [vmem:[%s1279 + $0x14] sm:$0xf]
    %v1286 = vld [vmem:[%s1279 + $0x18] sm:$0xf]
    %v1287 = vld [vmem:[%s1279 + $0x1c] sm:$0xf]
    %v1296 = vunpack.c.l.b16 %v1280
    %v1297 = vunpack.c.l.b16 %v1281
    %v1298 = vunpack.c.l.b16 %v1282
    %v1299 = vunpack.c.l.b16 %v1283
    %v1300 = vunpack.c.l.b16 %v1284
    %v1301 = vunpack.c.l.b16 %v1285
    %v1302 = vunpack.c.l.b16 %v1286
    %v1303 = vunpack.c.l.b16 %v1287
    %v1304 = vpack.c.b16 %v1297, %v1296
    %v1305 = vpack.c.b16 %v1299, %v1298
    %v1306 = vpack.c.b16 %v1301, %v1300
    %v1307 = vpack.c.b16 %v1303, %v1302
    %v1313 = vsel %vm52, %v1267, 0
    %v1316 = vsel %vm52, %v1268, 0
    %v1319 = vsel %vm52, %v1269, 0
    %v1322 = vsel %vm52, %v1270, 0
    %v1325 = vsel %vm52, %v1271, 0
    %v1328 = vsel %vm52, %v1272, 0
    %v1331 = vsel %vm52, %v1273, 0
    %v1334 = vsel %vm52, %v1274, 0
    %v1337 = vsel %vm52, %v1275, 0
    %v1340 = vsel %vm52, %v1276, 0
    %v1343 = vsel %vm52, %v1277, 0
    %v1346 = vsel %vm52, %v1278, 0
    %1348 = vmatprep.subr.bf16.mxu0 0
    %1349 = vmatpush1.bf16.msra.mxu0 0
    %1350 = vmatprep.subr.bf16.mxu0 0
    %1351 = vmatpush1.bf16.msra.mxu0 0
    %1352 = vmatprep.subr.bf16.mxu0 0
    %1353 = vmatpush1.bf16.msra.mxu0 0
    %1354 = vmatprep.subr.bf16.mxu0 0
    %1355 = vmatpush1.bf16.msra.mxu0 0
    %1356 = vmatprep.subr.bf16.mxu0 0
    %1357 = vmatpush1.bf16.msra.mxu0 %v1307
    %1358 = vmatprep.subr.bf16.mxu0 0
    %1359 = vmatpush1.bf16.msra.mxu0 %v1306
    %1360 = vmatprep.subr.bf16.mxu0 0
    %1361 = vmatpush1.bf16.msra.mxu0 %v1305
    %1362 = vmatprep.subr.bf16.mxu0 0
    %1363 = vmatpush1.bf16.msra.mxu0 %v1304
    %1364 = vmatprep.subr.bf16.mxu0 0
    %1365 = vmatpush2.bf16.msra.mxu0 0
    %1366 = vmatprep.subr.bf16.mxu0 0
    %1367 = vmatpush2.bf16.msra.mxu0 0
    %1368 = vmatprep.subr.bf16.mxu0 0
    %1369 = vmatpush2.bf16.msra.mxu0 0
    %1370 = vmatprep.subr.bf16.mxu0 0
    %1371 = vmatpush2.bf16.msra.mxu0 0
    %1372 = vmatprep.subr.bf16.mxu0 0
    %1373 = vmatpush2.bf16.msra.mxu0 0
    %1374 = vmatprep.subr.bf16.mxu0 0
    %1375 = vmatpush2.bf16.msra.mxu0 0
    %1376 = vmatprep.subr.bf16.mxu0 0
    %1377 = vmatpush2.bf16.msra.mxu0 0
    %1378 = vmatprep.subr.bf16.mxu0 0
    %1379 = vmatpush2.bf16.msra.mxu0 0
    %1380 = vmatprep.mubr.bf16.mxu0 0
    %1381 = vmatmul.mubr.bf16.gmra.mxu0 %v1313
    %v1382 = vpop.f32.mrf.mxu0
    %v1383 = vadd.f32 0.0, %v1382
    %v1384 = vpop.f32.mrf.mxu0
    %v1385 = vpop.f32.mrf.mxu0
    %v1386 = vadd.f32 0.0, %v1385
    %v1387 = vpop.f32.mrf.mxu0
    %1388 = vmatprep.mubr.bf16.mxu0 0
    %1389 = vmatmul.mubr.bf16.gmra.mxu0 %v1316
    %v1390 = vpop.f32.mrf.mxu0
    %v1391 = vadd.f32 0.0, %v1390
    %v1392 = vpop.f32.mrf.mxu0
    %v1393 = vpop.f32.mrf.mxu0
    %v1394 = vadd.f32 0.0, %v1393
    %v1395 = vpop.f32.mrf.mxu0
    %1396 = vmatprep.mubr.bf16.mxu0 0
    %1397 = vmatmul.mubr.bf16.gmra.mxu0 %v1319
    %v1398 = vpop.f32.mrf.mxu0
    %v1399 = vadd.f32 0.0, %v1398
    %v1400 = vpop.f32.mrf.mxu0
    %v1401 = vpop.f32.mrf.mxu0
    %v1402 = vadd.f32 0.0, %v1401
    %v1403 = vpop.f32.mrf.mxu0
    %1404 = vmatprep.mubr.bf16.mxu0 0
    %1405 = vmatmul.mubr.bf16.gmra.mxu0 %v1322
    %v1406 = vpop.f32.mrf.mxu0
    %v1407 = vadd.f32 0.0, %v1406
    %v1408 = vpop.f32.mrf.mxu0
    %v1409 = vpop.f32.mrf.mxu0
    %v1410 = vadd.f32 0.0, %v1409
    %v1411 = vpop.f32.mrf.mxu0
    %1412 = vmatprep.mubr.bf16.mxu0 0
    %1413 = vmatmul.mubr.bf16.gmra.mxu0 %v1325
    %v1414 = vpop.f32.mrf.mxu0
    %v1415 = vadd.f32 0.0, %v1414
    %v1416 = vpop.f32.mrf.mxu0
    %v1417 = vpop.f32.mrf.mxu0
    %v1418 = vadd.f32 0.0, %v1417
    %v1419 = vpop.f32.mrf.mxu0
    %1420 = vmatprep.mubr.bf16.mxu0 0
    %1421 = vmatmul.mubr.bf16.gmra.mxu0 %v1328
    %v1422 = vpop.f32.mrf.mxu0
    %v1423 = vadd.f32 0.0, %v1422
    %v1424 = vpop.f32.mrf.mxu0
    %v1425 = vpop.f32.mrf.mxu0
    %v1426 = vadd.f32 0.0, %v1425
    %v1427 = vpop.f32.mrf.mxu0
    %1428 = vmatprep.mubr.bf16.mxu0 0
    %1429 = vmatmul.mubr.bf16.gmra.mxu0 %v1331
    %v1430 = vpop.f32.mrf.mxu0
    %v1431 = vadd.f32 0.0, %v1430
    %v1432 = vpop.f32.mrf.mxu0
    %v1433 = vpop.f32.mrf.mxu0
    %v1434 = vadd.f32 0.0, %v1433
    %v1435 = vpop.f32.mrf.mxu0
    %1436 = vmatprep.mubr.bf16.mxu0 0
    %1437 = vmatmul.mubr.bf16.gmra.mxu0 %v1334
    %v1438 = vpop.f32.mrf.mxu0
    %v1439 = vadd.f32 0.0, %v1438
    %v1440 = vpop.f32.mrf.mxu0
    %v1441 = vpop.f32.mrf.mxu0
    %v1442 = vadd.f32 0.0, %v1441
    %v1443 = vpop.f32.mrf.mxu0
    %1444 = vmatprep.mubr.bf16.mxu0 0
    %1445 = vmatmul.mubr.bf16.gmra.mxu0 %v1337
    %v1446 = vpop.f32.mrf.mxu0
    %v1447 = vadd.f32 0.0, %v1446
    %v1448 = vpop.f32.mrf.mxu0
    %v1449 = vpop.f32.mrf.mxu0
    %v1450 = vadd.f32 0.0, %v1449
    %v1451 = vpop.f32.mrf.mxu0
    %1452 = vmatprep.mubr.bf16.mxu0 0
    %1453 = vmatmul.mubr.bf16.gmra.mxu0 %v1340
    %v1454 = vpop.f32.mrf.mxu0
    %v1455 = vadd.f32 0.0, %v1454
    %v1456 = vpop.f32.mrf.mxu0
    %v1457 = vpop.f32.mrf.mxu0
    %v1458 = vadd.f32 0.0, %v1457
    %v1459 = vpop.f32.mrf.mxu0
    %1460 = vmatprep.mubr.bf16.mxu0 0
    %1461 = vmatmul.mubr.bf16.gmra.mxu0 %v1343
    %v1462 = vpop.f32.mrf.mxu0
    %v1463 = vadd.f32 0.0, %v1462
    %v1464 = vpop.f32.mrf.mxu0
    %v1465 = vpop.f32.mrf.mxu0
    %v1466 = vadd.f32 0.0, %v1465
    %v1467 = vpop.f32.mrf.mxu0
    %1468 = vmatprep.mubr.bf16.mxu0 0
    %1469 = vmatmul.mubr.bf16.gmra.mxu0 %v1346
    %v1470 = vpop.f32.mrf.mxu0
    %v1471 = vadd.f32 0.0, %v1470
    %v1472 = vpop.f32.mrf.mxu0
    %v1473 = vpop.f32.mrf.mxu0
    %v1474 = vpop.f32.mrf.mxu0
    %1475 = vdwg.mxu0
    %v1484 = vunpack.c.l.b16 %v1236
    %v1485 = vunpack.c.l.b16 %v1237
    %v1486 = vunpack.c.l.b16 %v1238
    %v1487 = vunpack.c.l.b16 %v1239
    %v1488 = vunpack.c.l.b16 %v1240
    %v1489 = vunpack.c.l.b16 %v1241
    %v1490 = vunpack.c.l.b16 %v1242
    %v1491 = vunpack.c.l.b16 %v1243
    %v1492 = vpack.c.b16 %v1485, %v1484
    %v1493 = vpack.c.b16 %v1487, %v1486
    %v1494 = vpack.c.b16 %v1489, %v1488
    %v1495 = vpack.c.b16 %v1491, %v1490
    %v1501 = vsel %vm52, %v1224, 0
    %v1504 = vsel %vm52, %v1225, 0
    %v1507 = vsel %vm52, %v1226, 0
    %v1510 = vsel %vm52, %v1227, 0
    %v1513 = vsel %vm52, %v1228, 0
    %v1516 = vsel %vm52, %v1229, 0
    %v1519 = vsel %vm52, %v1230, 0
    %v1522 = vsel %vm52, %v1231, 0
    %v1525 = vsel %vm52, %v1232, 0
    %v1528 = vsel %vm52, %v1233, 0
    %v1531 = vsel %vm52, %v1234, 0
    %v1534 = vsel %vm52, %v1235, 0
    %1536 = vmatprep.subr.bf16.mxu0 0
    %1537 = vmatpush1.bf16.msra.mxu0 0
    %1538 = vmatprep.subr.bf16.mxu0 0
    %1539 = vmatpush1.bf16.msra.mxu0 0
    %1540 = vmatprep.subr.bf16.mxu0 0
    %1541 = vmatpush1.bf16.msra.mxu0 0
    %1542 = vmatprep.subr.bf16.mxu0 0
    %1543 = vmatpush1.bf16.msra.mxu0 0
    %1544 = vmatprep.subr.bf16.mxu0 0
    %1545 = vmatpush1.bf16.msra.mxu0 %v1495
    %1546 = vmatprep.subr.bf16.mxu0 0
    %1547 = vmatpush1.bf16.msra.mxu0 %v1494
    %1548 = vmatprep.subr.bf16.mxu0 0
    %1549 = vmatpush1.bf16.msra.mxu0 %v1493
    %1550 = vmatprep.subr.bf16.mxu0 0
    %1551 = vmatpush1.bf16.msra.mxu0 %v1492
    %1552 = vmatprep.subr.bf16.mxu0 0
    %1553 = vmatpush2.bf16.msra.mxu0 0
    %1554 = vmatprep.subr.bf16.mxu0 0
    %1555 = vmatpush2.bf16.msra.mxu0 0
    %1556 = vmatprep.subr.bf16.mxu0 0
    %1557 = vmatpush2.bf16.msra.mxu0 0
    %1558 = vmatprep.subr.bf16.mxu0 0
    %1559 = vmatpush2.bf16.msra.mxu0 0
    %1560 = vmatprep.subr.bf16.mxu0 0
    %1561 = vmatpush2.bf16.msra.mxu0 0
    %1562 = vmatprep.subr.bf16.mxu0 0
    %1563 = vmatpush2.bf16.msra.mxu0 0
    %1564 = vmatprep.subr.bf16.mxu0 0
    %1565 = vmatpush2.bf16.msra.mxu0 0
    %1566 = vmatprep.subr.bf16.mxu0 0
    %1567 = vmatpush2.bf16.msra.mxu0 0
    %1568 = vmatprep.mubr.bf16.mxu0 0
    %1569 = vmatmul.mubr.bf16.gmra.mxu0 %v1501
    %v1570 = vpop.f32.mrf.mxu0
    %v1571 = vadd.f32 %v1383, %v1570
    %v1572 = vpop.f32.mrf.mxu0
    %v1573 = vpop.f32.mrf.mxu0
    %v1574 = vadd.f32 %v1386, %v1573
    %v1575 = vpop.f32.mrf.mxu0
    %1576 = vmatprep.mubr.bf16.mxu0 0
    %1577 = vmatmul.mubr.bf16.gmra.mxu0 %v1504
    %v1578 = vpop.f32.mrf.mxu0
    %v1579 = vadd.f32 %v1391, %v1578
    %v1580 = vpop.f32.mrf.mxu0
    %v1581 = vpop.f32.mrf.mxu0
    %v1582 = vadd.f32 %v1394, %v1581
    %v1583 = vpop.f32.mrf.mxu0
    %1584 = vmatprep.mubr.bf16.mxu0 0
    %1585 = vmatmul.mubr.bf16.gmra.mxu0 %v1507
    %v1586 = vpop.f32.mrf.mxu0
    %v1587 = vadd.f32 %v1399, %v1586
    %v1588 = vpop.f32.mrf.mxu0
    %v1589 = vpop.f32.mrf.mxu0
    %v1590 = vadd.f32 %v1402, %v1589
    %v1591 = vpop.f32.mrf.mxu0
    %1592 = vmatprep.mubr.bf16.mxu0 0
    %1593 = vmatmul.mubr.bf16.gmra.mxu0 %v1510
    %v1594 = vpop.f32.mrf.mxu0
    %v1595 = vadd.f32 %v1407, %v1594
    %v1596 = vpop.f32.mrf.mxu0
    %v1597 = vpop.f32.mrf.mxu0
    %v1598 = vadd.f32 %v1410, %v1597
    %v1599 = vpop.f32.mrf.mxu0
    %1600 = vmatprep.mubr.bf16.mxu0 0
    %1601 = vmatmul.mubr.bf16.gmra.mxu0 %v1513
    %v1602 = vpop.f32.mrf.mxu0
    %v1603 = vadd.f32 %v1415, %v1602
    %v1604 = vpop.f32.mrf.mxu0
    %v1605 = vpop.f32.mrf.mxu0
    %v1606 = vadd.f32 %v1418, %v1605
    %v1607 = vpop.f32.mrf.mxu0
    %1608 = vmatprep.mubr.bf16.mxu0 0
    %1609 = vmatmul.mubr.bf16.gmra.mxu0 %v1516
    %v1610 = vpop.f32.mrf.mxu0
    %v1611 = vadd.f32 %v1423, %v1610
    %v1612 = vpop.f32.mrf.mxu0
    %v1613 = vpop.f32.mrf.mxu0
    %v1614 = vadd.f32 %v1426, %v1613
    %v1615 = vpop.f32.mrf.mxu0
    %1616 = vmatprep.mubr.bf16.mxu0 0
    %1617 = vmatmul.mubr.bf16.gmra.mxu0 %v1519
    %v1618 = vpop.f32.mrf.mxu0
    %v1619 = vadd.f32 %v1431, %v1618
    %v1620 = vpop.f32.mrf.mxu0
    %v1621 = vpop.f32.mrf.mxu0
    %v1622 = vadd.f32 %v1434, %v1621
    %v1623 = vpop.f32.mrf.mxu0
    %1624 = vmatprep.mubr.bf16.mxu0 0
    %1625 = vmatmul.mubr.bf16.gmra.mxu0 %v1522
    %v1626 = vpop.f32.mrf.mxu0
    %v1627 = vadd.f32 %v1439, %v1626
    %v1628 = vpop.f32.mrf.mxu0
    %v1629 = vpop.f32.mrf.mxu0
    %v1630 = vadd.f32 %v1442, %v1629
    %v1631 = vpop.f32.mrf.mxu0
    %1632 = vmatprep.mubr.bf16.mxu0 0
    %1633 = vmatmul.mubr.bf16.gmra.mxu0 %v1525
    %v1634 = vpop.f32.mrf.mxu0
    %v1635 = vadd.f32 %v1447, %v1634
    %v1636 = vpop.f32.mrf.mxu0
    %v1637 = vpop.f32.mrf.mxu0
    %v1638 = vadd.f32 %v1450, %v1637
    %v1639 = vpop.f32.mrf.mxu0
    %1640 = vmatprep.mubr.bf16.mxu0 0
    %1641 = vmatmul.mubr.bf16.gmra.mxu0 %v1528
    %v1642 = vpop.f32.mrf.mxu0
    %v1643 = vadd.f32 %v1455, %v1642
    %v1644 = vpop.f32.mrf.mxu0
    %v1645 = vpop.f32.mrf.mxu0
    %v1646 = vadd.f32 %v1458, %v1645
    %v1647 = vpop.f32.mrf.mxu0
    %1648 = vmatprep.mubr.bf16.mxu0 0
    %1649 = vmatmul.mubr.bf16.gmra.mxu0 %v1531
    %v1650 = vpop.f32.mrf.mxu0
    %v1651 = vadd.f32 %v1463, %v1650
    %v1652 = vpop.f32.mrf.mxu0
    %v1653 = vpop.f32.mrf.mxu0
    %v1654 = vadd.f32 %v1466, %v1653
    %v1655 = vpop.f32.mrf.mxu0
    %1656 = vmatprep.mubr.bf16.mxu0 0
    %1657 = vmatmul.mubr.bf16.gmra.mxu0 %v1534
    %v1658 = vpop.f32.mrf.mxu0
    %v1659 = vadd.f32 %v1471, %v1658
    %v1660 = vpop.f32.mrf.mxu0
    %v1661 = vpop.f32.mrf.mxu0
    %v1662 = vpop.f32.mrf.mxu0
    %1663 = vdwg.mxu0
    %v1664 = vld [vmem:[#allocation2 + $0x2] sm:$0xff]
    %v1665 = vld [vmem:[#allocation2 + $0xa] sm:$0xff]
    %v1666 = vld [vmem:[#allocation2 + $0x12] sm:$0xff]
    %v1667 = vld [vmem:[#allocation2 + $0x1a] sm:$0xff]
    %v1668 = vld [vmem:[#allocation2 + $0x22] sm:$0xff]
    %v1669 = vld [vmem:[#allocation2 + $0x2a] sm:$0xff]
    %v1670 = vld [vmem:[#allocation2 + $0x32] sm:$0xff]
    %v1671 = vld [vmem:[#allocation2 + $0x3a] sm:$0xff]
    %v1672 = vld [vmem:[#allocation2 + $0x42] sm:$0xff]
    %v1673 = vld [vmem:[#allocation2 + $0x4a] sm:$0xff]
    %v1674 = vld [vmem:[#allocation2 + $0x52] sm:$0xff]
    %v1675 = vld [vmem:[#allocation2 + $0x5a] sm:$0xff]
    %v1676 = vld [vmem:[#allocation2 + $0x62] sm:$0xff]
    %v1677 = vld [vmem:[#allocation2 + $0x6a] sm:$0xff]
    %v1678 = vld [vmem:[#allocation2 + $0x72] sm:$0xff]
    %v1679 = vld [vmem:[#allocation2 + $0x7a] sm:$0xff]
    %v1680 = vld [vmem:[#allocation2 + $0x82] sm:$0xff]
    %v1681 = vld [vmem:[#allocation2 + $0x8a] sm:$0xff]
    %v1682 = vld [vmem:[#allocation2 + $0x92] sm:$0xff]
    %v1683 = vld [vmem:[#allocation2 + $0x9a] sm:$0xff]
    %v1684 = vld [vmem:[#allocation2 + $0xa2] sm:$0xff]
    %v1685 = vld [vmem:[#allocation2 + $0xaa] sm:$0xff]
    %v1686 = vld [vmem:[#allocation2 + $0xb2] sm:$0xf]
    %v1687 = vpack.c.bf16 %v1665, %v1664
    %v1688 = vpack.c.bf16 %v1667, %v1666
    %v1689 = vpack.c.bf16 %v1669, %v1668
    %v1690 = vpack.c.bf16 %v1671, %v1670
    %v1691 = vpack.c.bf16 %v1673, %v1672
    %v1692 = vpack.c.bf16 %v1675, %v1674
    %v1693 = vpack.c.bf16 %v1677, %v1676
    %v1694 = vpack.c.bf16 %v1679, %v1678
    %v1695 = vpack.c.bf16 %v1681, %v1680
    %v1696 = vpack.c.bf16 %v1683, %v1682
    %v1697 = vpack.c.bf16 %v1685, %v1684
    %v1698 = vpack.c.bf16 %v1686, %v1686
    %s1699 = scalar_lea.vmem %s4, 64
    %v1700 = vld [vmem:[%s1699] sm:$0xf]
    %v1701 = vld [vmem:[%s1699 + $0x4] sm:$0xf]
    %v1702 = vld [vmem:[%s1699 + $0x8] sm:$0xf]
    %v1703 = vld [vmem:[%s1699 + $0xc] sm:$0xf]
    %v1704 = vld [vmem:[%s1699 + $0x10] sm:$0xf]
    %v1705 = vld [vmem:[%s1699 + $0x14] sm:$0xf]
    %v1706 = vld [vmem:[%s1699 + $0x18] sm:$0xf]
    %v1707 = vld [vmem:[%s1699 + $0x1c] sm:$0xf]
    %v1716 = vunpack.c.l.b16 %v1700
    %v1717 = vunpack.c.l.b16 %v1701
    %v1718 = vunpack.c.l.b16 %v1702
    %v1719 = vunpack.c.l.b16 %v1703
    %v1720 = vunpack.c.l.b16 %v1704
    %v1721 = vunpack.c.l.b16 %v1705
    %v1722 = vunpack.c.l.b16 %v1706
    %v1723 = vunpack.c.l.b16 %v1707
    %v1724 = vpack.c.b16 %v1717, %v1716
    %v1725 = vpack.c.b16 %v1719, %v1718
    %v1726 = vpack.c.b16 %v1721, %v1720
    %v1727 = vpack.c.b16 %v1723, %v1722
    %v1733 = vsel %vm52, %v1687, 0
    %v1736 = vsel %vm52, %v1688, 0
    %v1739 = vsel %vm52, %v1689, 0
    %v1742 = vsel %vm52, %v1690, 0
    %v1745 = vsel %vm52, %v1691, 0
    %v1748 = vsel %vm52, %v1692, 0
    %v1751 = vsel %vm52, %v1693, 0
    %v1754 = vsel %vm52, %v1694, 0
    %v1757 = vsel %vm52, %v1695, 0
    %v1760 = vsel %vm52, %v1696, 0
    %v1763 = vsel %vm52, %v1697, 0
    %v1766 = vsel %vm52, %v1698, 0
    %1768 = vmatprep.subr.bf16.mxu0 0
    %1769 = vmatpush1.bf16.msra.mxu0 0
    %1770 = vmatprep.subr.bf16.mxu0 0
    %1771 = vmatpush1.bf16.msra.mxu0 0
    %1772 = vmatprep.subr.bf16.mxu0 0
    %1773 = vmatpush1.bf16.msra.mxu0 0
    %1774 = vmatprep.subr.bf16.mxu0 0
    %1775 = vmatpush1.bf16.msra.mxu0 0
    %1776 = vmatprep.subr.bf16.mxu0 0
    %1777 = vmatpush1.bf16.msra.mxu0 %v1727
    %1778 = vmatprep.subr.bf16.mxu0 0
    %1779 = vmatpush1.bf16.msra.mxu0 %v1726
    %1780 = vmatprep.subr.bf16.mxu0 0
    %1781 = vmatpush1.bf16.msra.mxu0 %v1725
    %1782 = vmatprep.subr.bf16.mxu0 0
    %1783 = vmatpush1.bf16.msra.mxu0 %v1724
    %1784 = vmatprep.subr.bf16.mxu0 0
    %1785 = vmatpush2.bf16.msra.mxu0 0
    %1786 = vmatprep.subr.bf16.mxu0 0
    %1787 = vmatpush2.bf16.msra.mxu0 0
    %1788 = vmatprep.subr.bf16.mxu0 0
    %1789 = vmatpush2.bf16.msra.mxu0 0
    %1790 = vmatprep.subr.bf16.mxu0 0
    %1791 = vmatpush2.bf16.msra.mxu0 0
    %1792 = vmatprep.subr.bf16.mxu0 0
    %1793 = vmatpush2.bf16.msra.mxu0 0
    %1794 = vmatprep.subr.bf16.mxu0 0
    %1795 = vmatpush2.bf16.msra.mxu0 0
    %1796 = vmatprep.subr.bf16.mxu0 0
    %1797 = vmatpush2.bf16.msra.mxu0 0
    %1798 = vmatprep.subr.bf16.mxu0 0
    %1799 = vmatpush2.bf16.msra.mxu0 0
    %1800 = vmatprep.mubr.bf16.mxu0 0
    %1801 = vmatmul.mubr.bf16.gmra.mxu0 %v1733
    %v1802 = vpop.f32.mrf.mxu0
    %v1803 = vadd.f32 0.0, %v1802
    %v1804 = vpop.f32.mrf.mxu0
    %v1805 = vpop.f32.mrf.mxu0
    %v1806 = vadd.f32 0.0, %v1805
    %v1807 = vpop.f32.mrf.mxu0
    %1808 = vmatprep.mubr.bf16.mxu0 0
    %1809 = vmatmul.mubr.bf16.gmra.mxu0 %v1736
    %v1810 = vpop.f32.mrf.mxu0
    %v1811 = vadd.f32 0.0, %v1810
    %v1812 = vpop.f32.mrf.mxu0
    %v1813 = vpop.f32.mrf.mxu0
    %v1814 = vadd.f32 0.0, %v1813
    %v1815 = vpop.f32.mrf.mxu0
    %1816 = vmatprep.mubr.bf16.mxu0 0
    %1817 = vmatmul.mubr.bf16.gmra.mxu0 %v1739
    %v1818 = vpop.f32.mrf.mxu0
    %v1819 = vadd.f32 0.0, %v1818
    %v1820 = vpop.f32.mrf.mxu0
    %v1821 = vpop.f32.mrf.mxu0
    %v1822 = vadd.f32 0.0, %v1821
    %v1823 = vpop.f32.mrf.mxu0
    %1824 = vmatprep.mubr.bf16.mxu0 0
    %1825 = vmatmul.mubr.bf16.gmra.mxu0 %v1742
    %v1826 = vpop.f32.mrf.mxu0
    %v1827 = vadd.f32 0.0, %v1826
    %v1828 = vpop.f32.mrf.mxu0
    %v1829 = vpop.f32.mrf.mxu0
    %v1830 = vadd.f32 0.0, %v1829
    %v1831 = vpop.f32.mrf.mxu0
    %1832 = vmatprep.mubr.bf16.mxu0 0
    %1833 = vmatmul.mubr.bf16.gmra.mxu0 %v1745
    %v1834 = vpop.f32.mrf.mxu0
    %v1835 = vadd.f32 0.0, %v1834
    %v1836 = vpop.f32.mrf.mxu0
    %v1837 = vpop.f32.mrf.mxu0
    %v1838 = vadd.f32 0.0, %v1837
    %v1839 = vpop.f32.mrf.mxu0
    %1840 = vmatprep.mubr.bf16.mxu0 0
    %1841 = vmatmul.mubr.bf16.gmra.mxu0 %v1748
    %v1842 = vpop.f32.mrf.mxu0
    %v1843 = vadd.f32 0.0, %v1842
    %v1844 = vpop.f32.mrf.mxu0
    %v1845 = vpop.f32.mrf.mxu0
    %v1846 = vadd.f32 0.0, %v1845
    %v1847 = vpop.f32.mrf.mxu0
    %1848 = vmatprep.mubr.bf16.mxu0 0
    %1849 = vmatmul.mubr.bf16.gmra.mxu0 %v1751
    %v1850 = vpop.f32.mrf.mxu0
    %v1851 = vadd.f32 0.0, %v1850
    %v1852 = vpop.f32.mrf.mxu0
    %v1853 = vpop.f32.mrf.mxu0
    %v1854 = vadd.f32 0.0, %v1853
    %v1855 = vpop.f32.mrf.mxu0
    %1856 = vmatprep.mubr.bf16.mxu0 0
    %1857 = vmatmul.mubr.bf16.gmra.mxu0 %v1754
    %v1858 = vpop.f32.mrf.mxu0
    %v1859 = vadd.f32 0.0, %v1858
    %v1860 = vpop.f32.mrf.mxu0
    %v1861 = vpop.f32.mrf.mxu0
    %v1862 = vadd.f32 0.0, %v1861
    %v1863 = vpop.f32.mrf.mxu0
    %1864 = vmatprep.mubr.bf16.mxu0 0
    %1865 = vmatmul.mubr.bf16.gmra.mxu0 %v1757
    %v1866 = vpop.f32.mrf.mxu0
    %v1867 = vadd.f32 0.0, %v1866
    %v1868 = vpop.f32.mrf.mxu0
    %v1869 = vpop.f32.mrf.mxu0
    %v1870 = vadd.f32 0.0, %v1869
    %v1871 = vpop.f32.mrf.mxu0
    %1872 = vmatprep.mubr.bf16.mxu0 0
    %1873 = vmatmul.mubr.bf16.gmra.mxu0 %v1760
    %v1874 = vpop.f32.mrf.mxu0
    %v1875 = vadd.f32 0.0, %v1874
    %v1876 = vpop.f32.mrf.mxu0
    %v1877 = vpop.f32.mrf.mxu0
    %v1878 = vadd.f32 0.0, %v1877
    %v1879 = vpop.f32.mrf.mxu0
    %1880 = vmatprep.mubr.bf16.mxu0 0
    %1881 = vmatmul.mubr.bf16.gmra.mxu0 %v1763
    %v1882 = vpop.f32.mrf.mxu0
    %v1883 = vadd.f32 0.0, %v1882
    %v1884 = vpop.f32.mrf.mxu0
    %v1885 = vpop.f32.mrf.mxu0
    %v1886 = vadd.f32 0.0, %v1885
    %v1887 = vpop.f32.mrf.mxu0
    %1888 = vmatprep.mubr.bf16.mxu0 0
    %1889 = vmatmul.mubr.bf16.gmra.mxu0 %v1766
    %v1890 = vpop.f32.mrf.mxu0
    %v1891 = vadd.f32 0.0, %v1890
    %v1892 = vpop.f32.mrf.mxu0
    %v1893 = vpop.f32.mrf.mxu0
    %v1894 = vpop.f32.mrf.mxu0
    %1895 = vdwg.mxu0
    %v1896 = vadd.f32 %v1571, %v1803
    %v1897 = vadd.f32 %v1574, %v1806
    %v1898 = vadd.f32 %v1579, %v1811
    %v1899 = vadd.f32 %v1582, %v1814
    %v1900 = vadd.f32 %v1587, %v1819
    %v1901 = vadd.f32 %v1590, %v1822
    %v1902 = vadd.f32 %v1595, %v1827
    %v1903 = vadd.f32 %v1598, %v1830
    %v1904 = vadd.f32 %v1603, %v1835
    %v1905 = vadd.f32 %v1606, %v1838
    %v1906 = vadd.f32 %v1611, %v1843
    %v1907 = vadd.f32 %v1614, %v1846
    %v1908 = vadd.f32 %v1619, %v1851
    %v1909 = vadd.f32 %v1622, %v1854
    %v1910 = vadd.f32 %v1627, %v1859
    %v1911 = vadd.f32 %v1630, %v1862
    %v1912 = vadd.f32 %v1635, %v1867
    %v1913 = vadd.f32 %v1638, %v1870
    %v1914 = vadd.f32 %v1643, %v1875
    %v1915 = vadd.f32 %v1646, %v1878
    %v1916 = vadd.f32 %v1651, %v1883
    %v1917 = vadd.f32 %v1654, %v1886
    %v1918 = vadd.f32 %v1659, %v1891
    %v1919 = vld [vmem:[#allocation2 + $0xa] sm:$0xff]
    %v1920 = vld [vmem:[#allocation2 + $0x12] sm:$0xff]
    %v1921 = vld [vmem:[#allocation2 + $0x1a] sm:$0xff]
    %v1922 = vld [vmem:[#allocation2 + $0x22] sm:$0xff]
    %v1923 = vld [vmem:[#allocation2 + $0x2a] sm:$0xff]
    %v1924 = vld [vmem:[#allocation2 + $0x32] sm:$0xff]
    %v1925 = vld [vmem:[#allocation2 + $0x3a] sm:$0xff]
    %v1926 = vld [vmem:[#allocation2 + $0x42] sm:$0xff]
    %v1927 = vld [vmem:[#allocation2 + $0x4a] sm:$0xff]
    %v1928 = vld [vmem:[#allocation2 + $0x52] sm:$0xff]
    %v1929 = vld [vmem:[#allocation2 + $0x5a] sm:$0xff]
    %v1930 = vld [vmem:[#allocation2 + $0x62] sm:$0xff]
    %v1931 = vld [vmem:[#allocation2 + $0x6a] sm:$0xff]
    %v1932 = vld [vmem:[#allocation2 + $0x72] sm:$0xff]
    %v1933 = vld [vmem:[#allocation2 + $0x7a] sm:$0xff]
    %v1934 = vld [vmem:[#allocation2 + $0x82] sm:$0xff]
    %v1935 = vld [vmem:[#allocation2 + $0x8a] sm:$0xff]
    %v1936 = vld [vmem:[#allocation2 + $0x92] sm:$0xff]
    %v1937 = vld [vmem:[#allocation2 + $0x9a] sm:$0xff]
    %v1938 = vld [vmem:[#allocation2 + $0xa2] sm:$0xff]
    %v1939 = vld [vmem:[#allocation2 + $0xaa] sm:$0xff]
    %v1940 = vld [vmem:[#allocation2 + $0xb2] sm:$0xff]
    %v1941 = vld [vmem:[#allocation2 + $0xba] sm:$0xf]
    %v1942 = vpack.c.bf16 %v1920, %v1919
    %v1943 = vpack.c.bf16 %v1922, %v1921
    %v1944 = vpack.c.bf16 %v1924, %v1923
    %v1945 = vpack.c.bf16 %v1926, %v1925
    %v1946 = vpack.c.bf16 %v1928, %v1927
    %v1947 = vpack.c.bf16 %v1930, %v1929
    %v1948 = vpack.c.bf16 %v1932, %v1931
    %v1949 = vpack.c.bf16 %v1934, %v1933
    %v1950 = vpack.c.bf16 %v1936, %v1935
    %v1951 = vpack.c.bf16 %v1938, %v1937
    %v1952 = vpack.c.bf16 %v1940, %v1939
    %v1953 = vpack.c.bf16 %v1941, %v1941
    %s1954 = scalar_lea.vmem %s4, 96
    %v1955 = vld [vmem:[%s1954] sm:$0xf]
    %v1956 = vld [vmem:[%s1954 + $0x4] sm:$0xf]
    %v1957 = vld [vmem:[%s1954 + $0x8] sm:$0xf]
    %v1958 = vld [vmem:[%s1954 + $0xc] sm:$0xf]
    %v1959 = vld [vmem:[%s1954 + $0x10] sm:$0xf]
    %v1960 = vld [vmem:[%s1954 + $0x14] sm:$0xf]
    %v1961 = vld [vmem:[%s1954 + $0x18] sm:$0xf]
    %v1962 = vld [vmem:[%s1954 + $0x1c] sm:$0xf]
    %v1971 = vunpack.c.l.b16 %v1955
    %v1972 = vunpack.c.l.b16 %v1956
    %v1973 = vunpack.c.l.b16 %v1957
    %v1974 = vunpack.c.l.b16 %v1958
    %v1975 = vunpack.c.l.b16 %v1959
    %v1976 = vunpack.c.l.b16 %v1960
    %v1977 = vunpack.c.l.b16 %v1961
    %v1978 = vunpack.c.l.b16 %v1962
    %v1979 = vpack.c.b16 %v1972, %v1971
    %v1980 = vpack.c.b16 %v1974, %v1973
    %v1981 = vpack.c.b16 %v1976, %v1975
    %v1982 = vpack.c.b16 %v1978, %v1977
    %v1988 = vsel %vm52, %v1942, 0
    %v1991 = vsel %vm52, %v1943, 0
    %v1994 = vsel %vm52, %v1944, 0
    %v1997 = vsel %vm52, %v1945, 0
    %v2000 = vsel %vm52, %v1946, 0
    %v2003 = vsel %vm52, %v1947, 0
    %v2006 = vsel %vm52, %v1948, 0
    %v2009 = vsel %vm52, %v1949, 0
    %v2012 = vsel %vm52, %v1950, 0
    %v2015 = vsel %vm52, %v1951, 0
    %v2018 = vsel %vm52, %v1952, 0
    %v2021 = vsel %vm52, %v1953, 0
    %2023 = vmatprep.subr.bf16.mxu0 0
    %2024 = vmatpush1.bf16.msra.mxu0 0
    %2025 = vmatprep.subr.bf16.mxu0 0
    %2026 = vmatpush1.bf16.msra.mxu0 0
    %2027 = vmatprep.subr.bf16.mxu0 0
    %2028 = vmatpush1.bf16.msra.mxu0 0
    %2029 = vmatprep.subr.bf16.mxu0 0
    %2030 = vmatpush1.bf16.msra.mxu0 0
    %2031 = vmatprep.subr.bf16.mxu0 0
    %2032 = vmatpush1.bf16.msra.mxu0 %v1982
    %2033 = vmatprep.subr.bf16.mxu0 0
    %2034 = vmatpush1.bf16.msra.mxu0 %v1981
    %2035 = vmatprep.subr.bf16.mxu0 0
    %2036 = vmatpush1.bf16.msra.mxu0 %v1980
    %2037 = vmatprep.subr.bf16.mxu0 0
    %2038 = vmatpush1.bf16.msra.mxu0 %v1979
    %2039 = vmatprep.subr.bf16.mxu0 0
    %2040 = vmatpush2.bf16.msra.mxu0 0
    %2041 = vmatprep.subr.bf16.mxu0 0
    %2042 = vmatpush2.bf16.msra.mxu0 0
    %2043 = vmatprep.subr.bf16.mxu0 0
    %2044 = vmatpush2.bf16.msra.mxu0 0
    %2045 = vmatprep.subr.bf16.mxu0 0
    %2046 = vmatpush2.bf16.msra.mxu0 0
    %2047 = vmatprep.subr.bf16.mxu0 0
    %2048 = vmatpush2.bf16.msra.mxu0 0
    %2049 = vmatprep.subr.bf16.mxu0 0
    %2050 = vmatpush2.bf16.msra.mxu0 0
    %2051 = vmatprep.subr.bf16.mxu0 0
    %2052 = vmatpush2.bf16.msra.mxu0 0
    %2053 = vmatprep.subr.bf16.mxu0 0
    %2054 = vmatpush2.bf16.msra.mxu0 0
    %2055 = vmatprep.mubr.bf16.mxu0 0
    %2056 = vmatmul.mubr.bf16.gmra.mxu0 %v1988
    %v2057 = vpop.f32.mrf.mxu0
    %v2058 = vadd.f32 0.0, %v2057
    %v2059 = vpop.f32.mrf.mxu0
    %v2060 = vpop.f32.mrf.mxu0
    %v2061 = vadd.f32 0.0, %v2060
    %v2062 = vpop.f32.mrf.mxu0
    %2063 = vmatprep.mubr.bf16.mxu0 0
    %2064 = vmatmul.mubr.bf16.gmra.mxu0 %v1991
    %v2065 = vpop.f32.mrf.mxu0
    %v2066 = vadd.f32 0.0, %v2065
    %v2067 = vpop.f32.mrf.mxu0
    %v2068 = vpop.f32.mrf.mxu0
    %v2069 = vadd.f32 0.0, %v2068
    %v2070 = vpop.f32.mrf.mxu0
    %2071 = vmatprep.mubr.bf16.mxu0 0
    %2072 = vmatmul.mubr.bf16.gmra.mxu0 %v1994
    %v2073 = vpop.f32.mrf.mxu0
    %v2074 = vadd.f32 0.0, %v2073
    %v2075 = vpop.f32.mrf.mxu0
    %v2076 = vpop.f32.mrf.mxu0
    %v2077 = vadd.f32 0.0, %v2076
    %v2078 = vpop.f32.mrf.mxu0
    %2079 = vmatprep.mubr.bf16.mxu0 0
    %2080 = vmatmul.mubr.bf16.gmra.mxu0 %v1997
    %v2081 = vpop.f32.mrf.mxu0
    %v2082 = vadd.f32 0.0, %v2081
    %v2083 = vpop.f32.mrf.mxu0
    %v2084 = vpop.f32.mrf.mxu0
    %v2085 = vadd.f32 0.0, %v2084
    %v2086 = vpop.f32.mrf.mxu0
    %2087 = vmatprep.mubr.bf16.mxu0 0
    %2088 = vmatmul.mubr.bf16.gmra.mxu0 %v2000
    %v2089 = vpop.f32.mrf.mxu0
    %v2090 = vadd.f32 0.0, %v2089
    %v2091 = vpop.f32.mrf.mxu0
    %v2092 = vpop.f32.mrf.mxu0
    %v2093 = vadd.f32 0.0, %v2092
    %v2094 = vpop.f32.mrf.mxu0
    %2095 = vmatprep.mubr.bf16.mxu0 0
    %2096 = vmatmul.mubr.bf16.gmra.mxu0 %v2003
    %v2097 = vpop.f32.mrf.mxu0
    %v2098 = vadd.f32 0.0, %v2097
    %v2099 = vpop.f32.mrf.mxu0
    %v2100 = vpop.f32.mrf.mxu0
    %v2101 = vadd.f32 0.0, %v2100
    %v2102 = vpop.f32.mrf.mxu0
    %2103 = vmatprep.mubr.bf16.mxu0 0
    %2104 = vmatmul.mubr.bf16.gmra.mxu0 %v2006
    %v2105 = vpop.f32.mrf.mxu0
    %v2106 = vadd.f32 0.0, %v2105
    %v2107 = vpop.f32.mrf.mxu0
    %v2108 = vpop.f32.mrf.mxu0
    %v2109 = vadd.f32 0.0, %v2108
    %v2110 = vpop.f32.mrf.mxu0
    %2111 = vmatprep.mubr.bf16.mxu0 0
    %2112 = vmatmul.mubr.bf16.gmra.mxu0 %v2009
    %v2113 = vpop.f32.mrf.mxu0
    %v2114 = vadd.f32 0.0, %v2113
    %v2115 = vpop.f32.mrf.mxu0
    %v2116 = vpop.f32.mrf.mxu0
    %v2117 = vadd.f32 0.0, %v2116
    %v2118 = vpop.f32.mrf.mxu0
    %2119 = vmatprep.mubr.bf16.mxu0 0
    %2120 = vmatmul.mubr.bf16.gmra.mxu0 %v2012
    %v2121 = vpop.f32.mrf.mxu0
    %v2122 = vadd.f32 0.0, %v2121
    %v2123 = vpop.f32.mrf.mxu0
    %v2124 = vpop.f32.mrf.mxu0
    %v2125 = vadd.f32 0.0, %v2124
    %v2126 = vpop.f32.mrf.mxu0
    %2127 = vmatprep.mubr.bf16.mxu0 0
    %2128 = vmatmul.mubr.bf16.gmra.mxu0 %v2015
    %v2129 = vpop.f32.mrf.mxu0
    %v2130 = vadd.f32 0.0, %v2129
    %v2131 = vpop.f32.mrf.mxu0
    %v2132 = vpop.f32.mrf.mxu0
    %v2133 = vadd.f32 0.0, %v2132
    %v2134 = vpop.f32.mrf.mxu0
    %2135 = vmatprep.mubr.bf16.mxu0 0
    %2136 = vmatmul.mubr.bf16.gmra.mxu0 %v2018
    %v2137 = vpop.f32.mrf.mxu0
    %v2138 = vadd.f32 0.0, %v2137
    %v2139 = vpop.f32.mrf.mxu0
    %v2140 = vpop.f32.mrf.mxu0
    %v2141 = vadd.f32 0.0, %v2140
    %v2142 = vpop.f32.mrf.mxu0
    %2143 = vmatprep.mubr.bf16.mxu0 0
    %2144 = vmatmul.mubr.bf16.gmra.mxu0 %v2021
    %v2145 = vpop.f32.mrf.mxu0
    %v2146 = vadd.f32 0.0, %v2145
    %v2147 = vpop.f32.mrf.mxu0
    %v2148 = vpop.f32.mrf.mxu0
    %v2149 = vpop.f32.mrf.mxu0
    %2150 = vdwg.mxu0
    %v2151 = vadd.f32 %v1896, %v2058
    %v2152 = vadd.f32 %v1897, %v2061
    %v2153 = vadd.f32 %v1898, %v2066
    %v2154 = vadd.f32 %v1899, %v2069
    %v2155 = vadd.f32 %v1900, %v2074
    %v2156 = vadd.f32 %v1901, %v2077
    %v2157 = vadd.f32 %v1902, %v2082
    %v2158 = vadd.f32 %v1903, %v2085
    %v2159 = vadd.f32 %v1904, %v2090
    %v2160 = vadd.f32 %v1905, %v2093
    %v2161 = vadd.f32 %v1906, %v2098
    %v2162 = vadd.f32 %v1907, %v2101
    %v2163 = vadd.f32 %v1908, %v2106
    %v2164 = vadd.f32 %v1909, %v2109
    %v2165 = vadd.f32 %v1910, %v2114
    %v2166 = vadd.f32 %v1911, %v2117
    %v2167 = vadd.f32 %v1912, %v2122
    %v2168 = vadd.f32 %v1913, %v2125
    %v2169 = vadd.f32 %v1914, %v2130
    %v2170 = vadd.f32 %v1915, %v2133
    %v2171 = vadd.f32 %v1916, %v2138
    %v2172 = vadd.f32 %v1917, %v2141
    %v2173 = vadd.f32 %v1918, %v2146
    %v2174 = vld [vmem:[#allocation2 + $0xb] sm:$0xff]
    %v2175 = vld [vmem:[#allocation2 + $0x13] sm:$0xff]
    %v2176 = vld [vmem:[#allocation2 + $0x1b] sm:$0xff]
    %v2177 = vld [vmem:[#allocation2 + $0x23] sm:$0xff]
    %v2178 = vld [vmem:[#allocation2 + $0x2b] sm:$0xff]
    %v2179 = vld [vmem:[#allocation2 + $0x33] sm:$0xff]
    %v2180 = vld [vmem:[#allocation2 + $0x3b] sm:$0xff]
    %v2181 = vld [vmem:[#allocation2 + $0x43] sm:$0xff]
    %v2182 = vld [vmem:[#allocation2 + $0x4b] sm:$0xff]
    %v2183 = vld [vmem:[#allocation2 + $0x53] sm:$0xff]
    %v2184 = vld [vmem:[#allocation2 + $0x5b] sm:$0xff]
    %v2185 = vld [vmem:[#allocation2 + $0x63] sm:$0xff]
    %v2186 = vld [vmem:[#allocation2 + $0x6b] sm:$0xff]
    %v2187 = vld [vmem:[#allocation2 + $0x73] sm:$0xff]
    %v2188 = vld [vmem:[#allocation2 + $0x7b] sm:$0xff]
    %v2189 = vld [vmem:[#allocation2 + $0x83] sm:$0xff]
    %v2190 = vld [vmem:[#allocation2 + $0x8b] sm:$0xff]
    %v2191 = vld [vmem:[#allocation2 + $0x93] sm:$0xff]
    %v2192 = vld [vmem:[#allocation2 + $0x9b] sm:$0xff]
    %v2193 = vld [vmem:[#allocation2 + $0xa3] sm:$0xff]
    %v2194 = vld [vmem:[#allocation2 + $0xab] sm:$0xff]
    %v2195 = vld [vmem:[#allocation2 + $0xb3] sm:$0xff]
    %v2196 = vld [vmem:[#allocation2 + $0xbb] sm:$0xf]
    %v2197 = vpack.c.bf16 %v2175, %v2174
    %v2198 = vpack.c.bf16 %v2177, %v2176
    %v2199 = vpack.c.bf16 %v2179, %v2178
    %v2200 = vpack.c.bf16 %v2181, %v2180
    %v2201 = vpack.c.bf16 %v2183, %v2182
    %v2202 = vpack.c.bf16 %v2185, %v2184
    %v2203 = vpack.c.bf16 %v2187, %v2186
    %v2204 = vpack.c.bf16 %v2189, %v2188
    %v2205 = vpack.c.bf16 %v2191, %v2190
    %v2206 = vpack.c.bf16 %v2193, %v2192
    %v2207 = vpack.c.bf16 %v2195, %v2194
    %v2208 = vpack.c.bf16 %v2196, %v2196
    %s2209 = scalar_lea.vmem %s4, 128
    %v2210 = vld [vmem:[%s2209] sm:$0xf]
    %v2211 = vld [vmem:[%s2209 + $0x4] sm:$0xf]
    %v2212 = vld [vmem:[%s2209 + $0x8] sm:$0xf]
    %v2213 = vld [vmem:[%s2209 + $0xc] sm:$0xf]
    %v2214 = vld [vmem:[%s2209 + $0x10] sm:$0xf]
    %v2215 = vld [vmem:[%s2209 + $0x14] sm:$0xf]
    %v2216 = vld [vmem:[%s2209 + $0x18] sm:$0xf]
    %v2217 = vld [vmem:[%s2209 + $0x1c] sm:$0xf]
    %v2226 = vunpack.c.l.b16 %v2210
    %v2227 = vunpack.c.l.b16 %v2211
    %v2228 = vunpack.c.l.b16 %v2212
    %v2229 = vunpack.c.l.b16 %v2213
    %v2230 = vunpack.c.l.b16 %v2214
    %v2231 = vunpack.c.l.b16 %v2215
    %v2232 = vunpack.c.l.b16 %v2216
    %v2233 = vunpack.c.l.b16 %v2217
    %v2234 = vpack.c.b16 %v2227, %v2226
    %v2235 = vpack.c.b16 %v2229, %v2228
    %v2236 = vpack.c.b16 %v2231, %v2230
    %v2237 = vpack.c.b16 %v2233, %v2232
    %v2243 = vsel %vm52, %v2197, 0
    %v2246 = vsel %vm52, %v2198, 0
    %v2249 = vsel %vm52, %v2199, 0
    %v2252 = vsel %vm52, %v2200, 0
    %v2255 = vsel %vm52, %v2201, 0
    %v2258 = vsel %vm52, %v2202, 0
    %v2261 = vsel %vm52, %v2203, 0
    %v2264 = vsel %vm52, %v2204, 0
    %v2267 = vsel %vm52, %v2205, 0
    %v2270 = vsel %vm52, %v2206, 0
    %v2273 = vsel %vm52, %v2207, 0
    %v2276 = vsel %vm52, %v2208, 0
    %2278 = vmatprep.subr.bf16.mxu0 0
    %2279 = vmatpush1.bf16.msra.mxu0 0
    %2280 = vmatprep.subr.bf16.mxu0 0
    %2281 = vmatpush1.bf16.msra.mxu0 0
    %2282 = vmatprep.subr.bf16.mxu0 0
    %2283 = vmatpush1.bf16.msra.mxu0 0
    %2284 = vmatprep.subr.bf16.mxu0 0
    %2285 = vmatpush1.bf16.msra.mxu0 0
    %2286 = vmatprep.subr.bf16.mxu0 0
    %2287 = vmatpush1.bf16.msra.mxu0 %v2237
    %2288 = vmatprep.subr.bf16.mxu0 0
    %2289 = vmatpush1.bf16.msra.mxu0 %v2236
    %2290 = vmatprep.subr.bf16.mxu0 0
    %2291 = vmatpush1.bf16.msra.mxu0 %v2235
    %2292 = vmatprep.subr.bf16.mxu0 0
    %2293 = vmatpush1.bf16.msra.mxu0 %v2234
    %2294 = vmatprep.subr.bf16.mxu0 0
    %2295 = vmatpush2.bf16.msra.mxu0 0
    %2296 = vmatprep.subr.bf16.mxu0 0
    %2297 = vmatpush2.bf16.msra.mxu0 0
    %2298 = vmatprep.subr.bf16.mxu0 0
    %2299 = vmatpush2.bf16.msra.mxu0 0
    %2300 = vmatprep.subr.bf16.mxu0 0
    %2301 = vmatpush2.bf16.msra.mxu0 0
    %2302 = vmatprep.subr.bf16.mxu0 0
    %2303 = vmatpush2.bf16.msra.mxu0 0
    %2304 = vmatprep.subr.bf16.mxu0 0
    %2305 = vmatpush2.bf16.msra.mxu0 0
    %2306 = vmatprep.subr.bf16.mxu0 0
    %2307 = vmatpush2.bf16.msra.mxu0 0
    %2308 = vmatprep.subr.bf16.mxu0 0
    %2309 = vmatpush2.bf16.msra.mxu0 0
    %2310 = vmatprep.mubr.bf16.mxu0 0
    %2311 = vmatmul.mubr.bf16.gmra.mxu0 %v2243
    %v2312 = vpop.f32.mrf.mxu0
    %v2313 = vadd.f32 0.0, %v2312
    %v2314 = vpop.f32.mrf.mxu0
    %v2315 = vpop.f32.mrf.mxu0
    %v2316 = vadd.f32 0.0, %v2315
    %v2317 = vpop.f32.mrf.mxu0
    %2318 = vmatprep.mubr.bf16.mxu0 0
    %2319 = vmatmul.mubr.bf16.gmra.mxu0 %v2246
    %v2320 = vpop.f32.mrf.mxu0
    %v2321 = vadd.f32 0.0, %v2320
    %v2322 = vpop.f32.mrf.mxu0
    %v2323 = vpop.f32.mrf.mxu0
    %v2324 = vadd.f32 0.0, %v2323
    %v2325 = vpop.f32.mrf.mxu0
    %2326 = vmatprep.mubr.bf16.mxu0 0
    %2327 = vmatmul.mubr.bf16.gmra.mxu0 %v2249
    %v2328 = vpop.f32.mrf.mxu0
    %v2329 = vadd.f32 0.0, %v2328
    %v2330 = vpop.f32.mrf.mxu0
    %v2331 = vpop.f32.mrf.mxu0
    %v2332 = vadd.f32 0.0, %v2331
    %v2333 = vpop.f32.mrf.mxu0
    %2334 = vmatprep.mubr.bf16.mxu0 0
    %2335 = vmatmul.mubr.bf16.gmra.mxu0 %v2252
    %v2336 = vpop.f32.mrf.mxu0
    %v2337 = vadd.f32 0.0, %v2336
    %v2338 = vpop.f32.mrf.mxu0
    %v2339 = vpop.f32.mrf.mxu0
    %v2340 = vadd.f32 0.0, %v2339
    %v2341 = vpop.f32.mrf.mxu0
    %2342 = vmatprep.mubr.bf16.mxu0 0
    %2343 = vmatmul.mubr.bf16.gmra.mxu0 %v2255
    %v2344 = vpop.f32.mrf.mxu0
    %v2345 = vadd.f32 0.0, %v2344
    %v2346 = vpop.f32.mrf.mxu0
    %v2347 = vpop.f32.mrf.mxu0
    %v2348 = vadd.f32 0.0, %v2347
    %v2349 = vpop.f32.mrf.mxu0
    %2350 = vmatprep.mubr.bf16.mxu0 0
    %2351 = vmatmul.mubr.bf16.gmra.mxu0 %v2258
    %v2352 = vpop.f32.mrf.mxu0
    %v2353 = vadd.f32 0.0, %v2352
    %v2354 = vpop.f32.mrf.mxu0
    %v2355 = vpop.f32.mrf.mxu0
    %v2356 = vadd.f32 0.0, %v2355
    %v2357 = vpop.f32.mrf.mxu0
    %2358 = vmatprep.mubr.bf16.mxu0 0
    %2359 = vmatmul.mubr.bf16.gmra.mxu0 %v2261
    %v2360 = vpop.f32.mrf.mxu0
    %v2361 = vadd.f32 0.0, %v2360
    %v2362 = vpop.f32.mrf.mxu0
    %v2363 = vpop.f32.mrf.mxu0
    %v2364 = vadd.f32 0.0, %v2363
    %v2365 = vpop.f32.mrf.mxu0
    %2366 = vmatprep.mubr.bf16.mxu0 0
    %2367 = vmatmul.mubr.bf16.gmra.mxu0 %v2264
    %v2368 = vpop.f32.mrf.mxu0
    %v2369 = vadd.f32 0.0, %v2368
    %v2370 = vpop.f32.mrf.mxu0
    %v2371 = vpop.f32.mrf.mxu0
    %v2372 = vadd.f32 0.0, %v2371
    %v2373 = vpop.f32.mrf.mxu0
    %2374 = vmatprep.mubr.bf16.mxu0 0
    %2375 = vmatmul.mubr.bf16.gmra.mxu0 %v2267
    %v2376 = vpop.f32.mrf.mxu0
    %v2377 = vadd.f32 0.0, %v2376
    %v2378 = vpop.f32.mrf.mxu0
    %v2379 = vpop.f32.mrf.mxu0
    %v2380 = vadd.f32 0.0, %v2379
    %v2381 = vpop.f32.mrf.mxu0
    %2382 = vmatprep.mubr.bf16.mxu0 0
    %2383 = vmatmul.mubr.bf16.gmra.mxu0 %v2270
    %v2384 = vpop.f32.mrf.mxu0
    %v2385 = vadd.f32 0.0, %v2384
    %v2386 = vpop.f32.mrf.mxu0
    %v2387 = vpop.f32.mrf.mxu0
    %v2388 = vadd.f32 0.0, %v2387
    %v2389 = vpop.f32.mrf.mxu0
    %2390 = vmatprep.mubr.bf16.mxu0 0
    %2391 = vmatmul.mubr.bf16.gmra.mxu0 %v2273
    %v2392 = vpop.f32.mrf.mxu0
    %v2393 = vadd.f32 0.0, %v2392
    %v2394 = vpop.f32.mrf.mxu0
    %v2395 = vpop.f32.mrf.mxu0
    %v2396 = vadd.f32 0.0, %v2395
    %v2397 = vpop.f32.mrf.mxu0
    %2398 = vmatprep.mubr.bf16.mxu0 0
    %2399 = vmatmul.mubr.bf16.gmra.mxu0 %v2276
    %v2400 = vpop.f32.mrf.mxu0
    %v2401 = vadd.f32 0.0, %v2400
    %v2402 = vpop.f32.mrf.mxu0
    %v2403 = vpop.f32.mrf.mxu0
    %v2404 = vpop.f32.mrf.mxu0
    %2405 = vdwg.mxu0
    %v2406 = vadd.f32 %v2151, %v2313
    %v2407 = vadd.f32 %v2152, %v2316
    %v2408 = vadd.f32 %v2153, %v2321
    %v2409 = vadd.f32 %v2154, %v2324
    %v2410 = vadd.f32 %v2155, %v2329
    %v2411 = vadd.f32 %v2156, %v2332
    %v2412 = vadd.f32 %v2157, %v2337
    %v2413 = vadd.f32 %v2158, %v2340
    %v2414 = vadd.f32 %v2159, %v2345
    %v2415 = vadd.f32 %v2160, %v2348
    %v2416 = vadd.f32 %v2161, %v2353
    %v2417 = vadd.f32 %v2162, %v2356
    %v2418 = vadd.f32 %v2163, %v2361
    %v2419 = vadd.f32 %v2164, %v2364
    %v2420 = vadd.f32 %v2165, %v2369
    %v2421 = vadd.f32 %v2166, %v2372
    %v2422 = vadd.f32 %v2167, %v2377
    %v2423 = vadd.f32 %v2168, %v2380
    %v2424 = vadd.f32 %v2169, %v2385
    %v2425 = vadd.f32 %v2170, %v2388
    %v2426 = vadd.f32 %v2171, %v2393
    %v2427 = vadd.f32 %v2172, %v2396
    %v2428 = vadd.f32 %v2173, %v2401
    %v2429 = vld [vmem:[#allocation2 + $0xc] sm:$0xff]
    %v2430 = vld [vmem:[#allocation2 + $0x14] sm:$0xff]
    %v2431 = vld [vmem:[#allocation2 + $0x1c] sm:$0xff]
    %v2432 = vld [vmem:[#allocation2 + $0x24] sm:$0xff]
    %v2433 = vld [vmem:[#allocation2 + $0x2c] sm:$0xff]
    %v2434 = vld [vmem:[#allocation2 + $0x34] sm:$0xff]
    %v2435 = vld [vmem:[#allocation2 + $0x3c] sm:$0xff]
    %v2436 = vld [vmem:[#allocation2 + $0x44] sm:$0xff]
    %v2437 = vld [vmem:[#allocation2 + $0x4c] sm:$0xff]
    %v2438 = vld [vmem:[#allocation2 + $0x54] sm:$0xff]
    %v2439 = vld [vmem:[#allocation2 + $0x5c] sm:$0xff]
    %v2440 = vld [vmem:[#allocation2 + $0x64] sm:$0xff]
    %v2441 = vld [vmem:[#allocation2 + $0x6c] sm:$0xff]
    %v2442 = vld [vmem:[#allocation2 + $0x74] sm:$0xff]
    %v2443 = vld [vmem:[#allocation2 + $0x7c] sm:$0xff]
    %v2444 = vld [vmem:[#allocation2 + $0x84] sm:$0xff]
    %v2445 = vld [vmem:[#allocation2 + $0x8c] sm:$0xff]
    %v2446 = vld [vmem:[#allocation2 + $0x94] sm:$0xff]
    %v2447 = vld [vmem:[#allocation2 + $0x9c] sm:$0xff]
    %v2448 = vld [vmem:[#allocation2 + $0xa4] sm:$0xff]
    %v2449 = vld [vmem:[#allocation2 + $0xac] sm:$0xff]
    %v2450 = vld [vmem:[#allocation2 + $0xb4] sm:$0xff]
    %v2451 = vld [vmem:[#allocation2 + $0xbc] sm:$0xf]
    %v2452 = vpack.c.bf16 %v2430, %v2429
    %v2453 = vpack.c.bf16 %v2432, %v2431
    %v2454 = vpack.c.bf16 %v2434, %v2433
    %v2455 = vpack.c.bf16 %v2436, %v2435
    %v2456 = vpack.c.bf16 %v2438, %v2437
    %v2457 = vpack.c.bf16 %v2440, %v2439
    %v2458 = vpack.c.bf16 %v2442, %v2441
    %v2459 = vpack.c.bf16 %v2444, %v2443
    %v2460 = vpack.c.bf16 %v2446, %v2445
    %v2461 = vpack.c.bf16 %v2448, %v2447
    %v2462 = vpack.c.bf16 %v2450, %v2449
    %v2463 = vpack.c.bf16 %v2451, %v2451
    %s2464 = scalar_lea.vmem %s4, 160
    %v2465 = vld [vmem:[%s2464] sm:$0xf]
    %v2466 = vld [vmem:[%s2464 + $0x4] sm:$0xf]
    %v2467 = vld [vmem:[%s2464 + $0x8] sm:$0xf]
    %v2468 = vld [vmem:[%s2464 + $0xc] sm:$0xf]
    %v2469 = vld [vmem:[%s2464 + $0x10] sm:$0xf]
    %v2470 = vld [vmem:[%s2464 + $0x14] sm:$0xf]
    %v2471 = vld [vmem:[%s2464 + $0x18] sm:$0xf]
    %v2472 = vld [vmem:[%s2464 + $0x1c] sm:$0xf]
    %v2481 = vunpack.c.l.b16 %v2465
    %v2482 = vunpack.c.l.b16 %v2466
    %v2483 = vunpack.c.l.b16 %v2467
    %v2484 = vunpack.c.l.b16 %v2468
    %v2485 = vunpack.c.l.b16 %v2469
    %v2486 = vunpack.c.l.b16 %v2470
    %v2487 = vunpack.c.l.b16 %v2471
    %v2488 = vunpack.c.l.b16 %v2472
    %v2489 = vpack.c.b16 %v2482, %v2481
    %v2490 = vpack.c.b16 %v2484, %v2483
    %v2491 = vpack.c.b16 %v2486, %v2485
    %v2492 = vpack.c.b16 %v2488, %v2487
    %v2498 = vsel %vm52, %v2452, 0
    %v2501 = vsel %vm52, %v2453, 0
    %v2504 = vsel %vm52, %v2454, 0
    %v2507 = vsel %vm52, %v2455, 0
    %v2510 = vsel %vm52, %v2456, 0
    %v2513 = vsel %vm52, %v2457, 0
    %v2516 = vsel %vm52, %v2458, 0
    %v2519 = vsel %vm52, %v2459, 0
    %v2522 = vsel %vm52, %v2460, 0
    %v2525 = vsel %vm52, %v2461, 0
    %v2528 = vsel %vm52, %v2462, 0
    %v2531 = vsel %vm52, %v2463, 0
    %2533 = vmatprep.subr.bf16.mxu0 0
    %2534 = vmatpush1.bf16.msra.mxu0 0
    %2535 = vmatprep.subr.bf16.mxu0 0
    %2536 = vmatpush1.bf16.msra.mxu0 0
    %2537 = vmatprep.subr.bf16.mxu0 0
    %2538 = vmatpush1.bf16.msra.mxu0 0
    %2539 = vmatprep.subr.bf16.mxu0 0
    %2540 = vmatpush1.bf16.msra.mxu0 0
    %2541 = vmatprep.subr.bf16.mxu0 0
    %2542 = vmatpush1.bf16.msra.mxu0 %v2492
    %2543 = vmatprep.subr.bf16.mxu0 0
    %2544 = vmatpush1.bf16.msra.mxu0 %v2491
    %2545 = vmatprep.subr.bf16.mxu0 0
    %2546 = vmatpush1.bf16.msra.mxu0 %v2490
    %2547 = vmatprep.subr.bf16.mxu0 0
    %2548 = vmatpush1.bf16.msra.mxu0 %v2489
    %2549 = vmatprep.subr.bf16.mxu0 0
    %2550 = vmatpush2.bf16.msra.mxu0 0
    %2551 = vmatprep.subr.bf16.mxu0 0
    %2552 = vmatpush2.bf16.msra.mxu0 0
    %2553 = vmatprep.subr.bf16.mxu0 0
    %2554 = vmatpush2.bf16.msra.mxu0 0
    %2555 = vmatprep.subr.bf16.mxu0 0
    %2556 = vmatpush2.bf16.msra.mxu0 0
    %2557 = vmatprep.subr.bf16.mxu0 0
    %2558 = vmatpush2.bf16.msra.mxu0 0
    %2559 = vmatprep.subr.bf16.mxu0 0
    %2560 = vmatpush2.bf16.msra.mxu0 0
    %2561 = vmatprep.subr.bf16.mxu0 0
    %2562 = vmatpush2.bf16.msra.mxu0 0
    %2563 = vmatprep.subr.bf16.mxu0 0
    %2564 = vmatpush2.bf16.msra.mxu0 0
    %2565 = vmatprep.mubr.bf16.mxu0 0
    %2566 = vmatmul.mubr.bf16.gmra.mxu0 %v2498
    %v2567 = vpop.f32.mrf.mxu0
    %v2568 = vadd.f32 0.0, %v2567
    %v2569 = vpop.f32.mrf.mxu0
    %v2570 = vpop.f32.mrf.mxu0
    %v2571 = vadd.f32 0.0, %v2570
    %v2572 = vpop.f32.mrf.mxu0
    %2573 = vmatprep.mubr.bf16.mxu0 0
    %2574 = vmatmul.mubr.bf16.gmra.mxu0 %v2501
    %v2575 = vpop.f32.mrf.mxu0
    %v2576 = vadd.f32 0.0, %v2575
    %v2577 = vpop.f32.mrf.mxu0
    %v2578 = vpop.f32.mrf.mxu0
    %v2579 = vadd.f32 0.0, %v2578
    %v2580 = vpop.f32.mrf.mxu0
    %2581 = vmatprep.mubr.bf16.mxu0 0
    %2582 = vmatmul.mubr.bf16.gmra.mxu0 %v2504
    %v2583 = vpop.f32.mrf.mxu0
    %v2584 = vadd.f32 0.0, %v2583
    %v2585 = vpop.f32.mrf.mxu0
    %v2586 = vpop.f32.mrf.mxu0
    %v2587 = vadd.f32 0.0, %v2586
    %v2588 = vpop.f32.mrf.mxu0
    %2589 = vmatprep.mubr.bf16.mxu0 0
    %2590 = vmatmul.mubr.bf16.gmra.mxu0 %v2507
    %v2591 = vpop.f32.mrf.mxu0
    %v2592 = vadd.f32 0.0, %v2591
    %v2593 = vpop.f32.mrf.mxu0
    %v2594 = vpop.f32.mrf.mxu0
    %v2595 = vadd.f32 0.0, %v2594
    %v2596 = vpop.f32.mrf.mxu0
    %2597 = vmatprep.mubr.bf16.mxu0 0
    %2598 = vmatmul.mubr.bf16.gmra.mxu0 %v2510
    %v2599 = vpop.f32.mrf.mxu0
    %v2600 = vadd.f32 0.0, %v2599
    %v2601 = vpop.f32.mrf.mxu0
    %v2602 = vpop.f32.mrf.mxu0
    %v2603 = vadd.f32 0.0, %v2602
    %v2604 = vpop.f32.mrf.mxu0
    %2605 = vmatprep.mubr.bf16.mxu0 0
    %2606 = vmatmul.mubr.bf16.gmra.mxu0 %v2513
    %v2607 = vpop.f32.mrf.mxu0
    %v2608 = vadd.f32 0.0, %v2607
    %v2609 = vpop.f32.mrf.mxu0
    %v2610 = vpop.f32.mrf.mxu0
    %v2611 = vadd.f32 0.0, %v2610
    %v2612 = vpop.f32.mrf.mxu0
    %2613 = vmatprep.mubr.bf16.mxu0 0
    %2614 = vmatmul.mubr.bf16.gmra.mxu0 %v2516
    %v2615 = vpop.f32.mrf.mxu0
    %v2616 = vadd.f32 0.0, %v2615
    %v2617 = vpop.f32.mrf.mxu0
    %v2618 = vpop.f32.mrf.mxu0
    %v2619 = vadd.f32 0.0, %v2618
    %v2620 = vpop.f32.mrf.mxu0
    %2621 = vmatprep.mubr.bf16.mxu0 0
    %2622 = vmatmul.mubr.bf16.gmra.mxu0 %v2519
    %v2623 = vpop.f32.mrf.mxu0
    %v2624 = vadd.f32 0.0, %v2623
    %v2625 = vpop.f32.mrf.mxu0
    %v2626 = vpop.f32.mrf.mxu0
    %v2627 = vadd.f32 0.0, %v2626
    %v2628 = vpop.f32.mrf.mxu0
    %2629 = vmatprep.mubr.bf16.mxu0 0
    %2630 = vmatmul.mubr.bf16.gmra.mxu0 %v2522
    %v2631 = vpop.f32.mrf.mxu0
    %v2632 = vadd.f32 0.0, %v2631
    %v2633 = vpop.f32.mrf.mxu0
    %v2634 = vpop.f32.mrf.mxu0
    %v2635 = vadd.f32 0.0, %v2634
    %v2636 = vpop.f32.mrf.mxu0
    %2637 = vmatprep.mubr.bf16.mxu0 0
    %2638 = vmatmul.mubr.bf16.gmra.mxu0 %v2525
    %v2639 = vpop.f32.mrf.mxu0
    %v2640 = vadd.f32 0.0, %v2639
    %v2641 = vpop.f32.mrf.mxu0
    %v2642 = vpop.f32.mrf.mxu0
    %v2643 = vadd.f32 0.0, %v2642
    %v2644 = vpop.f32.mrf.mxu0
    %2645 = vmatprep.mubr.bf16.mxu0 0
    %2646 = vmatmul.mubr.bf16.gmra.mxu0 %v2528
    %v2647 = vpop.f32.mrf.mxu0
    %v2648 = vadd.f32 0.0, %v2647
    %v2649 = vpop.f32.mrf.mxu0
    %v2650 = vpop.f32.mrf.mxu0
    %v2651 = vadd.f32 0.0, %v2650
    %v2652 = vpop.f32.mrf.mxu0
    %2653 = vmatprep.mubr.bf16.mxu0 0
    %2654 = vmatmul.mubr.bf16.gmra.mxu0 %v2531
    %v2655 = vpop.f32.mrf.mxu0
    %v2656 = vadd.f32 0.0, %v2655
    %v2657 = vpop.f32.mrf.mxu0
    %v2658 = vpop.f32.mrf.mxu0
    %v2659 = vpop.f32.mrf.mxu0
    %2660 = vdwg.mxu0
    %v2661 = vadd.f32 %v2406, %v2568
    %v2662 = vadd.f32 %v2407, %v2571
    %v2663 = vadd.f32 %v2408, %v2576
    %v2664 = vadd.f32 %v2409, %v2579
    %v2665 = vadd.f32 %v2410, %v2584
    %v2666 = vadd.f32 %v2411, %v2587
    %v2667 = vadd.f32 %v2412, %v2592
    %v2668 = vadd.f32 %v2413, %v2595
    %v2669 = vadd.f32 %v2414, %v2600
    %v2670 = vadd.f32 %v2415, %v2603
    %v2671 = vadd.f32 %v2416, %v2608
    %v2672 = vadd.f32 %v2417, %v2611
    %v2673 = vadd.f32 %v2418, %v2616
    %v2674 = vadd.f32 %v2419, %v2619
    %v2675 = vadd.f32 %v2420, %v2624
    %v2676 = vadd.f32 %v2421, %v2627
    %v2677 = vadd.f32 %v2422, %v2632
    %v2678 = vadd.f32 %v2423, %v2635
    %v2679 = vadd.f32 %v2424, %v2640
    %v2680 = vadd.f32 %v2425, %v2643
    %v2681 = vadd.f32 %v2426, %v2648
    %v2682 = vadd.f32 %v2427, %v2651
    %v2683 = vadd.f32 %v2428, %v2656
    %v2684 = vld [vmem:[#allocation2 + $0x14] sm:$0xff]
    %v2685 = vld [vmem:[#allocation2 + $0x1c] sm:$0xff]
    %v2686 = vld [vmem:[#allocation2 + $0x24] sm:$0xff]
    %v2687 = vld [vmem:[#allocation2 + $0x2c] sm:$0xff]
    %v2688 = vld [vmem:[#allocation2 + $0x34] sm:$0xff]
    %v2689 = vld [vmem:[#allocation2 + $0x3c] sm:$0xff]
    %v2690 = vld [vmem:[#allocation2 + $0x44] sm:$0xff]
    %v2691 = vld [vmem:[#allocation2 + $0x4c] sm:$0xff]
    %v2692 = vld [vmem:[#allocation2 + $0x54] sm:$0xff]
    %v2693 = vld [vmem:[#allocation2 + $0x5c] sm:$0xff]
    %v2694 = vld [vmem:[#allocation2 + $0x64] sm:$0xff]
    %v2695 = vld [vmem:[#allocation2 + $0x6c] sm:$0xff]
    %v2696 = vld [vmem:[#allocation2 + $0x74] sm:$0xff]
    %v2697 = vld [vmem:[#allocation2 + $0x7c] sm:$0xff]
    %v2698 = vld [vmem:[#allocation2 + $0x84] sm:$0xff]
    %v2699 = vld [vmem:[#allocation2 + $0x8c] sm:$0xff]
    %v2700 = vld [vmem:[#allocation2 + $0x94] sm:$0xff]
    %v2701 = vld [vmem:[#allocation2 + $0x9c] sm:$0xff]
    %v2702 = vld [vmem:[#allocation2 + $0xa4] sm:$0xff]
    %v2703 = vld [vmem:[#allocation2 + $0xac] sm:$0xff]
    %v2704 = vld [vmem:[#allocation2 + $0xb4] sm:$0xff]
    %v2705 = vld [vmem:[#allocation2 + $0xbc] sm:$0xff]
    %v2706 = vld [vmem:[#allocation2 + $0xc4] sm:$0xf]
    %v2707 = vpack.c.bf16 %v2685, %v2684
    %v2708 = vpack.c.bf16 %v2687, %v2686
    %v2709 = vpack.c.bf16 %v2689, %v2688
    %v2710 = vpack.c.bf16 %v2691, %v2690
    %v2711 = vpack.c.bf16 %v2693, %v2692
    %v2712 = vpack.c.bf16 %v2695, %v2694
    %v2713 = vpack.c.bf16 %v2697, %v2696
    %v2714 = vpack.c.bf16 %v2699, %v2698
    %v2715 = vpack.c.bf16 %v2701, %v2700
    %v2716 = vpack.c.bf16 %v2703, %v2702
    %v2717 = vpack.c.bf16 %v2705, %v2704
    %v2718 = vpack.c.bf16 %v2706, %v2706
    %s2719 = scalar_lea.vmem %s4, 192
    %v2720 = vld [vmem:[%s2719] sm:$0xf]
    %v2721 = vld [vmem:[%s2719 + $0x4] sm:$0xf]
    %v2722 = vld [vmem:[%s2719 + $0x8] sm:$0xf]
    %v2723 = vld [vmem:[%s2719 + $0xc] sm:$0xf]
    %v2724 = vld [vmem:[%s2719 + $0x10] sm:$0xf]
    %v2725 = vld [vmem:[%s2719 + $0x14] sm:$0xf]
    %v2726 = vld [vmem:[%s2719 + $0x18] sm:$0xf]
    %v2727 = vld [vmem:[%s2719 + $0x1c] sm:$0xf]
    %v2736 = vunpack.c.l.b16 %v2720
    %v2737 = vunpack.c.l.b16 %v2721
    %v2738 = vunpack.c.l.b16 %v2722
    %v2739 = vunpack.c.l.b16 %v2723
    %v2740 = vunpack.c.l.b16 %v2724
    %v2741 = vunpack.c.l.b16 %v2725
    %v2742 = vunpack.c.l.b16 %v2726
    %v2743 = vunpack.c.l.b16 %v2727
    %v2744 = vpack.c.b16 %v2737, %v2736
    %v2745 = vpack.c.b16 %v2739, %v2738
    %v2746 = vpack.c.b16 %v2741, %v2740
    %v2747 = vpack.c.b16 %v2743, %v2742
    %v2753 = vsel %vm52, %v2707, 0
    %v2756 = vsel %vm52, %v2708, 0
    %v2759 = vsel %vm52, %v2709, 0
    %v2762 = vsel %vm52, %v2710, 0
    %v2765 = vsel %vm52, %v2711, 0
    %v2768 = vsel %vm52, %v2712, 0
    %v2771 = vsel %vm52, %v2713, 0
    %v2774 = vsel %vm52, %v2714, 0
    %v2777 = vsel %vm52, %v2715, 0
    %v2780 = vsel %vm52, %v2716, 0
    %v2783 = vsel %vm52, %v2717, 0
    %v2786 = vsel %vm52, %v2718, 0
    %2788 = vmatprep.subr.bf16.mxu0 0
    %2789 = vmatpush1.bf16.msra.mxu0 0
    %2790 = vmatprep.subr.bf16.mxu0 0
    %2791 = vmatpush1.bf16.msra.mxu0 0
    %2792 = vmatprep.subr.bf16.mxu0 0
    %2793 = vmatpush1.bf16.msra.mxu0 0
    %2794 = vmatprep.subr.bf16.mxu0 0
    %2795 = vmatpush1.bf16.msra.mxu0 0
    %2796 = vmatprep.subr.bf16.mxu0 0
    %2797 = vmatpush1.bf16.msra.mxu0 %v2747
    %2798 = vmatprep.subr.bf16.mxu0 0
    %2799 = vmatpush1.bf16.msra.mxu0 %v2746
    %2800 = vmatprep.subr.bf16.mxu0 0
    %2801 = vmatpush1.bf16.msra.mxu0 %v2745
    %2802 = vmatprep.subr.bf16.mxu0 0
    %2803 = vmatpush1.bf16.msra.mxu0 %v2744
    %2804 = vmatprep.subr.bf16.mxu0 0
    %2805 = vmatpush2.bf16.msra.mxu0 0
    %2806 = vmatprep.subr.bf16.mxu0 0
    %2807 = vmatpush2.bf16.msra.mxu0 0
    %2808 = vmatprep.subr.bf16.mxu0 0
    %2809 = vmatpush2.bf16.msra.mxu0 0
    %2810 = vmatprep.subr.bf16.mxu0 0
    %2811 = vmatpush2.bf16.msra.mxu0 0
    %2812 = vmatprep.subr.bf16.mxu0 0
    %2813 = vmatpush2.bf16.msra.mxu0 0
    %2814 = vmatprep.subr.bf16.mxu0 0
    %2815 = vmatpush2.bf16.msra.mxu0 0
    %2816 = vmatprep.subr.bf16.mxu0 0
    %2817 = vmatpush2.bf16.msra.mxu0 0
    %2818 = vmatprep.subr.bf16.mxu0 0
    %2819 = vmatpush2.bf16.msra.mxu0 0
    %2820 = vmatprep.mubr.bf16.mxu0 0
    %2821 = vmatmul.mubr.bf16.gmra.mxu0 %v2753
    %v2822 = vpop.f32.mrf.mxu0
    %v2823 = vadd.f32 0.0, %v2822
    %v2824 = vpop.f32.mrf.mxu0
    %v2825 = vpop.f32.mrf.mxu0
    %v2826 = vadd.f32 0.0, %v2825
    %v2827 = vpop.f32.mrf.mxu0
    %2828 = vmatprep.mubr.bf16.mxu0 0
    %2829 = vmatmul.mubr.bf16.gmra.mxu0 %v2756
    %v2830 = vpop.f32.mrf.mxu0
    %v2831 = vadd.f32 0.0, %v2830
    %v2832 = vpop.f32.mrf.mxu0
    %v2833 = vpop.f32.mrf.mxu0
    %v2834 = vadd.f32 0.0, %v2833
    %v2835 = vpop.f32.mrf.mxu0
    %2836 = vmatprep.mubr.bf16.mxu0 0
    %2837 = vmatmul.mubr.bf16.gmra.mxu0 %v2759
    %v2838 = vpop.f32.mrf.mxu0
    %v2839 = vadd.f32 0.0, %v2838
    %v2840 = vpop.f32.mrf.mxu0
    %v2841 = vpop.f32.mrf.mxu0
    %v2842 = vadd.f32 0.0, %v2841
    %v2843 = vpop.f32.mrf.mxu0
    %2844 = vmatprep.mubr.bf16.mxu0 0
    %2845 = vmatmul.mubr.bf16.gmra.mxu0 %v2762
    %v2846 = vpop.f32.mrf.mxu0
    %v2847 = vadd.f32 0.0, %v2846
    %v2848 = vpop.f32.mrf.mxu0
    %v2849 = vpop.f32.mrf.mxu0
    %v2850 = vadd.f32 0.0, %v2849
    %v2851 = vpop.f32.mrf.mxu0
    %2852 = vmatprep.mubr.bf16.mxu0 0
    %2853 = vmatmul.mubr.bf16.gmra.mxu0 %v2765
    %v2854 = vpop.f32.mrf.mxu0
    %v2855 = vadd.f32 0.0, %v2854
    %v2856 = vpop.f32.mrf.mxu0
    %v2857 = vpop.f32.mrf.mxu0
    %v2858 = vadd.f32 0.0, %v2857
    %v2859 = vpop.f32.mrf.mxu0
    %2860 = vmatprep.mubr.bf16.mxu0 0
    %2861 = vmatmul.mubr.bf16.gmra.mxu0 %v2768
    %v2862 = vpop.f32.mrf.mxu0
    %v2863 = vadd.f32 0.0, %v2862
    %v2864 = vpop.f32.mrf.mxu0
    %v2865 = vpop.f32.mrf.mxu0
    %v2866 = vadd.f32 0.0, %v2865
    %v2867 = vpop.f32.mrf.mxu0
    %2868 = vmatprep.mubr.bf16.mxu0 0
    %2869 = vmatmul.mubr.bf16.gmra.mxu0 %v2771
    %v2870 = vpop.f32.mrf.mxu0
    %v2871 = vadd.f32 0.0, %v2870
    %v2872 = vpop.f32.mrf.mxu0
    %v2873 = vpop.f32.mrf.mxu0
    %v2874 = vadd.f32 0.0, %v2873
    %v2875 = vpop.f32.mrf.mxu0
    %2876 = vmatprep.mubr.bf16.mxu0 0
    %2877 = vmatmul.mubr.bf16.gmra.mxu0 %v2774
    %v2878 = vpop.f32.mrf.mxu0
    %v2879 = vadd.f32 0.0, %v2878
    %v2880 = vpop.f32.mrf.mxu0
    %v2881 = vpop.f32.mrf.mxu0
    %v2882 = vadd.f32 0.0, %v2881
    %v2883 = vpop.f32.mrf.mxu0
    %2884 = vmatprep.mubr.bf16.mxu0 0
    %2885 = vmatmul.mubr.bf16.gmra.mxu0 %v2777
    %v2886 = vpop.f32.mrf.mxu0
    %v2887 = vadd.f32 0.0, %v2886
    %v2888 = vpop.f32.mrf.mxu0
    %v2889 = vpop.f32.mrf.mxu0
    %v2890 = vadd.f32 0.0, %v2889
    %v2891 = vpop.f32.mrf.mxu0
    %2892 = vmatprep.mubr.bf16.mxu0 0
    %2893 = vmatmul.mubr.bf16.gmra.mxu0 %v2780
    %v2894 = vpop.f32.mrf.mxu0
    %v2895 = vadd.f32 0.0, %v2894
    %v2896 = vpop.f32.mrf.mxu0
    %v2897 = vpop.f32.mrf.mxu0
    %v2898 = vadd.f32 0.0, %v2897
    %v2899 = vpop.f32.mrf.mxu0
    %2900 = vmatprep.mubr.bf16.mxu0 0
    %2901 = vmatmul.mubr.bf16.gmra.mxu0 %v2783
    %v2902 = vpop.f32.mrf.mxu0
    %v2903 = vadd.f32 0.0, %v2902
    %v2904 = vpop.f32.mrf.mxu0
    %v2905 = vpop.f32.mrf.mxu0
    %v2906 = vadd.f32 0.0, %v2905
    %v2907 = vpop.f32.mrf.mxu0
    %2908 = vmatprep.mubr.bf16.mxu0 0
    %2909 = vmatmul.mubr.bf16.gmra.mxu0 %v2786
    %v2910 = vpop.f32.mrf.mxu0
    %v2911 = vadd.f32 0.0, %v2910
    %v2912 = vpop.f32.mrf.mxu0
    %v2913 = vpop.f32.mrf.mxu0
    %v2914 = vpop.f32.mrf.mxu0
    %2915 = vdwg.mxu0
    %v2916 = vadd.f32 %v2661, %v2823
    %v2917 = vadd.f32 %v2662, %v2826
    %v2918 = vadd.f32 %v2663, %v2831
    %v2919 = vadd.f32 %v2664, %v2834
    %v2920 = vadd.f32 %v2665, %v2839
    %v2921 = vadd.f32 %v2666, %v2842
    %v2922 = vadd.f32 %v2667, %v2847
    %v2923 = vadd.f32 %v2668, %v2850
    %v2924 = vadd.f32 %v2669, %v2855
    %v2925 = vadd.f32 %v2670, %v2858
    %v2926 = vadd.f32 %v2671, %v2863
    %v2927 = vadd.f32 %v2672, %v2866
    %v2928 = vadd.f32 %v2673, %v2871
    %v2929 = vadd.f32 %v2674, %v2874
    %v2930 = vadd.f32 %v2675, %v2879
    %v2931 = vadd.f32 %v2676, %v2882
    %v2932 = vadd.f32 %v2677, %v2887
    %v2933 = vadd.f32 %v2678, %v2890
    %v2934 = vadd.f32 %v2679, %v2895
    %v2935 = vadd.f32 %v2680, %v2898
    %v2936 = vadd.f32 %v2681, %v2903
    %v2937 = vadd.f32 %v2682, %v2906
    %v2938 = vadd.f32 %v2683, %v2911
    %v2939 = vld [vmem:[#allocation2 + $0x15] sm:$0xff]
    %v2940 = vld [vmem:[#allocation2 + $0x1d] sm:$0xff]
    %v2941 = vld [vmem:[#allocation2 + $0x25] sm:$0xff]
    %v2942 = vld [vmem:[#allocation2 + $0x2d] sm:$0xff]
    %v2943 = vld [vmem:[#allocation2 + $0x35] sm:$0xff]
    %v2944 = vld [vmem:[#allocation2 + $0x3d] sm:$0xff]
    %v2945 = vld [vmem:[#allocation2 + $0x45] sm:$0xff]
    %v2946 = vld [vmem:[#allocation2 + $0x4d] sm:$0xff]
    %v2947 = vld [vmem:[#allocation2 + $0x55] sm:$0xff]
    %v2948 = vld [vmem:[#allocation2 + $0x5d] sm:$0xff]
    %v2949 = vld [vmem:[#allocation2 + $0x65] sm:$0xff]
    %v2950 = vld [vmem:[#allocation2 + $0x6d] sm:$0xff]
    %v2951 = vld [vmem:[#allocation2 + $0x75] sm:$0xff]
    %v2952 = vld [vmem:[#allocation2 + $0x7d] sm:$0xff]
    %v2953 = vld [vmem:[#allocation2 + $0x85] sm:$0xff]
    %v2954 = vld [vmem:[#allocation2 + $0x8d] sm:$0xff]
    %v2955 = vld [vmem:[#allocation2 + $0x95] sm:$0xff]
    %v2956 = vld [vmem:[#allocation2 + $0x9d] sm:$0xff]
    %v2957 = vld [vmem:[#allocation2 + $0xa5] sm:$0xff]
    %v2958 = vld [vmem:[#allocation2 + $0xad] sm:$0xff]
    %v2959 = vld [vmem:[#allocation2 + $0xb5] sm:$0xff]
    %v2960 = vld [vmem:[#allocation2 + $0xbd] sm:$0xff]
    %v2961 = vld [vmem:[#allocation2 + $0xc5] sm:$0xf]
    %v2962 = vpack.c.bf16 %v2940, %v2939
    %v2963 = vpack.c.bf16 %v2942, %v2941
    %v2964 = vpack.c.bf16 %v2944, %v2943
    %v2965 = vpack.c.bf16 %v2946, %v2945
    %v2966 = vpack.c.bf16 %v2948, %v2947
    %v2967 = vpack.c.bf16 %v2950, %v2949
    %v2968 = vpack.c.bf16 %v2952, %v2951
    %v2969 = vpack.c.bf16 %v2954, %v2953
    %v2970 = vpack.c.bf16 %v2956, %v2955
    %v2971 = vpack.c.bf16 %v2958, %v2957
    %v2972 = vpack.c.bf16 %v2960, %v2959
    %v2973 = vpack.c.bf16 %v2961, %v2961
    %s2974 = scalar_lea.vmem %s4, 224
    %v2975 = vld [vmem:[%s2974] sm:$0xf]
    %v2976 = vld [vmem:[%s2974 + $0x4] sm:$0xf]
    %v2977 = vld [vmem:[%s2974 + $0x8] sm:$0xf]
    %v2978 = vld [vmem:[%s2974 + $0xc] sm:$0xf]
    %v2979 = vld [vmem:[%s2974 + $0x10] sm:$0xf]
    %v2980 = vld [vmem:[%s2974 + $0x14] sm:$0xf]
    %v2981 = vld [vmem:[%s2974 + $0x18] sm:$0xf]
    %v2982 = vld [vmem:[%s2974 + $0x1c] sm:$0xf]
    %v2991 = vunpack.c.l.b16 %v2975
    %v2992 = vunpack.c.l.b16 %v2976
    %v2993 = vunpack.c.l.b16 %v2977
    %v2994 = vunpack.c.l.b16 %v2978
    %v2995 = vunpack.c.l.b16 %v2979
    %v2996 = vunpack.c.l.b16 %v2980
    %v2997 = vunpack.c.l.b16 %v2981
    %v2998 = vunpack.c.l.b16 %v2982
    %v2999 = vpack.c.b16 %v2992, %v2991
    %v3000 = vpack.c.b16 %v2994, %v2993
    %v3001 = vpack.c.b16 %v2996, %v2995
    %v3002 = vpack.c.b16 %v2998, %v2997
    %v3008 = vsel %vm52, %v2962, 0
    %v3011 = vsel %vm52, %v2963, 0
    %v3014 = vsel %vm52, %v2964, 0
    %v3017 = vsel %vm52, %v2965, 0
    %v3020 = vsel %vm52, %v2966, 0
    %v3023 = vsel %vm52, %v2967, 0
    %v3026 = vsel %vm52, %v2968, 0
    %v3029 = vsel %vm52, %v2969, 0
    %v3032 = vsel %vm52, %v2970, 0
    %v3035 = vsel %vm52, %v2971, 0
    %v3038 = vsel %vm52, %v2972, 0
    %v3041 = vsel %vm52, %v2973, 0
    %3043 = vmatprep.subr.bf16.mxu0 0
    %3044 = vmatpush1.bf16.msra.mxu0 0
    %3045 = vmatprep.subr.bf16.mxu0 0
    %3046 = vmatpush1.bf16.msra.mxu0 0
    %3047 = vmatprep.subr.bf16.mxu0 0
    %3048 = vmatpush1.bf16.msra.mxu0 0
    %3049 = vmatprep.subr.bf16.mxu0 0
    %3050 = vmatpush1.bf16.msra.mxu0 0
    %3051 = vmatprep.subr.bf16.mxu0 0
    %3052 = vmatpush1.bf16.msra.mxu0 %v3002
    %3053 = vmatprep.subr.bf16.mxu0 0
    %3054 = vmatpush1.bf16.msra.mxu0 %v3001
    %3055 = vmatprep.subr.bf16.mxu0 0
    %3056 = vmatpush1.bf16.msra.mxu0 %v3000
    %3057 = vmatprep.subr.bf16.mxu0 0
    %3058 = vmatpush1.bf16.msra.mxu0 %v2999
    %3059 = vmatprep.subr.bf16.mxu0 0
    %3060 = vmatpush2.bf16.msra.mxu0 0
    %3061 = vmatprep.subr.bf16.mxu0 0
    %3062 = vmatpush2.bf16.msra.mxu0 0
    %3063 = vmatprep.subr.bf16.mxu0 0
    %3064 = vmatpush2.bf16.msra.mxu0 0
    %3065 = vmatprep.subr.bf16.mxu0 0
    %3066 = vmatpush2.bf16.msra.mxu0 0
    %3067 = vmatprep.subr.bf16.mxu0 0
    %3068 = vmatpush2.bf16.msra.mxu0 0
    %3069 = vmatprep.subr.bf16.mxu0 0
    %3070 = vmatpush2.bf16.msra.mxu0 0
    %3071 = vmatprep.subr.bf16.mxu0 0
    %3072 = vmatpush2.bf16.msra.mxu0 0
    %3073 = vmatprep.subr.bf16.mxu0 0
    %3074 = vmatpush2.bf16.msra.mxu0 0
    %3075 = vmatprep.mubr.bf16.mxu0 0
    %3076 = vmatmul.mubr.bf16.gmra.mxu0 %v3008
    %v3077 = vpop.f32.mrf.mxu0
    %v3078 = vadd.f32 0.0, %v3077
    %v3079 = vpop.f32.mrf.mxu0
    %v3080 = vpop.f32.mrf.mxu0
    %v3081 = vadd.f32 0.0, %v3080
    %v3082 = vpop.f32.mrf.mxu0
    %3083 = vmatprep.mubr.bf16.mxu0 0
    %3084 = vmatmul.mubr.bf16.gmra.mxu0 %v3011
    %v3085 = vpop.f32.mrf.mxu0
    %v3086 = vadd.f32 0.0, %v3085
    %v3087 = vpop.f32.mrf.mxu0
    %v3088 = vpop.f32.mrf.mxu0
    %v3089 = vadd.f32 0.0, %v3088
    %v3090 = vpop.f32.mrf.mxu0
    %3091 = vmatprep.mubr.bf16.mxu0 0
    %3092 = vmatmul.mubr.bf16.gmra.mxu0 %v3014
    %v3093 = vpop.f32.mrf.mxu0
    %v3094 = vadd.f32 0.0, %v3093
    %v3095 = vpop.f32.mrf.mxu0
    %v3096 = vpop.f32.mrf.mxu0
    %v3097 = vadd.f32 0.0, %v3096
    %v3098 = vpop.f32.mrf.mxu0
    %3099 = vmatprep.mubr.bf16.mxu0 0
    %3100 = vmatmul.mubr.bf16.gmra.mxu0 %v3017
    %v3101 = vpop.f32.mrf.mxu0
    %v3102 = vadd.f32 0.0, %v3101
    %v3103 = vpop.f32.mrf.mxu0
    %v3104 = vpop.f32.mrf.mxu0
    %v3105 = vadd.f32 0.0, %v3104
    %v3106 = vpop.f32.mrf.mxu0
    %3107 = vmatprep.mubr.bf16.mxu0 0
    %3108 = vmatmul.mubr.bf16.gmra.mxu0 %v3020
    %v3109 = vpop.f32.mrf.mxu0
    %v3110 = vadd.f32 0.0, %v3109
    %v3111 = vpop.f32.mrf.mxu0
    %v3112 = vpop.f32.mrf.mxu0
    %v3113 = vadd.f32 0.0, %v3112
    %v3114 = vpop.f32.mrf.mxu0
    %3115 = vmatprep.mubr.bf16.mxu0 0
    %3116 = vmatmul.mubr.bf16.gmra.mxu0 %v3023
    %v3117 = vpop.f32.mrf.mxu0
    %v3118 = vadd.f32 0.0, %v3117
    %v3119 = vpop.f32.mrf.mxu0
    %v3120 = vpop.f32.mrf.mxu0
    %v3121 = vadd.f32 0.0, %v3120
    %v3122 = vpop.f32.mrf.mxu0
    %3123 = vmatprep.mubr.bf16.mxu0 0
    %3124 = vmatmul.mubr.bf16.gmra.mxu0 %v3026
    %v3125 = vpop.f32.mrf.mxu0
    %v3126 = vadd.f32 0.0, %v3125
    %v3127 = vpop.f32.mrf.mxu0
    %v3128 = vpop.f32.mrf.mxu0
    %v3129 = vadd.f32 0.0, %v3128
    %v3130 = vpop.f32.mrf.mxu0
    %3131 = vmatprep.mubr.bf16.mxu0 0
    %3132 = vmatmul.mubr.bf16.gmra.mxu0 %v3029
    %v3133 = vpop.f32.mrf.mxu0
    %v3134 = vadd.f32 0.0, %v3133
    %v3135 = vpop.f32.mrf.mxu0
    %v3136 = vpop.f32.mrf.mxu0
    %v3137 = vadd.f32 0.0, %v3136
    %v3138 = vpop.f32.mrf.mxu0
    %3139 = vmatprep.mubr.bf16.mxu0 0
    %3140 = vmatmul.mubr.bf16.gmra.mxu0 %v3032
    %v3141 = vpop.f32.mrf.mxu0
    %v3142 = vadd.f32 0.0, %v3141
    %v3143 = vpop.f32.mrf.mxu0
    %v3144 = vpop.f32.mrf.mxu0
    %v3145 = vadd.f32 0.0, %v3144
    %v3146 = vpop.f32.mrf.mxu0
    %3147 = vmatprep.mubr.bf16.mxu0 0
    %3148 = vmatmul.mubr.bf16.gmra.mxu0 %v3035
    %v3149 = vpop.f32.mrf.mxu0
    %v3150 = vadd.f32 0.0, %v3149
    %v3151 = vpop.f32.mrf.mxu0
    %v3152 = vpop.f32.mrf.mxu0
    %v3153 = vadd.f32 0.0, %v3152
    %v3154 = vpop.f32.mrf.mxu0
    %3155 = vmatprep.mubr.bf16.mxu0 0
    %3156 = vmatmul.mubr.bf16.gmra.mxu0 %v3038
    %v3157 = vpop.f32.mrf.mxu0
    %v3158 = vadd.f32 0.0, %v3157
    %v3159 = vpop.f32.mrf.mxu0
    %v3160 = vpop.f32.mrf.mxu0
    %v3161 = vadd.f32 0.0, %v3160
    %v3162 = vpop.f32.mrf.mxu0
    %3163 = vmatprep.mubr.bf16.mxu0 0
    %3164 = vmatmul.mubr.bf16.gmra.mxu0 %v3041
    %v3165 = vpop.f32.mrf.mxu0
    %v3166 = vadd.f32 0.0, %v3165
    %v3167 = vpop.f32.mrf.mxu0
    %v3168 = vpop.f32.mrf.mxu0
    %v3169 = vpop.f32.mrf.mxu0
    %3170 = vdwg.mxu0
    %v3171 = vadd.f32 %v2916, %v3078
    %v3172 = vadd.f32 %v2917, %v3081
    %v3173 = vadd.f32 %v2918, %v3086
    %v3174 = vadd.f32 %v2919, %v3089
    %v3175 = vadd.f32 %v2920, %v3094
    %v3176 = vadd.f32 %v2921, %v3097
    %v3177 = vadd.f32 %v2922, %v3102
    %v3178 = vadd.f32 %v2923, %v3105
    %v3179 = vadd.f32 %v2924, %v3110
    %v3180 = vadd.f32 %v2925, %v3113
    %v3181 = vadd.f32 %v2926, %v3118
    %v3182 = vadd.f32 %v2927, %v3121
    %v3183 = vadd.f32 %v2928, %v3126
    %v3184 = vadd.f32 %v2929, %v3129
    %v3185 = vadd.f32 %v2930, %v3134
    %v3186 = vadd.f32 %v2931, %v3137
    %v3187 = vadd.f32 %v2932, %v3142
    %v3188 = vadd.f32 %v2933, %v3145
    %v3189 = vadd.f32 %v2934, %v3150
    %v3190 = vadd.f32 %v2935, %v3153
    %v3191 = vadd.f32 %v2936, %v3158
    %v3192 = vadd.f32 %v2937, %v3161
    %v3193 = vadd.f32 %v2938, %v3166
    %v3194 = vld [vmem:[#allocation2 + $0x16] sm:$0xff]
    %v3195 = vld [vmem:[#allocation2 + $0x1e] sm:$0xff]
    %v3196 = vld [vmem:[#allocation2 + $0x26] sm:$0xff]
    %v3197 = vld [vmem:[#allocation2 + $0x2e] sm:$0xff]
    %v3198 = vld [vmem:[#allocation2 + $0x36] sm:$0xff]
    %v3199 = vld [vmem:[#allocation2 + $0x3e] sm:$0xff]
    %v3200 = vld [vmem:[#allocation2 + $0x46] sm:$0xff]
    %v3201 = vld [vmem:[#allocation2 + $0x4e] sm:$0xff]
    %v3202 = vld [vmem:[#allocation2 + $0x56] sm:$0xff]
    %v3203 = vld [vmem:[#allocation2 + $0x5e] sm:$0xff]
    %v3204 = vld [vmem:[#allocation2 + $0x66] sm:$0xff]
    %v3205 = vld [vmem:[#allocation2 + $0x6e] sm:$0xff]
    %v3206 = vld [vmem:[#allocation2 + $0x76] sm:$0xff]
    %v3207 = vld [vmem:[#allocation2 + $0x7e] sm:$0xff]
    %v3208 = vld [vmem:[#allocation2 + $0x86] sm:$0xff]
    %v3209 = vld [vmem:[#allocation2 + $0x8e] sm:$0xff]
    %v3210 = vld [vmem:[#allocation2 + $0x96] sm:$0xff]
    %v3211 = vld [vmem:[#allocation2 + $0x9e] sm:$0xff]
    %v3212 = vld [vmem:[#allocation2 + $0xa6] sm:$0xff]
    %v3213 = vld [vmem:[#allocation2 + $0xae] sm:$0xff]
    %v3214 = vld [vmem:[#allocation2 + $0xb6] sm:$0xff]
    %v3215 = vld [vmem:[#allocation2 + $0xbe] sm:$0xff]
    %v3216 = vld [vmem:[#allocation2 + $0xc6] sm:$0xf]
    %v3217 = vpack.c.bf16 %v3195, %v3194
    %v3218 = vpack.c.bf16 %v3197, %v3196
    %v3219 = vpack.c.bf16 %v3199, %v3198
    %v3220 = vpack.c.bf16 %v3201, %v3200
    %v3221 = vpack.c.bf16 %v3203, %v3202
    %v3222 = vpack.c.bf16 %v3205, %v3204
    %v3223 = vpack.c.bf16 %v3207, %v3206
    %v3224 = vpack.c.bf16 %v3209, %v3208
    %v3225 = vpack.c.bf16 %v3211, %v3210
    %v3226 = vpack.c.bf16 %v3213, %v3212
    %v3227 = vpack.c.bf16 %v3215, %v3214
    %v3228 = vpack.c.bf16 %v3216, %v3216
    %s3229 = scalar_lea.vmem %s4, 256
    %v3230 = vld [vmem:[%s3229] sm:$0xf]
    %v3231 = vld [vmem:[%s3229 + $0x4] sm:$0xf]
    %v3232 = vld [vmem:[%s3229 + $0x8] sm:$0xf]
    %v3233 = vld [vmem:[%s3229 + $0xc] sm:$0xf]
    %v3234 = vld [vmem:[%s3229 + $0x10] sm:$0xf]
    %v3235 = vld [vmem:[%s3229 + $0x14] sm:$0xf]
    %v3236 = vld [vmem:[%s3229 + $0x18] sm:$0xf]
    %v3237 = vld [vmem:[%s3229 + $0x1c] sm:$0xf]
    %v3246 = vunpack.c.l.b16 %v3230
    %v3247 = vunpack.c.l.b16 %v3231
    %v3248 = vunpack.c.l.b16 %v3232
    %v3249 = vunpack.c.l.b16 %v3233
    %v3250 = vunpack.c.l.b16 %v3234
    %v3251 = vunpack.c.l.b16 %v3235
    %v3252 = vunpack.c.l.b16 %v3236
    %v3253 = vunpack.c.l.b16 %v3237
    %v3254 = vpack.c.b16 %v3247, %v3246
    %v3255 = vpack.c.b16 %v3249, %v3248
    %v3256 = vpack.c.b16 %v3251, %v3250
    %v3257 = vpack.c.b16 %v3253, %v3252
    %v3263 = vsel %vm52, %v3217, 0
    %v3266 = vsel %vm52, %v3218, 0
    %v3269 = vsel %vm52, %v3219, 0
    %v3272 = vsel %vm52, %v3220, 0
    %v3275 = vsel %vm52, %v3221, 0
    %v3278 = vsel %vm52, %v3222, 0
    %v3281 = vsel %vm52, %v3223, 0
    %v3284 = vsel %vm52, %v3224, 0
    %v3287 = vsel %vm52, %v3225, 0
    %v3290 = vsel %vm52, %v3226, 0
    %v3293 = vsel %vm52, %v3227, 0
    %v3296 = vsel %vm52, %v3228, 0
    %3298 = vmatprep.subr.bf16.mxu0 0
    %3299 = vmatpush1.bf16.msra.mxu0 0
    %3300 = vmatprep.subr.bf16.mxu0 0
    %3301 = vmatpush1.bf16.msra.mxu0 0
    %3302 = vmatprep.subr.bf16.mxu0 0
    %3303 = vmatpush1.bf16.msra.mxu0 0
    %3304 = vmatprep.subr.bf16.mxu0 0
    %3305 = vmatpush1.bf16.msra.mxu0 0
    %3306 = vmatprep.subr.bf16.mxu0 0
    %3307 = vmatpush1.bf16.msra.mxu0 %v3257
    %3308 = vmatprep.subr.bf16.mxu0 0
    %3309 = vmatpush1.bf16.msra.mxu0 %v3256
    %3310 = vmatprep.subr.bf16.mxu0 0
    %3311 = vmatpush1.bf16.msra.mxu0 %v3255
    %3312 = vmatprep.subr.bf16.mxu0 0
    %3313 = vmatpush1.bf16.msra.mxu0 %v3254
    %3314 = vmatprep.subr.bf16.mxu0 0
    %3315 = vmatpush2.bf16.msra.mxu0 0
    %3316 = vmatprep.subr.bf16.mxu0 0
    %3317 = vmatpush2.bf16.msra.mxu0 0
    %3318 = vmatprep.subr.bf16.mxu0 0
    %3319 = vmatpush2.bf16.msra.mxu0 0
    %3320 = vmatprep.subr.bf16.mxu0 0
    %3321 = vmatpush2.bf16.msra.mxu0 0
    %3322 = vmatprep.subr.bf16.mxu0 0
    %3323 = vmatpush2.bf16.msra.mxu0 0
    %3324 = vmatprep.subr.bf16.mxu0 0
    %3325 = vmatpush2.bf16.msra.mxu0 0
    %3326 = vmatprep.subr.bf16.mxu0 0
    %3327 = vmatpush2.bf16.msra.mxu0 0
    %3328 = vmatprep.subr.bf16.mxu0 0
    %3329 = vmatpush2.bf16.msra.mxu0 0
    %3330 = vmatprep.mubr.bf16.mxu0 0
    %3331 = vmatmul.mubr.bf16.gmra.mxu0 %v3263
    %v3332 = vpop.f32.mrf.mxu0
    %v3333 = vadd.f32 0.0, %v3332
    %v3334 = vpop.f32.mrf.mxu0
    %v3335 = vpop.f32.mrf.mxu0
    %v3336 = vadd.f32 0.0, %v3335
    %v3337 = vpop.f32.mrf.mxu0
    %3338 = vmatprep.mubr.bf16.mxu0 0
    %3339 = vmatmul.mubr.bf16.gmra.mxu0 %v3266
    %v3340 = vpop.f32.mrf.mxu0
    %v3341 = vadd.f32 0.0, %v3340
    %v3342 = vpop.f32.mrf.mxu0
    %v3343 = vpop.f32.mrf.mxu0
    %v3344 = vadd.f32 0.0, %v3343
    %v3345 = vpop.f32.mrf.mxu0
    %3346 = vmatprep.mubr.bf16.mxu0 0
    %3347 = vmatmul.mubr.bf16.gmra.mxu0 %v3269
    %v3348 = vpop.f32.mrf.mxu0
    %v3349 = vadd.f32 0.0, %v3348
    %v3350 = vpop.f32.mrf.mxu0
    %v3351 = vpop.f32.mrf.mxu0
    %v3352 = vadd.f32 0.0, %v3351
    %v3353 = vpop.f32.mrf.mxu0
    %3354 = vmatprep.mubr.bf16.mxu0 0
    %3355 = vmatmul.mubr.bf16.gmra.mxu0 %v3272
    %v3356 = vpop.f32.mrf.mxu0
    %v3357 = vadd.f32 0.0, %v3356
    %v3358 = vpop.f32.mrf.mxu0
    %v3359 = vpop.f32.mrf.mxu0
    %v3360 = vadd.f32 0.0, %v3359
    %v3361 = vpop.f32.mrf.mxu0
    %3362 = vmatprep.mubr.bf16.mxu0 0
    %3363 = vmatmul.mubr.bf16.gmra.mxu0 %v3275
    %v3364 = vpop.f32.mrf.mxu0
    %v3365 = vadd.f32 0.0, %v3364
    %v3366 = vpop.f32.mrf.mxu0
    %v3367 = vpop.f32.mrf.mxu0
    %v3368 = vadd.f32 0.0, %v3367
    %v3369 = vpop.f32.mrf.mxu0
    %3370 = vmatprep.mubr.bf16.mxu0 0
    %3371 = vmatmul.mubr.bf16.gmra.mxu0 %v3278
    %v3372 = vpop.f32.mrf.mxu0
    %v3373 = vadd.f32 0.0, %v3372
    %v3374 = vpop.f32.mrf.mxu0
    %v3375 = vpop.f32.mrf.mxu0
    %v3376 = vadd.f32 0.0, %v3375
    %v3377 = vpop.f32.mrf.mxu0
    %3378 = vmatprep.mubr.bf16.mxu0 0
    %3379 = vmatmul.mubr.bf16.gmra.mxu0 %v3281
    %v3380 = vpop.f32.mrf.mxu0
    %v3381 = vadd.f32 0.0, %v3380
    %v3382 = vpop.f32.mrf.mxu0
    %v3383 = vpop.f32.mrf.mxu0
    %v3384 = vadd.f32 0.0, %v3383
    %v3385 = vpop.f32.mrf.mxu0
    %3386 = vmatprep.mubr.bf16.mxu0 0
    %3387 = vmatmul.mubr.bf16.gmra.mxu0 %v3284
    %v3388 = vpop.f32.mrf.mxu0
    %v3389 = vadd.f32 0.0, %v3388
    %v3390 = vpop.f32.mrf.mxu0
    %v3391 = vpop.f32.mrf.mxu0
    %v3392 = vadd.f32 0.0, %v3391
    %v3393 = vpop.f32.mrf.mxu0
    %3394 = vmatprep.mubr.bf16.mxu0 0
    %3395 = vmatmul.mubr.bf16.gmra.mxu0 %v3287
    %v3396 = vpop.f32.mrf.mxu0
    %v3397 = vadd.f32 0.0, %v3396
    %v3398 = vpop.f32.mrf.mxu0
    %v3399 = vpop.f32.mrf.mxu0
    %v3400 = vadd.f32 0.0, %v3399
    %v3401 = vpop.f32.mrf.mxu0
    %3402 = vmatprep.mubr.bf16.mxu0 0
    %3403 = vmatmul.mubr.bf16.gmra.mxu0 %v3290
    %v3404 = vpop.f32.mrf.mxu0
    %v3405 = vadd.f32 0.0, %v3404
    %v3406 = vpop.f32.mrf.mxu0
    %v3407 = vpop.f32.mrf.mxu0
    %v3408 = vadd.f32 0.0, %v3407
    %v3409 = vpop.f32.mrf.mxu0
    %3410 = vmatprep.mubr.bf16.mxu0 0
    %3411 = vmatmul.mubr.bf16.gmra.mxu0 %v3293
    %v3412 = vpop.f32.mrf.mxu0
    %v3413 = vadd.f32 0.0, %v3412
    %v3414 = vpop.f32.mrf.mxu0
    %v3415 = vpop.f32.mrf.mxu0
    %v3416 = vadd.f32 0.0, %v3415
    %v3417 = vpop.f32.mrf.mxu0
    %3418 = vmatprep.mubr.bf16.mxu0 0
    %3419 = vmatmul.mubr.bf16.gmra.mxu0 %v3296
    %v3420 = vpop.f32.mrf.mxu0
    %v3421 = vadd.f32 0.0, %v3420
    %v3422 = vpop.f32.mrf.mxu0
    %v3423 = vpop.f32.mrf.mxu0
    %v3424 = vpop.f32.mrf.mxu0
    %3425 = vdwg.mxu0
    %v3426 = vadd.f32 %v3171, %v3333
    %v3427 = vadd.f32 %v3172, %v3336
    %v3428 = vadd.f32 %v3173, %v3341
    %v3429 = vadd.f32 %v3174, %v3344
    %v3430 = vadd.f32 %v3175, %v3349
    %v3431 = vadd.f32 %v3176, %v3352
    %v3432 = vadd.f32 %v3177, %v3357
    %v3433 = vadd.f32 %v3178, %v3360
    %v3434 = vadd.f32 %v3179, %v3365
    %v3435 = vadd.f32 %v3180, %v3368
    %v3436 = vadd.f32 %v3181, %v3373
    %v3437 = vadd.f32 %v3182, %v3376
    %v3438 = vadd.f32 %v3183, %v3381
    %v3439 = vadd.f32 %v3184, %v3384
    %v3440 = vadd.f32 %v3185, %v3389
    %v3441 = vadd.f32 %v3186, %v3392
    %v3442 = vadd.f32 %v3187, %v3397
    %v3443 = vadd.f32 %v3188, %v3400
    %v3444 = vadd.f32 %v3189, %v3405
    %v3445 = vadd.f32 %v3190, %v3408
    %v3446 = vadd.f32 %v3191, %v3413
    %v3447 = vadd.f32 %v3192, %v3416
    %v3448 = vadd.f32 %v3193, %v3421
    %v3450 = vlaneseq
    %v3451 = vshrl.u32 %v3450, 7
    %v3452 = vsub.s32 0, %v3451
    %v3453 = vrot.slane %v1199, %v3452
    %v3455 = vmul.f32 %v3426, %v3453
    %v3456 = vmul.f32 %v3427, %v3453
    %v3457 = vmul.f32 %v3428, %v3453
    %v3458 = vmul.f32 %v3429, %v3453
    %v3459 = vmul.f32 %v3430, %v3453
    %v3460 = vmul.f32 %v3431, %v3453
    %v3461 = vmul.f32 %v3432, %v3453
    %v3462 = vmul.f32 %v3433, %v3453
    %v3463 = vmul.f32 %v3434, %v3453
    %v3464 = vmul.f32 %v3435, %v3453
    %v3465 = vmul.f32 %v3436, %v3453
    %v3466 = vmul.f32 %v3437, %v3453
    %v3467 = vmul.f32 %v3438, %v3453
    %v3468 = vmul.f32 %v3439, %v3453
    %v3469 = vmul.f32 %v3440, %v3453
    %v3470 = vmul.f32 %v3441, %v3453
    %v3471 = vmul.f32 %v3442, %v3453
    %v3472 = vmul.f32 %v3443, %v3453
    %v3473 = vmul.f32 %v3444, %v3453
    %v3474 = vmul.f32 %v3445, %v3453
    %v3475 = vmul.f32 %v3446, %v3453
    %v3476 = vmul.f32 %v3447, %v3453
    %v3477 = vmul.f32 %v3448, %v3453
    %v3479 = vlaneseq
    %v3480 = vshrl.u32 %v3479, 7
    %v3481 = vsub.s32 0, %v3480
    %v3482 = vrot.slane %v1200, %v3481
    %v3484 = vadd.f32 %v3455, %v3482
    %v3485 = vadd.f32 %v3456, %v3482
    %v3486 = vadd.f32 %v3457, %v3482
    %v3487 = vadd.f32 %v3458, %v3482
    %v3488 = vadd.f32 %v3459, %v3482
    %v3489 = vadd.f32 %v3460, %v3482
    %v3490 = vadd.f32 %v3461, %v3482
    %v3491 = vadd.f32 %v3462, %v3482
    %v3492 = vadd.f32 %v3463, %v3482
    %v3493 = vadd.f32 %v3464, %v3482
    %v3494 = vadd.f32 %v3465, %v3482
    %v3495 = vadd.f32 %v3466, %v3482
    %v3496 = vadd.f32 %v3467, %v3482
    %v3497 = vadd.f32 %v3468, %v3482
    %v3498 = vadd.f32 %v3469, %v3482
    %v3499 = vadd.f32 %v3470, %v3482
    %v3500 = vadd.f32 %v3471, %v3482
    %v3501 = vadd.f32 %v3472, %v3482
    %v3502 = vadd.f32 %v3473, %v3482
    %v3503 = vadd.f32 %v3474, %v3482
    %v3504 = vadd.f32 %v3475, %v3482
    %v3505 = vadd.f32 %v3476, %v3482
    %v3506 = vadd.f32 %v3477, %v3482
    %v3507 = vmax.f32 %v3484, 0.0
    %v3508 = vmax.f32 %v3485, 0.0
    %v3509 = vmax.f32 %v3486, 0.0
    %v3510 = vmax.f32 %v3487, 0.0
    %v3511 = vmax.f32 %v3488, 0.0
    %v3512 = vmax.f32 %v3489, 0.0
    %v3513 = vmax.f32 %v3490, 0.0
    %v3514 = vmax.f32 %v3491, 0.0
    %v3515 = vmax.f32 %v3492, 0.0
    %v3516 = vmax.f32 %v3493, 0.0
    %v3517 = vmax.f32 %v3494, 0.0
    %v3518 = vmax.f32 %v3495, 0.0
    %v3519 = vmax.f32 %v3496, 0.0
    %v3520 = vmax.f32 %v3497, 0.0
    %v3521 = vmax.f32 %v3498, 0.0
    %v3522 = vmax.f32 %v3499, 0.0
    %v3523 = vmax.f32 %v3500, 0.0
    %v3524 = vmax.f32 %v3501, 0.0
    %v3525 = vmax.f32 %v3502, 0.0
    %v3526 = vmax.f32 %v3503, 0.0
    %v3527 = vmax.f32 %v3504, 0.0
    %v3528 = vmax.f32 %v3505, 0.0
    %v3529 = vmax.f32 %v3506, 0.0
    %3530 = vst.msk [vmem:[#allocation5] sm:$0xff] %vm52, %v3507
    %3531 = vst.msk [vmem:[#allocation5 + $0x8] sm:$0xff] %vm52, %v3508
    %3532 = vst.msk [vmem:[#allocation5 + $0x10] sm:$0xff] %vm52, %v3509
    %3533 = vst.msk [vmem:[#allocation5 + $0x18] sm:$0xff] %vm52, %v3510
    %3534 = vst.msk [vmem:[#allocation5 + $0x20] sm:$0xff] %vm52, %v3511
    %3535 = vst.msk [vmem:[#allocation5 + $0x28] sm:$0xff] %vm52, %v3512
    %3536 = vst.msk [vmem:[#allocation5 + $0x30] sm:$0xff] %vm52, %v3513
    %3537 = vst.msk [vmem:[#allocation5 + $0x38] sm:$0xff] %vm52, %v3514
    %3538 = vst.msk [vmem:[#allocation5 + $0x40] sm:$0xff] %vm52, %v3515
    %3539 = vst.msk [vmem:[#allocation5 + $0x48] sm:$0xff] %vm52, %v3516
    %3540 = vst.msk [vmem:[#allocation5 + $0x50] sm:$0xff] %vm52, %v3517
    %3541 = vst.msk [vmem:[#allocation5 + $0x58] sm:$0xff] %vm52, %v3518
    %3542 = vst.msk [vmem:[#allocation5 + $0x60] sm:$0xff] %vm52, %v3519
    %3543 = vst.msk [vmem:[#allocation5 + $0x68] sm:$0xff] %vm52, %v3520
    %3544 = vst.msk [vmem:[#allocation5 + $0x70] sm:$0xff] %vm52, %v3521
    %3545 = vst.msk [vmem:[#allocation5 + $0x78] sm:$0xff] %vm52, %v3522
    %3546 = vst.msk [vmem:[#allocation5 + $0x80] sm:$0xff] %vm52, %v3523
    %3547 = vst.msk [vmem:[#allocation5 + $0x88] sm:$0xff] %vm52, %v3524
    %3548 = vst.msk [vmem:[#allocation5 + $0x90] sm:$0xff] %vm52, %v3525
    %3549 = vst.msk [vmem:[#allocation5 + $0x98] sm:$0xff] %vm52, %v3526
    %3550 = vst.msk [vmem:[#allocation5 + $0xa0] sm:$0xff] %vm52, %v3527
    %3551 = vst.msk [vmem:[#allocation5 + $0xa8] sm:$0xff] %vm52, %v3528
    %vm3552 = vcmask 519168
    %3553 = vst.msk [vmem:[#allocation5 + $0xb0] sm:$0xf] %vm3552, %v3529
    %v3554 = vld [vmem:[#allocation5] ss:$2 sm:$0xf]
    %v3555 = vld [vmem:[%s575] ss:$2 sm:$0xf]
    %s3556 = scalar_lea.vmem [#allocation5], 10
    %v3557 = vld [vmem:[%s3556] ss:$2 sm:$0xf]
    %s3558 = scalar_lea.vmem [#allocation5], 11
    %v3559 = vld [vmem:[%s3558] ss:$2 sm:$0xf]
    %v3560 = vmax.f32 %v3554, %v3555
    %v3561 = vmax.f32 %v3557, %v3559
    %v3562 = vmax.f32 %v3560, %v3561
    %3563 = vst.msk [vmem:[#allocation3 + $0x7] sm:$0xf] %vm3552, %v3562
    %s3564 = scalar_lea.vmem [#allocation5], 20
    %v3565 = vld [vmem:[%s3564] ss:$2 sm:$0xf]
    %s3566 = scalar_lea.vmem [#allocation5], 21
    %v3567 = vld [vmem:[%s3566] ss:$2 sm:$0xf]
    %s3568 = scalar_lea.vmem [#allocation5], 30
    %v3569 = vld [vmem:[%s3568] ss:$2 sm:$0xf]
    %s3570 = scalar_lea.vmem [#allocation5], 31
    %v3571 = vld [vmem:[%s3570] ss:$2 sm:$0xf]
    %v3572 = vmax.f32 %v3565, %v3567
    %v3573 = vmax.f32 %v3569, %v3571
    %v3574 = vmax.f32 %v3572, %v3573
    %3575 = vst.msk [vmem:[#allocation3 + $0xd] sm:$0xf] %vm3552, %v3574
    %s3576 = scalar_lea.vmem [#allocation5], 40
    %v3577 = vld [vmem:[%s3576] ss:$2 sm:$0xf]
    %s3578 = scalar_lea.vmem [#allocation5], 41
    %v3579 = vld [vmem:[%s3578] ss:$2 sm:$0xf]
    %s3580 = scalar_lea.vmem [#allocation5], 50
    %v3581 = vld [vmem:[%s3580] ss:$2 sm:$0xf]
    %s3582 = scalar_lea.vmem [#allocation5], 51
    %v3583 = vld [vmem:[%s3582] ss:$2 sm:$0xf]
    %v3584 = vmax.f32 %v3577, %v3579
    %v3585 = vmax.f32 %v3581, %v3583
    %v3586 = vmax.f32 %v3584, %v3585
    %3587 = vst.msk [vmem:[#allocation3 + $0x13] sm:$0xf] %vm3552, %v3586
    %s3588 = scalar_lea.vmem [#allocation5], 60
    %v3589 = vld [vmem:[%s3588] ss:$2 sm:$0xf]
    %s3590 = scalar_lea.vmem [#allocation5], 61
    %v3591 = vld [vmem:[%s3590] ss:$2 sm:$0xf]
    %s3592 = scalar_lea.vmem [#allocation5], 70
    %v3593 = vld [vmem:[%s3592] ss:$2 sm:$0xf]
    %s3594 = scalar_lea.vmem [#allocation5], 71
    %v3595 = vld [vmem:[%s3594] ss:$2 sm:$0xf]
    %v3596 = vmax.f32 %v3589, %v3591
    %v3597 = vmax.f32 %v3593, %v3595
    %v3598 = vmax.f32 %v3596, %v3597
    %3599 = vst.msk [vmem:[#allocation3 + $0x19] sm:$0xf] %vm3552, %v3598
    %s3600 = scalar_lea.vmem [#allocation5], 100
    %v3601 = vld [vmem:[%s3600] ss:$2 sm:$0xf]
    %s3602 = scalar_lea.vmem [#allocation5], 101
    %v3603 = vld [vmem:[%s3602] ss:$2 sm:$0xf]
    %s3604 = scalar_lea.vmem [#allocation5], 110
    %v3605 = vld [vmem:[%s3604] ss:$2 sm:$0xf]
    %s3606 = scalar_lea.vmem [#allocation5], 111
    %v3607 = vld [vmem:[%s3606] ss:$2 sm:$0xf]
    %v3608 = vmax.f32 %v3601, %v3603
    %v3609 = vmax.f32 %v3605, %v3607
    %v3610 = vmax.f32 %v3608, %v3609
    %3611 = vst.msk [vmem:[#allocation3 + $0x2b] sm:$0xf] %vm3552, %v3610
    %s3612 = scalar_lea.vmem [#allocation5], 120
    %v3613 = vld [vmem:[%s3612] ss:$2 sm:$0xf]
    %s3614 = scalar_lea.vmem [#allocation5], 121
    %v3615 = vld [vmem:[%s3614] ss:$2 sm:$0xf]
    %s3616 = scalar_lea.vmem [#allocation5], 130
    %v3617 = vld [vmem:[%s3616] ss:$2 sm:$0xf]
    %s3618 = scalar_lea.vmem [#allocation5], 131
    %v3619 = vld [vmem:[%s3618] ss:$2 sm:$0xf]
    %v3620 = vmax.f32 %v3613, %v3615
    %v3621 = vmax.f32 %v3617, %v3619
    %v3622 = vmax.f32 %v3620, %v3621
    %3623 = vst.msk [vmem:[#allocation3 + $0x31] sm:$0xf] %vm3552, %v3622
    %s3624 = scalar_lea.vmem [#allocation5], 140
    %v3625 = vld [vmem:[%s3624] ss:$2 sm:$0xf]
    %s3626 = scalar_lea.vmem [#allocation5], 141
    %v3627 = vld [vmem:[%s3626] ss:$2 sm:$0xf]
    %s3628 = scalar_lea.vmem [#allocation5], 150
    %v3629 = vld [vmem:[%s3628] ss:$2 sm:$0xf]
    %s3630 = scalar_lea.vmem [#allocation5], 151
    %v3631 = vld [vmem:[%s3630] ss:$2 sm:$0xf]
    %v3632 = vmax.f32 %v3625, %v3627
    %v3633 = vmax.f32 %v3629, %v3631
    %v3634 = vmax.f32 %v3632, %v3633
    %3635 = vst.msk [vmem:[#allocation3 + $0x37] sm:$0xf] %vm3552, %v3634
    %v3636 = vld [vmem:[%s633] ss:$2 sm:$0xf]
    %v3637 = vld [vmem:[%s635] ss:$2 sm:$0xf]
    %s3638 = scalar_lea.vmem [#allocation5], 170
    %v3639 = vld [vmem:[%s3638] ss:$2 sm:$0xf]
    %s3640 = scalar_lea.vmem [#allocation5], 171
    %v3641 = vld [vmem:[%s3640] ss:$2 sm:$0xf]
    %v3642 = vmax.f32 %v3636, %v3637
    %v3643 = vmax.f32 %v3639, %v3641
    %v3644 = vmax.f32 %v3642, %v3643
    %3645 = vst.msk [vmem:[#allocation3 + $0x3d] sm:$0xf] %vm3552, %v3644
    %v3646 = vld [vmem:[%s8] sm:$0x1]
    %v3647 = vld [vmem:[%s9] sm:$0x1]
    %v3648 = vld [vmem:[#allocation3] sm:$0xff]
    %v3649 = vld [vmem:[#allocation3 + $0x8] sm:$0xff]
    %v3650 = vld [vmem:[#allocation3 + $0x10] sm:$0xff]
    %v3651 = vld [vmem:[#allocation3 + $0x18] sm:$0xff]
    %v3652 = vld [vmem:[#allocation3 + $0x20] sm:$0xff]
    %v3653 = vld [vmem:[#allocation3 + $0x28] sm:$0xff]
    %v3654 = vld [vmem:[#allocation3 + $0x30] sm:$0xff]
    %v3655 = vld [vmem:[#allocation3 + $0x38] sm:$0xf]
    %v3656 = vpack.c.bf16 %v3649, %v3648
    %v3657 = vpack.c.bf16 %v3651, %v3650
    %v3658 = vpack.c.bf16 %v3653, %v3652
    %v3659 = vpack.c.bf16 %v3655, %v3654
    %v3660 = vld [vmem:[%s7] sm:$0xf]
    %v3661 = vld [vmem:[%s7 + $0x4] sm:$0xf]
    %v3662 = vld [vmem:[%s7 + $0x8] sm:$0xf]
    %v3663 = vld [vmem:[%s7 + $0xc] sm:$0xf]
    %v3664 = vld [vmem:[%s7 + $0x10] sm:$0xf]
    %v3665 = vld [vmem:[%s7 + $0x14] sm:$0xf]
    %v3666 = vld [vmem:[%s7 + $0x18] sm:$0xf]
    %v3667 = vld [vmem:[%s7 + $0x1c] sm:$0xf]
    %v3668 = vld [vmem:[#allocation3 + $0x1] sm:$0xff]
    %v3669 = vld [vmem:[#allocation3 + $0x9] sm:$0xff]
    %v3670 = vld [vmem:[#allocation3 + $0x11] sm:$0xff]
    %v3671 = vld [vmem:[#allocation3 + $0x19] sm:$0xff]
    %v3672 = vld [vmem:[#allocation3 + $0x21] sm:$0xff]
    %v3673 = vld [vmem:[#allocation3 + $0x29] sm:$0xff]
    %v3674 = vld [vmem:[#allocation3 + $0x31] sm:$0xff]
    %v3675 = vld [vmem:[#allocation3 + $0x39] sm:$0xf]
    %v3676 = vpack.c.bf16 %v3669, %v3668
    %v3677 = vpack.c.bf16 %v3671, %v3670
    %v3678 = vpack.c.bf16 %v3673, %v3672
    %v3679 = vpack.c.bf16 %v3675, %v3674
    %s3680 = scalar_lea.vmem %s7, 32
    %v3681 = vld [vmem:[%s3680] sm:$0xf]
    %v3682 = vld [vmem:[%s3680 + $0x4] sm:$0xf]
    %v3683 = vld [vmem:[%s3680 + $0x8] sm:$0xf]
    %v3684 = vld [vmem:[%s3680 + $0xc] sm:$0xf]
    %v3685 = vld [vmem:[%s3680 + $0x10] sm:$0xf]
    %v3686 = vld [vmem:[%s3680 + $0x14] sm:$0xf]
    %v3687 = vld [vmem:[%s3680 + $0x18] sm:$0xf]
    %v3688 = vld [vmem:[%s3680 + $0x1c] sm:$0xf]
    %v3697 = vunpack.c.l.b16 %v3681
    %v3698 = vunpack.c.l.b16 %v3682
    %v3699 = vunpack.c.l.b16 %v3683
    %v3700 = vunpack.c.l.b16 %v3684
    %v3701 = vunpack.c.l.b16 %v3685
    %v3702 = vunpack.c.l.b16 %v3686
    %v3703 = vunpack.c.l.b16 %v3687
    %v3704 = vunpack.c.l.b16 %v3688
    %v3705 = vpack.c.b16 %v3698, %v3697
    %v3706 = vpack.c.b16 %v3700, %v3699
    %v3707 = vpack.c.b16 %v3702, %v3701
    %v3708 = vpack.c.b16 %v3704, %v3703
    %v3714 = vsel %vm52, %v3676, 0
    %v3717 = vsel %vm52, %v3677, 0
    %v3720 = vsel %vm52, %v3678, 0
    %v3723 = vsel %vm52, %v3679, 0
    %3725 = vmatprep.subr.bf16.mxu0 0
    %3726 = vmatpush1.bf16.msra.mxu0 0
    %3727 = vmatprep.subr.bf16.mxu0 0
    %3728 = vmatpush1.bf16.msra.mxu0 0
    %3729 = vmatprep.subr.bf16.mxu0 0
    %3730 = vmatpush1.bf16.msra.mxu0 0
    %3731 = vmatprep.subr.bf16.mxu0 0
    %3732 = vmatpush1.bf16.msra.mxu0 0
    %3733 = vmatprep.subr.bf16.mxu0 0
    %3734 = vmatpush1.bf16.msra.mxu0 %v3708
    %3735 = vmatprep.subr.bf16.mxu0 0
    %3736 = vmatpush1.bf16.msra.mxu0 %v3707
    %3737 = vmatprep.subr.bf16.mxu0 0
    %3738 = vmatpush1.bf16.msra.mxu0 %v3706
    %3739 = vmatprep.subr.bf16.mxu0 0
    %3740 = vmatpush1.bf16.msra.mxu0 %v3705
    %3741 = vmatprep.subr.bf16.mxu0 0
    %3742 = vmatpush2.bf16.msra.mxu0 0
    %3743 = vmatprep.subr.bf16.mxu0 0
    %3744 = vmatpush2.bf16.msra.mxu0 0
    %3745 = vmatprep.subr.bf16.mxu0 0
    %3746 = vmatpush2.bf16.msra.mxu0 0
    %3747 = vmatprep.subr.bf16.mxu0 0
    %3748 = vmatpush2.bf16.msra.mxu0 0
    %3749 = vmatprep.subr.bf16.mxu0 0
    %3750 = vmatpush2.bf16.msra.mxu0 0
    %3751 = vmatprep.subr.bf16.mxu0 0
    %3752 = vmatpush2.bf16.msra.mxu0 0
    %3753 = vmatprep.subr.bf16.mxu0 0
    %3754 = vmatpush2.bf16.msra.mxu0 0
    %3755 = vmatprep.subr.bf16.mxu0 0
    %3756 = vmatpush2.bf16.msra.mxu0 0
    %3757 = vmatprep.mubr.bf16.mxu0 0
    %3758 = vmatmul.mubr.bf16.gmra.mxu0 %v3714
    %v3759 = vpop.f32.mrf.mxu0
    %v3760 = vadd.f32 0.0, %v3759
    %v3761 = vpop.f32.mrf.mxu0
    %v3762 = vpop.f32.mrf.mxu0
    %v3763 = vadd.f32 0.0, %v3762
    %v3764 = vpop.f32.mrf.mxu0
    %3765 = vmatprep.mubr.bf16.mxu0 0
    %3766 = vmatmul.mubr.bf16.gmra.mxu0 %v3717
    %v3767 = vpop.f32.mrf.mxu0
    %v3768 = vadd.f32 0.0, %v3767
    %v3769 = vpop.f32.mrf.mxu0
    %v3770 = vpop.f32.mrf.mxu0
    %v3771 = vadd.f32 0.0, %v3770
    %v3772 = vpop.f32.mrf.mxu0
    %3773 = vmatprep.mubr.bf16.mxu0 0
    %3774 = vmatmul.mubr.bf16.gmra.mxu0 %v3720
    %v3775 = vpop.f32.mrf.mxu0
    %v3776 = vadd.f32 0.0, %v3775
    %v3777 = vpop.f32.mrf.mxu0
    %v3778 = vpop.f32.mrf.mxu0
    %v3779 = vadd.f32 0.0, %v3778
    %v3780 = vpop.f32.mrf.mxu0
    %3781 = vmatprep.mubr.bf16.mxu0 0
    %3782 = vmatmul.mubr.bf16.gmra.mxu0 %v3723
    %v3783 = vpop.f32.mrf.mxu0
    %v3784 = vadd.f32 0.0, %v3783
    %v3785 = vpop.f32.mrf.mxu0
    %v3786 = vpop.f32.mrf.mxu0
    %v3787 = vadd.f32 0.0, %v3786
    %v3788 = vpop.f32.mrf.mxu0
    %3789 = vdwg.mxu0
    %v3798 = vunpack.c.l.b16 %v3660
    %v3799 = vunpack.c.l.b16 %v3661
    %v3800 = vunpack.c.l.b16 %v3662
    %v3801 = vunpack.c.l.b16 %v3663
    %v3802 = vunpack.c.l.b16 %v3664
    %v3803 = vunpack.c.l.b16 %v3665
    %v3804 = vunpack.c.l.b16 %v3666
    %v3805 = vunpack.c.l.b16 %v3667
    %v3806 = vpack.c.b16 %v3799, %v3798
    %v3807 = vpack.c.b16 %v3801, %v3800
    %v3808 = vpack.c.b16 %v3803, %v3802
    %v3809 = vpack.c.b16 %v3805, %v3804
    %v3815 = vsel %vm52, %v3656, 0
    %v3818 = vsel %vm52, %v3657, 0
    %v3821 = vsel %vm52, %v3658, 0
    %v3824 = vsel %vm52, %v3659, 0
    %3826 = vmatprep.subr.bf16.mxu0 0
    %3827 = vmatpush1.bf16.msra.mxu0 0
    %3828 = vmatprep.subr.bf16.mxu0 0
    %3829 = vmatpush1.bf16.msra.mxu0 0
    %3830 = vmatprep.subr.bf16.mxu0 0
    %3831 = vmatpush1.bf16.msra.mxu0 0
    %3832 = vmatprep.subr.bf16.mxu0 0
    %3833 = vmatpush1.bf16.msra.mxu0 0
    %3834 = vmatprep.subr.bf16.mxu0 0
    %3835 = vmatpush1.bf16.msra.mxu0 %v3809
    %3836 = vmatprep.subr.bf16.mxu0 0
    %3837 = vmatpush1.bf16.msra.mxu0 %v3808
    %3838 = vmatprep.subr.bf16.mxu0 0
    %3839 = vmatpush1.bf16.msra.mxu0 %v3807
    %3840 = vmatprep.subr.bf16.mxu0 0
    %3841 = vmatpush1.bf16.msra.mxu0 %v3806
    %3842 = vmatprep.subr.bf16.mxu0 0
    %3843 = vmatpush2.bf16.msra.mxu0 0
    %3844 = vmatprep.subr.bf16.mxu0 0
    %3845 = vmatpush2.bf16.msra.mxu0 0
    %3846 = vmatprep.subr.bf16.mxu0 0
    %3847 = vmatpush2.bf16.msra.mxu0 0
    %3848 = vmatprep.subr.bf16.mxu0 0
    %3849 = vmatpush2.bf16.msra.mxu0 0
    %3850 = vmatprep.subr.bf16.mxu0 0
    %3851 = vmatpush2.bf16.msra.mxu0 0
    %3852 = vmatprep.subr.bf16.mxu0 0
    %3853 = vmatpush2.bf16.msra.mxu0 0
    %3854 = vmatprep.subr.bf16.mxu0 0
    %3855 = vmatpush2.bf16.msra.mxu0 0
    %3856 = vmatprep.subr.bf16.mxu0 0
    %3857 = vmatpush2.bf16.msra.mxu0 0
    %3858 = vmatprep.mubr.bf16.mxu0 0
    %3859 = vmatmul.mubr.bf16.gmra.mxu0 %v3815
    %v3860 = vpop.f32.mrf.mxu0
    %v3861 = vadd.f32 %v3760, %v3860
    %v3862 = vpop.f32.mrf.mxu0
    %v3863 = vpop.f32.mrf.mxu0
    %v3864 = vadd.f32 %v3763, %v3863
    %v3865 = vpop.f32.mrf.mxu0
    %3866 = vmatprep.mubr.bf16.mxu0 0
    %3867 = vmatmul.mubr.bf16.gmra.mxu0 %v3818
    %v3868 = vpop.f32.mrf.mxu0
    %v3869 = vadd.f32 %v3768, %v3868
    %v3870 = vpop.f32.mrf.mxu0
    %v3871 = vpop.f32.mrf.mxu0
    %v3872 = vadd.f32 %v3771, %v3871
    %v3873 = vpop.f32.mrf.mxu0
    %3874 = vmatprep.mubr.bf16.mxu0 0
    %3875 = vmatmul.mubr.bf16.gmra.mxu0 %v3821
    %v3876 = vpop.f32.mrf.mxu0
    %v3877 = vadd.f32 %v3776, %v3876
    %v3878 = vpop.f32.mrf.mxu0
    %v3879 = vpop.f32.mrf.mxu0
    %v3880 = vadd.f32 %v3779, %v3879
    %v3881 = vpop.f32.mrf.mxu0
    %3882 = vmatprep.mubr.bf16.mxu0 0
    %3883 = vmatmul.mubr.bf16.gmra.mxu0 %v3824
    %v3884 = vpop.f32.mrf.mxu0
    %v3885 = vadd.f32 %v3784, %v3884
    %v3886 = vpop.f32.mrf.mxu0
    %v3887 = vpop.f32.mrf.mxu0
    %v3888 = vadd.f32 %v3787, %v3887
    %v3889 = vpop.f32.mrf.mxu0
    %3890 = vdwg.mxu0
    %v3891 = vld [vmem:[#allocation3 + $0x2] sm:$0xff]
    %v3892 = vld [vmem:[#allocation3 + $0xa] sm:$0xff]
    %v3893 = vld [vmem:[#allocation3 + $0x12] sm:$0xff]
    %v3894 = vld [vmem:[#allocation3 + $0x1a] sm:$0xff]
    %v3895 = vld [vmem:[#allocation3 + $0x22] sm:$0xff]
    %v3896 = vld [vmem:[#allocation3 + $0x2a] sm:$0xff]
    %v3897 = vld [vmem:[#allocation3 + $0x32] sm:$0xff]
    %v3898 = vld [vmem:[#allocation3 + $0x3a] sm:$0xf]
    %v3899 = vpack.c.bf16 %v3892, %v3891
    %v3900 = vpack.c.bf16 %v3894, %v3893
    %v3901 = vpack.c.bf16 %v3896, %v3895
    %v3902 = vpack.c.bf16 %v3898, %v3897
    %s3903 = scalar_lea.vmem %s7, 64
    %v3904 = vld [vmem:[%s3903] sm:$0xf]
    %v3905 = vld [vmem:[%s3903 + $0x4] sm:$0xf]
    %v3906 = vld [vmem:[%s3903 + $0x8] sm:$0xf]
    %v3907 = vld [vmem:[%s3903 + $0xc] sm:$0xf]
    %v3908 = vld [vmem:[%s3903 + $0x10] sm:$0xf]
    %v3909 = vld [vmem:[%s3903 + $0x14] sm:$0xf]
    %v3910 = vld [vmem:[%s3903 + $0x18] sm:$0xf]
    %v3911 = vld [vmem:[%s3903 + $0x1c] sm:$0xf]
    %v3920 = vunpack.c.l.b16 %v3904
    %v3921 = vunpack.c.l.b16 %v3905
    %v3922 = vunpack.c.l.b16 %v3906
    %v3923 = vunpack.c.l.b16 %v3907
    %v3924 = vunpack.c.l.b16 %v3908
    %v3925 = vunpack.c.l.b16 %v3909
    %v3926 = vunpack.c.l.b16 %v3910
    %v3927 = vunpack.c.l.b16 %v3911
    %v3928 = vpack.c.b16 %v3921, %v3920
    %v3929 = vpack.c.b16 %v3923, %v3922
    %v3930 = vpack.c.b16 %v3925, %v3924
    %v3931 = vpack.c.b16 %v3927, %v3926
    %v3937 = vsel %vm52, %v3899, 0
    %v3940 = vsel %vm52, %v3900, 0
    %v3943 = vsel %vm52, %v3901, 0
    %v3946 = vsel %vm52, %v3902, 0
    %3948 = vmatprep.subr.bf16.mxu0 0
    %3949 = vmatpush1.bf16.msra.mxu0 0
    %3950 = vmatprep.subr.bf16.mxu0 0
    %3951 = vmatpush1.bf16.msra.mxu0 0
    %3952 = vmatprep.subr.bf16.mxu0 0
    %3953 = vmatpush1.bf16.msra.mxu0 0
    %3954 = vmatprep.subr.bf16.mxu0 0
    %3955 = vmatpush1.bf16.msra.mxu0 0
    %3956 = vmatprep.subr.bf16.mxu0 0
    %3957 = vmatpush1.bf16.msra.mxu0 %v3931
    %3958 = vmatprep.subr.bf16.mxu0 0
    %3959 = vmatpush1.bf16.msra.mxu0 %v3930
    %3960 = vmatprep.subr.bf16.mxu0 0
    %3961 = vmatpush1.bf16.msra.mxu0 %v3929
    %3962 = vmatprep.subr.bf16.mxu0 0
    %3963 = vmatpush1.bf16.msra.mxu0 %v3928
    %3964 = vmatprep.subr.bf16.mxu0 0
    %3965 = vmatpush2.bf16.msra.mxu0 0
    %3966 = vmatprep.subr.bf16.mxu0 0
    %3967 = vmatpush2.bf16.msra.mxu0 0
    %3968 = vmatprep.subr.bf16.mxu0 0
    %3969 = vmatpush2.bf16.msra.mxu0 0
    %3970 = vmatprep.subr.bf16.mxu0 0
    %3971 = vmatpush2.bf16.msra.mxu0 0
    %3972 = vmatprep.subr.bf16.mxu0 0
    %3973 = vmatpush2.bf16.msra.mxu0 0
    %3974 = vmatprep.subr.bf16.mxu0 0
    %3975 = vmatpush2.bf16.msra.mxu0 0
    %3976 = vmatprep.subr.bf16.mxu0 0
    %3977 = vmatpush2.bf16.msra.mxu0 0
    %3978 = vmatprep.subr.bf16.mxu0 0
    %3979 = vmatpush2.bf16.msra.mxu0 0
    %3980 = vmatprep.mubr.bf16.mxu0 0
    %3981 = vmatmul.mubr.bf16.gmra.mxu0 %v3937
    %v3982 = vpop.f32.mrf.mxu0
    %v3983 = vadd.f32 0.0, %v3982
    %v3984 = vpop.f32.mrf.mxu0
    %v3985 = vpop.f32.mrf.mxu0
    %v3986 = vadd.f32 0.0, %v3985
    %v3987 = vpop.f32.mrf.mxu0
    %3988 = vmatprep.mubr.bf16.mxu0 0
    %3989 = vmatmul.mubr.bf16.gmra.mxu0 %v3940
    %v3990 = vpop.f32.mrf.mxu0
    %v3991 = vadd.f32 0.0, %v3990
    %v3992 = vpop.f32.mrf.mxu0
    %v3993 = vpop.f32.mrf.mxu0
    %v3994 = vadd.f32 0.0, %v3993
    %v3995 = vpop.f32.mrf.mxu0
    %3996 = vmatprep.mubr.bf16.mxu0 0
    %3997 = vmatmul.mubr.bf16.gmra.mxu0 %v3943
    %v3998 = vpop.f32.mrf.mxu0
    %v3999 = vadd.f32 0.0, %v3998
    %v4000 = vpop.f32.mrf.mxu0
    %v4001 = vpop.f32.mrf.mxu0
    %v4002 = vadd.f32 0.0, %v4001
    %v4003 = vpop.f32.mrf.mxu0
    %4004 = vmatprep.mubr.bf16.mxu0 0
    %4005 = vmatmul.mubr.bf16.gmra.mxu0 %v3946
    %v4006 = vpop.f32.mrf.mxu0
    %v4007 = vadd.f32 0.0, %v4006
    %v4008 = vpop.f32.mrf.mxu0
    %v4009 = vpop.f32.mrf.mxu0
    %v4010 = vadd.f32 0.0, %v4009
    %v4011 = vpop.f32.mrf.mxu0
    %4012 = vdwg.mxu0
    %v4013 = vadd.f32 %v3861, %v3983
    %v4014 = vadd.f32 %v3864, %v3986
    %v4015 = vadd.f32 %v3869, %v3991
    %v4016 = vadd.f32 %v3872, %v3994
    %v4017 = vadd.f32 %v3877, %v3999
    %v4018 = vadd.f32 %v3880, %v4002
    %v4019 = vadd.f32 %v3885, %v4007
    %v4020 = vadd.f32 %v3888, %v4010
    %v4021 = vld [vmem:[#allocation3 + $0x6] sm:$0xff]
    %v4022 = vld [vmem:[#allocation3 + $0xe] sm:$0xff]
    %v4023 = vld [vmem:[#allocation3 + $0x16] sm:$0xff]
    %v4024 = vld [vmem:[#allocation3 + $0x1e] sm:$0xff]
    %v4025 = vld [vmem:[#allocation3 + $0x26] sm:$0xff]
    %v4026 = vld [vmem:[#allocation3 + $0x2e] sm:$0xff]
    %v4027 = vld [vmem:[#allocation3 + $0x36] sm:$0xff]
    %v4028 = vld [vmem:[#allocation3 + $0x3e] sm:$0xf]
    %v4029 = vpack.c.bf16 %v4022, %v4021
    %v4030 = vpack.c.bf16 %v4024, %v4023
    %v4031 = vpack.c.bf16 %v4026, %v4025
    %v4032 = vpack.c.bf16 %v4028, %v4027
    %s4033 = scalar_lea.vmem %s7, 96
    %v4034 = vld [vmem:[%s4033] sm:$0xf]
    %v4035 = vld [vmem:[%s4033 + $0x4] sm:$0xf]
    %v4036 = vld [vmem:[%s4033 + $0x8] sm:$0xf]
    %v4037 = vld [vmem:[%s4033 + $0xc] sm:$0xf]
    %v4038 = vld [vmem:[%s4033 + $0x10] sm:$0xf]
    %v4039 = vld [vmem:[%s4033 + $0x14] sm:$0xf]
    %v4040 = vld [vmem:[%s4033 + $0x18] sm:$0xf]
    %v4041 = vld [vmem:[%s4033 + $0x1c] sm:$0xf]
    %v4050 = vunpack.c.l.b16 %v4034
    %v4051 = vunpack.c.l.b16 %v4035
    %v4052 = vunpack.c.l.b16 %v4036
    %v4053 = vunpack.c.l.b16 %v4037
    %v4054 = vunpack.c.l.b16 %v4038
    %v4055 = vunpack.c.l.b16 %v4039
    %v4056 = vunpack.c.l.b16 %v4040
    %v4057 = vunpack.c.l.b16 %v4041
    %v4058 = vpack.c.b16 %v4051, %v4050
    %v4059 = vpack.c.b16 %v4053, %v4052
    %v4060 = vpack.c.b16 %v4055, %v4054
    %v4061 = vpack.c.b16 %v4057, %v4056
    %v4067 = vsel %vm52, %v4029, 0
    %v4070 = vsel %vm52, %v4030, 0
    %v4073 = vsel %vm52, %v4031, 0
    %v4076 = vsel %vm52, %v4032, 0
    %4078 = vmatprep.subr.bf16.mxu0 0
    %4079 = vmatpush1.bf16.msra.mxu0 0
    %4080 = vmatprep.subr.bf16.mxu0 0
    %4081 = vmatpush1.bf16.msra.mxu0 0
    %4082 = vmatprep.subr.bf16.mxu0 0
    %4083 = vmatpush1.bf16.msra.mxu0 0
    %4084 = vmatprep.subr.bf16.mxu0 0
    %4085 = vmatpush1.bf16.msra.mxu0 0
    %4086 = vmatprep.subr.bf16.mxu0 0
    %4087 = vmatpush1.bf16.msra.mxu0 %v4061
    %4088 = vmatprep.subr.bf16.mxu0 0
    %4089 = vmatpush1.bf16.msra.mxu0 %v4060
    %4090 = vmatprep.subr.bf16.mxu0 0
    %4091 = vmatpush1.bf16.msra.mxu0 %v4059
    %4092 = vmatprep.subr.bf16.mxu0 0
    %4093 = vmatpush1.bf16.msra.mxu0 %v4058
    %4094 = vmatprep.subr.bf16.mxu0 0
    %4095 = vmatpush2.bf16.msra.mxu0 0
    %4096 = vmatprep.subr.bf16.mxu0 0
    %4097 = vmatpush2.bf16.msra.mxu0 0
    %4098 = vmatprep.subr.bf16.mxu0 0
    %4099 = vmatpush2.bf16.msra.mxu0 0
    %4100 = vmatprep.subr.bf16.mxu0 0
    %4101 = vmatpush2.bf16.msra.mxu0 0
    %4102 = vmatprep.subr.bf16.mxu0 0
    %4103 = vmatpush2.bf16.msra.mxu0 0
    %4104 = vmatprep.subr.bf16.mxu0 0
    %4105 = vmatpush2.bf16.msra.mxu0 0
    %4106 = vmatprep.subr.bf16.mxu0 0
    %4107 = vmatpush2.bf16.msra.mxu0 0
    %4108 = vmatprep.subr.bf16.mxu0 0
    %4109 = vmatpush2.bf16.msra.mxu0 0
    %4110 = vmatprep.mubr.bf16.mxu0 0
    %4111 = vmatmul.mubr.bf16.gmra.mxu0 %v4067
    %v4112 = vpop.f32.mrf.mxu0
    %v4113 = vadd.f32 0.0, %v4112
    %v4114 = vpop.f32.mrf.mxu0
    %v4115 = vpop.f32.mrf.mxu0
    %v4116 = vadd.f32 0.0, %v4115
    %v4117 = vpop.f32.mrf.mxu0
    %4118 = vmatprep.mubr.bf16.mxu0 0
    %4119 = vmatmul.mubr.bf16.gmra.mxu0 %v4070
    %v4120 = vpop.f32.mrf.mxu0
    %v4121 = vadd.f32 0.0, %v4120
    %v4122 = vpop.f32.mrf.mxu0
    %v4123 = vpop.f32.mrf.mxu0
    %v4124 = vadd.f32 0.0, %v4123
    %v4125 = vpop.f32.mrf.mxu0
    %4126 = vmatprep.mubr.bf16.mxu0 0
    %4127 = vmatmul.mubr.bf16.gmra.mxu0 %v4073
    %v4128 = vpop.f32.mrf.mxu0
    %v4129 = vadd.f32 0.0, %v4128
    %v4130 = vpop.f32.mrf.mxu0
    %v4131 = vpop.f32.mrf.mxu0
    %v4132 = vadd.f32 0.0, %v4131
    %v4133 = vpop.f32.mrf.mxu0
    %4134 = vmatprep.mubr.bf16.mxu0 0
    %4135 = vmatmul.mubr.bf16.gmra.mxu0 %v4076
    %v4136 = vpop.f32.mrf.mxu0
    %v4137 = vadd.f32 0.0, %v4136
    %v4138 = vpop.f32.mrf.mxu0
    %v4139 = vpop.f32.mrf.mxu0
    %v4140 = vadd.f32 0.0, %v4139
    %v4141 = vpop.f32.mrf.mxu0
    %4142 = vdwg.mxu0
    %v4143 = vadd.f32 %v4013, %v4113
    %v4144 = vadd.f32 %v4014, %v4116
    %v4145 = vadd.f32 %v4015, %v4121
    %v4146 = vadd.f32 %v4016, %v4124
    %v4147 = vadd.f32 %v4017, %v4129
    %v4148 = vadd.f32 %v4018, %v4132
    %v4149 = vadd.f32 %v4019, %v4137
    %v4150 = vadd.f32 %v4020, %v4140
    %v4151 = vld [vmem:[#allocation3 + $0x7] sm:$0xff]
    %v4152 = vld [vmem:[#allocation3 + $0xf] sm:$0xff]
    %v4153 = vld [vmem:[#allocation3 + $0x17] sm:$0xff]
    %v4154 = vld [vmem:[#allocation3 + $0x1f] sm:$0xff]
    %v4155 = vld [vmem:[#allocation3 + $0x27] sm:$0xff]
    %v4156 = vld [vmem:[#allocation3 + $0x2f] sm:$0xff]
    %v4157 = vld [vmem:[#allocation3 + $0x37] sm:$0xff]
    %v4158 = vld [vmem:[#allocation3 + $0x3f] sm:$0xf]
    %v4159 = vpack.c.bf16 %v4152, %v4151
    %v4160 = vpack.c.bf16 %v4154, %v4153
    %v4161 = vpack.c.bf16 %v4156, %v4155
    %v4162 = vpack.c.bf16 %v4158, %v4157
    %s4163 = scalar_lea.vmem %s7, 128
    %v4164 = vld [vmem:[%s4163] sm:$0xf]
    %v4165 = vld [vmem:[%s4163 + $0x4] sm:$0xf]
    %v4166 = vld [vmem:[%s4163 + $0x8] sm:$0xf]
    %v4167 = vld [vmem:[%s4163 + $0xc] sm:$0xf]
    %v4168 = vld [vmem:[%s4163 + $0x10] sm:$0xf]
    %v4169 = vld [vmem:[%s4163 + $0x14] sm:$0xf]
    %v4170 = vld [vmem:[%s4163 + $0x18] sm:$0xf]
    %v4171 = vld [vmem:[%s4163 + $0x1c] sm:$0xf]
    %v4180 = vunpack.c.l.b16 %v4164
    %v4181 = vunpack.c.l.b16 %v4165
    %v4182 = vunpack.c.l.b16 %v4166
    %v4183 = vunpack.c.l.b16 %v4167
    %v4184 = vunpack.c.l.b16 %v4168
    %v4185 = vunpack.c.l.b16 %v4169
    %v4186 = vunpack.c.l.b16 %v4170
    %v4187 = vunpack.c.l.b16 %v4171
    %v4188 = vpack.c.b16 %v4181, %v4180
    %v4189 = vpack.c.b16 %v4183, %v4182
    %v4190 = vpack.c.b16 %v4185, %v4184
    %v4191 = vpack.c.b16 %v4187, %v4186
    %v4197 = vsel %vm52, %v4159, 0
    %v4200 = vsel %vm52, %v4160, 0
    %v4203 = vsel %vm52, %v4161, 0
    %v4206 = vsel %vm52, %v4162, 0
    %4208 = vmatprep.subr.bf16.mxu0 0
    %4209 = vmatpush1.bf16.msra.mxu0 0
    %4210 = vmatprep.subr.bf16.mxu0 0
    %4211 = vmatpush1.bf16.msra.mxu0 0
    %4212 = vmatprep.subr.bf16.mxu0 0
    %4213 = vmatpush1.bf16.msra.mxu0 0
    %4214 = vmatprep.subr.bf16.mxu0 0
    %4215 = vmatpush1.bf16.msra.mxu0 0
    %4216 = vmatprep.subr.bf16.mxu0 0
    %4217 = vmatpush1.bf16.msra.mxu0 %v4191
    %4218 = vmatprep.subr.bf16.mxu0 0
    %4219 = vmatpush1.bf16.msra.mxu0 %v4190
    %4220 = vmatprep.subr.bf16.mxu0 0
    %4221 = vmatpush1.bf16.msra.mxu0 %v4189
    %4222 = vmatprep.subr.bf16.mxu0 0
    %4223 = vmatpush1.bf16.msra.mxu0 %v4188
    %4224 = vmatprep.subr.bf16.mxu0 0
    %4225 = vmatpush2.bf16.msra.mxu0 0
    %4226 = vmatprep.subr.bf16.mxu0 0
    %4227 = vmatpush2.bf16.msra.mxu0 0
    %4228 = vmatprep.subr.bf16.mxu0 0
    %4229 = vmatpush2.bf16.msra.mxu0 0
    %4230 = vmatprep.subr.bf16.mxu0 0
    %4231 = vmatpush2.bf16.msra.mxu0 0
    %4232 = vmatprep.subr.bf16.mxu0 0
    %4233 = vmatpush2.bf16.msra.mxu0 0
    %4234 = vmatprep.subr.bf16.mxu0 0
    %4235 = vmatpush2.bf16.msra.mxu0 0
    %4236 = vmatprep.subr.bf16.mxu0 0
    %4237 = vmatpush2.bf16.msra.mxu0 0
    %4238 = vmatprep.subr.bf16.mxu0 0
    %4239 = vmatpush2.bf16.msra.mxu0 0
    %4240 = vmatprep.mubr.bf16.mxu0 0
    %4241 = vmatmul.mubr.bf16.gmra.mxu0 %v4197
    %v4242 = vpop.f32.mrf.mxu0
    %v4243 = vadd.f32 0.0, %v4242
    %v4244 = vpop.f32.mrf.mxu0
    %v4245 = vpop.f32.mrf.mxu0
    %v4246 = vadd.f32 0.0, %v4245
    %v4247 = vpop.f32.mrf.mxu0
    %4248 = vmatprep.mubr.bf16.mxu0 0
    %4249 = vmatmul.mubr.bf16.gmra.mxu0 %v4200
    %v4250 = vpop.f32.mrf.mxu0
    %v4251 = vadd.f32 0.0, %v4250
    %v4252 = vpop.f32.mrf.mxu0
    %v4253 = vpop.f32.mrf.mxu0
    %v4254 = vadd.f32 0.0, %v4253
    %v4255 = vpop.f32.mrf.mxu0
    %4256 = vmatprep.mubr.bf16.mxu0 0
    %4257 = vmatmul.mubr.bf16.gmra.mxu0 %v4203
    %v4258 = vpop.f32.mrf.mxu0
    %v4259 = vadd.f32 0.0, %v4258
    %v4260 = vpop.f32.mrf.mxu0
    %v4261 = vpop.f32.mrf.mxu0
    %v4262 = vadd.f32 0.0, %v4261
    %v4263 = vpop.f32.mrf.mxu0
    %4264 = vmatprep.mubr.bf16.mxu0 0
    %4265 = vmatmul.mubr.bf16.gmra.mxu0 %v4206
    %v4266 = vpop.f32.mrf.mxu0
    %v4267 = vadd.f32 0.0, %v4266
    %v4268 = vpop.f32.mrf.mxu0
    %v4269 = vpop.f32.mrf.mxu0
    %v4270 = vadd.f32 0.0, %v4269
    %v4271 = vpop.f32.mrf.mxu0
    %4272 = vdwg.mxu0
    %v4273 = vadd.f32 %v4143, %v4243
    %v4274 = vadd.f32 %v4144, %v4246
    %v4275 = vadd.f32 %v4145, %v4251
    %v4276 = vadd.f32 %v4146, %v4254
    %v4277 = vadd.f32 %v4147, %v4259
    %v4278 = vadd.f32 %v4148, %v4262
    %v4279 = vadd.f32 %v4149, %v4267
    %v4280 = vadd.f32 %v4150, %v4270
    %v4281 = vld [vmem:[#allocation3 + $0x8] sm:$0xff]
    %v4282 = vld [vmem:[#allocation3 + $0x10] sm:$0xff]
    %v4283 = vld [vmem:[#allocation3 + $0x18] sm:$0xff]
    %v4284 = vld [vmem:[#allocation3 + $0x20] sm:$0xff]
    %v4285 = vld [vmem:[#allocation3 + $0x28] sm:$0xff]
    %v4286 = vld [vmem:[#allocation3 + $0x30] sm:$0xff]
    %v4287 = vld [vmem:[#allocation3 + $0x38] sm:$0xff]
    %v4288 = vld [vmem:[#allocation3 + $0x40] sm:$0xf]
    %v4289 = vpack.c.bf16 %v4282, %v4281
    %v4290 = vpack.c.bf16 %v4284, %v4283
    %v4291 = vpack.c.bf16 %v4286, %v4285
    %v4292 = vpack.c.bf16 %v4288, %v4287
    %s4293 = scalar_lea.vmem %s7, 160
    %v4294 = vld [vmem:[%s4293] sm:$0xf]
    %v4295 = vld [vmem:[%s4293 + $0x4] sm:$0xf]
    %v4296 = vld [vmem:[%s4293 + $0x8] sm:$0xf]
    %v4297 = vld [vmem:[%s4293 + $0xc] sm:$0xf]
    %v4298 = vld [vmem:[%s4293 + $0x10] sm:$0xf]
    %v4299 = vld [vmem:[%s4293 + $0x14] sm:$0xf]
    %v4300 = vld [vmem:[%s4293 + $0x18] sm:$0xf]
    %v4301 = vld [vmem:[%s4293 + $0x1c] sm:$0xf]
    %v4310 = vunpack.c.l.b16 %v4294
    %v4311 = vunpack.c.l.b16 %v4295
    %v4312 = vunpack.c.l.b16 %v4296
    %v4313 = vunpack.c.l.b16 %v4297
    %v4314 = vunpack.c.l.b16 %v4298
    %v4315 = vunpack.c.l.b16 %v4299
    %v4316 = vunpack.c.l.b16 %v4300
    %v4317 = vunpack.c.l.b16 %v4301
    %v4318 = vpack.c.b16 %v4311, %v4310
    %v4319 = vpack.c.b16 %v4313, %v4312
    %v4320 = vpack.c.b16 %v4315, %v4314
    %v4321 = vpack.c.b16 %v4317, %v4316
    %v4327 = vsel %vm52, %v4289, 0
    %v4330 = vsel %vm52, %v4290, 0
    %v4333 = vsel %vm52, %v4291, 0
    %v4336 = vsel %vm52, %v4292, 0
    %4338 = vmatprep.subr.bf16.mxu0 0
    %4339 = vmatpush1.bf16.msra.mxu0 0
    %4340 = vmatprep.subr.bf16.mxu0 0
    %4341 = vmatpush1.bf16.msra.mxu0 0
    %4342 = vmatprep.subr.bf16.mxu0 0
    %4343 = vmatpush1.bf16.msra.mxu0 0
    %4344 = vmatprep.subr.bf16.mxu0 0
    %4345 = vmatpush1.bf16.msra.mxu0 0
    %4346 = vmatprep.subr.bf16.mxu0 0
    %4347 = vmatpush1.bf16.msra.mxu0 %v4321
    %4348 = vmatprep.subr.bf16.mxu0 0
    %4349 = vmatpush1.bf16.msra.mxu0 %v4320
    %4350 = vmatprep.subr.bf16.mxu0 0
    %4351 = vmatpush1.bf16.msra.mxu0 %v4319
    %4352 = vmatprep.subr.bf16.mxu0 0
    %4353 = vmatpush1.bf16.msra.mxu0 %v4318
    %4354 = vmatprep.subr.bf16.mxu0 0
    %4355 = vmatpush2.bf16.msra.mxu0 0
    %4356 = vmatprep.subr.bf16.mxu0 0
    %4357 = vmatpush2.bf16.msra.mxu0 0
    %4358 = vmatprep.subr.bf16.mxu0 0
    %4359 = vmatpush2.bf16.msra.mxu0 0
    %4360 = vmatprep.subr.bf16.mxu0 0
    %4361 = vmatpush2.bf16.msra.mxu0 0
    %4362 = vmatprep.subr.bf16.mxu0 0
    %4363 = vmatpush2.bf16.msra.mxu0 0
    %4364 = vmatprep.subr.bf16.mxu0 0
    %4365 = vmatpush2.bf16.msra.mxu0 0
    %4366 = vmatprep.subr.bf16.mxu0 0
    %4367 = vmatpush2.bf16.msra.mxu0 0
    %4368 = vmatprep.subr.bf16.mxu0 0
    %4369 = vmatpush2.bf16.msra.mxu0 0
    %4370 = vmatprep.mubr.bf16.mxu0 0
    %4371 = vmatmul.mubr.bf16.gmra.mxu0 %v4327
    %v4372 = vpop.f32.mrf.mxu0
    %v4373 = vadd.f32 0.0, %v4372
    %v4374 = vpop.f32.mrf.mxu0
    %v4375 = vpop.f32.mrf.mxu0
    %v4376 = vadd.f32 0.0, %v4375
    %v4377 = vpop.f32.mrf.mxu0
    %4378 = vmatprep.mubr.bf16.mxu0 0
    %4379 = vmatmul.mubr.bf16.gmra.mxu0 %v4330
    %v4380 = vpop.f32.mrf.mxu0
    %v4381 = vadd.f32 0.0, %v4380
    %v4382 = vpop.f32.mrf.mxu0
    %v4383 = vpop.f32.mrf.mxu0
    %v4384 = vadd.f32 0.0, %v4383
    %v4385 = vpop.f32.mrf.mxu0
    %4386 = vmatprep.mubr.bf16.mxu0 0
    %4387 = vmatmul.mubr.bf16.gmra.mxu0 %v4333
    %v4388 = vpop.f32.mrf.mxu0
    %v4389 = vadd.f32 0.0, %v4388
    %v4390 = vpop.f32.mrf.mxu0
    %v4391 = vpop.f32.mrf.mxu0
    %v4392 = vadd.f32 0.0, %v4391
    %v4393 = vpop.f32.mrf.mxu0
    %4394 = vmatprep.mubr.bf16.mxu0 0
    %4395 = vmatmul.mubr.bf16.gmra.mxu0 %v4336
    %v4396 = vpop.f32.mrf.mxu0
    %v4397 = vadd.f32 0.0, %v4396
    %v4398 = vpop.f32.mrf.mxu0
    %v4399 = vpop.f32.mrf.mxu0
    %v4400 = vadd.f32 0.0, %v4399
    %v4401 = vpop.f32.mrf.mxu0
    %4402 = vdwg.mxu0
    %v4403 = vadd.f32 %v4273, %v4373
    %v4404 = vadd.f32 %v4274, %v4376
    %v4405 = vadd.f32 %v4275, %v4381
    %v4406 = vadd.f32 %v4276, %v4384
    %v4407 = vadd.f32 %v4277, %v4389
    %v4408 = vadd.f32 %v4278, %v4392
    %v4409 = vadd.f32 %v4279, %v4397
    %v4410 = vadd.f32 %v4280, %v4400
    %v4411 = vld [vmem:[#allocation3 + $0xc] sm:$0xff]
    %v4412 = vld [vmem:[#allocation3 + $0x14] sm:$0xff]
    %v4413 = vld [vmem:[#allocation3 + $0x1c] sm:$0xff]
    %v4414 = vld [vmem:[#allocation3 + $0x24] sm:$0xff]
    %v4415 = vld [vmem:[#allocation3 + $0x2c] sm:$0xff]
    %v4416 = vld [vmem:[#allocation3 + $0x34] sm:$0xff]
    %v4417 = vld [vmem:[#allocation3 + $0x3c] sm:$0xff]
    %v4418 = vld [vmem:[#allocation3 + $0x44] sm:$0xf]
    %v4419 = vpack.c.bf16 %v4412, %v4411
    %v4420 = vpack.c.bf16 %v4414, %v4413
    %v4421 = vpack.c.bf16 %v4416, %v4415
    %v4422 = vpack.c.bf16 %v4418, %v4417
    %s4423 = scalar_lea.vmem %s7, 192
    %v4424 = vld [vmem:[%s4423] sm:$0xf]
    %v4425 = vld [vmem:[%s4423 + $0x4] sm:$0xf]
    %v4426 = vld [vmem:[%s4423 + $0x8] sm:$0xf]
    %v4427 = vld [vmem:[%s4423 + $0xc] sm:$0xf]
    %v4428 = vld [vmem:[%s4423 + $0x10] sm:$0xf]
    %v4429 = vld [vmem:[%s4423 + $0x14] sm:$0xf]
    %v4430 = vld [vmem:[%s4423 + $0x18] sm:$0xf]
    %v4431 = vld [vmem:[%s4423 + $0x1c] sm:$0xf]
    %v4440 = vunpack.c.l.b16 %v4424
    %v4441 = vunpack.c.l.b16 %v4425
    %v4442 = vunpack.c.l.b16 %v4426
    %v4443 = vunpack.c.l.b16 %v4427
    %v4444 = vunpack.c.l.b16 %v4428
    %v4445 = vunpack.c.l.b16 %v4429
    %v4446 = vunpack.c.l.b16 %v4430
    %v4447 = vunpack.c.l.b16 %v4431
    %v4448 = vpack.c.b16 %v4441, %v4440
    %v4449 = vpack.c.b16 %v4443, %v4442
    %v4450 = vpack.c.b16 %v4445, %v4444
    %v4451 = vpack.c.b16 %v4447, %v4446
    %v4457 = vsel %vm52, %v4419, 0
    %v4460 = vsel %vm52, %v4420, 0
    %v4463 = vsel %vm52, %v4421, 0
    %v4466 = vsel %vm52, %v4422, 0
    %4468 = vmatprep.subr.bf16.mxu0 0
    %4469 = vmatpush1.bf16.msra.mxu0 0
    %4470 = vmatprep.subr.bf16.mxu0 0
    %4471 = vmatpush1.bf16.msra.mxu0 0
    %4472 = vmatprep.subr.bf16.mxu0 0
    %4473 = vmatpush1.bf16.msra.mxu0 0
    %4474 = vmatprep.subr.bf16.mxu0 0
    %4475 = vmatpush1.bf16.msra.mxu0 0
    %4476 = vmatprep.subr.bf16.mxu0 0
    %4477 = vmatpush1.bf16.msra.mxu0 %v4451
    %4478 = vmatprep.subr.bf16.mxu0 0
    %4479 = vmatpush1.bf16.msra.mxu0 %v4450
    %4480 = vmatprep.subr.bf16.mxu0 0
    %4481 = vmatpush1.bf16.msra.mxu0 %v4449
    %4482 = vmatprep.subr.bf16.mxu0 0
    %4483 = vmatpush1.bf16.msra.mxu0 %v4448
    %4484 = vmatprep.subr.bf16.mxu0 0
    %4485 = vmatpush2.bf16.msra.mxu0 0
    %4486 = vmatprep.subr.bf16.mxu0 0
    %4487 = vmatpush2.bf16.msra.mxu0 0
    %4488 = vmatprep.subr.bf16.mxu0 0
    %4489 = vmatpush2.bf16.msra.mxu0 0
    %4490 = vmatprep.subr.bf16.mxu0 0
    %4491 = vmatpush2.bf16.msra.mxu0 0
    %4492 = vmatprep.subr.bf16.mxu0 0
    %4493 = vmatpush2.bf16.msra.mxu0 0
    %4494 = vmatprep.subr.bf16.mxu0 0
    %4495 = vmatpush2.bf16.msra.mxu0 0
    %4496 = vmatprep.subr.bf16.mxu0 0
    %4497 = vmatpush2.bf16.msra.mxu0 0
    %4498 = vmatprep.subr.bf16.mxu0 0
    %4499 = vmatpush2.bf16.msra.mxu0 0
    %4500 = vmatprep.mubr.bf16.mxu0 0
    %4501 = vmatmul.mubr.bf16.gmra.mxu0 %v4457
    %v4502 = vpop.f32.mrf.mxu0
    %v4503 = vadd.f32 0.0, %v4502
    %v4504 = vpop.f32.mrf.mxu0
    %v4505 = vpop.f32.mrf.mxu0
    %v4506 = vadd.f32 0.0, %v4505
    %v4507 = vpop.f32.mrf.mxu0
    %4508 = vmatprep.mubr.bf16.mxu0 0
    %4509 = vmatmul.mubr.bf16.gmra.mxu0 %v4460
    %v4510 = vpop.f32.mrf.mxu0
    %v4511 = vadd.f32 0.0, %v4510
    %v4512 = vpop.f32.mrf.mxu0
    %v4513 = vpop.f32.mrf.mxu0
    %v4514 = vadd.f32 0.0, %v4513
    %v4515 = vpop.f32.mrf.mxu0
    %4516 = vmatprep.mubr.bf16.mxu0 0
    %4517 = vmatmul.mubr.bf16.gmra.mxu0 %v4463
    %v4518 = vpop.f32.mrf.mxu0
    %v4519 = vadd.f32 0.0, %v4518
    %v4520 = vpop.f32.mrf.mxu0
    %v4521 = vpop.f32.mrf.mxu0
    %v4522 = vadd.f32 0.0, %v4521
    %v4523 = vpop.f32.mrf.mxu0
    %4524 = vmatprep.mubr.bf16.mxu0 0
    %4525 = vmatmul.mubr.bf16.gmra.mxu0 %v4466
    %v4526 = vpop.f32.mrf.mxu0
    %v4527 = vadd.f32 0.0, %v4526
    %v4528 = vpop.f32.mrf.mxu0
    %v4529 = vpop.f32.mrf.mxu0
    %v4530 = vadd.f32 0.0, %v4529
    %v4531 = vpop.f32.mrf.mxu0
    %4532 = vdwg.mxu0
    %v4533 = vadd.f32 %v4403, %v4503
    %v4534 = vadd.f32 %v4404, %v4506
    %v4535 = vadd.f32 %v4405, %v4511
    %v4536 = vadd.f32 %v4406, %v4514
    %v4537 = vadd.f32 %v4407, %v4519
    %v4538 = vadd.f32 %v4408, %v4522
    %v4539 = vadd.f32 %v4409, %v4527
    %v4540 = vadd.f32 %v4410, %v4530
    %v4541 = vld [vmem:[#allocation3 + $0xd] sm:$0xff]
    %v4542 = vld [vmem:[#allocation3 + $0x15] sm:$0xff]
    %v4543 = vld [vmem:[#allocation3 + $0x1d] sm:$0xff]
    %v4544 = vld [vmem:[#allocation3 + $0x25] sm:$0xff]
    %v4545 = vld [vmem:[#allocation3 + $0x2d] sm:$0xff]
    %v4546 = vld [vmem:[#allocation3 + $0x35] sm:$0xff]
    %v4547 = vld [vmem:[#allocation3 + $0x3d] sm:$0xff]
    %v4548 = vld [vmem:[#allocation3 + $0x45] sm:$0xf]
    %v4549 = vpack.c.bf16 %v4542, %v4541
    %v4550 = vpack.c.bf16 %v4544, %v4543
    %v4551 = vpack.c.bf16 %v4546, %v4545
    %v4552 = vpack.c.bf16 %v4548, %v4547
    %s4553 = scalar_lea.vmem %s7, 224
    %v4554 = vld [vmem:[%s4553] sm:$0xf]
    %v4555 = vld [vmem:[%s4553 + $0x4] sm:$0xf]
    %v4556 = vld [vmem:[%s4553 + $0x8] sm:$0xf]
    %v4557 = vld [vmem:[%s4553 + $0xc] sm:$0xf]
    %v4558 = vld [vmem:[%s4553 + $0x10] sm:$0xf]
    %v4559 = vld [vmem:[%s4553 + $0x14] sm:$0xf]
    %v4560 = vld [vmem:[%s4553 + $0x18] sm:$0xf]
    %v4561 = vld [vmem:[%s4553 + $0x1c] sm:$0xf]
    %v4570 = vunpack.c.l.b16 %v4554
    %v4571 = vunpack.c.l.b16 %v4555
    %v4572 = vunpack.c.l.b16 %v4556
    %v4573 = vunpack.c.l.b16 %v4557
    %v4574 = vunpack.c.l.b16 %v4558
    %v4575 = vunpack.c.l.b16 %v4559
    %v4576 = vunpack.c.l.b16 %v4560
    %v4577 = vunpack.c.l.b16 %v4561
    %v4578 = vpack.c.b16 %v4571, %v4570
    %v4579 = vpack.c.b16 %v4573, %v4572
    %v4580 = vpack.c.b16 %v4575, %v4574
    %v4581 = vpack.c.b16 %v4577, %v4576
    %v4587 = vsel %vm52, %v4549, 0
    %v4590 = vsel %vm52, %v4550, 0
    %v4593 = vsel %vm52, %v4551, 0
    %v4596 = vsel %vm52, %v4552, 0
    %4598 = vmatprep.subr.bf16.mxu0 0
    %4599 = vmatpush1.bf16.msra.mxu0 0
    %4600 = vmatprep.subr.bf16.mxu0 0
    %4601 = vmatpush1.bf16.msra.mxu0 0
    %4602 = vmatprep.subr.bf16.mxu0 0
    %4603 = vmatpush1.bf16.msra.mxu0 0
    %4604 = vmatprep.subr.bf16.mxu0 0
    %4605 = vmatpush1.bf16.msra.mxu0 0
    %4606 = vmatprep.subr.bf16.mxu0 0
    %4607 = vmatpush1.bf16.msra.mxu0 %v4581
    %4608 = vmatprep.subr.bf16.mxu0 0
    %4609 = vmatpush1.bf16.msra.mxu0 %v4580
    %4610 = vmatprep.subr.bf16.mxu0 0
    %4611 = vmatpush1.bf16.msra.mxu0 %v4579
    %4612 = vmatprep.subr.bf16.mxu0 0
    %4613 = vmatpush1.bf16.msra.mxu0 %v4578
    %4614 = vmatprep.subr.bf16.mxu0 0
    %4615 = vmatpush2.bf16.msra.mxu0 0
    %4616 = vmatprep.subr.bf16.mxu0 0
    %4617 = vmatpush2.bf16.msra.mxu0 0
    %4618 = vmatprep.subr.bf16.mxu0 0
    %4619 = vmatpush2.bf16.msra.mxu0 0
    %4620 = vmatprep.subr.bf16.mxu0 0
    %4621 = vmatpush2.bf16.msra.mxu0 0
    %4622 = vmatprep.subr.bf16.mxu0 0
    %4623 = vmatpush2.bf16.msra.mxu0 0
    %4624 = vmatprep.subr.bf16.mxu0 0
    %4625 = vmatpush2.bf16.msra.mxu0 0
    %4626 = vmatprep.subr.bf16.mxu0 0
    %4627 = vmatpush2.bf16.msra.mxu0 0
    %4628 = vmatprep.subr.bf16.mxu0 0
    %4629 = vmatpush2.bf16.msra.mxu0 0
    %4630 = vmatprep.mubr.bf16.mxu0 0
    %4631 = vmatmul.mubr.bf16.gmra.mxu0 %v4587
    %v4632 = vpop.f32.mrf.mxu0
    %v4633 = vadd.f32 0.0, %v4632
    %v4634 = vpop.f32.mrf.mxu0
    %v4635 = vpop.f32.mrf.mxu0
    %v4636 = vadd.f32 0.0, %v4635
    %v4637 = vpop.f32.mrf.mxu0
    %4638 = vmatprep.mubr.bf16.mxu0 0
    %4639 = vmatmul.mubr.bf16.gmra.mxu0 %v4590
    %v4640 = vpop.f32.mrf.mxu0
    %v4641 = vadd.f32 0.0, %v4640
    %v4642 = vpop.f32.mrf.mxu0
    %v4643 = vpop.f32.mrf.mxu0
    %v4644 = vadd.f32 0.0, %v4643
    %v4645 = vpop.f32.mrf.mxu0
    %4646 = vmatprep.mubr.bf16.mxu0 0
    %4647 = vmatmul.mubr.bf16.gmra.mxu0 %v4593
    %v4648 = vpop.f32.mrf.mxu0
    %v4649 = vadd.f32 0.0, %v4648
    %v4650 = vpop.f32.mrf.mxu0
    %v4651 = vpop.f32.mrf.mxu0
    %v4652 = vadd.f32 0.0, %v4651
    %v4653 = vpop.f32.mrf.mxu0
    %4654 = vmatprep.mubr.bf16.mxu0 0
    %4655 = vmatmul.mubr.bf16.gmra.mxu0 %v4596
    %v4656 = vpop.f32.mrf.mxu0
    %v4657 = vadd.f32 0.0, %v4656
    %v4658 = vpop.f32.mrf.mxu0
    %v4659 = vpop.f32.mrf.mxu0
    %v4660 = vadd.f32 0.0, %v4659
    %v4661 = vpop.f32.mrf.mxu0
    %4662 = vdwg.mxu0
    %v4663 = vadd.f32 %v4533, %v4633
    %v4664 = vadd.f32 %v4534, %v4636
    %v4665 = vadd.f32 %v4535, %v4641
    %v4666 = vadd.f32 %v4536, %v4644
    %v4667 = vadd.f32 %v4537, %v4649
    %v4668 = vadd.f32 %v4538, %v4652
    %v4669 = vadd.f32 %v4539, %v4657
    %v4670 = vadd.f32 %v4540, %v4660
    %v4671 = vld [vmem:[#allocation3 + $0xe] sm:$0xff]
    %v4672 = vld [vmem:[#allocation3 + $0x16] sm:$0xff]
    %v4673 = vld [vmem:[#allocation3 + $0x1e] sm:$0xff]
    %v4674 = vld [vmem:[#allocation3 + $0x26] sm:$0xff]
    %v4675 = vld [vmem:[#allocation3 + $0x2e] sm:$0xff]
    %v4676 = vld [vmem:[#allocation3 + $0x36] sm:$0xff]
    %v4677 = vld [vmem:[#allocation3 + $0x3e] sm:$0xff]
    %v4678 = vld [vmem:[#allocation3 + $0x46] sm:$0xf]
    %v4679 = vpack.c.bf16 %v4672, %v4671
    %v4680 = vpack.c.bf16 %v4674, %v4673
    %v4681 = vpack.c.bf16 %v4676, %v4675
    %v4682 = vpack.c.bf16 %v4678, %v4677
    %s4683 = scalar_lea.vmem %s7, 256
    %v4684 = vld [vmem:[%s4683] sm:$0xf]
    %v4685 = vld [vmem:[%s4683 + $0x4] sm:$0xf]
    %v4686 = vld [vmem:[%s4683 + $0x8] sm:$0xf]
    %v4687 = vld [vmem:[%s4683 + $0xc] sm:$0xf]
    %v4688 = vld [vmem:[%s4683 + $0x10] sm:$0xf]
    %v4689 = vld [vmem:[%s4683 + $0x14] sm:$0xf]
    %v4690 = vld [vmem:[%s4683 + $0x18] sm:$0xf]
    %v4691 = vld [vmem:[%s4683 + $0x1c] sm:$0xf]
    %v4700 = vunpack.c.l.b16 %v4684
    %v4701 = vunpack.c.l.b16 %v4685
    %v4702 = vunpack.c.l.b16 %v4686
    %v4703 = vunpack.c.l.b16 %v4687
    %v4704 = vunpack.c.l.b16 %v4688
    %v4705 = vunpack.c.l.b16 %v4689
    %v4706 = vunpack.c.l.b16 %v4690
    %v4707 = vunpack.c.l.b16 %v4691
    %v4708 = vpack.c.b16 %v4701, %v4700
    %v4709 = vpack.c.b16 %v4703, %v4702
    %v4710 = vpack.c.b16 %v4705, %v4704
    %v4711 = vpack.c.b16 %v4707, %v4706
    %v4717 = vsel %vm52, %v4679, 0
    %v4720 = vsel %vm52, %v4680, 0
    %v4723 = vsel %vm52, %v4681, 0
    %v4726 = vsel %vm52, %v4682, 0
    %4728 = vmatprep.subr.bf16.mxu0 0
    %4729 = vmatpush1.bf16.msra.mxu0 0
    %4730 = vmatprep.subr.bf16.mxu0 0
    %4731 = vmatpush1.bf16.msra.mxu0 0
    %4732 = vmatprep.subr.bf16.mxu0 0
    %4733 = vmatpush1.bf16.msra.mxu0 0
    %4734 = vmatprep.subr.bf16.mxu0 0
    %4735 = vmatpush1.bf16.msra.mxu0 0
    %4736 = vmatprep.subr.bf16.mxu0 0
    %4737 = vmatpush1.bf16.msra.mxu0 %v4711
    %4738 = vmatprep.subr.bf16.mxu0 0
    %4739 = vmatpush1.bf16.msra.mxu0 %v4710
    %4740 = vmatprep.subr.bf16.mxu0 0
    %4741 = vmatpush1.bf16.msra.mxu0 %v4709
    %4742 = vmatprep.subr.bf16.mxu0 0
    %4743 = vmatpush1.bf16.msra.mxu0 %v4708
    %4744 = vmatprep.subr.bf16.mxu0 0
    %4745 = vmatpush2.bf16.msra.mxu0 0
    %4746 = vmatprep.subr.bf16.mxu0 0
    %4747 = vmatpush2.bf16.msra.mxu0 0
    %4748 = vmatprep.subr.bf16.mxu0 0
    %4749 = vmatpush2.bf16.msra.mxu0 0
    %4750 = vmatprep.subr.bf16.mxu0 0
    %4751 = vmatpush2.bf16.msra.mxu0 0
    %4752 = vmatprep.subr.bf16.mxu0 0
    %4753 = vmatpush2.bf16.msra.mxu0 0
    %4754 = vmatprep.subr.bf16.mxu0 0
    %4755 = vmatpush2.bf16.msra.mxu0 0
    %4756 = vmatprep.subr.bf16.mxu0 0
    %4757 = vmatpush2.bf16.msra.mxu0 0
    %4758 = vmatprep.subr.bf16.mxu0 0
    %4759 = vmatpush2.bf16.msra.mxu0 0
    %4760 = vmatprep.mubr.bf16.mxu0 0
    %4761 = vmatmul.mubr.bf16.gmra.mxu0 %v4717
    %v4762 = vpop.f32.mrf.mxu0
    %v4763 = vadd.f32 0.0, %v4762
    %v4764 = vpop.f32.mrf.mxu0
    %v4765 = vpop.f32.mrf.mxu0
    %v4766 = vadd.f32 0.0, %v4765
    %v4767 = vpop.f32.mrf.mxu0
    %4768 = vmatprep.mubr.bf16.mxu0 0
    %4769 = vmatmul.mubr.bf16.gmra.mxu0 %v4720
    %v4770 = vpop.f32.mrf.mxu0
    %v4771 = vadd.f32 0.0, %v4770
    %v4772 = vpop.f32.mrf.mxu0
    %v4773 = vpop.f32.mrf.mxu0
    %v4774 = vadd.f32 0.0, %v4773
    %v4775 = vpop.f32.mrf.mxu0
    %4776 = vmatprep.mubr.bf16.mxu0 0
    %4777 = vmatmul.mubr.bf16.gmra.mxu0 %v4723
    %v4778 = vpop.f32.mrf.mxu0
    %v4779 = vadd.f32 0.0, %v4778
    %v4780 = vpop.f32.mrf.mxu0
    %v4781 = vpop.f32.mrf.mxu0
    %v4782 = vadd.f32 0.0, %v4781
    %v4783 = vpop.f32.mrf.mxu0
    %4784 = vmatprep.mubr.bf16.mxu0 0
    %4785 = vmatmul.mubr.bf16.gmra.mxu0 %v4726
    %v4786 = vpop.f32.mrf.mxu0
    %v4787 = vadd.f32 0.0, %v4786
    %v4788 = vpop.f32.mrf.mxu0
    %v4789 = vpop.f32.mrf.mxu0
    %v4790 = vadd.f32 0.0, %v4789
    %v4791 = vpop.f32.mrf.mxu0
    %4792 = vdwg.mxu0
    %v4793 = vadd.f32 %v4663, %v4763
    %v4794 = vadd.f32 %v4664, %v4766
    %v4795 = vadd.f32 %v4665, %v4771
    %v4796 = vadd.f32 %v4666, %v4774
    %v4797 = vadd.f32 %v4667, %v4779
    %v4798 = vadd.f32 %v4668, %v4782
    %v4799 = vadd.f32 %v4669, %v4787
    %v4800 = vadd.f32 %v4670, %v4790
    %v4802 = vlaneseq
    %v4803 = vshrl.u32 %v4802, 7
    %v4804 = vsub.s32 0, %v4803
    %v4805 = vrot.slane %v3646, %v4804
    %v4807 = vmul.f32 %v4793, %v4805
    %v4808 = vmul.f32 %v4794, %v4805
    %v4809 = vmul.f32 %v4795, %v4805
    %v4810 = vmul.f32 %v4796, %v4805
    %v4811 = vmul.f32 %v4797, %v4805
    %v4812 = vmul.f32 %v4798, %v4805
    %v4813 = vmul.f32 %v4799, %v4805
    %v4814 = vmul.f32 %v4800, %v4805
    %v4816 = vlaneseq
    %v4817 = vshrl.u32 %v4816, 7
    %v4818 = vsub.s32 0, %v4817
    %v4819 = vrot.slane %v3647, %v4818
    %v4821 = vadd.f32 %v4807, %v4819
    %v4822 = vadd.f32 %v4808, %v4819
    %v4823 = vadd.f32 %v4809, %v4819
    %v4824 = vadd.f32 %v4810, %v4819
    %v4825 = vadd.f32 %v4811, %v4819
    %v4826 = vadd.f32 %v4812, %v4819
    %v4827 = vadd.f32 %v4813, %v4819
    %v4828 = vadd.f32 %v4814, %v4819
    %v4829 = vmax.f32 %v4821, 0.0
    %v4830 = vmax.f32 %v4822, 0.0
    %v4831 = vmax.f32 %v4823, 0.0
    %v4832 = vmax.f32 %v4824, 0.0
    %v4833 = vmax.f32 %v4825, 0.0
    %v4834 = vmax.f32 %v4826, 0.0
    %v4835 = vmax.f32 %v4827, 0.0
    %v4836 = vmax.f32 %v4828, 0.0
    %4837 = vst.msk [vmem:[#allocation5] sm:$0xff] %vm52, %v4829
    %4838 = vst.msk [vmem:[#allocation5 + $0x8] sm:$0xff] %vm52, %v4830
    %4839 = vst.msk [vmem:[#allocation5 + $0x10] sm:$0xff] %vm52, %v4831
    %4840 = vst.msk [vmem:[#allocation5 + $0x18] sm:$0xff] %vm52, %v4832
    %4841 = vst.msk [vmem:[#allocation5 + $0x20] sm:$0xff] %vm52, %v4833
    %4842 = vst.msk [vmem:[#allocation5 + $0x28] sm:$0xff] %vm52, %v4834
    %4843 = vst.msk [vmem:[#allocation5 + $0x30] sm:$0xff] %vm52, %v4835
    %4844 = vst.msk [vmem:[#allocation5 + $0x38] sm:$0xf] %vm3552, %v4836
    %v4845 = vld [vmem:[#allocation5] ss:$2 sm:$0x3]
    %v4846 = vld [vmem:[%s575] ss:$2 sm:$0x3]
    %s4847 = scalar_lea.vmem [#allocation5], 6
    %v4848 = vld [vmem:[%s4847] ss:$2 sm:$0x3]
    %s4849 = scalar_lea.vmem [#allocation5], 7
    %v4850 = vld [vmem:[%s4849] ss:$2 sm:$0x3]
    %v4851 = vmax.f32 %v4845, %v4846
    %v4852 = vmax.f32 %v4848, %v4850
    %v4853 = vmax.f32 %v4851, %v4852
    %vm4854 = vcmask 517120
    %4855 = vst.msk [vmem:[#allocation4 + $0x5] sm:$0x3] %vm4854, %v4853
    %s4856 = scalar_lea.vmem [#allocation5], 12
    %v4857 = vld [vmem:[%s4856] ss:$2 sm:$0x3]
    %s4858 = scalar_lea.vmem [#allocation5], 13
    %v4859 = vld [vmem:[%s4858] ss:$2 sm:$0x3]
    %s4860 = scalar_lea.vmem [#allocation5], 18
    %v4861 = vld [vmem:[%s4860] ss:$2 sm:$0x3]
    %s4862 = scalar_lea.vmem [#allocation5], 19
    %v4863 = vld [vmem:[%s4862] ss:$2 sm:$0x3]
    %v4864 = vmax.f32 %v4857, %v4859
    %v4865 = vmax.f32 %v4861, %v4863
    %v4866 = vmax.f32 %v4864, %v4865
    %4867 = vst.msk [vmem:[#allocation4 + $0x9] sm:$0x3] %vm4854, %v4866
    %s4868 = scalar_lea.vmem [#allocation5], 36
    %v4869 = vld [vmem:[%s4868] ss:$2 sm:$0x3]
    %s4870 = scalar_lea.vmem [#allocation5], 37
    %v4871 = vld [vmem:[%s4870] ss:$2 sm:$0x3]
    %s4872 = scalar_lea.vmem [#allocation5], 42
    %v4873 = vld [vmem:[%s4872] ss:$2 sm:$0x3]
    %s4874 = scalar_lea.vmem [#allocation5], 43
    %v4875 = vld [vmem:[%s4874] ss:$2 sm:$0x3]
    %v4876 = vmax.f32 %v4869, %v4871
    %v4877 = vmax.f32 %v4873, %v4875
    %v4878 = vmax.f32 %v4876, %v4877
    %4879 = vst.msk [vmem:[#allocation4 + $0x15] sm:$0x3] %vm4854, %v4878
    %v4880 = vld [vmem:[%s589] ss:$2 sm:$0x3]
    %v4881 = vld [vmem:[%s591] ss:$2 sm:$0x3]
    %s4882 = scalar_lea.vmem [#allocation5], 54
    %v4883 = vld [vmem:[%s4882] ss:$2 sm:$0x3]
    %s4884 = scalar_lea.vmem [#allocation5], 55
    %v4885 = vld [vmem:[%s4884] ss:$2 sm:$0x3]
    %v4886 = vmax.f32 %v4880, %v4881
    %v4887 = vmax.f32 %v4883, %v4885
    %v4888 = vmax.f32 %v4886, %v4887
    %4889 = vst.msk [vmem:[#allocation4 + $0x19] sm:$0x3] %vm4854, %v4888
    %v4890 = vld [vmem:[%s11] sm:$0x1]
    %v4891 = vld [vmem:[%s12] sm:$0x1]
    %v4892 = vld [vmem:[#allocation4] sm:$0xff]
    %v4893 = vld [vmem:[#allocation4 + $0x8] sm:$0xff]
    %v4894 = vld [vmem:[#allocation4 + $0x10] sm:$0xff]
    %v4895 = vpack.c.bf16 %v4893, %v4892
    %v4896 = vpack.c.bf16 %v4894, %v4894
    %v4897 = vld [vmem:[%s10] sm:$0xf]
    %v4898 = vld [vmem:[%s10 + $0x4] sm:$0xf]
    %v4899 = vld [vmem:[%s10 + $0x8] sm:$0xf]
    %v4900 = vld [vmem:[%s10 + $0xc] sm:$0xf]
    %v4901 = vld [vmem:[%s10 + $0x10] sm:$0xf]
    %v4902 = vld [vmem:[%s10 + $0x14] sm:$0xf]
    %v4903 = vld [vmem:[%s10 + $0x18] sm:$0xf]
    %v4904 = vld [vmem:[%s10 + $0x1c] sm:$0xf]
    %v4905 = vld [vmem:[#allocation4 + $0x1] sm:$0xff]
    %v4906 = vld [vmem:[#allocation4 + $0x9] sm:$0xff]
    %v4907 = vld [vmem:[#allocation4 + $0x11] sm:$0xff]
    %v4908 = vpack.c.bf16 %v4906, %v4905
    %v4909 = vpack.c.bf16 %v4907, %v4907
    %s4910 = scalar_lea.vmem %s10, 32
    %v4911 = vld [vmem:[%s4910] sm:$0xf]
    %v4912 = vld [vmem:[%s4910 + $0x4] sm:$0xf]
    %v4913 = vld [vmem:[%s4910 + $0x8] sm:$0xf]
    %v4914 = vld [vmem:[%s4910 + $0xc] sm:$0xf]
    %v4915 = vld [vmem:[%s4910 + $0x10] sm:$0xf]
    %v4916 = vld [vmem:[%s4910 + $0x14] sm:$0xf]
    %v4917 = vld [vmem:[%s4910 + $0x18] sm:$0xf]
    %v4918 = vld [vmem:[%s4910 + $0x1c] sm:$0xf]
    %v4927 = vunpack.c.l.b16 %v4911
    %v4928 = vunpack.c.l.b16 %v4912
    %v4929 = vunpack.c.l.b16 %v4913
    %v4930 = vunpack.c.l.b16 %v4914
    %v4931 = vunpack.c.l.b16 %v4915
    %v4932 = vunpack.c.l.b16 %v4916
    %v4933 = vunpack.c.l.b16 %v4917
    %v4934 = vunpack.c.l.b16 %v4918
    %v4935 = vpack.c.b16 %v4928, %v4927
    %v4936 = vpack.c.b16 %v4930, %v4929
    %v4937 = vpack.c.b16 %v4932, %v4931
    %v4938 = vpack.c.b16 %v4934, %v4933
    %v4944 = vsel %vm52, %v4908, 0
    %v4947 = vsel %vm52, %v4909, 0
    %4949 = vmatprep.subr.bf16.mxu0 0
    %4950 = vmatpush1.bf16.msra.mxu0 0
    %4951 = vmatprep.subr.bf16.mxu0 0
    %4952 = vmatpush1.bf16.msra.mxu0 0
    %4953 = vmatprep.subr.bf16.mxu0 0
    %4954 = vmatpush1.bf16.msra.mxu0 0
    %4955 = vmatprep.subr.bf16.mxu0 0
    %4956 = vmatpush1.bf16.msra.mxu0 0
    %4957 = vmatprep.subr.bf16.mxu0 0
    %4958 = vmatpush1.bf16.msra.mxu0 %v4938
    %4959 = vmatprep.subr.bf16.mxu0 0
    %4960 = vmatpush1.bf16.msra.mxu0 %v4937
    %4961 = vmatprep.subr.bf16.mxu0 0
    %4962 = vmatpush1.bf16.msra.mxu0 %v4936
    %4963 = vmatprep.subr.bf16.mxu0 0
    %4964 = vmatpush1.bf16.msra.mxu0 %v4935
    %4965 = vmatprep.subr.bf16.mxu0 0
    %4966 = vmatpush2.bf16.msra.mxu0 0
    %4967 = vmatprep.subr.bf16.mxu0 0
    %4968 = vmatpush2.bf16.msra.mxu0 0
    %4969 = vmatprep.subr.bf16.mxu0 0
    %4970 = vmatpush2.bf16.msra.mxu0 0
    %4971 = vmatprep.subr.bf16.mxu0 0
    %4972 = vmatpush2.bf16.msra.mxu0 0
    %4973 = vmatprep.subr.bf16.mxu0 0
    %4974 = vmatpush2.bf16.msra.mxu0 0
    %4975 = vmatprep.subr.bf16.mxu0 0
    %4976 = vmatpush2.bf16.msra.mxu0 0
    %4977 = vmatprep.subr.bf16.mxu0 0
    %4978 = vmatpush2.bf16.msra.mxu0 0
    %4979 = vmatprep.subr.bf16.mxu0 0
    %4980 = vmatpush2.bf16.msra.mxu0 0
    %4981 = vmatprep.mubr.bf16.mxu0 0
    %4982 = vmatmul.mubr.bf16.gmra.mxu0 %v4944
    %v4983 = vpop.f32.mrf.mxu0
    %v4984 = vadd.f32 0.0, %v4983
    %v4985 = vpop.f32.mrf.mxu0
    %v4986 = vpop.f32.mrf.mxu0
    %v4987 = vadd.f32 0.0, %v4986
    %v4988 = vpop.f32.mrf.mxu0
    %4989 = vmatprep.mubr.bf16.mxu0 0
    %4990 = vmatmul.mubr.bf16.gmra.mxu0 %v4947
    %v4991 = vpop.f32.mrf.mxu0
    %v4992 = vadd.f32 0.0, %v4991
    %v4993 = vpop.f32.mrf.mxu0
    %v4994 = vpop.f32.mrf.mxu0
    %v4995 = vpop.f32.mrf.mxu0
    %4996 = vdwg.mxu0
    %v5005 = vunpack.c.l.b16 %v4897
    %v5006 = vunpack.c.l.b16 %v4898
    %v5007 = vunpack.c.l.b16 %v4899
    %v5008 = vunpack.c.l.b16 %v4900
    %v5009 = vunpack.c.l.b16 %v4901
    %v5010 = vunpack.c.l.b16 %v4902
    %v5011 = vunpack.c.l.b16 %v4903
    %v5012 = vunpack.c.l.b16 %v4904
    %v5013 = vpack.c.b16 %v5006, %v5005
    %v5014 = vpack.c.b16 %v5008, %v5007
    %v5015 = vpack.c.b16 %v5010, %v5009
    %v5016 = vpack.c.b16 %v5012, %v5011
    %v5022 = vsel %vm52, %v4895, 0
    %v5025 = vsel %vm52, %v4896, 0
    %5027 = vmatprep.subr.bf16.mxu0 0
    %5028 = vmatpush1.bf16.msra.mxu0 0
    %5029 = vmatprep.subr.bf16.mxu0 0
    %5030 = vmatpush1.bf16.msra.mxu0 0
    %5031 = vmatprep.subr.bf16.mxu0 0
    %5032 = vmatpush1.bf16.msra.mxu0 0
    %5033 = vmatprep.subr.bf16.mxu0 0
    %5034 = vmatpush1.bf16.msra.mxu0 0
    %5035 = vmatprep.subr.bf16.mxu0 0
    %5036 = vmatpush1.bf16.msra.mxu0 %v5016
    %5037 = vmatprep.subr.bf16.mxu0 0
    %5038 = vmatpush1.bf16.msra.mxu0 %v5015
    %5039 = vmatprep.subr.bf16.mxu0 0
    %5040 = vmatpush1.bf16.msra.mxu0 %v5014
    %5041 = vmatprep.subr.bf16.mxu0 0
    %5042 = vmatpush1.bf16.msra.mxu0 %v5013
    %5043 = vmatprep.subr.bf16.mxu0 0
    %5044 = vmatpush2.bf16.msra.mxu0 0
    %5045 = vmatprep.subr.bf16.mxu0 0
    %5046 = vmatpush2.bf16.msra.mxu0 0
    %5047 = vmatprep.subr.bf16.mxu0 0
    %5048 = vmatpush2.bf16.msra.mxu0 0
    %5049 = vmatprep.subr.bf16.mxu0 0
    %5050 = vmatpush2.bf16.msra.mxu0 0
    %5051 = vmatprep.subr.bf16.mxu0 0
    %5052 = vmatpush2.bf16.msra.mxu0 0
    %5053 = vmatprep.subr.bf16.mxu0 0
    %5054 = vmatpush2.bf16.msra.mxu0 0
    %5055 = vmatprep.subr.bf16.mxu0 0
    %5056 = vmatpush2.bf16.msra.mxu0 0
    %5057 = vmatprep.subr.bf16.mxu0 0
    %5058 = vmatpush2.bf16.msra.mxu0 0
    %5059 = vmatprep.mubr.bf16.mxu0 0
    %5060 = vmatmul.mubr.bf16.gmra.mxu0 %v5022
    %v5061 = vpop.f32.mrf.mxu0
    %v5062 = vadd.f32 %v4984, %v5061
    %v5063 = vpop.f32.mrf.mxu0
    %v5064 = vpop.f32.mrf.mxu0
    %v5065 = vadd.f32 %v4987, %v5064
    %v5066 = vpop.f32.mrf.mxu0
    %5067 = vmatprep.mubr.bf16.mxu0 0
    %5068 = vmatmul.mubr.bf16.gmra.mxu0 %v5025
    %v5069 = vpop.f32.mrf.mxu0
    %v5070 = vadd.f32 %v4992, %v5069
    %v5071 = vpop.f32.mrf.mxu0
    %v5072 = vpop.f32.mrf.mxu0
    %v5073 = vpop.f32.mrf.mxu0
    %5074 = vdwg.mxu0
    %v5075 = vld [vmem:[#allocation4 + $0x2] sm:$0xff]
    %v5076 = vld [vmem:[#allocation4 + $0xa] sm:$0xff]
    %v5077 = vld [vmem:[#allocation4 + $0x12] sm:$0xff]
    %v5078 = vpack.c.bf16 %v5076, %v5075
    %v5079 = vpack.c.bf16 %v5077, %v5077
    %s5080 = scalar_lea.vmem %s10, 64
    %v5081 = vld [vmem:[%s5080] sm:$0xf]
    %v5082 = vld [vmem:[%s5080 + $0x4] sm:$0xf]
    %v5083 = vld [vmem:[%s5080 + $0x8] sm:$0xf]
    %v5084 = vld [vmem:[%s5080 + $0xc] sm:$0xf]
    %v5085 = vld [vmem:[%s5080 + $0x10] sm:$0xf]
    %v5086 = vld [vmem:[%s5080 + $0x14] sm:$0xf]
    %v5087 = vld [vmem:[%s5080 + $0x18] sm:$0xf]
    %v5088 = vld [vmem:[%s5080 + $0x1c] sm:$0xf]
    %v5097 = vunpack.c.l.b16 %v5081
    %v5098 = vunpack.c.l.b16 %v5082
    %v5099 = vunpack.c.l.b16 %v5083
    %v5100 = vunpack.c.l.b16 %v5084
    %v5101 = vunpack.c.l.b16 %v5085
    %v5102 = vunpack.c.l.b16 %v5086
    %v5103 = vunpack.c.l.b16 %v5087
    %v5104 = vunpack.c.l.b16 %v5088
    %v5105 = vpack.c.b16 %v5098, %v5097
    %v5106 = vpack.c.b16 %v5100, %v5099
    %v5107 = vpack.c.b16 %v5102, %v5101
    %v5108 = vpack.c.b16 %v5104, %v5103
    %v5114 = vsel %vm52, %v5078, 0
    %v5117 = vsel %vm52, %v5079, 0
    %5119 = vmatprep.subr.bf16.mxu0 0
    %5120 = vmatpush1.bf16.msra.mxu0 0
    %5121 = vmatprep.subr.bf16.mxu0 0
    %5122 = vmatpush1.bf16.msra.mxu0 0
    %5123 = vmatprep.subr.bf16.mxu0 0
    %5124 = vmatpush1.bf16.msra.mxu0 0
    %5125 = vmatprep.subr.bf16.mxu0 0
    %5126 = vmatpush1.bf16.msra.mxu0 0
    %5127 = vmatprep.subr.bf16.mxu0 0
    %5128 = vmatpush1.bf16.msra.mxu0 %v5108
    %5129 = vmatprep.subr.bf16.mxu0 0
    %5130 = vmatpush1.bf16.msra.mxu0 %v5107
    %5131 = vmatprep.subr.bf16.mxu0 0
    %5132 = vmatpush1.bf16.msra.mxu0 %v5106
    %5133 = vmatprep.subr.bf16.mxu0 0
    %5134 = vmatpush1.bf16.msra.mxu0 %v5105
    %5135 = vmatprep.subr.bf16.mxu0 0
    %5136 = vmatpush2.bf16.msra.mxu0 0
    %5137 = vmatprep.subr.bf16.mxu0 0
    %5138 = vmatpush2.bf16.msra.mxu0 0
    %5139 = vmatprep.subr.bf16.mxu0 0
    %5140 = vmatpush2.bf16.msra.mxu0 0
    %5141 = vmatprep.subr.bf16.mxu0 0
    %5142 = vmatpush2.bf16.msra.mxu0 0
    %5143 = vmatprep.subr.bf16.mxu0 0
    %5144 = vmatpush2.bf16.msra.mxu0 0
    %5145 = vmatprep.subr.bf16.mxu0 0
    %5146 = vmatpush2.bf16.msra.mxu0 0
    %5147 = vmatprep.subr.bf16.mxu0 0
    %5148 = vmatpush2.bf16.msra.mxu0 0
    %5149 = vmatprep.subr.bf16.mxu0 0
    %5150 = vmatpush2.bf16.msra.mxu0 0
    %5151 = vmatprep.mubr.bf16.mxu0 0
    %5152 = vmatmul.mubr.bf16.gmra.mxu0 %v5114
    %v5153 = vpop.f32.mrf.mxu0
    %v5154 = vadd.f32 0.0, %v5153
    %v5155 = vpop.f32.mrf.mxu0
    %v5156 = vpop.f32.mrf.mxu0
    %v5157 = vadd.f32 0.0, %v5156
    %v5158 = vpop.f32.mrf.mxu0
    %5159 = vmatprep.mubr.bf16.mxu0 0
    %5160 = vmatmul.mubr.bf16.gmra.mxu0 %v5117
    %v5161 = vpop.f32.mrf.mxu0
    %v5162 = vadd.f32 0.0, %v5161
    %v5163 = vpop.f32.mrf.mxu0
    %v5164 = vpop.f32.mrf.mxu0
    %v5165 = vpop.f32.mrf.mxu0
    %5166 = vdwg.mxu0
    %v5167 = vadd.f32 %v5062, %v5154
    %v5168 = vadd.f32 %v5065, %v5157
    %v5169 = vadd.f32 %v5070, %v5162
    %v5170 = vld [vmem:[#allocation4 + $0x4] sm:$0xff]
    %v5171 = vld [vmem:[#allocation4 + $0xc] sm:$0xff]
    %v5172 = vld [vmem:[#allocation4 + $0x14] sm:$0xff]
    %v5173 = vpack.c.bf16 %v5171, %v5170
    %v5174 = vpack.c.bf16 %v5172, %v5172
    %s5175 = scalar_lea.vmem %s10, 96
    %v5176 = vld [vmem:[%s5175] sm:$0xf]
    %v5177 = vld [vmem:[%s5175 + $0x4] sm:$0xf]
    %v5178 = vld [vmem:[%s5175 + $0x8] sm:$0xf]
    %v5179 = vld [vmem:[%s5175 + $0xc] sm:$0xf]
    %v5180 = vld [vmem:[%s5175 + $0x10] sm:$0xf]
    %v5181 = vld [vmem:[%s5175 + $0x14] sm:$0xf]
    %v5182 = vld [vmem:[%s5175 + $0x18] sm:$0xf]
    %v5183 = vld [vmem:[%s5175 + $0x1c] sm:$0xf]
    %v5192 = vunpack.c.l.b16 %v5176
    %v5193 = vunpack.c.l.b16 %v5177
    %v5194 = vunpack.c.l.b16 %v5178
    %v5195 = vunpack.c.l.b16 %v5179
    %v5196 = vunpack.c.l.b16 %v5180
    %v5197 = vunpack.c.l.b16 %v5181
    %v5198 = vunpack.c.l.b16 %v5182
    %v5199 = vunpack.c.l.b16 %v5183
    %v5200 = vpack.c.b16 %v5193, %v5192
    %v5201 = vpack.c.b16 %v5195, %v5194
    %v5202 = vpack.c.b16 %v5197, %v5196
    %v5203 = vpack.c.b16 %v5199, %v5198
    %v5209 = vsel %vm52, %v5173, 0
    %v5212 = vsel %vm52, %v5174, 0
    %5214 = vmatprep.subr.bf16.mxu0 0
    %5215 = vmatpush1.bf16.msra.mxu0 0
    %5216 = vmatprep.subr.bf16.mxu0 0
    %5217 = vmatpush1.bf16.msra.mxu0 0
    %5218 = vmatprep.subr.bf16.mxu0 0
    %5219 = vmatpush1.bf16.msra.mxu0 0
    %5220 = vmatprep.subr.bf16.mxu0 0
    %5221 = vmatpush1.bf16.msra.mxu0 0
    %5222 = vmatprep.subr.bf16.mxu0 0
    %5223 = vmatpush1.bf16.msra.mxu0 %v5203
    %5224 = vmatprep.subr.bf16.mxu0 0
    %5225 = vmatpush1.bf16.msra.mxu0 %v5202
    %5226 = vmatprep.subr.bf16.mxu0 0
    %5227 = vmatpush1.bf16.msra.mxu0 %v5201
    %5228 = vmatprep.subr.bf16.mxu0 0
    %5229 = vmatpush1.bf16.msra.mxu0 %v5200
    %5230 = vmatprep.subr.bf16.mxu0 0
    %5231 = vmatpush2.bf16.msra.mxu0 0
    %5232 = vmatprep.subr.bf16.mxu0 0
    %5233 = vmatpush2.bf16.msra.mxu0 0
    %5234 = vmatprep.subr.bf16.mxu0 0
    %5235 = vmatpush2.bf16.msra.mxu0 0
    %5236 = vmatprep.subr.bf16.mxu0 0
    %5237 = vmatpush2.bf16.msra.mxu0 0
    %5238 = vmatprep.subr.bf16.mxu0 0
    %5239 = vmatpush2.bf16.msra.mxu0 0
    %5240 = vmatprep.subr.bf16.mxu0 0
    %5241 = vmatpush2.bf16.msra.mxu0 0
    %5242 = vmatprep.subr.bf16.mxu0 0
    %5243 = vmatpush2.bf16.msra.mxu0 0
    %5244 = vmatprep.subr.bf16.mxu0 0
    %5245 = vmatpush2.bf16.msra.mxu0 0
    %5246 = vmatprep.mubr.bf16.mxu0 0
    %5247 = vmatmul.mubr.bf16.gmra.mxu0 %v5209
    %v5248 = vpop.f32.mrf.mxu0
    %v5249 = vadd.f32 0.0, %v5248
    %v5250 = vpop.f32.mrf.mxu0
    %v5251 = vpop.f32.mrf.mxu0
    %v5252 = vadd.f32 0.0, %v5251
    %v5253 = vpop.f32.mrf.mxu0
    %5254 = vmatprep.mubr.bf16.mxu0 0
    %5255 = vmatmul.mubr.bf16.gmra.mxu0 %v5212
    %v5256 = vpop.f32.mrf.mxu0
    %v5257 = vadd.f32 0.0, %v5256
    %v5258 = vpop.f32.mrf.mxu0
    %v5259 = vpop.f32.mrf.mxu0
    %v5260 = vpop.f32.mrf.mxu0
    %5261 = vdwg.mxu0
    %v5262 = vadd.f32 %v5167, %v5249
    %v5263 = vadd.f32 %v5168, %v5252
    %v5264 = vadd.f32 %v5169, %v5257
    %v5265 = vld [vmem:[#allocation4 + $0x5] sm:$0xff]
    %v5266 = vld [vmem:[#allocation4 + $0xd] sm:$0xff]
    %v5267 = vld [vmem:[#allocation4 + $0x15] sm:$0xff]
    %v5268 = vpack.c.bf16 %v5266, %v5265
    %v5269 = vpack.c.bf16 %v5267, %v5267
    %s5270 = scalar_lea.vmem %s10, 128
    %v5271 = vld [vmem:[%s5270] sm:$0xf]
    %v5272 = vld [vmem:[%s5270 + $0x4] sm:$0xf]
    %v5273 = vld [vmem:[%s5270 + $0x8] sm:$0xf]
    %v5274 = vld [vmem:[%s5270 + $0xc] sm:$0xf]
    %v5275 = vld [vmem:[%s5270 + $0x10] sm:$0xf]
    %v5276 = vld [vmem:[%s5270 + $0x14] sm:$0xf]
    %v5277 = vld [vmem:[%s5270 + $0x18] sm:$0xf]
    %v5278 = vld [vmem:[%s5270 + $0x1c] sm:$0xf]
    %v5287 = vunpack.c.l.b16 %v5271
    %v5288 = vunpack.c.l.b16 %v5272
    %v5289 = vunpack.c.l.b16 %v5273
    %v5290 = vunpack.c.l.b16 %v5274
    %v5291 = vunpack.c.l.b16 %v5275
    %v5292 = vunpack.c.l.b16 %v5276
    %v5293 = vunpack.c.l.b16 %v5277
    %v5294 = vunpack.c.l.b16 %v5278
    %v5295 = vpack.c.b16 %v5288, %v5287
    %v5296 = vpack.c.b16 %v5290, %v5289
    %v5297 = vpack.c.b16 %v5292, %v5291
    %v5298 = vpack.c.b16 %v5294, %v5293
    %v5304 = vsel %vm52, %v5268, 0
    %v5307 = vsel %vm52, %v5269, 0
    %5309 = vmatprep.subr.bf16.mxu0 0
    %5310 = vmatpush1.bf16.msra.mxu0 0
    %5311 = vmatprep.subr.bf16.mxu0 0
    %5312 = vmatpush1.bf16.msra.mxu0 0
    %5313 = vmatprep.subr.bf16.mxu0 0
    %5314 = vmatpush1.bf16.msra.mxu0 0
    %5315 = vmatprep.subr.bf16.mxu0 0
    %5316 = vmatpush1.bf16.msra.mxu0 0
    %5317 = vmatprep.subr.bf16.mxu0 0
    %5318 = vmatpush1.bf16.msra.mxu0 %v5298
    %5319 = vmatprep.subr.bf16.mxu0 0
    %5320 = vmatpush1.bf16.msra.mxu0 %v5297
    %5321 = vmatprep.subr.bf16.mxu0 0
    %5322 = vmatpush1.bf16.msra.mxu0 %v5296
    %5323 = vmatprep.subr.bf16.mxu0 0
    %5324 = vmatpush1.bf16.msra.mxu0 %v5295
    %5325 = vmatprep.subr.bf16.mxu0 0
    %5326 = vmatpush2.bf16.msra.mxu0 0
    %5327 = vmatprep.subr.bf16.mxu0 0
    %5328 = vmatpush2.bf16.msra.mxu0 0
    %5329 = vmatprep.subr.bf16.mxu0 0
    %5330 = vmatpush2.bf16.msra.mxu0 0
    %5331 = vmatprep.subr.bf16.mxu0 0
    %5332 = vmatpush2.bf16.msra.mxu0 0
    %5333 = vmatprep.subr.bf16.mxu0 0
    %5334 = vmatpush2.bf16.msra.mxu0 0
    %5335 = vmatprep.subr.bf16.mxu0 0
    %5336 = vmatpush2.bf16.msra.mxu0 0
    %5337 = vmatprep.subr.bf16.mxu0 0
    %5338 = vmatpush2.bf16.msra.mxu0 0
    %5339 = vmatprep.subr.bf16.mxu0 0
    %5340 = vmatpush2.bf16.msra.mxu0 0
    %5341 = vmatprep.mubr.bf16.mxu0 0
    %5342 = vmatmul.mubr.bf16.gmra.mxu0 %v5304
    %v5343 = vpop.f32.mrf.mxu0
    %v5344 = vadd.f32 0.0, %v5343
    %v5345 = vpop.f32.mrf.mxu0
    %v5346 = vpop.f32.mrf.mxu0
    %v5347 = vadd.f32 0.0, %v5346
    %v5348 = vpop.f32.mrf.mxu0
    %5349 = vmatprep.mubr.bf16.mxu0 0
    %5350 = vmatmul.mubr.bf16.gmra.mxu0 %v5307
    %v5351 = vpop.f32.mrf.mxu0
    %v5352 = vadd.f32 0.0, %v5351
    %v5353 = vpop.f32.mrf.mxu0
    %v5354 = vpop.f32.mrf.mxu0
    %v5355 = vpop.f32.mrf.mxu0
    %5356 = vdwg.mxu0
    %v5357 = vadd.f32 %v5262, %v5344
    %v5358 = vadd.f32 %v5263, %v5347
    %v5359 = vadd.f32 %v5264, %v5352
    %v5360 = vld [vmem:[#allocation4 + $0x6] sm:$0xff]
    %v5361 = vld [vmem:[#allocation4 + $0xe] sm:$0xff]
    %v5362 = vld [vmem:[#allocation4 + $0x16] sm:$0xff]
    %v5363 = vpack.c.bf16 %v5361, %v5360
    %v5364 = vpack.c.bf16 %v5362, %v5362
    %s5365 = scalar_lea.vmem %s10, 160
    %v5366 = vld [vmem:[%s5365] sm:$0xf]
    %v5367 = vld [vmem:[%s5365 + $0x4] sm:$0xf]
    %v5368 = vld [vmem:[%s5365 + $0x8] sm:$0xf]
    %v5369 = vld [vmem:[%s5365 + $0xc] sm:$0xf]
    %v5370 = vld [vmem:[%s5365 + $0x10] sm:$0xf]
    %v5371 = vld [vmem:[%s5365 + $0x14] sm:$0xf]
    %v5372 = vld [vmem:[%s5365 + $0x18] sm:$0xf]
    %v5373 = vld [vmem:[%s5365 + $0x1c] sm:$0xf]
    %v5382 = vunpack.c.l.b16 %v5366
    %v5383 = vunpack.c.l.b16 %v5367
    %v5384 = vunpack.c.l.b16 %v5368
    %v5385 = vunpack.c.l.b16 %v5369
    %v5386 = vunpack.c.l.b16 %v5370
    %v5387 = vunpack.c.l.b16 %v5371
    %v5388 = vunpack.c.l.b16 %v5372
    %v5389 = vunpack.c.l.b16 %v5373
    %v5390 = vpack.c.b16 %v5383, %v5382
    %v5391 = vpack.c.b16 %v5385, %v5384
    %v5392 = vpack.c.b16 %v5387, %v5386
    %v5393 = vpack.c.b16 %v5389, %v5388
    %v5399 = vsel %vm52, %v5363, 0
    %v5402 = vsel %vm52, %v5364, 0
    %5404 = vmatprep.subr.bf16.mxu0 0
    %5405 = vmatpush1.bf16.msra.mxu0 0
    %5406 = vmatprep.subr.bf16.mxu0 0
    %5407 = vmatpush1.bf16.msra.mxu0 0
    %5408 = vmatprep.subr.bf16.mxu0 0
    %5409 = vmatpush1.bf16.msra.mxu0 0
    %5410 = vmatprep.subr.bf16.mxu0 0
    %5411 = vmatpush1.bf16.msra.mxu0 0
    %5412 = vmatprep.subr.bf16.mxu0 0
    %5413 = vmatpush1.bf16.msra.mxu0 %v5393
    %5414 = vmatprep.subr.bf16.mxu0 0
    %5415 = vmatpush1.bf16.msra.mxu0 %v5392
    %5416 = vmatprep.subr.bf16.mxu0 0
    %5417 = vmatpush1.bf16.msra.mxu0 %v5391
    %5418 = vmatprep.subr.bf16.mxu0 0
    %5419 = vmatpush1.bf16.msra.mxu0 %v5390
    %5420 = vmatprep.subr.bf16.mxu0 0
    %5421 = vmatpush2.bf16.msra.mxu0 0
    %5422 = vmatprep.subr.bf16.mxu0 0
    %5423 = vmatpush2.bf16.msra.mxu0 0
    %5424 = vmatprep.subr.bf16.mxu0 0
    %5425 = vmatpush2.bf16.msra.mxu0 0
    %5426 = vmatprep.subr.bf16.mxu0 0
    %5427 = vmatpush2.bf16.msra.mxu0 0
    %5428 = vmatprep.subr.bf16.mxu0 0
    %5429 = vmatpush2.bf16.msra.mxu0 0
    %5430 = vmatprep.subr.bf16.mxu0 0
    %5431 = vmatpush2.bf16.msra.mxu0 0
    %5432 = vmatprep.subr.bf16.mxu0 0
    %5433 = vmatpush2.bf16.msra.mxu0 0
    %5434 = vmatprep.subr.bf16.mxu0 0
    %5435 = vmatpush2.bf16.msra.mxu0 0
    %5436 = vmatprep.mubr.bf16.mxu0 0
    %5437 = vmatmul.mubr.bf16.gmra.mxu0 %v5399
    %v5438 = vpop.f32.mrf.mxu0
    %v5439 = vadd.f32 0.0, %v5438
    %v5440 = vpop.f32.mrf.mxu0
    %v5441 = vpop.f32.mrf.mxu0
    %v5442 = vadd.f32 0.0, %v5441
    %v5443 = vpop.f32.mrf.mxu0
    %5444 = vmatprep.mubr.bf16.mxu0 0
    %5445 = vmatmul.mubr.bf16.gmra.mxu0 %v5402
    %v5446 = vpop.f32.mrf.mxu0
    %v5447 = vadd.f32 0.0, %v5446
    %v5448 = vpop.f32.mrf.mxu0
    %v5449 = vpop.f32.mrf.mxu0
    %v5450 = vpop.f32.mrf.mxu0
    %5451 = vdwg.mxu0
    %v5452 = vadd.f32 %v5357, %v5439
    %v5453 = vadd.f32 %v5358, %v5442
    %v5454 = vadd.f32 %v5359, %v5447
    %v5455 = vld [vmem:[#allocation4 + $0x8] sm:$0xff]
    %v5456 = vld [vmem:[#allocation4 + $0x10] sm:$0xff]
    %v5457 = vld [vmem:[#allocation4 + $0x18] sm:$0xff]
    %v5458 = vpack.c.bf16 %v5456, %v5455
    %v5459 = vpack.c.bf16 %v5457, %v5457
    %s5460 = scalar_lea.vmem %s10, 192
    %v5461 = vld [vmem:[%s5460] sm:$0xf]
    %v5462 = vld [vmem:[%s5460 + $0x4] sm:$0xf]
    %v5463 = vld [vmem:[%s5460 + $0x8] sm:$0xf]
    %v5464 = vld [vmem:[%s5460 + $0xc] sm:$0xf]
    %v5465 = vld [vmem:[%s5460 + $0x10] sm:$0xf]
    %v5466 = vld [vmem:[%s5460 + $0x14] sm:$0xf]
    %v5467 = vld [vmem:[%s5460 + $0x18] sm:$0xf]
    %v5468 = vld [vmem:[%s5460 + $0x1c] sm:$0xf]
    %v5477 = vunpack.c.l.b16 %v5461
    %v5478 = vunpack.c.l.b16 %v5462
    %v5479 = vunpack.c.l.b16 %v5463
    %v5480 = vunpack.c.l.b16 %v5464
    %v5481 = vunpack.c.l.b16 %v5465
    %v5482 = vunpack.c.l.b16 %v5466
    %v5483 = vunpack.c.l.b16 %v5467
    %v5484 = vunpack.c.l.b16 %v5468
    %v5485 = vpack.c.b16 %v5478, %v5477
    %v5486 = vpack.c.b16 %v5480, %v5479
    %v5487 = vpack.c.b16 %v5482, %v5481
    %v5488 = vpack.c.b16 %v5484, %v5483
    %v5494 = vsel %vm52, %v5458, 0
    %v5497 = vsel %vm52, %v5459, 0
    %5499 = vmatprep.subr.bf16.mxu0 0
    %5500 = vmatpush1.bf16.msra.mxu0 0
    %5501 = vmatprep.subr.bf16.mxu0 0
    %5502 = vmatpush1.bf16.msra.mxu0 0
    %5503 = vmatprep.subr.bf16.mxu0 0
    %5504 = vmatpush1.bf16.msra.mxu0 0
    %5505 = vmatprep.subr.bf16.mxu0 0
    %5506 = vmatpush1.bf16.msra.mxu0 0
    %5507 = vmatprep.subr.bf16.mxu0 0
    %5508 = vmatpush1.bf16.msra.mxu0 %v5488
    %5509 = vmatprep.subr.bf16.mxu0 0
    %5510 = vmatpush1.bf16.msra.mxu0 %v5487
    %5511 = vmatprep.subr.bf16.mxu0 0
    %5512 = vmatpush1.bf16.msra.mxu0 %v5486
    %5513 = vmatprep.subr.bf16.mxu0 0
    %5514 = vmatpush1.bf16.msra.mxu0 %v5485
    %5515 = vmatprep.subr.bf16.mxu0 0
    %5516 = vmatpush2.bf16.msra.mxu0 0
    %5517 = vmatprep.subr.bf16.mxu0 0
    %5518 = vmatpush2.bf16.msra.mxu0 0
    %5519 = vmatprep.subr.bf16.mxu0 0
    %5520 = vmatpush2.bf16.msra.mxu0 0
    %5521 = vmatprep.subr.bf16.mxu0 0
    %5522 = vmatpush2.bf16.msra.mxu0 0
    %5523 = vmatprep.subr.bf16.mxu0 0
    %5524 = vmatpush2.bf16.msra.mxu0 0
    %5525 = vmatprep.subr.bf16.mxu0 0
    %5526 = vmatpush2.bf16.msra.mxu0 0
    %5527 = vmatprep.subr.bf16.mxu0 0
    %5528 = vmatpush2.bf16.msra.mxu0 0
    %5529 = vmatprep.subr.bf16.mxu0 0
    %5530 = vmatpush2.bf16.msra.mxu0 0
    %5531 = vmatprep.mubr.bf16.mxu0 0
    %5532 = vmatmul.mubr.bf16.gmra.mxu0 %v5494
    %v5533 = vpop.f32.mrf.mxu0
    %v5534 = vadd.f32 0.0, %v5533
    %v5535 = vpop.f32.mrf.mxu0
    %v5536 = vpop.f32.mrf.mxu0
    %v5537 = vadd.f32 0.0, %v5536
    %v5538 = vpop.f32.mrf.mxu0
    %5539 = vmatprep.mubr.bf16.mxu0 0
    %5540 = vmatmul.mubr.bf16.gmra.mxu0 %v5497
    %v5541 = vpop.f32.mrf.mxu0
    %v5542 = vadd.f32 0.0, %v5541
    %v5543 = vpop.f32.mrf.mxu0
    %v5544 = vpop.f32.mrf.mxu0
    %v5545 = vpop.f32.mrf.mxu0
    %5546 = vdwg.mxu0
    %v5547 = vadd.f32 %v5452, %v5534
    %v5548 = vadd.f32 %v5453, %v5537
    %v5549 = vadd.f32 %v5454, %v5542
    %v5550 = vld [vmem:[#allocation4 + $0x9] sm:$0xff]
    %v5551 = vld [vmem:[#allocation4 + $0x11] sm:$0xff]
    %v5552 = vld [vmem:[#allocation4 + $0x19] sm:$0xff]
    %v5553 = vpack.c.bf16 %v5551, %v5550
    %v5554 = vpack.c.bf16 %v5552, %v5552
    %s5555 = scalar_lea.vmem %s10, 224
    %v5556 = vld [vmem:[%s5555] sm:$0xf]
    %v5557 = vld [vmem:[%s5555 + $0x4] sm:$0xf]
    %v5558 = vld [vmem:[%s5555 + $0x8] sm:$0xf]
    %v5559 = vld [vmem:[%s5555 + $0xc] sm:$0xf]
    %v5560 = vld [vmem:[%s5555 + $0x10] sm:$0xf]
    %v5561 = vld [vmem:[%s5555 + $0x14] sm:$0xf]
    %v5562 = vld [vmem:[%s5555 + $0x18] sm:$0xf]
    %v5563 = vld [vmem:[%s5555 + $0x1c] sm:$0xf]
    %v5572 = vunpack.c.l.b16 %v5556
    %v5573 = vunpack.c.l.b16 %v5557
    %v5574 = vunpack.c.l.b16 %v5558
    %v5575 = vunpack.c.l.b16 %v5559
    %v5576 = vunpack.c.l.b16 %v5560
    %v5577 = vunpack.c.l.b16 %v5561
    %v5578 = vunpack.c.l.b16 %v5562
    %v5579 = vunpack.c.l.b16 %v5563
    %v5580 = vpack.c.b16 %v5573, %v5572
    %v5581 = vpack.c.b16 %v5575, %v5574
    %v5582 = vpack.c.b16 %v5577, %v5576
    %v5583 = vpack.c.b16 %v5579, %v5578
    %v5589 = vsel %vm52, %v5553, 0
    %v5592 = vsel %vm52, %v5554, 0
    %5594 = vmatprep.subr.bf16.mxu0 0
    %5595 = vmatpush1.bf16.msra.mxu0 0
    %5596 = vmatprep.subr.bf16.mxu0 0
    %5597 = vmatpush1.bf16.msra.mxu0 0
    %5598 = vmatprep.subr.bf16.mxu0 0
    %5599 = vmatpush1.bf16.msra.mxu0 0
    %5600 = vmatprep.subr.bf16.mxu0 0
    %5601 = vmatpush1.bf16.msra.mxu0 0
    %5602 = vmatprep.subr.bf16.mxu0 0
    %5603 = vmatpush1.bf16.msra.mxu0 %v5583
    %5604 = vmatprep.subr.bf16.mxu0 0
    %5605 = vmatpush1.bf16.msra.mxu0 %v5582
    %5606 = vmatprep.subr.bf16.mxu0 0
    %5607 = vmatpush1.bf16.msra.mxu0 %v5581
    %5608 = vmatprep.subr.bf16.mxu0 0
    %5609 = vmatpush1.bf16.msra.mxu0 %v5580
    %5610 = vmatprep.subr.bf16.mxu0 0
    %5611 = vmatpush2.bf16.msra.mxu0 0
    %5612 = vmatprep.subr.bf16.mxu0 0
    %5613 = vmatpush2.bf16.msra.mxu0 0
    %5614 = vmatprep.subr.bf16.mxu0 0
    %5615 = vmatpush2.bf16.msra.mxu0 0
    %5616 = vmatprep.subr.bf16.mxu0 0
    %5617 = vmatpush2.bf16.msra.mxu0 0
    %5618 = vmatprep.subr.bf16.mxu0 0
    %5619 = vmatpush2.bf16.msra.mxu0 0
    %5620 = vmatprep.subr.bf16.mxu0 0
    %5621 = vmatpush2.bf16.msra.mxu0 0
    %5622 = vmatprep.subr.bf16.mxu0 0
    %5623 = vmatpush2.bf16.msra.mxu0 0
    %5624 = vmatprep.subr.bf16.mxu0 0
    %5625 = vmatpush2.bf16.msra.mxu0 0
    %5626 = vmatprep.mubr.bf16.mxu0 0
    %5627 = vmatmul.mubr.bf16.gmra.mxu0 %v5589
    %v5628 = vpop.f32.mrf.mxu0
    %v5629 = vadd.f32 0.0, %v5628
    %v5630 = vpop.f32.mrf.mxu0
    %v5631 = vpop.f32.mrf.mxu0
    %v5632 = vadd.f32 0.0, %v5631
    %v5633 = vpop.f32.mrf.mxu0
    %5634 = vmatprep.mubr.bf16.mxu0 0
    %5635 = vmatmul.mubr.bf16.gmra.mxu0 %v5592
    %v5636 = vpop.f32.mrf.mxu0
    %v5637 = vadd.f32 0.0, %v5636
    %v5638 = vpop.f32.mrf.mxu0
    %v5639 = vpop.f32.mrf.mxu0
    %v5640 = vpop.f32.mrf.mxu0
    %5641 = vdwg.mxu0
    %v5642 = vadd.f32 %v5547, %v5629
    %v5643 = vadd.f32 %v5548, %v5632
    %v5644 = vadd.f32 %v5549, %v5637
    %v5645 = vld [vmem:[#allocation4 + $0xa] sm:$0xff]
    %v5646 = vld [vmem:[#allocation4 + $0x12] sm:$0xff]
    %v5647 = vld [vmem:[#allocation4 + $0x1a] sm:$0xff]
    %v5648 = vpack.c.bf16 %v5646, %v5645
    %v5649 = vpack.c.bf16 %v5647, %v5647
    %s5650 = scalar_lea.vmem %s10, 256
    %v5651 = vld [vmem:[%s5650] sm:$0xf]
    %v5652 = vld [vmem:[%s5650 + $0x4] sm:$0xf]
    %v5653 = vld [vmem:[%s5650 + $0x8] sm:$0xf]
    %v5654 = vld [vmem:[%s5650 + $0xc] sm:$0xf]
    %v5655 = vld [vmem:[%s5650 + $0x10] sm:$0xf]
    %v5656 = vld [vmem:[%s5650 + $0x14] sm:$0xf]
    %v5657 = vld [vmem:[%s5650 + $0x18] sm:$0xf]
    %v5658 = vld [vmem:[%s5650 + $0x1c] sm:$0xf]
    %v5667 = vunpack.c.l.b16 %v5651
    %v5668 = vunpack.c.l.b16 %v5652
    %v5669 = vunpack.c.l.b16 %v5653
    %v5670 = vunpack.c.l.b16 %v5654
    %v5671 = vunpack.c.l.b16 %v5655
    %v5672 = vunpack.c.l.b16 %v5656
    %v5673 = vunpack.c.l.b16 %v5657
    %v5674 = vunpack.c.l.b16 %v5658
    %v5675 = vpack.c.b16 %v5668, %v5667
    %v5676 = vpack.c.b16 %v5670, %v5669
    %v5677 = vpack.c.b16 %v5672, %v5671
    %v5678 = vpack.c.b16 %v5674, %v5673
    %v5684 = vsel %vm52, %v5648, 0
    %v5687 = vsel %vm52, %v5649, 0
    %5689 = vmatprep.subr.bf16.mxu0 0
    %5690 = vmatpush1.bf16.msra.mxu0 0
    %5691 = vmatprep.subr.bf16.mxu0 0
    %5692 = vmatpush1.bf16.msra.mxu0 0
    %5693 = vmatprep.subr.bf16.mxu0 0
    %5694 = vmatpush1.bf16.msra.mxu0 0
    %5695 = vmatprep.subr.bf16.mxu0 0
    %5696 = vmatpush1.bf16.msra.mxu0 0
    %5697 = vmatprep.subr.bf16.mxu0 0
    %5698 = vmatpush1.bf16.msra.mxu0 %v5678
    %5699 = vmatprep.subr.bf16.mxu0 0
    %5700 = vmatpush1.bf16.msra.mxu0 %v5677
    %5701 = vmatprep.subr.bf16.mxu0 0
    %5702 = vmatpush1.bf16.msra.mxu0 %v5676
    %5703 = vmatprep.subr.bf16.mxu0 0
    %5704 = vmatpush1.bf16.msra.mxu0 %v5675
    %5705 = vmatprep.subr.bf16.mxu0 0
    %5706 = vmatpush2.bf16.msra.mxu0 0
    %5707 = vmatprep.subr.bf16.mxu0 0
    %5708 = vmatpush2.bf16.msra.mxu0 0
    %5709 = vmatprep.subr.bf16.mxu0 0
    %5710 = vmatpush2.bf16.msra.mxu0 0
    %5711 = vmatprep.subr.bf16.mxu0 0
    %5712 = vmatpush2.bf16.msra.mxu0 0
    %5713 = vmatprep.subr.bf16.mxu0 0
    %5714 = vmatpush2.bf16.msra.mxu0 0
    %5715 = vmatprep.subr.bf16.mxu0 0
    %5716 = vmatpush2.bf16.msra.mxu0 0
    %5717 = vmatprep.subr.bf16.mxu0 0
    %5718 = vmatpush2.bf16.msra.mxu0 0
    %5719 = vmatprep.subr.bf16.mxu0 0
    %5720 = vmatpush2.bf16.msra.mxu0 0
    %5721 = vmatprep.mubr.bf16.mxu0 0
    %5722 = vmatmul.mubr.bf16.gmra.mxu0 %v5684
    %v5723 = vpop.f32.mrf.mxu0
    %v5724 = vadd.f32 0.0, %v5723
    %v5725 = vpop.f32.mrf.mxu0
    %v5726 = vpop.f32.mrf.mxu0
    %v5727 = vadd.f32 0.0, %v5726
    %v5728 = vpop.f32.mrf.mxu0
    %5729 = vmatprep.mubr.bf16.mxu0 0
    %5730 = vmatmul.mubr.bf16.gmra.mxu0 %v5687
    %v5731 = vpop.f32.mrf.mxu0
    %v5732 = vadd.f32 0.0, %v5731
    %v5733 = vpop.f32.mrf.mxu0
    %v5734 = vpop.f32.mrf.mxu0
    %v5735 = vpop.f32.mrf.mxu0
    %5736 = vdwg.mxu0
    %v5737 = vadd.f32 %v5642, %v5724
    %v5738 = vadd.f32 %v5643, %v5727
    %v5739 = vadd.f32 %v5644, %v5732
    %v5741 = vlaneseq
    %v5742 = vshrl.u32 %v5741, 7
    %v5743 = vsub.s32 0, %v5742
    %v5744 = vrot.slane %v4890, %v5743
    %v5746 = vmul.f32 %v5737, %v5744
    %v5747 = vmul.f32 %v5738, %v5744
    %v5748 = vmul.f32 %v5739, %v5744
    %v5750 = vlaneseq
    %v5751 = vshrl.u32 %v5750, 7
    %v5752 = vsub.s32 0, %v5751
    %v5753 = vrot.slane %v4891, %v5752
    %v5755 = vadd.f32 %v5746, %v5753
    %v5756 = vadd.f32 %v5747, %v5753
    %v5757 = vadd.f32 %v5748, %v5753
    %v5758 = vmax.f32 %v5755, 0.0
    %v5759 = vmax.f32 %v5756, 0.0
    %v5760 = vmax.f32 %v5757, 0.0
    %5761 = vst.msk [vmem:[#allocation5] sm:$0xff] %vm52, %v5758
    %5762 = vst.msk [vmem:[#allocation5 + $0x8] sm:$0xff] %vm52, %v5759
    %5763 = vst.msk [vmem:[#allocation5 + $0x10] sm:$0xff] %vm52, %v5760
    %v5764 = vld [vmem:[#allocation5] sm:$0x1]
    %v5765 = vld [vmem:[#allocation5 + $0x1] sm:$0x1]
    %v5766 = vld [vmem:[#allocation5 + $0x4] sm:$0x1]
    %v5767 = vld [vmem:[#allocation5 + $0x5] sm:$0x1]
    %v5768 = vmax.f32 %v5764, %v5765
    %v5769 = vmax.f32 %v5766, %v5767
    %v5770 = vmax.f32 %v5768, %v5769
    %vm5771 = vcmask 516096
    %5772 = vst.msk [vmem:[#allocation6] sm:$0x1] %vm5771, %v5770
    %v5773 = vld [vmem:[#allocation5 + $0x10] sm:$0x1]
    %v5774 = vld [vmem:[#allocation5 + $0x11] sm:$0x1]
    %v5775 = vld [vmem:[#allocation5 + $0x14] sm:$0x1]
    %v5776 = vld [vmem:[#allocation5 + $0x15] sm:$0x1]
    %v5777 = vmax.f32 %v5773, %v5774
    %v5778 = vmax.f32 %v5775, %v5776
    %v5779 = vmax.f32 %v5777, %v5778
    %5780 = vst.msk [vmem:[#allocation6 + $0x1] sm:$0x1] %vm5771, %v5779
    %v5781 = vld [vmem:[#allocation6] sm:$0x3]
    %v5782 = vpack.c.bf16 %v5781, %v5781
    %v5783 = vld [vmem:[%s13] sm:$0xf]
    %v5784 = vld [vmem:[%s13 + $0x4] sm:$0xf]
    %v5785 = vld [vmem:[%s13 + $0x8] sm:$0xf]
    %v5786 = vld [vmem:[%s13 + $0xc] sm:$0xf]
    %v5787 = vld [vmem:[%s13 + $0x10] sm:$0xf]
    %v5788 = vld [vmem:[%s13 + $0x14] sm:$0xf]
    %v5789 = vld [vmem:[%s13 + $0x18] sm:$0xf]
    %v5790 = vld [vmem:[%s13 + $0x1c] sm:$0xf]
    %v5791 = vld [vmem:[%s14] sm:$0x1]
    %v5793 = vlaneseq
    %v5794 = vshrl.u32 %v5793, 7
    %v5795 = vsub.s32 0, %v5794
    %v5796 = vrot.slane %v5791, %v5795
    %v5806 = vunpack.c.l.b16 %v5783
    %v5807 = vunpack.c.l.b16 %v5784
    %v5808 = vunpack.c.l.b16 %v5785
    %v5809 = vunpack.c.l.b16 %v5786
    %v5810 = vunpack.c.l.b16 %v5787
    %v5811 = vunpack.c.l.b16 %v5788
    %v5812 = vunpack.c.l.b16 %v5789
    %v5813 = vunpack.c.l.b16 %v5790
    %v5814 = vpack.c.b16 %v5807, %v5806
    %v5815 = vpack.c.b16 %v5809, %v5808
    %v5816 = vpack.c.b16 %v5811, %v5810
    %v5817 = vpack.c.b16 %v5813, %v5812
    %v5823 = vsel %vm52, %v5782, 0
    %5825 = vmatprep.subr.bf16.mxu0 0
    %5826 = vmatpush1.bf16.msra.mxu0 0
    %5827 = vmatprep.subr.bf16.mxu0 0
    %5828 = vmatpush1.bf16.msra.mxu0 0
    %5829 = vmatprep.subr.bf16.mxu0 0
    %5830 = vmatpush1.bf16.msra.mxu0 0
    %5831 = vmatprep.subr.bf16.mxu0 0
    %5832 = vmatpush1.bf16.msra.mxu0 0
    %5833 = vmatprep.subr.bf16.mxu0 0
    %5834 = vmatpush1.bf16.msra.mxu0 %v5817
    %5835 = vmatprep.subr.bf16.mxu0 0
    %5836 = vmatpush1.bf16.msra.mxu0 %v5816
    %5837 = vmatprep.subr.bf16.mxu0 0
    %5838 = vmatpush1.bf16.msra.mxu0 %v5815
    %5839 = vmatprep.subr.bf16.mxu0 0
    %5840 = vmatpush1.bf16.msra.mxu0 %v5814
    %5841 = vmatprep.subr.bf16.mxu0 0
    %5842 = vmatpush2.bf16.msra.mxu0 0
    %5843 = vmatprep.subr.bf16.mxu0 0
    %5844 = vmatpush2.bf16.msra.mxu0 0
    %5845 = vmatprep.subr.bf16.mxu0 0
    %5846 = vmatpush2.bf16.msra.mxu0 0
    %5847 = vmatprep.subr.bf16.mxu0 0
    %5848 = vmatpush2.bf16.msra.mxu0 0
    %5849 = vmatprep.subr.bf16.mxu0 0
    %5850 = vmatpush2.bf16.msra.mxu0 0
    %5851 = vmatprep.subr.bf16.mxu0 0
    %5852 = vmatpush2.bf16.msra.mxu0 0
    %5853 = vmatprep.subr.bf16.mxu0 0
    %5854 = vmatpush2.bf16.msra.mxu0 0
    %5855 = vmatprep.subr.bf16.mxu0 0
    %5856 = vmatpush2.bf16.msra.mxu0 0
    %5857 = vmatprep.mubr.bf16.mxu0 0
    %5858 = vmatmul.mubr.bf16.gmra.mxu0 %v5823
    %v5859 = vpop.f32.mrf.mxu0
    %v5860 = vadd.f32 %v5796, %v5859
    %v5861 = vpop.f32.mrf.mxu0
    %v5862 = vpop.f32.mrf.mxu0
    %v5863 = vpop.f32.mrf.mxu0
    %5864 = vdwg.mxu0
    %5865 = vst [vmem:[#allocation7] sm:$0x3] %v5860
    // Predicated region
    $region62: #{simpleshot_forward.1} parent=1 // pred_check
      _
    $region63: #{simpleshot_forward.1} parent=1 // pred_check_branch
      %5867 = sbr.rel (0) target = $region65
    $region64: #{simpleshot_forward.1} parent=1 // pred_region
      %s5869 = ssub.s32 32, 32
      %5870 = vsyncadd [#allocation8], %s5869
      %s5872 = sshll.u32 [#allocation7], 4
      %s5873 = int_to_ptr.vmem [resolvable:$true] %s5872
      %5875 = dma.vmem_to_hbm [thread:$0]  %s5873, 32, %s15, [#allocation8]
    $region65: #{simpleshot_forward.1} parent=1 // pred_fallthru
      _
    // Predicated region
    $region66: #{simpleshot_forward.1} parent=1 // pred_check
      _
    $region67: #{simpleshot_forward.1} parent=1 // pred_check_branch
      %5877 = sbr.rel (0) target = $region69
    $region68: #{simpleshot_forward.1} parent=1 // pred_region
      %5878 = dma.done [#allocation8], 32
    $region69: #{simpleshot_forward.1} parent=1 // pred_fallthru
      _
    %5879 = vsyncpa [#allocation8], 1

</llo_original>
